<compile_context>
chip_gen: v7x
topology: tpu7x:2x2x1
jax: 0.10.0
libtpu: 0.0.40
codegen_flags: <defaults>
</compile_context>

<pallas_src>
import functools

import jax
import jax.numpy as jnp
from jax.experimental import pallas as pl
from jax.experimental.pallas import tpu as pltpu

SCALE = 4
PAD = 2                      # max conv half-width (k=5 -> pad 2; k=3 uses a subset)
F32 = jnp.float32
BF16 = jnp.bfloat16


def _softplus(x):
    # stable softplus without relying on log1p lowering
    return jnp.maximum(x, 0.0) + jnp.log(1.0 + jnp.exp(-jnp.abs(x)))


# -----------------------------------------------------------------------------
# The fused kernel
# -----------------------------------------------------------------------------
def _generator_kernel(
    # inputs
    mask_ref, xs2d_ref, r_ref, eps_ref,
    w_down_ref,
    w_prior_ref, b_prior_ref, w_post_ref, b_post_ref,
    w_inf_ru_ref, b_inf_ru_ref, w_inf_s_ref, b_inf_s_ref,
    w_gen_ru_ref, b_gen_ru_ref, w_gen_s_ref, b_gen_s_ref,
    w_up_ref, w_obs_ref, b_obs_ref,
    # outputs
    xmu_ref, kl_ref,
    # scratch (persist across the L grid steps of one image)
    hid_i, hid_g, xds_buf, z_buf, rs_buf, u_buf,
    *, rows, margin, wpad, h_dim, z_dim):
    l = pl.program_id(1)
    last = pl.num_programs(1) - 1
    mask = mask_ref[...]                     # (rows, 1): 1 at interior, 0 at pad

    def patches(srcs, k):
        """im2col from margined flat buffers -> one (rows, k*k*sum(C)) bf16 slab.

        Row i of the slab is the flattened padded-grid position i; the tap
        (kh, kw) contribution is a static row-shifted slice of each source, so
        the whole conv becomes a single deep-contraction matmul."""
        pk = (k - 1) // 2
        cols = []
        for kh in range(k):
            for kw in range(k):
                lo = margin + (kh - pk) * wpad + (kw - pk)
                for s in srcs:
                    cols.append(s[lo:lo + rows, :])
        return jnp.concatenate(cols, axis=-1).astype(BF16)

    def mm(lhs_bf16, w_ref, b_ref=None):
        acc = jnp.dot(lhs_bf16, w_ref[...], preferred_element_type=F32)
        if b_ref is not None:
            acc = acc + b_ref[...]
        return acc

    # ---- per-image init (grid order is l-innermost, so this runs once per b)
    @pl.when(l == 0)
    def _init():
        hid_i[...] = jnp.zeros_like(hid_i)
        hid_g[...] = jnp.zeros_like(hid_g)
        xds_buf[...] = jnp.zeros_like(xds_buf)
        z_buf[...] = jnp.zeros_like(z_buf)
        rs_buf[...] = jnp.zeros_like(rs_buf)
        u_buf[...] = jnp.zeros_like(u_buf)
        kl_ref[...] = jnp.zeros_like(kl_ref)
        # stride-4 downsample conv == space-to-depth matmul (once per image)
        xd = mm(xs2d_ref[...].astype(BF16), w_down_ref)
        xds_buf[margin:margin + rows, :] = xd * mask

    # ---- prior density: k=5 conv of hidden_g, softplus scale
    pri = mm(patches([hid_g], 5), w_prior_ref, b_prior_ref)
    p_mu = pri[:, :z_dim]
    p_sigma = _softplus(pri[:, z_dim:])

    # ---- inference ConvGRU: reset+update fused into one matmul (Cout = 2h)
    cat1_i = patches([hid_i, hid_g, xds_buf, r_ref], 3)     # [state | input]
    ru_i = jax.nn.sigmoid(mm(cat1_i, w_inf_ru_ref, b_inf_ru_ref))
    h_i = hid_i[margin:margin + rows, :]
    rs_buf[margin:margin + rows, :] = ru_i[:, :h_dim] * h_i
    cand_i = jnp.tanh(mm(patches([rs_buf, hid_g, xds_buf, r_ref], 3),
                         w_inf_s_ref, b_inf_s_ref))
    upd_i = ru_i[:, h_dim:]
    h_i_new = ((1.0 - upd_i) * h_i + upd_i * cand_i) * mask
    hid_i[margin:margin + rows, :] = h_i_new

    # ---- posterior density + reparameterized sample
    post = mm(patches([hid_i], 5), w_post_ref, b_post_ref)
    q_mu = post[:, :z_dim]
    q_sigma = _softplus(post[:, z_dim:])
    z = (q_mu + q_sigma * eps_ref[...]) * mask
    z_buf[margin:margin + rows, :] = z

    # ---- generator ConvGRU
    cat1_g = patches([hid_g, z_buf, r_ref], 3)
    ru_g = jax.nn.sigmoid(mm(cat1_g, w_gen_ru_ref, b_gen_ru_ref))
    h_g = hid_g[margin:margin + rows, :]
    rs_buf[margin:margin + rows, :] = ru_g[:, :h_dim] * h_g
    cand_g = jnp.tanh(mm(patches([rs_buf, z_buf, r_ref], 3),
                         w_gen_s_ref, b_gen_s_ref))
    upd_g = ru_g[:, h_dim:]
    h_g_new = ((1.0 - upd_g) * h_g + upd_g * cand_g) * mask
    hid_g[margin:margin + rows, :] = h_g_new

    # ---- ConvTranspose2d(k=4, s=4) upsample == matmul into a depth-to-space slab
    u_buf[...] += mm(h_g_new.astype(BF16), w_up_ref)

    # ---- KL(Normal(q) || Normal(p)), accumulated over refinements
    kl_ref[...] += (jnp.log(p_sigma) - jnp.log(q_sigma)
                    + (q_sigma * q_sigma + (q_mu - p_mu) ** 2)
                    / (2.0 * p_sigma * p_sigma) - 0.5)

    # ---- observation density (1x1 conv, block-diag over sub-pixels) + sigmoid
    @pl.when(l == last)
    def _obs():
        xmu_ref[...] = jax.nn.sigmoid(
            mm(u_buf[...].astype(BF16), w_obs_ref, b_obs_ref))


# -----------------------------------------------------------------------------
# Weight preparation (torch layouts -> matmul matrices)
# -----------------------------------------------------------------------------
def _conv_matrix(w_pt):
    """(Cout, Cin, K, K) torch conv weight -> (K*K*Cin, Cout), tap-major rows."""
    cout, cin, k, _ = w_pt.shape
    return jnp.transpose(w_pt, (2, 3, 1, 0)).reshape(k * k * cin, cout)


def prepare_params(p, *, x_dim, h_dim):
    s2 = SCALE * SCALE

    def gru(g):
        w_ru = jnp.concatenate([_conv_matrix(g["w_r"]), _conv_matrix(g["w_u"])],
                               axis=1)
        b_ru = jnp.concatenate([g["b_r"], g["b_u"]])
        return (w_ru.astype(BF16), b_ru.reshape(1, -1).astype(F32),
                _conv_matrix(g["w_s"]).astype(BF16),
                g["b_s"].reshape(1, -1).astype(F32))

    ops = {
        "w_down": _conv_matrix(p["down_w"]).astype(BF16),          # (16*x, x)
        "w_prior": _conv_matrix(p["prior_w"]).astype(BF16),
        "b_prior": p["prior_b"].reshape(1, -1).astype(F32),
        "w_post": _conv_matrix(p["post_w"]).astype(BF16),
        "b_post": p["post_b"].reshape(1, -1).astype(F32),
    }
    (ops["w_inf_ru"], ops["b_inf_ru"],
     ops["w_inf_s"], ops["b_inf_s"]) = gru(p["inference"])
    (ops["w_gen_ru"], ops["b_gen_ru"],
     ops["w_gen_s"], ops["b_gen_s"]) = gru(p["generator"])
    # ConvTranspose2d(h, h, 4, 4): weight (Cin, Cout, 4, 4) -> (h, 16*h)
    ops["w_up"] = jnp.transpose(p["up_w"], (0, 2, 3, 1)).reshape(
        h_dim, s2 * h_dim).astype(BF16)
    # 1x1 observation conv applied per sub-pixel of the flat u slab: block-diag
    w_obs1 = p["obs_w"].reshape(x_dim, h_dim).T                    # (h, x)
    ops["w_obs"] = jnp.kron(jnp.eye(s2, dtype=F32), w_obs1).astype(BF16)
    ops["b_obs"] = jnp.tile(p["obs_b"], s2).reshape(1, -1).astype(F32)
    return ops


_WEIGHT_ORDER = ["w_down", "w_prior", "b_prior", "w_post", "b_post",
                 "w_inf_ru", "b_inf_ru", "w_inf_s", "b_inf_s",
                 "w_gen_ru", "b_gen_ru", "w_gen_s", "b_gen_s",
                 "w_up", "w_obs", "b_obs"]


# -----------------------------------------------------------------------------
# Forward wrapper
# -----------------------------------------------------------------------------
def generator_forward(params, x_nchw, r_nchw, key, *, z_dim, h_dim, L):
    B, x_dim, H, W = x_nchw.shape
    r_dim = r_nchw.shape[1]
    Hs, Ws = H // SCALE, W // SCALE
    hp, wp = Hs + 2 * PAD, Ws + 2 * PAD
    rows = hp * wp
    margin = ((2 * wp + 2) + 7) // 8 * 8       # >= max tap row shift, 8-aligned
    s2 = SCALE * SCALE

    x = jnp.transpose(x_nchw, (0, 2, 3, 1)).astype(F32)   # NHWC
    r = jnp.transpose(r_nchw, (0, 2, 3, 1)).astype(F32)

    # space-to-depth x laid out on the zero-padded (hp, wp) grid, flattened
    xs2d = x.reshape(B, Hs, SCALE, Ws, SCALE, x_dim).transpose(0, 1, 3, 2, 4, 5)
    xs2d = xs2d.reshape(B, Hs, Ws, s2 * x_dim)
    xs2d = jnp.pad(xs2d, ((0, 0), (PAD, PAD), (PAD, PAD), (0, 0)))
    xs2d = xs2d.reshape(B, rows, s2 * x_dim)

    # representation r on the padded grid + zero row margins for tap slicing
    r_flat = jnp.pad(r, ((0, 0), (PAD, PAD), (PAD, PAD), (0, 0)))
    r_flat = r_flat.reshape(B, rows, r_dim)
    r_m = jnp.pad(r_flat, ((0, 0), (margin, margin), (0, 0)))

    mask = jnp.pad(jnp.ones((Hs, Ws), F32),
                   ((PAD, PAD), (PAD, PAD))).reshape(rows, 1)

    # pre-sampled N(0,1) noise for the posterior rsample (one slab per step)
    eps = jax.random.normal(key, (B, L, rows, z_dim), F32)

    ops = prepare_params(params, x_dim=x_dim, h_dim=h_dim)
    weights = [ops[n] for n in _WEIGHT_ORDER]

    def whole(arr):
        n = len(arr.shape)
        return pl.BlockSpec(arr.shape, lambda b, l, _n=n: (0,) * _n)

    in_specs = [
        pl.BlockSpec((rows, 1), lambda b, l: (0, 0)),                       # mask
        pl.BlockSpec((None, rows, s2 * x_dim), lambda b, l: (b, 0, 0)),     # xs2d
        pl.BlockSpec((None, rows + 2 * margin, r_dim),
                     lambda b, l: (b, 0, 0)),                               # r
        pl.BlockSpec((None, None, rows, z_dim),
                     lambda b, l: (b, l, 0, 0)),                            # eps
    ] + [whole(w) for w in weights]

    out_specs = [
        pl.BlockSpec((None, rows, s2 * x_dim), lambda b, l: (b, 0, 0)),     # x_mu
        pl.BlockSpec((None, rows, z_dim), lambda b, l: (b, 0, 0)),          # kl
    ]
    out_shape = [
        jax.ShapeDtypeStruct((B, rows, s2 * x_dim), F32),
        jax.ShapeDtypeStruct((B, rows, z_dim), F32),
    ]
    scratch = [
        pltpu.VMEM((rows + 2 * margin, h_dim), F32),   # hidden_i
        pltpu.VMEM((rows + 2 * margin, h_dim), F32),   # hidden_g
        pltpu.VMEM((rows + 2 * margin, x_dim), F32),   # downsampled x
        pltpu.VMEM((rows + 2 * margin, z_dim), F32),   # latent sample z
        pltpu.VMEM((rows + 2 * margin, h_dim), F32),   # reset*state (shared)
        pltpu.VMEM((rows, s2 * h_dim), F32),           # u accumulator (flat)
    ]

    kernel = functools.partial(_generator_kernel, rows=rows, margin=margin,
                               wpad=wp, h_dim=h_dim, z_dim=z_dim)
    xmu_flat, kl_flat = pl.pallas_call(
        kernel,
        out_shape=out_shape,
        grid_spec=pltpu.PrefetchScalarGridSpec(
            num_scalar_prefetch=0,
            grid=(B, L),
            in_specs=in_specs,
            out_specs=out_specs,
            scratch_shapes=scratch),
        compiler_params=pltpu.CompilerParams(
            dimension_semantics=("parallel", "arbitrary")),
    )(mask, xs2d, r_m, eps, *weights)

    # flat slabs -> interior pixels -> NCHW
    xm = xmu_flat.reshape(B, hp, wp, SCALE, SCALE, x_dim)
    xm = xm[:, PAD:PAD + Hs, PAD:PAD + Ws]
    xm = xm.transpose(0, 1, 3, 2, 4, 5).reshape(B, H, W, x_dim)
    kl = kl_flat.reshape(B, hp, wp, z_dim)[:, PAD:PAD + Hs, PAD:PAD + Ws]
    return jnp.transpose(xm, (0, 3, 1, 2)), jnp.transpose(kl, (0, 3, 1, 2))


# -----------------------------------------------------------------------------
# Deterministic synthetic parameters (PyTorch weight layouts)
# -----------------------------------------------------------------------------
def init_params(key, *, x_dim, r_dim, z_dim, h_dim):
    def conv_w(k, cout, cin, ksz):
        return 0.05 * jax.random.normal(k, (cout, cin, ksz, ksz), F32)

    def bias(k, cout):
        return 0.05 * jax.random.normal(k, (cout,), F32)

    def gru(k, cin_input, cout, ksz=3):
        cin = cin_input + cout  # ConvGRUCell: in_channels += out_channels
        ks = jax.random.split(k, 6)
        return dict(w_r=conv_w(ks[0], cout, cin, ksz), b_r=bias(ks[1], cout),
                    w_u=conv_w(ks[2], cout, cin, ksz), b_u=bias(ks[3], cout),
                    w_s=conv_w(ks[4], cout, cin, ksz), b_s=bias(ks[5], cout))

    ks = jax.random.split(key, 10)
    return dict(
        inference=gru(ks[0], r_dim + h_dim + x_dim, h_dim),
        generator=gru(ks[1], r_dim + z_dim, h_dim),
        post_w=conv_w(ks[2], 2 * z_dim, h_dim, 5), post_b=bias(ks[3], 2 * z_dim),
        prior_w=conv_w(ks[4], 2 * z_dim, h_dim, 5), prior_b=bias(ks[5], 2 * z_dim),
        obs_w=conv_w(ks[6], x_dim, h_dim, 1), obs_b=bias(ks[7], x_dim),
        up_w=0.05 * jax.random.normal(ks[8], (h_dim, h_dim, SCALE, SCALE), F32),
        down_w=conv_w(ks[9], x_dim, x_dim, SCALE),
    )


# -----------------------------------------------------------------------------
if __name__ == "__main__":
    key = jax.random.PRNGKey(0)
    k_param, k_x, k_r, k_z = jax.random.split(key, 4)

    B, x_dim, H, W = 2, 3, 16, 16
    r_dim, z_dim, h_dim, L = 8, 8, 16, 2

    params = init_params(k_param, x_dim=x_dim, r_dim=r_dim, z_dim=z_dim,
                         h_dim=h_dim)
    x = jax.random.normal(k_x, (B, x_dim, H, W), F32)
    r = jax.random.normal(k_r, (B, r_dim, H // SCALE, W // SCALE), F32)

    fwd = jax.jit(functools.partial(generator_forward,
                                    z_dim=z_dim, h_dim=h_dim, L=L))
    x_mu, kl = fwd(params, x, r, k_z)
    jax.block_until_ready((x_mu, kl))

    assert x_mu.shape == (B, x_dim, H, W)
    assert kl.shape == (B, z_dim, H // SCALE, W // SCALE)
    assert bool(jnp.all(jnp.isfinite(x_mu))) and bool(jnp.all(jnp.isfinite(kl)))
    assert bool(jnp.all((x_mu >= 0.0) & (x_mu <= 1.0)))
    print("KERNEL_OK")
</pallas_src>

<mosaic_0001>
module attributes {stable_mosaic.version = 11 : i64} {
  func.func @_generator_kernel(%arg0: i32, %arg1: i32, %arg2: memref<64x1xf32, #tpu.memory_space<vmem>>, %arg3: memref<1x64x48xf32, #tpu.memory_space<vmem>>, %arg4: memref<1x112x8xf32, #tpu.memory_space<vmem>>, %arg5: memref<1x1x64x8xf32, #tpu.memory_space<vmem>>, %arg6: memref<48x3xbf16, #tpu.memory_space<vmem>>, %arg7: memref<400x16xbf16, #tpu.memory_space<vmem>>, %arg8: memref<1x16xf32, #tpu.memory_space<vmem>>, %arg9: memref<400x16xbf16, #tpu.memory_space<vmem>>, %arg10: memref<1x16xf32, #tpu.memory_space<vmem>>, %arg11: memref<387x32xbf16, #tpu.memory_space<vmem>>, %arg12: memref<1x32xf32, #tpu.memory_space<vmem>>, %arg13: memref<387x16xbf16, #tpu.memory_space<vmem>>, %arg14: memref<1x16xf32, #tpu.memory_space<vmem>>, %arg15: memref<288x32xbf16, #tpu.memory_space<vmem>>, %arg16: memref<1x32xf32, #tpu.memory_space<vmem>>, %arg17: memref<288x16xbf16, #tpu.memory_space<vmem>>, %arg18: memref<1x16xf32, #tpu.memory_space<vmem>>, %arg19: memref<16x256xbf16, #tpu.memory_space<vmem>>, %arg20: memref<256x48xbf16, #tpu.memory_space<vmem>>, %arg21: memref<1x48xf32, #tpu.memory_space<vmem>>, %arg22: memref<1x64x48xf32, #tpu.memory_space<vmem>>, %arg23: memref<1x64x8xf32, #tpu.memory_space<vmem>>, %arg24: memref<112x16xf32, #tpu.memory_space<vmem>>, %arg25: memref<112x16xf32, #tpu.memory_space<vmem>>, %arg26: memref<112x3xf32, #tpu.memory_space<vmem>>, %arg27: memref<112x8xf32, #tpu.memory_space<vmem>>, %arg28: memref<112x16xf32, #tpu.memory_space<vmem>>, %arg29: memref<64x256xf32, #tpu.memory_space<vmem>>) attributes {dimension_semantics = [#tpu.dimension_semantics<parallel>, #tpu.dimension_semantics<arbitrary>], iteration_bounds = array<i64: 2, 2>, scalar_prefetch = 0 : i64, scratch_operands = 6 : i64, tpu.core_type = #tpu.core_type<tc>, window_params = [{pipeline_mode = #tpu.pipeline_mode<synchronous>, transform_indices = @transform_0, window_bounds = array<i64: 64, 1>}, {transform_indices = @transform_1, window_bounds = array<i64: 1, 64, 48>}, {transform_indices = @transform_2, window_bounds = array<i64: 1, 112, 8>}, {transform_indices = @transform_3, window_bounds = array<i64: 1, 1, 64, 8>}, {pipeline_mode = #tpu.pipeline_mode<synchronous>, transform_indices = @transform_4, window_bounds = array<i64: 48, 3>}, {pipeline_mode = #tpu.pipeline_mode<synchronous>, transform_indices = @transform_5, window_bounds = array<i64: 400, 16>}, {pipeline_mode = #tpu.pipeline_mode<synchronous>, transform_indices = @transform_6, window_bounds = array<i64: 1, 16>}, {pipeline_mode = #tpu.pipeline_mode<synchronous>, transform_indices = @transform_7, window_bounds = array<i64: 400, 16>}, {pipeline_mode = #tpu.pipeline_mode<synchronous>, transform_indices = @transform_8, window_bounds = array<i64: 1, 16>}, {pipeline_mode = #tpu.pipeline_mode<synchronous>, transform_indices = @transform_9, window_bounds = array<i64: 387, 32>}, {pipeline_mode = #tpu.pipeline_mode<synchronous>, transform_indices = @transform_10, window_bounds = array<i64: 1, 32>}, {pipeline_mode = #tpu.pipeline_mode<synchronous>, transform_indices = @transform_11, window_bounds = array<i64: 387, 16>}, {pipeline_mode = #tpu.pipeline_mode<synchronous>, transform_indices = @transform_12, window_bounds = array<i64: 1, 16>}, {pipeline_mode = #tpu.pipeline_mode<synchronous>, transform_indices = @transform_13, window_bounds = array<i64: 288, 32>}, {pipeline_mode = #tpu.pipeline_mode<synchronous>, transform_indices = @transform_14, window_bounds = array<i64: 1, 32>}, {pipeline_mode = #tpu.pipeline_mode<synchronous>, transform_indices = @transform_15, window_bounds = array<i64: 288, 16>}, {pipeline_mode = #tpu.pipeline_mode<synchronous>, transform_indices = @transform_16, window_bounds = array<i64: 1, 16>}, {pipeline_mode = #tpu.pipeline_mode<synchronous>, transform_indices = @transform_17, window_bounds = array<i64: 16, 256>}, {pipeline_mode = #tpu.pipeline_mode<synchronous>, transform_indices = @transform_18, window_bounds = array<i64: 256, 48>}, {pipeline_mode = #tpu.pipeline_mode<synchronous>, transform_indices = @transform_19, window_bounds = array<i64: 1, 48>}, {transform_indices = @transform_20, window_bounds = array<i64: 1, 64, 48>}, {transform_indices = @transform_21, window_bounds = array<i64: 1, 64, 8>}]} {
    %c0 = arith.constant 0 : index
    %c0_0 = arith.constant 0 : index
    %0 = vector.load %arg2[%c0, %c0_0] : memref<64x1xf32, #tpu.memory_space<vmem>>, vector<64x1xf32>
    %c0_i32 = arith.constant 0 : i32
    %1 = arith.cmpi eq, %arg1, %c0_i32 : i32
    %2 = arith.extui %1 : i1 to i32
    %c0_i32_1 = arith.constant 0 : i32
    %3 = arith.cmpi ne, %2, %c0_i32_1 : i32
    scf.if %3 {
      %cst_438 = arith.constant 0.000000e+00 : f32
      %370 = vector.broadcast %cst_438 : f32 to vector<112x16xf32>
      %c0_439 = arith.constant 0 : index
      %c0_440 = arith.constant 0 : index
      %371 = vector.load %arg24[%c0_439, %c0_440] : memref<112x16xf32, #tpu.memory_space<vmem>>, vector<112x16xf32>
      tpu.vector_store %arg24[%c0_439, %c0_440], %370 {strides = array<i32>} : memref<112x16xf32, #tpu.memory_space<vmem>>, vector<112x16xf32>,
      %cst_441 = arith.constant 0.000000e+00 : f32
      %372 = vector.broadcast %cst_441 : f32 to vector<112x16xf32>
      %c0_442 = arith.constant 0 : index
      %c0_443 = arith.constant 0 : index
      %373 = vector.load %arg25[%c0_442, %c0_443] : memref<112x16xf32, #tpu.memory_space<vmem>>, vector<112x16xf32>
      tpu.vector_store %arg25[%c0_442, %c0_443], %372 {strides = array<i32>} : memref<112x16xf32, #tpu.memory_space<vmem>>, vector<112x16xf32>,
      %cst_444 = arith.constant 0.000000e+00 : f32
      %374 = vector.broadcast %cst_444 : f32 to vector<112x3xf32>
      %c0_445 = arith.constant 0 : index
      %c0_446 = arith.constant 0 : index
      %375 = vector.load %arg26[%c0_445, %c0_446] : memref<112x3xf32, #tpu.memory_space<vmem>>, vector<112x3xf32>
      tpu.vector_store %arg26[%c0_445, %c0_446], %374 {strides = array<i32>} : memref<112x3xf32, #tpu.memory_space<vmem>>, vector<112x3xf32>,
      %cst_447 = arith.constant 0.000000e+00 : f32
      %376 = vector.broadcast %cst_447 : f32 to vector<112x8xf32>
      %c0_448 = arith.constant 0 : index
      %c0_449 = arith.constant 0 : index
      %377 = vector.load %arg27[%c0_448, %c0_449] : memref<112x8xf32, #tpu.memory_space<vmem>>, vector<112x8xf32>
      tpu.vector_store %arg27[%c0_448, %c0_449], %376 {strides = array<i32>} : memref<112x8xf32, #tpu.memory_space<vmem>>, vector<112x8xf32>,
      %cst_450 = arith.constant 0.000000e+00 : f32
      %378 = vector.broadcast %cst_450 : f32 to vector<112x16xf32>
      %c0_451 = arith.constant 0 : index
      %c0_452 = arith.constant 0 : index
      %379 = vector.load %arg28[%c0_451, %c0_452] : memref<112x16xf32, #tpu.memory_space<vmem>>, vector<112x16xf32>
      tpu.vector_store %arg28[%c0_451, %c0_452], %378 {strides = array<i32>} : memref<112x16xf32, #tpu.memory_space<vmem>>, vector<112x16xf32>,
      %cst_453 = arith.constant 0.000000e+00 : f32
      %380 = vector.broadcast %cst_453 : f32 to vector<64x256xf32>
      %c0_454 = arith.constant 0 : index
      %c0_455 = arith.constant 0 : index
      %381 = vector.load %arg29[%c0_454, %c0_455] : memref<64x256xf32, #tpu.memory_space<vmem>>, vector<64x256xf32>
      tpu.vector_store %arg29[%c0_454, %c0_455], %380 {strides = array<i32>} : memref<64x256xf32, #tpu.memory_space<vmem>>, vector<64x256xf32>,
      %cst_456 = arith.constant 0.000000e+00 : f32
      %382 = vector.broadcast %cst_456 : f32 to vector<64x8xf32>
      %c0_457 = arith.constant 0 : index
      %c0_458 = arith.constant 0 : index
      %c0_459 = arith.constant 0 : index
      %383 = vector.load %arg23[%c0_457, %c0_458, %c0_459] : memref<1x64x8xf32, #tpu.memory_space<vmem>>, vector<1x64x8xf32>
      %384 = vector.shape_cast %383 : vector<1x64x8xf32> to vector<64x8xf32>
      %385 = vector.shape_cast %382 : vector<64x8xf32> to vector<1x64x8xf32>
      tpu.vector_store %arg23[%c0_457, %c0_458, %c0_459], %385 {strides = array<i32>} : memref<1x64x8xf32, #tpu.memory_space<vmem>>, vector<1x64x8xf32>,
      %c0_460 = arith.constant 0 : index
      %c0_461 = arith.constant 0 : index
      %c0_462 = arith.constant 0 : index
      %386 = vector.load %arg3[%c0_460, %c0_461, %c0_462] : memref<1x64x48xf32, #tpu.memory_space<vmem>>, vector<1x64x48xf32>
      %387 = vector.shape_cast %386 : vector<1x64x48xf32> to vector<64x48xf32>
      %388 = arith.truncf %387 : vector<64x48xf32> to vector<64x48xbf16>
      %c0_463 = arith.constant 0 : index
      %c0_464 = arith.constant 0 : index
      %389 = vector.load %arg6[%c0_463, %c0_464] : memref<48x3xbf16, #tpu.memory_space<vmem>>, vector<48x3xbf16>
      %cst_465 = arith.constant dense<0.000000e+00> : vector<64x3xf32>
      %390 = tpu.matmul %388, %389, %cst_465 {dimension_numbers = #tpu.dot_dimension_numbers<[1], [0], [0], [1], [0, 0, 1, 1], [], []>} : vector<64x48xbf16>, vector<48x3xbf16>, vector<64x3xf32> -> vector<64x3xf32>
      %391 = vector.broadcast %0 : vector<64x1xf32> to vector<64x3xf32>
      %392 = arith.mulf %390, %391 : vector<64x3xf32>
      %c24_466 = arith.constant 24 : index
      %c0_467 = arith.constant 0 : index
      %393 = vector.load %arg26[%c24_466, %c0_467] : memref<112x3xf32, #tpu.memory_space<vmem>>, vector<64x3xf32>
      tpu.vector_store %arg26[%c24_466, %c0_467], %392 {strides = array<i32>} : memref<112x3xf32, #tpu.memory_space<vmem>>, vector<64x3xf32>,
    } else {
    }
    %c6 = arith.constant 6 : index
    %c0_2 = arith.constant 0 : index
    %4 = vector.load %arg25[%c6, %c0_2] : memref<112x16xf32, #tpu.memory_space<vmem>>, vector<64x16xf32>
    %c7 = arith.constant 7 : index
    %c0_3 = arith.constant 0 : index
    %5 = vector.load %arg25[%c7, %c0_3] : memref<112x16xf32, #tpu.memory_space<vmem>>, vector<64x16xf32>
    %c8 = arith.constant 8 : index
    %c0_4 = arith.constant 0 : index
    %6 = vector.load %arg25[%c8, %c0_4] : memref<112x16xf32, #tpu.memory_space<vmem>>, vector<64x16xf32>
    %c9 = arith.constant 9 : index
    %c0_5 = arith.constant 0 : index
    %7 = vector.load %arg25[%c9, %c0_5] : memref<112x16xf32, #tpu.memory_space<vmem>>, vector<64x16xf32>
    %c10 = arith.constant 10 : index
    %c0_6 = arith.constant 0 : index
    %8 = vector.load %arg25[%c10, %c0_6] : memref<112x16xf32, #tpu.memory_space<vmem>>, vector<64x16xf32>
    %c14 = arith.constant 14 : index
    %c0_7 = arith.constant 0 : index
    %9 = vector.load %arg25[%c14, %c0_7] : memref<112x16xf32, #tpu.memory_space<vmem>>, vector<64x16xf32>
    %c15 = arith.constant 15 : index
    %c0_8 = arith.constant 0 : index
    %10 = vector.load %arg25[%c15, %c0_8] : memref<112x16xf32, #tpu.memory_space<vmem>>, vector<64x16xf32>
    %c16 = arith.constant 16 : index
    %c0_9 = arith.constant 0 : index
    %11 = vector.load %arg25[%c16, %c0_9] : memref<112x16xf32, #tpu.memory_space<vmem>>, vector<64x16xf32>
    %c17 = arith.constant 17 : index
    %c0_10 = arith.constant 0 : index
    %12 = vector.load %arg25[%c17, %c0_10] : memref<112x16xf32, #tpu.memory_space<vmem>>, vector<64x16xf32>
    %c18 = arith.constant 18 : index
    %c0_11 = arith.constant 0 : index
    %13 = vector.load %arg25[%c18, %c0_11] : memref<112x16xf32, #tpu.memory_space<vmem>>, vector<64x16xf32>
    %c22 = arith.constant 22 : index
    %c0_12 = arith.constant 0 : index
    %14 = vector.load %arg25[%c22, %c0_12] : memref<112x16xf32, #tpu.memory_space<vmem>>, vector<64x16xf32>
    %c23 = arith.constant 23 : index
    %c0_13 = arith.constant 0 : index
    %15 = vector.load %arg25[%c23, %c0_13] : memref<112x16xf32, #tpu.memory_space<vmem>>, vector<64x16xf32>
    %c24 = arith.constant 24 : index
    %c0_14 = arith.constant 0 : index
    %16 = vector.load %arg25[%c24, %c0_14] : memref<112x16xf32, #tpu.memory_space<vmem>>, vector<64x16xf32>
    %c25 = arith.constant 25 : index
    %c0_15 = arith.constant 0 : index
    %17 = vector.load %arg25[%c25, %c0_15] : memref<112x16xf32, #tpu.memory_space<vmem>>, vector<64x16xf32>
    %c26 = arith.constant 26 : index
    %c0_16 = arith.constant 0 : index
    %18 = vector.load %arg25[%c26, %c0_16] : memref<112x16xf32, #tpu.memory_space<vmem>>, vector<64x16xf32>
    %c30 = arith.constant 30 : index
    %c0_17 = arith.constant 0 : index
    %19 = vector.load %arg25[%c30, %c0_17] : memref<112x16xf32, #tpu.memory_space<vmem>>, vector<64x16xf32>
    %c31 = arith.constant 31 : index
    %c0_18 = arith.constant 0 : index
    %20 = vector.load %arg25[%c31, %c0_18] : memref<112x16xf32, #tpu.memory_space<vmem>>, vector<64x16xf32>
    %c32 = arith.constant 32 : index
    %c0_19 = arith.constant 0 : index
    %21 = vector.load %arg25[%c32, %c0_19] : memref<112x16xf32, #tpu.memory_space<vmem>>, vector<64x16xf32>
    %c33 = arith.constant 33 : index
    %c0_20 = arith.constant 0 : index
    %22 = vector.load %arg25[%c33, %c0_20] : memref<112x16xf32, #tpu.memory_space<vmem>>, vector<64x16xf32>
    %c34 = arith.constant 34 : index
    %c0_21 = arith.constant 0 : index
    %23 = vector.load %arg25[%c34, %c0_21] : memref<112x16xf32, #tpu.memory_space<vmem>>, vector<64x16xf32>
    %c38 = arith.constant 38 : index
    %c0_22 = arith.constant 0 : index
    %24 = vector.load %arg25[%c38, %c0_22] : memref<112x16xf32, #tpu.memory_space<vmem>>, vector<64x16xf32>
    %c39 = arith.constant 39 : index
    %c0_23 = arith.constant 0 : index
    %25 = vector.load %arg25[%c39, %c0_23] : memref<112x16xf32, #tpu.memory_space<vmem>>, vector<64x16xf32>
    %c40 = arith.constant 40 : index
    %c0_24 = arith.constant 0 : index
    %26 = vector.load %arg25[%c40, %c0_24] : memref<112x16xf32, #tpu.memory_space<vmem>>, vector<64x16xf32>
    %c41 = arith.constant 41 : index
    %c0_25 = arith.constant 0 : index
    %27 = vector.load %arg25[%c41, %c0_25] : memref<112x16xf32, #tpu.memory_space<vmem>>, vector<64x16xf32>
    %c42 = arith.constant 42 : index
    %c0_26 = arith.constant 0 : index
    %28 = vector.load %arg25[%c42, %c0_26] : memref<112x16xf32, #tpu.memory_space<vmem>>, vector<64x16xf32>
    %29 = tpu.concatenate %4, %5, %6, %7, %8, %9, %10, %11, %12, %13, %14, %15, %16, %17, %18, %19 in 1 : vector<64x16xf32>, vector<64x16xf32>, vector<64x16xf32>, vector<64x16xf32>, vector<64x16xf32>, vector<64x16xf32>, vector<64x16xf32>, vector<64x16xf32>, vector<64x16xf32>, vector<64x16xf32>, vector<64x16xf32>, vector<64x16xf32>, vector<64x16xf32>, vector<64x16xf32>, vector<64x16xf32>, vector<64x16xf32> -> vector<64x256xf32>
    %30 = tpu.concatenate %20, %21, %22, %23, %24, %25, %26, %27, %28 in 1 : vector<64x16xf32>, vector<64x16xf32>, vector<64x16xf32>, vector<64x16xf32>, vector<64x16xf32>, vector<64x16xf32>, vector<64x16xf32>, vector<64x16xf32>, vector<64x16xf32> -> vector<64x144xf32>
    %31 = tpu.concatenate %29, %30 in 1 : vector<64x256xf32>, vector<64x144xf32> -> vector<64x400xf32>
    %32 = arith.truncf %31 : vector<64x400xf32> to vector<64x400xbf16>
    %c0_27 = arith.constant 0 : index
    %c0_28 = arith.constant 0 : index
    %33 = vector.load %arg7[%c0_27, %c0_28] : memref<400x16xbf16, #tpu.memory_space<vmem>>, vector<400x16xbf16>
    %cst = arith.constant dense<0.000000e+00> : vector<64x16xf32>
    %34 = tpu.matmul %32, %33, %cst {dimension_numbers = #tpu.dot_dimension_numbers<[1], [0], [0], [1], [0, 0, 1, 1], [], []>} : vector<64x400xbf16>, vector<400x16xbf16>, vector<64x16xf32> -> vector<64x16xf32>
    %c0_29 = arith.constant 0 : index
    %c0_30 = arith.constant 0 : index
    %35 = vector.load %arg8[%c0_29, %c0_30] : memref<1x16xf32, #tpu.memory_space<vmem>>, vector<1x16xf32>
    %36 = vector.broadcast %35 : vector<1x16xf32> to vector<64x16xf32>
    %37 = arith.addf %34, %36 : vector<64x16xf32>
    %38 = vector.extract_strided_slice %37 {offsets = [0, 0], sizes = [64, 8], strides = [1, 1]} : vector<64x16xf32> to vector<64x8xf32>
    %39 = vector.extract_strided_slice %37 {offsets = [0, 8], sizes = [64, 8], strides = [1, 1]} : vector<64x16xf32> to vector<64x8xf32>
    %cst_31 = arith.constant 0.000000e+00 : f32
    %40 = vector.broadcast %cst_31 : f32 to vector<64x8xf32>
    %41 = arith.maximumf %39, %40 : vector<64x8xf32>
    %42 = math.absf %39 : vector<64x8xf32>
    %cst_32 = arith.constant 0.000000e+00 : f32
    %43 = vector.broadcast %cst_32 : f32 to vector<64x8xf32>
    %44 = arith.subf %43, %42 : vector<64x8xf32>
    %45 = math.exp %44 : vector<64x8xf32>
    %cst_33 = arith.constant 1.000000e+00 : f32
    %46 = vector.broadcast %cst_33 : f32 to vector<64x8xf32>
    %47 = arith.addf %46, %45 : vector<64x8xf32>
    %48 = math.log %47 : vector<64x8xf32>
    %49 = arith.addf %41, %48 : vector<64x8xf32>
    %c15_34 = arith.constant 15 : index
    %c0_35 = arith.constant 0 : index
    %50 = vector.load %arg24[%c15_34, %c0_35] : memref<112x16xf32, #tpu.memory_space<vmem>>, vector<64x16xf32>
    %c15_36 = arith.constant 15 : index
    %c0_37 = arith.constant 0 : index
    %51 = vector.load %arg25[%c15_36, %c0_37] : memref<112x16xf32, #tpu.memory_space<vmem>>, vector<64x16xf32>
    %c15_38 = arith.constant 15 : index
    %c0_39 = arith.constant 0 : index
    %52 = vector.load %arg26[%c15_38, %c0_39] : memref<112x3xf32, #tpu.memory_space<vmem>>, vector<64x3xf32>
    %c0_40 = arith.constant 0 : index
    %c15_41 = arith.constant 15 : index
    %c0_42 = arith.constant 0 : index
    %53 = vector.load %arg4[%c0_40, %c15_41, %c0_42] : memref<1x112x8xf32, #tpu.memory_space<vmem>>, vector<1x64x8xf32>
    %54 = vector.shape_cast %53 : vector<1x64x8xf32> to vector<64x8xf32>
    %c16_43 = arith.constant 16 : index
    %c0_44 = arith.constant 0 : index
    %55 = vector.load %arg24[%c16_43, %c0_44] : memref<112x16xf32, #tpu.memory_space<vmem>>, vector<64x16xf32>
    %c16_45 = arith.constant 16 : index
    %c0_46 = arith.constant 0 : index
    %56 = vector.load %arg25[%c16_45, %c0_46] : memref<112x16xf32, #tpu.memory_space<vmem>>, vector<64x16xf32>
    %c16_47 = arith.constant 16 : index
    %c0_48 = arith.constant 0 : index
    %57 = vector.load %arg26[%c16_47, %c0_48] : memref<112x3xf32, #tpu.memory_space<vmem>>, vector<64x3xf32>
    %c0_49 = arith.constant 0 : index
    %c16_50 = arith.constant 16 : index
    %c0_51 = arith.constant 0 : index
    %58 = vector.load %arg4[%c0_49, %c16_50, %c0_51] : memref<1x112x8xf32, #tpu.memory_space<vmem>>, vector<1x64x8xf32>
    %59 = vector.shape_cast %58 : vector<1x64x8xf32> to vector<64x8xf32>
    %c17_52 = arith.constant 17 : index
    %c0_53 = arith.constant 0 : index
    %60 = vector.load %arg24[%c17_52, %c0_53] : memref<112x16xf32, #tpu.memory_space<vmem>>, vector<64x16xf32>
    %c17_54 = arith.constant 17 : index
    %c0_55 = arith.constant 0 : index
    %61 = vector.load %arg25[%c17_54, %c0_55] : memref<112x16xf32, #tpu.memory_space<vmem>>, vector<64x16xf32>
    %c17_56 = arith.constant 17 : index
    %c0_57 = arith.constant 0 : index
    %62 = vector.load %arg26[%c17_56, %c0_57] : memref<112x3xf32, #tpu.memory_space<vmem>>, vector<64x3xf32>
    %c0_58 = arith.constant 0 : index
    %c17_59 = arith.constant 17 : index
    %c0_60 = arith.constant 0 : index
    %63 = vector.load %arg4[%c0_58, %c17_59, %c0_60] : memref<1x112x8xf32, #tpu.memory_space<vmem>>, vector<1x64x8xf32>
    %64 = vector.shape_cast %63 : vector<1x64x8xf32> to vector<64x8xf32>
    %c23_61 = arith.constant 23 : index
    %c0_62 = arith.constant 0 : index
    %65 = vector.load %arg24[%c23_61, %c0_62] : memref<112x16xf32, #tpu.memory_space<vmem>>, vector<64x16xf32>
    %c23_63 = arith.constant 23 : index
    %c0_64 = arith.constant 0 : index
    %66 = vector.load %arg25[%c23_63, %c0_64] : memref<112x16xf32, #tpu.memory_space<vmem>>, vector<64x16xf32>
    %c23_65 = arith.constant 23 : index
    %c0_66 = arith.constant 0 : index
    %67 = vector.load %arg26[%c23_65, %c0_66] : memref<112x3xf32, #tpu.memory_space<vmem>>, vector<64x3xf32>
    %c0_67 = arith.constant 0 : index
    %c23_68 = arith.constant 23 : index
    %c0_69 = arith.constant 0 : index
    %68 = vector.load %arg4[%c0_67, %c23_68, %c0_69] : memref<1x112x8xf32, #tpu.memory_space<vmem>>, vector<1x64x8xf32>
    %69 = vector.shape_cast %68 : vector<1x64x8xf32> to vector<64x8xf32>
    %c24_70 = arith.constant 24 : index
    %c0_71 = arith.constant 0 : index
    %70 = vector.load %arg24[%c24_70, %c0_71] : memref<112x16xf32, #tpu.memory_space<vmem>>, vector<64x16xf32>
    %c24_72 = arith.constant 24 : index
    %c0_73 = arith.constant 0 : index
    %71 = vector.load %arg25[%c24_72, %c0_73] : memref<112x16xf32, #tpu.memory_space<vmem>>, vector<64x16xf32>
    %c24_74 = arith.constant 24 : index
    %c0_75 = arith.constant 0 : index
    %72 = vector.load %arg26[%c24_74, %c0_75] : memref<112x3xf32, #tpu.memory_space<vmem>>, vector<64x3xf32>
    %c0_76 = arith.constant 0 : index
    %c24_77 = arith.constant 24 : index
    %c0_78 = arith.constant 0 : index
    %73 = vector.load %arg4[%c0_76, %c24_77, %c0_78] : memref<1x112x8xf32, #tpu.memory_space<vmem>>, vector<1x64x8xf32>
    %74 = vector.shape_cast %73 : vector<1x64x8xf32> to vector<64x8xf32>
    %c25_79 = arith.constant 25 : index
    %c0_80 = arith.constant 0 : index
    %75 = vector.load %arg24[%c25_79, %c0_80] : memref<112x16xf32, #tpu.memory_space<vmem>>, vector<64x16xf32>
    %c25_81 = arith.constant 25 : index
    %c0_82 = arith.constant 0 : index
    %76 = vector.load %arg25[%c25_81, %c0_82] : memref<112x16xf32, #tpu.memory_space<vmem>>, vector<64x16xf32>
    %c25_83 = arith.constant 25 : index
    %c0_84 = arith.constant 0 : index
    %77 = vector.load %arg26[%c25_83, %c0_84] : memref<112x3xf32, #tpu.memory_space<vmem>>, vector<64x3xf32>
    %c0_85 = arith.constant 0 : index
    %c25_86 = arith.constant 25 : index
    %c0_87 = arith.constant 0 : index
    %78 = vector.load %arg4[%c0_85, %c25_86, %c0_87] : memref<1x112x8xf32, #tpu.memory_space<vmem>>, vector<1x64x8xf32>
    %79 = vector.shape_cast %78 : vector<1x64x8xf32> to vector<64x8xf32>
    %c31_88 = arith.constant 31 : index
    %c0_89 = arith.constant 0 : index
    %80 = vector.load %arg24[%c31_88, %c0_89] : memref<112x16xf32, #tpu.memory_space<vmem>>, vector<64x16xf32>
    %c31_90 = arith.constant 31 : index
    %c0_91 = arith.constant 0 : index
    %81 = vector.load %arg25[%c31_90, %c0_91] : memref<112x16xf32, #tpu.memory_space<vmem>>, vector<64x16xf32>
    %c31_92 = arith.constant 31 : index
    %c0_93 = arith.constant 0 : index
    %82 = vector.load %arg26[%c31_92, %c0_93] : memref<112x3xf32, #tpu.memory_space<vmem>>, vector<64x3xf32>
    %c0_94 = arith.constant 0 : index
    %c31_95 = arith.constant 31 : index
    %c0_96 = arith.constant 0 : index
    %83 = vector.load %arg4[%c0_94, %c31_95, %c0_96] : memref<1x112x8xf32, #tpu.memory_space<vmem>>, vector<1x64x8xf32>
    %84 = vector.shape_cast %83 : vector<1x64x8xf32> to vector<64x8xf32>
    %c32_97 = arith.constant 32 : index
    %c0_98 = arith.constant 0 : index
    %85 = vector.load %arg24[%c32_97, %c0_98] : memref<112x16xf32, #tpu.memory_space<vmem>>, vector<64x16xf32>
    %c32_99 = arith.constant 32 : index
    %c0_100 = arith.constant 0 : index
    %86 = vector.load %arg25[%c32_99, %c0_100] : memref<112x16xf32, #tpu.memory_space<vmem>>, vector<64x16xf32>
    %c32_101 = arith.constant 32 : index
    %c0_102 = arith.constant 0 : index
    %87 = vector.load %arg26[%c32_101, %c0_102] : memref<112x3xf32, #tpu.memory_space<vmem>>, vector<64x3xf32>
    %c0_103 = arith.constant 0 : index
    %c32_104 = arith.constant 32 : index
    %c0_105 = arith.constant 0 : index
    %88 = vector.load %arg4[%c0_103, %c32_104, %c0_105] : memref<1x112x8xf32, #tpu.memory_space<vmem>>, vector<1x64x8xf32>
    %89 = vector.shape_cast %88 : vector<1x64x8xf32> to vector<64x8xf32>
    %c33_106 = arith.constant 33 : index
    %c0_107 = arith.constant 0 : index
    %90 = vector.load %arg24[%c33_106, %c0_107] : memref<112x16xf32, #tpu.memory_space<vmem>>, vector<64x16xf32>
    %c33_108 = arith.constant 33 : index
    %c0_109 = arith.constant 0 : index
    %91 = vector.load %arg25[%c33_108, %c0_109] : memref<112x16xf32, #tpu.memory_space<vmem>>, vector<64x16xf32>
    %c33_110 = arith.constant 33 : index
    %c0_111 = arith.constant 0 : index
    %92 = vector.load %arg26[%c33_110, %c0_111] : memref<112x3xf32, #tpu.memory_space<vmem>>, vector<64x3xf32>
    %c0_112 = arith.constant 0 : index
    %c33_113 = arith.constant 33 : index
    %c0_114 = arith.constant 0 : index
    %93 = vector.load %arg4[%c0_112, %c33_113, %c0_114] : memref<1x112x8xf32, #tpu.memory_space<vmem>>, vector<1x64x8xf32>
    %94 = vector.shape_cast %93 : vector<1x64x8xf32> to vector<64x8xf32>
    %95 = tpu.concatenate %50, %51, %52, %54, %55, %56, %57, %59, %60, %61, %62, %64, %65, %66, %67, %69 in 1 : vector<64x16xf32>, vector<64x16xf32>, vector<64x3xf32>, vector<64x8xf32>, vector<64x16xf32>, vector<64x16xf32>, vector<64x3xf32>, vector<64x8xf32>, vector<64x16xf32>, vector<64x16xf32>, vector<64x3xf32>, vector<64x8xf32>, vector<64x16xf32>, vector<64x16xf32>, vector<64x3xf32>, vector<64x8xf32> -> vector<64x172xf32>
    %96 = tpu.concatenate %70, %71, %72, %74, %75, %76, %77, %79, %80, %81, %82, %84, %85, %86, %87, %89 in 1 : vector<64x16xf32>, vector<64x16xf32>, vector<64x3xf32>, vector<64x8xf32>, vector<64x16xf32>, vector<64x16xf32>, vector<64x3xf32>, vector<64x8xf32>, vector<64x16xf32>, vector<64x16xf32>, vector<64x3xf32>, vector<64x8xf32>, vector<64x16xf32>, vector<64x16xf32>, vector<64x3xf32>, vector<64x8xf32> -> vector<64x172xf32>
    %97 = tpu.concatenate %90, %91, %92, %94 in 1 : vector<64x16xf32>, vector<64x16xf32>, vector<64x3xf32>, vector<64x8xf32> -> vector<64x43xf32>
    %98 = tpu.concatenate %95, %96, %97 in 1 : vector<64x172xf32>, vector<64x172xf32>, vector<64x43xf32> -> vector<64x387xf32>
    %99 = arith.truncf %98 : vector<64x387xf32> to vector<64x387xbf16>
    %c0_115 = arith.constant 0 : index
    %c0_116 = arith.constant 0 : index
    %100 = vector.load %arg11[%c0_115, %c0_116] : memref<387x32xbf16, #tpu.memory_space<vmem>>, vector<387x32xbf16>
    %cst_117 = arith.constant dense<0.000000e+00> : vector<64x32xf32>
    %101 = tpu.matmul %99, %100, %cst_117 {dimension_numbers = #tpu.dot_dimension_numbers<[1], [0], [0], [1], [0, 0, 1, 1], [], []>} : vector<64x387xbf16>, vector<387x32xbf16>, vector<64x32xf32> -> vector<64x32xf32>
    %c0_118 = arith.constant 0 : index
    %c0_119 = arith.constant 0 : index
    %102 = vector.load %arg12[%c0_118, %c0_119] : memref<1x32xf32, #tpu.memory_space<vmem>>, vector<1x32xf32>
    %103 = vector.broadcast %102 : vector<1x32xf32> to vector<64x32xf32>
    %104 = arith.addf %101, %103 : vector<64x32xf32>
    %105 = arith.negf %104 : vector<64x32xf32>
    %106 = math.exp %105 : vector<64x32xf32>
    %cst_120 = arith.constant 1.000000e+00 : f32
    %107 = vector.broadcast %cst_120 : f32 to vector<64x32xf32>
    %108 = arith.addf %107, %106 : vector<64x32xf32>
    %109 = arith.divf %107, %108 : vector<64x32xf32>
    %c24_121 = arith.constant 24 : index
    %c0_122 = arith.constant 0 : index
    %110 = vector.load %arg24[%c24_121, %c0_122] : memref<112x16xf32, #tpu.memory_space<vmem>>, vector<64x16xf32>
    %111 = vector.extract_strided_slice %109 {offsets = [0, 0], sizes = [64, 16], strides = [1, 1]} : vector<64x32xf32> to vector<64x16xf32>
    %112 = arith.mulf %111, %110 : vector<64x16xf32>
    %c24_123 = arith.constant 24 : index
    %c0_124 = arith.constant 0 : index
    %113 = vector.load %arg28[%c24_123, %c0_124] : memref<112x16xf32, #tpu.memory_space<vmem>>, vector<64x16xf32>
    tpu.vector_store %arg28[%c24_123, %c0_124], %112 {strides = array<i32>} : memref<112x16xf32, #tpu.memory_space<vmem>>, vector<64x16xf32>,
    %c15_125 = arith.constant 15 : index
    %c0_126 = arith.constant 0 : index
    %114 = vector.load %arg28[%c15_125, %c0_126] : memref<112x16xf32, #tpu.memory_space<vmem>>, vector<64x16xf32>
    %c15_127 = arith.constant 15 : index
    %c0_128 = arith.constant 0 : index
    %115 = vector.load %arg25[%c15_127, %c0_128] : memref<112x16xf32, #tpu.memory_space<vmem>>, vector<64x16xf32>
    %c15_129 = arith.constant 15 : index
    %c0_130 = arith.constant 0 : index
    %116 = vector.load %arg26[%c15_129, %c0_130] : memref<112x3xf32, #tpu.memory_space<vmem>>, vector<64x3xf32>
    %c0_131 = arith.constant 0 : index
    %c15_132 = arith.constant 15 : index
    %c0_133 = arith.constant 0 : index
    %117 = vector.load %arg4[%c0_131, %c15_132, %c0_133] : memref<1x112x8xf32, #tpu.memory_space<vmem>>, vector<1x64x8xf32>
    %118 = vector.shape_cast %117 : vector<1x64x8xf32> to vector<64x8xf32>
    %c16_134 = arith.constant 16 : index
    %c0_135 = arith.constant 0 : index
    %119 = vector.load %arg28[%c16_134, %c0_135] : memref<112x16xf32, #tpu.memory_space<vmem>>, vector<64x16xf32>
    %c16_136 = arith.constant 16 : index
    %c0_137 = arith.constant 0 : index
    %120 = vector.load %arg25[%c16_136, %c0_137] : memref<112x16xf32, #tpu.memory_space<vmem>>, vector<64x16xf32>
    %c16_138 = arith.constant 16 : index
    %c0_139 = arith.constant 0 : index
    %121 = vector.load %arg26[%c16_138, %c0_139] : memref<112x3xf32, #tpu.memory_space<vmem>>, vector<64x3xf32>
    %c0_140 = arith.constant 0 : index
    %c16_141 = arith.constant 16 : index
    %c0_142 = arith.constant 0 : index
    %122 = vector.load %arg4[%c0_140, %c16_141, %c0_142] : memref<1x112x8xf32, #tpu.memory_space<vmem>>, vector<1x64x8xf32>
    %123 = vector.shape_cast %122 : vector<1x64x8xf32> to vector<64x8xf32>
    %c17_143 = arith.constant 17 : index
    %c0_144 = arith.constant 0 : index
    %124 = vector.load %arg28[%c17_143, %c0_144] : memref<112x16xf32, #tpu.memory_space<vmem>>, vector<64x16xf32>
    %c17_145 = arith.constant 17 : index
    %c0_146 = arith.constant 0 : index
    %125 = vector.load %arg25[%c17_145, %c0_146] : memref<112x16xf32, #tpu.memory_space<vmem>>, vector<64x16xf32>
    %c17_147 = arith.constant 17 : index
    %c0_148 = arith.constant 0 : index
    %126 = vector.load %arg26[%c17_147, %c0_148] : memref<112x3xf32, #tpu.memory_space<vmem>>, vector<64x3xf32>
    %c0_149 = arith.constant 0 : index
    %c17_150 = arith.constant 17 : index
    %c0_151 = arith.constant 0 : index
    %127 = vector.load %arg4[%c0_149, %c17_150, %c0_151] : memref<1x112x8xf32, #tpu.memory_space<vmem>>, vector<1x64x8xf32>
    %128 = vector.shape_cast %127 : vector<1x64x8xf32> to vector<64x8xf32>
    %c23_152 = arith.constant 23 : index
    %c0_153 = arith.constant 0 : index
    %129 = vector.load %arg28[%c23_152, %c0_153] : memref<112x16xf32, #tpu.memory_space<vmem>>, vector<64x16xf32>
    %c23_154 = arith.constant 23 : index
    %c0_155 = arith.constant 0 : index
    %130 = vector.load %arg25[%c23_154, %c0_155] : memref<112x16xf32, #tpu.memory_space<vmem>>, vector<64x16xf32>
    %c23_156 = arith.constant 23 : index
    %c0_157 = arith.constant 0 : index
    %131 = vector.load %arg26[%c23_156, %c0_157] : memref<112x3xf32, #tpu.memory_space<vmem>>, vector<64x3xf32>
    %c0_158 = arith.constant 0 : index
    %c23_159 = arith.constant 23 : index
    %c0_160 = arith.constant 0 : index
    %132 = vector.load %arg4[%c0_158, %c23_159, %c0_160] : memref<1x112x8xf32, #tpu.memory_space<vmem>>, vector<1x64x8xf32>
    %133 = vector.shape_cast %132 : vector<1x64x8xf32> to vector<64x8xf32>
    %c24_161 = arith.constant 24 : index
    %c0_162 = arith.constant 0 : index
    %134 = vector.load %arg28[%c24_161, %c0_162] : memref<112x16xf32, #tpu.memory_space<vmem>>, vector<64x16xf32>
    %c24_163 = arith.constant 24 : index
    %c0_164 = arith.constant 0 : index
    %135 = vector.load %arg25[%c24_163, %c0_164] : memref<112x16xf32, #tpu.memory_space<vmem>>, vector<64x16xf32>
    %c24_165 = arith.constant 24 : index
    %c0_166 = arith.constant 0 : index
    %136 = vector.load %arg26[%c24_165, %c0_166] : memref<112x3xf32, #tpu.memory_space<vmem>>, vector<64x3xf32>
    %c0_167 = arith.constant 0 : index
    %c24_168 = arith.constant 24 : index
    %c0_169 = arith.constant 0 : index
    %137 = vector.load %arg4[%c0_167, %c24_168, %c0_169] : memref<1x112x8xf32, #tpu.memory_space<vmem>>, vector<1x64x8xf32>
    %138 = vector.shape_cast %137 : vector<1x64x8xf32> to vector<64x8xf32>
    %c25_170 = arith.constant 25 : index
    %c0_171 = arith.constant 0 : index
    %139 = vector.load %arg28[%c25_170, %c0_171] : memref<112x16xf32, #tpu.memory_space<vmem>>, vector<64x16xf32>
    %c25_172 = arith.constant 25 : index
    %c0_173 = arith.constant 0 : index
    %140 = vector.load %arg25[%c25_172, %c0_173] : memref<112x16xf32, #tpu.memory_space<vmem>>, vector<64x16xf32>
    %c25_174 = arith.constant 25 : index
    %c0_175 = arith.constant 0 : index
    %141 = vector.load %arg26[%c25_174, %c0_175] : memref<112x3xf32, #tpu.memory_space<vmem>>, vector<64x3xf32>
    %c0_176 = arith.constant 0 : index
    %c25_177 = arith.constant 25 : index
    %c0_178 = arith.constant 0 : index
    %142 = vector.load %arg4[%c0_176, %c25_177, %c0_178] : memref<1x112x8xf32, #tpu.memory_space<vmem>>, vector<1x64x8xf32>
    %143 = vector.shape_cast %142 : vector<1x64x8xf32> to vector<64x8xf32>
    %c31_179 = arith.constant 31 : index
    %c0_180 = arith.constant 0 : index
    %144 = vector.load %arg28[%c31_179, %c0_180] : memref<112x16xf32, #tpu.memory_space<vmem>>, vector<64x16xf32>
    %c31_181 = arith.constant 31 : index
    %c0_182 = arith.constant 0 : index
    %145 = vector.load %arg25[%c31_181, %c0_182] : memref<112x16xf32, #tpu.memory_space<vmem>>, vector<64x16xf32>
    %c31_183 = arith.constant 31 : index
    %c0_184 = arith.constant 0 : index
    %146 = vector.load %arg26[%c31_183, %c0_184] : memref<112x3xf32, #tpu.memory_space<vmem>>, vector<64x3xf32>
    %c0_185 = arith.constant 0 : index
    %c31_186 = arith.constant 31 : index
    %c0_187 = arith.constant 0 : index
    %147 = vector.load %arg4[%c0_185, %c31_186, %c0_187] : memref<1x112x8xf32, #tpu.memory_space<vmem>>, vector<1x64x8xf32>
    %148 = vector.shape_cast %147 : vector<1x64x8xf32> to vector<64x8xf32>
    %c32_188 = arith.constant 32 : index
    %c0_189 = arith.constant 0 : index
    %149 = vector.load %arg28[%c32_188, %c0_189] : memref<112x16xf32, #tpu.memory_space<vmem>>, vector<64x16xf32>
    %c32_190 = arith.constant 32 : index
    %c0_191 = arith.constant 0 : index
    %150 = vector.load %arg25[%c32_190, %c0_191] : memref<112x16xf32, #tpu.memory_space<vmem>>, vector<64x16xf32>
    %c32_192 = arith.constant 32 : index
    %c0_193 = arith.constant 0 : index
    %151 = vector.load %arg26[%c32_192, %c0_193] : memref<112x3xf32, #tpu.memory_space<vmem>>, vector<64x3xf32>
    %c0_194 = arith.constant 0 : index
    %c32_195 = arith.constant 32 : index
    %c0_196 = arith.constant 0 : index
    %152 = vector.load %arg4[%c0_194, %c32_195, %c0_196] : memref<1x112x8xf32, #tpu.memory_space<vmem>>, vector<1x64x8xf32>
    %153 = vector.shape_cast %152 : vector<1x64x8xf32> to vector<64x8xf32>
    %c33_197 = arith.constant 33 : index
    %c0_198 = arith.constant 0 : index
    %154 = vector.load %arg28[%c33_197, %c0_198] : memref<112x16xf32, #tpu.memory_space<vmem>>, vector<64x16xf32>
    %c33_199 = arith.constant 33 : index
    %c0_200 = arith.constant 0 : index
    %155 = vector.load %arg25[%c33_199, %c0_200] : memref<112x16xf32, #tpu.memory_space<vmem>>, vector<64x16xf32>
    %c33_201 = arith.constant 33 : index
    %c0_202 = arith.constant 0 : index
    %156 = vector.load %arg26[%c33_201, %c0_202] : memref<112x3xf32, #tpu.memory_space<vmem>>, vector<64x3xf32>
    %c0_203 = arith.constant 0 : index
    %c33_204 = arith.constant 33 : index
    %c0_205 = arith.constant 0 : index
    %157 = vector.load %arg4[%c0_203, %c33_204, %c0_205] : memref<1x112x8xf32, #tpu.memory_space<vmem>>, vector<1x64x8xf32>
    %158 = vector.shape_cast %157 : vector<1x64x8xf32> to vector<64x8xf32>
    %159 = tpu.concatenate %114, %115, %116, %118, %119, %120, %121, %123, %124, %125, %126, %128, %129, %130, %131, %133 in 1 : vector<64x16xf32>, vector<64x16xf32>, vector<64x3xf32>, vector<64x8xf32>, vector<64x16xf32>, vector<64x16xf32>, vector<64x3xf32>, vector<64x8xf32>, vector<64x16xf32>, vector<64x16xf32>, vector<64x3xf32>, vector<64x8xf32>, vector<64x16xf32>, vector<64x16xf32>, vector<64x3xf32>, vector<64x8xf32> -> vector<64x172xf32>
    %160 = tpu.concatenate %134, %135, %136, %138, %139, %140, %141, %143, %144, %145, %146, %148, %149, %150, %151, %153 in 1 : vector<64x16xf32>, vector<64x16xf32>, vector<64x3xf32>, vector<64x8xf32>, vector<64x16xf32>, vector<64x16xf32>, vector<64x3xf32>, vector<64x8xf32>, vector<64x16xf32>, vector<64x16xf32>, vector<64x3xf32>, vector<64x8xf32>, vector<64x16xf32>, vector<64x16xf32>, vector<64x3xf32>, vector<64x8xf32> -> vector<64x172xf32>
    %161 = tpu.concatenate %154, %155, %156, %158 in 1 : vector<64x16xf32>, vector<64x16xf32>, vector<64x3xf32>, vector<64x8xf32> -> vector<64x43xf32>
    %162 = tpu.concatenate %159, %160, %161 in 1 : vector<64x172xf32>, vector<64x172xf32>, vector<64x43xf32> -> vector<64x387xf32>
    %163 = arith.truncf %162 : vector<64x387xf32> to vector<64x387xbf16>
    %c0_206 = arith.constant 0 : index
    %c0_207 = arith.constant 0 : index
    %164 = vector.load %arg13[%c0_206, %c0_207] : memref<387x16xbf16, #tpu.memory_space<vmem>>, vector<387x16xbf16>
    %cst_208 = arith.constant dense<0.000000e+00> : vector<64x16xf32>
    %165 = tpu.matmul %163, %164, %cst_208 {dimension_numbers = #tpu.dot_dimension_numbers<[1], [0], [0], [1], [0, 0, 1, 1], [], []>} : vector<64x387xbf16>, vector<387x16xbf16>, vector<64x16xf32> -> vector<64x16xf32>
    %c0_209 = arith.constant 0 : index
    %c0_210 = arith.constant 0 : index
    %166 = vector.load %arg14[%c0_209, %c0_210] : memref<1x16xf32, #tpu.memory_space<vmem>>, vector<1x16xf32>
    %167 = vector.broadcast %166 : vector<1x16xf32> to vector<64x16xf32>
    %168 = arith.addf %165, %167 : vector<64x16xf32>
    %169 = math.tanh %168 : vector<64x16xf32>
    %170 = vector.extract_strided_slice %109 {offsets = [0, 16], sizes = [64, 16], strides = [1, 1]} : vector<64x32xf32> to vector<64x16xf32>
    %cst_211 = arith.constant 1.000000e+00 : f32
    %171 = vector.broadcast %cst_211 : f32 to vector<64x16xf32>
    %172 = arith.subf %171, %170 : vector<64x16xf32>
    %173 = arith.mulf %172, %110 : vector<64x16xf32>
    %174 = arith.mulf %170, %169 : vector<64x16xf32>
    %175 = arith.addf %173, %174 : vector<64x16xf32>
    %176 = vector.broadcast %0 : vector<64x1xf32> to vector<64x16xf32>
    %177 = arith.mulf %175, %176 : vector<64x16xf32>
    %c24_212 = arith.constant 24 : index
    %c0_213 = arith.constant 0 : index
    %178 = vector.load %arg24[%c24_212, %c0_213] : memref<112x16xf32, #tpu.memory_space<vmem>>, vector<64x16xf32>
    tpu.vector_store %arg24[%c24_212, %c0_213], %177 {strides = array<i32>} : memref<112x16xf32, #tpu.memory_space<vmem>>, vector<64x16xf32>,
    %c6_214 = arith.constant 6 : index
    %c0_215 = arith.constant 0 : index
    %179 = vector.load %arg24[%c6_214, %c0_215] : memref<112x16xf32, #tpu.memory_space<vmem>>, vector<64x16xf32>
    %c7_216 = arith.constant 7 : index
    %c0_217 = arith.constant 0 : index
    %180 = vector.load %arg24[%c7_216, %c0_217] : memref<112x16xf32, #tpu.memory_space<vmem>>, vector<64x16xf32>
    %c8_218 = arith.constant 8 : index
    %c0_219 = arith.constant 0 : index
    %181 = vector.load %arg24[%c8_218, %c0_219] : memref<112x16xf32, #tpu.memory_space<vmem>>, vector<64x16xf32>
    %c9_220 = arith.constant 9 : index
    %c0_221 = arith.constant 0 : index
    %182 = vector.load %arg24[%c9_220, %c0_221] : memref<112x16xf32, #tpu.memory_space<vmem>>, vector<64x16xf32>
    %c10_222 = arith.constant 10 : index
    %c0_223 = arith.constant 0 : index
    %183 = vector.load %arg24[%c10_222, %c0_223] : memref<112x16xf32, #tpu.memory_space<vmem>>, vector<64x16xf32>
    %c14_224 = arith.constant 14 : index
    %c0_225 = arith.constant 0 : index
    %184 = vector.load %arg24[%c14_224, %c0_225] : memref<112x16xf32, #tpu.memory_space<vmem>>, vector<64x16xf32>
    %c15_226 = arith.constant 15 : index
    %c0_227 = arith.constant 0 : index
    %185 = vector.load %arg24[%c15_226, %c0_227] : memref<112x16xf32, #tpu.memory_space<vmem>>, vector<64x16xf32>
    %c16_228 = arith.constant 16 : index
    %c0_229 = arith.constant 0 : index
    %186 = vector.load %arg24[%c16_228, %c0_229] : memref<112x16xf32, #tpu.memory_space<vmem>>, vector<64x16xf32>
    %c17_230 = arith.constant 17 : index
    %c0_231 = arith.constant 0 : index
    %187 = vector.load %arg24[%c17_230, %c0_231] : memref<112x16xf32, #tpu.memory_space<vmem>>, vector<64x16xf32>
    %c18_232 = arith.constant 18 : index
    %c0_233 = arith.constant 0 : index
    %188 = vector.load %arg24[%c18_232, %c0_233] : memref<112x16xf32, #tpu.memory_space<vmem>>, vector<64x16xf32>
    %c22_234 = arith.constant 22 : index
    %c0_235 = arith.constant 0 : index
    %189 = vector.load %arg24[%c22_234, %c0_235] : memref<112x16xf32, #tpu.memory_space<vmem>>, vector<64x16xf32>
    %c23_236 = arith.constant 23 : index
    %c0_237 = arith.constant 0 : index
    %190 = vector.load %arg24[%c23_236, %c0_237] : memref<112x16xf32, #tpu.memory_space<vmem>>, vector<64x16xf32>
    %c24_238 = arith.constant 24 : index
    %c0_239 = arith.constant 0 : index
    %191 = vector.load %arg24[%c24_238, %c0_239] : memref<112x16xf32, #tpu.memory_space<vmem>>, vector<64x16xf32>
    %c25_240 = arith.constant 25 : index
    %c0_241 = arith.constant 0 : index
    %192 = vector.load %arg24[%c25_240, %c0_241] : memref<112x16xf32, #tpu.memory_space<vmem>>, vector<64x16xf32>
    %c26_242 = arith.constant 26 : index
    %c0_243 = arith.constant 0 : index
    %193 = vector.load %arg24[%c26_242, %c0_243] : memref<112x16xf32, #tpu.memory_space<vmem>>, vector<64x16xf32>
    %c30_244 = arith.constant 30 : index
    %c0_245 = arith.constant 0 : index
    %194 = vector.load %arg24[%c30_244, %c0_245] : memref<112x16xf32, #tpu.memory_space<vmem>>, vector<64x16xf32>
    %c31_246 = arith.constant 31 : index
    %c0_247 = arith.constant 0 : index
    %195 = vector.load %arg24[%c31_246, %c0_247] : memref<112x16xf32, #tpu.memory_space<vmem>>, vector<64x16xf32>
    %c32_248 = arith.constant 32 : index
    %c0_249 = arith.constant 0 : index
    %196 = vector.load %arg24[%c32_248, %c0_249] : memref<112x16xf32, #tpu.memory_space<vmem>>, vector<64x16xf32>
    %c33_250 = arith.constant 33 : index
    %c0_251 = arith.constant 0 : index
    %197 = vector.load %arg24[%c33_250, %c0_251] : memref<112x16xf32, #tpu.memory_space<vmem>>, vector<64x16xf32>
    %c34_252 = arith.constant 34 : index
    %c0_253 = arith.constant 0 : index
    %198 = vector.load %arg24[%c34_252, %c0_253] : memref<112x16xf32, #tpu.memory_space<vmem>>, vector<64x16xf32>
    %c38_254 = arith.constant 38 : index
    %c0_255 = arith.constant 0 : index
    %199 = vector.load %arg24[%c38_254, %c0_255] : memref<112x16xf32, #tpu.memory_space<vmem>>, vector<64x16xf32>
    %c39_256 = arith.constant 39 : index
    %c0_257 = arith.constant 0 : index
    %200 = vector.load %arg24[%c39_256, %c0_257] : memref<112x16xf32, #tpu.memory_space<vmem>>, vector<64x16xf32>
    %c40_258 = arith.constant 40 : index
    %c0_259 = arith.constant 0 : index
    %201 = vector.load %arg24[%c40_258, %c0_259] : memref<112x16xf32, #tpu.memory_space<vmem>>, vector<64x16xf32>
    %c41_260 = arith.constant 41 : index
    %c0_261 = arith.constant 0 : index
    %202 = vector.load %arg24[%c41_260, %c0_261] : memref<112x16xf32, #tpu.memory_space<vmem>>, vector<64x16xf32>
    %c42_262 = arith.constant 42 : index
    %c0_263 = arith.constant 0 : index
    %203 = vector.load %arg24[%c42_262, %c0_263] : memref<112x16xf32, #tpu.memory_space<vmem>>, vector<64x16xf32>
    %204 = tpu.concatenate %179, %180, %181, %182, %183, %184, %185, %186, %187, %188, %189, %190, %191, %192, %193, %194 in 1 : vector<64x16xf32>, vector<64x16xf32>, vector<64x16xf32>, vector<64x16xf32>, vector<64x16xf32>, vector<64x16xf32>, vector<64x16xf32>, vector<64x16xf32>, vector<64x16xf32>, vector<64x16xf32>, vector<64x16xf32>, vector<64x16xf32>, vector<64x16xf32>, vector<64x16xf32>, vector<64x16xf32>, vector<64x16xf32> -> vector<64x256xf32>
    %205 = tpu.concatenate %195, %196, %197, %198, %199, %200, %201, %202, %203 in 1 : vector<64x16xf32>, vector<64x16xf32>, vector<64x16xf32>, vector<64x16xf32>, vector<64x16xf32>, vector<64x16xf32>, vector<64x16xf32>, vector<64x16xf32>, vector<64x16xf32> -> vector<64x144xf32>
    %206 = tpu.concatenate %204, %205 in 1 : vector<64x256xf32>, vector<64x144xf32> -> vector<64x400xf32>
    %207 = arith.truncf %206 : vector<64x400xf32> to vector<64x400xbf16>
    %c0_264 = arith.constant 0 : index
    %c0_265 = arith.constant 0 : index
    %208 = vector.load %arg9[%c0_264, %c0_265] : memref<400x16xbf16, #tpu.memory_space<vmem>>, vector<400x16xbf16>
    %cst_266 = arith.constant dense<0.000000e+00> : vector<64x16xf32>
    %209 = tpu.matmul %207, %208, %cst_266 {dimension_numbers = #tpu.dot_dimension_numbers<[1], [0], [0], [1], [0, 0, 1, 1], [], []>} : vector<64x400xbf16>, vector<400x16xbf16>, vector<64x16xf32> -> vector<64x16xf32>
    %c0_267 = arith.constant 0 : index
    %c0_268 = arith.constant 0 : index
    %210 = vector.load %arg10[%c0_267, %c0_268] : memref<1x16xf32, #tpu.memory_space<vmem>>, vector<1x16xf32>
    %211 = vector.broadcast %210 : vector<1x16xf32> to vector<64x16xf32>
    %212 = arith.addf %209, %211 : vector<64x16xf32>
    %213 = vector.extract_strided_slice %212 {offsets = [0, 0], sizes = [64, 8], strides = [1, 1]} : vector<64x16xf32> to vector<64x8xf32>
    %214 = vector.extract_strided_slice %212 {offsets = [0, 8], sizes = [64, 8], strides = [1, 1]} : vector<64x16xf32> to vector<64x8xf32>
    %cst_269 = arith.constant 0.000000e+00 : f32
    %215 = vector.broadcast %cst_269 : f32 to vector<64x8xf32>
    %216 = arith.maximumf %214, %215 : vector<64x8xf32>
    %217 = math.absf %214 : vector<64x8xf32>
    %cst_270 = arith.constant 0.000000e+00 : f32
    %218 = vector.broadcast %cst_270 : f32 to vector<64x8xf32>
    %219 = arith.subf %218, %217 : vector<64x8xf32>
    %220 = math.exp %219 : vector<64x8xf32>
    %cst_271 = arith.constant 1.000000e+00 : f32
    %221 = vector.broadcast %cst_271 : f32 to vector<64x8xf32>
    %222 = arith.addf %221, %220 : vector<64x8xf32>
    %223 = math.log %222 : vector<64x8xf32>
    %224 = arith.addf %216, %223 : vector<64x8xf32>
    %c0_272 = arith.constant 0 : index
    %c0_273 = arith.constant 0 : index
    %c0_274 = arith.constant 0 : index
    %c0_275 = arith.constant 0 : index
    %225 = vector.load %arg5[%c0_272, %c0_273, %c0_274, %c0_275] : memref<1x1x64x8xf32, #tpu.memory_space<vmem>>, vector<1x1x64x8xf32>
    %226 = vector.shape_cast %225 : vector<1x1x64x8xf32> to vector<64x8xf32>
    %227 = arith.mulf %224, %226 : vector<64x8xf32>
    %228 = arith.addf %213, %227 : vector<64x8xf32>
    %229 = vector.broadcast %0 : vector<64x1xf32> to vector<64x8xf32>
    %230 = arith.mulf %228, %229 : vector<64x8xf32>
    %c24_276 = arith.constant 24 : index
    %c0_277 = arith.constant 0 : index
    %231 = vector.load %arg27[%c24_276, %c0_277] : memref<112x8xf32, #tpu.memory_space<vmem>>, vector<64x8xf32>
    tpu.vector_store %arg27[%c24_276, %c0_277], %230 {strides = array<i32>} : memref<112x8xf32, #tpu.memory_space<vmem>>, vector<64x8xf32>,
    %c15_278 = arith.constant 15 : index
    %c0_279 = arith.constant 0 : index
    %232 = vector.load %arg25[%c15_278, %c0_279] : memref<112x16xf32, #tpu.memory_space<vmem>>, vector<64x16xf32>
    %c15_280 = arith.constant 15 : index
    %c0_281 = arith.constant 0 : index
    %233 = vector.load %arg27[%c15_280, %c0_281] : memref<112x8xf32, #tpu.memory_space<vmem>>, vector<64x8xf32>
    %c0_282 = arith.constant 0 : index
    %c15_283 = arith.constant 15 : index
    %c0_284 = arith.constant 0 : index
    %234 = vector.load %arg4[%c0_282, %c15_283, %c0_284] : memref<1x112x8xf32, #tpu.memory_space<vmem>>, vector<1x64x8xf32>
    %235 = vector.shape_cast %234 : vector<1x64x8xf32> to vector<64x8xf32>
    %c16_285 = arith.constant 16 : index
    %c0_286 = arith.constant 0 : index
    %236 = vector.load %arg25[%c16_285, %c0_286] : memref<112x16xf32, #tpu.memory_space<vmem>>, vector<64x16xf32>
    %c16_287 = arith.constant 16 : index
    %c0_288 = arith.constant 0 : index
    %237 = vector.load %arg27[%c16_287, %c0_288] : memref<112x8xf32, #tpu.memory_space<vmem>>, vector<64x8xf32>
    %c0_289 = arith.constant 0 : index
    %c16_290 = arith.constant 16 : index
    %c0_291 = arith.constant 0 : index
    %238 = vector.load %arg4[%c0_289, %c16_290, %c0_291] : memref<1x112x8xf32, #tpu.memory_space<vmem>>, vector<1x64x8xf32>
    %239 = vector.shape_cast %238 : vector<1x64x8xf32> to vector<64x8xf32>
    %c17_292 = arith.constant 17 : index
    %c0_293 = arith.constant 0 : index
    %240 = vector.load %arg25[%c17_292, %c0_293] : memref<112x16xf32, #tpu.memory_space<vmem>>, vector<64x16xf32>
    %c17_294 = arith.constant 17 : index
    %c0_295 = arith.constant 0 : index
    %241 = vector.load %arg27[%c17_294, %c0_295] : memref<112x8xf32, #tpu.memory_space<vmem>>, vector<64x8xf32>
    %c0_296 = arith.constant 0 : index
    %c17_297 = arith.constant 17 : index
    %c0_298 = arith.constant 0 : index
    %242 = vector.load %arg4[%c0_296, %c17_297, %c0_298] : memref<1x112x8xf32, #tpu.memory_space<vmem>>, vector<1x64x8xf32>
    %243 = vector.shape_cast %242 : vector<1x64x8xf32> to vector<64x8xf32>
    %c23_299 = arith.constant 23 : index
    %c0_300 = arith.constant 0 : index
    %244 = vector.load %arg25[%c23_299, %c0_300] : memref<112x16xf32, #tpu.memory_space<vmem>>, vector<64x16xf32>
    %c23_301 = arith.constant 23 : index
    %c0_302 = arith.constant 0 : index
    %245 = vector.load %arg27[%c23_301, %c0_302] : memref<112x8xf32, #tpu.memory_space<vmem>>, vector<64x8xf32>
    %c0_303 = arith.constant 0 : index
    %c23_304 = arith.constant 23 : index
    %c0_305 = arith.constant 0 : index
    %246 = vector.load %arg4[%c0_303, %c23_304, %c0_305] : memref<1x112x8xf32, #tpu.memory_space<vmem>>, vector<1x64x8xf32>
    %247 = vector.shape_cast %246 : vector<1x64x8xf32> to vector<64x8xf32>
    %c24_306 = arith.constant 24 : index
    %c0_307 = arith.constant 0 : index
    %248 = vector.load %arg25[%c24_306, %c0_307] : memref<112x16xf32, #tpu.memory_space<vmem>>, vector<64x16xf32>
    %c24_308 = arith.constant 24 : index
    %c0_309 = arith.constant 0 : index
    %249 = vector.load %arg27[%c24_308, %c0_309] : memref<112x8xf32, #tpu.memory_space<vmem>>, vector<64x8xf32>
    %c0_310 = arith.constant 0 : index
    %c24_311 = arith.constant 24 : index
    %c0_312 = arith.constant 0 : index
    %250 = vector.load %arg4[%c0_310, %c24_311, %c0_312] : memref<1x112x8xf32, #tpu.memory_space<vmem>>, vector<1x64x8xf32>
    %251 = vector.shape_cast %250 : vector<1x64x8xf32> to vector<64x8xf32>
    %c25_313 = arith.constant 25 : index
    %c0_314 = arith.constant 0 : index
    %252 = vector.load %arg25[%c25_313, %c0_314] : memref<112x16xf32, #tpu.memory_space<vmem>>, vector<64x16xf32>
    %c25_315 = arith.constant 25 : index
    %c0_316 = arith.constant 0 : index
    %253 = vector.load %arg27[%c25_315, %c0_316] : memref<112x8xf32, #tpu.memory_space<vmem>>, vector<64x8xf32>
    %c0_317 = arith.constant 0 : index
    %c25_318 = arith.constant 25 : index
    %c0_319 = arith.constant 0 : index
    %254 = vector.load %arg4[%c0_317, %c25_318, %c0_319] : memref<1x112x8xf32, #tpu.memory_space<vmem>>, vector<1x64x8xf32>
    %255 = vector.shape_cast %254 : vector<1x64x8xf32> to vector<64x8xf32>
    %c31_320 = arith.constant 31 : index
    %c0_321 = arith.constant 0 : index
    %256 = vector.load %arg25[%c31_320, %c0_321] : memref<112x16xf32, #tpu.memory_space<vmem>>, vector<64x16xf32>
    %c31_322 = arith.constant 31 : index
    %c0_323 = arith.constant 0 : index
    %257 = vector.load %arg27[%c31_322, %c0_323] : memref<112x8xf32, #tpu.memory_space<vmem>>, vector<64x8xf32>
    %c0_324 = arith.constant 0 : index
    %c31_325 = arith.constant 31 : index
    %c0_326 = arith.constant 0 : index
    %258 = vector.load %arg4[%c0_324, %c31_325, %c0_326] : memref<1x112x8xf32, #tpu.memory_space<vmem>>, vector<1x64x8xf32>
    %259 = vector.shape_cast %258 : vector<1x64x8xf32> to vector<64x8xf32>
    %c32_327 = arith.constant 32 : index
    %c0_328 = arith.constant 0 : index
    %260 = vector.load %arg25[%c32_327, %c0_328] : memref<112x16xf32, #tpu.memory_space<vmem>>, vector<64x16xf32>
    %c32_329 = arith.constant 32 : index
    %c0_330 = arith.constant 0 : index
    %261 = vector.load %arg27[%c32_329, %c0_330] : memref<112x8xf32, #tpu.memory_space<vmem>>, vector<64x8xf32>
    %c0_331 = arith.constant 0 : index
    %c32_332 = arith.constant 32 : index
    %c0_333 = arith.constant 0 : index
    %262 = vector.load %arg4[%c0_331, %c32_332, %c0_333] : memref<1x112x8xf32, #tpu.memory_space<vmem>>, vector<1x64x8xf32>
    %263 = vector.shape_cast %262 : vector<1x64x8xf32> to vector<64x8xf32>
    %c33_334 = arith.constant 33 : index
    %c0_335 = arith.constant 0 : index
    %264 = vector.load %arg25[%c33_334, %c0_335] : memref<112x16xf32, #tpu.memory_space<vmem>>, vector<64x16xf32>
    %c33_336 = arith.constant 33 : index
    %c0_337 = arith.constant 0 : index
    %265 = vector.load %arg27[%c33_336, %c0_337] : memref<112x8xf32, #tpu.memory_space<vmem>>, vector<64x8xf32>
    %c0_338 = arith.constant 0 : index
    %c33_339 = arith.constant 33 : index
    %c0_340 = arith.constant 0 : index
    %266 = vector.load %arg4[%c0_338, %c33_339, %c0_340] : memref<1x112x8xf32, #tpu.memory_space<vmem>>, vector<1x64x8xf32>
    %267 = vector.shape_cast %266 : vector<1x64x8xf32> to vector<64x8xf32>
    %268 = tpu.concatenate %232, %233, %235, %236, %237, %239, %240, %241, %243, %244, %245, %247, %248, %249, %251, %252 in 1 : vector<64x16xf32>, vector<64x8xf32>, vector<64x8xf32>, vector<64x16xf32>, vector<64x8xf32>, vector<64x8xf32>, vector<64x16xf32>, vector<64x8xf32>, vector<64x8xf32>, vector<64x16xf32>, vector<64x8xf32>, vector<64x8xf32>, vector<64x16xf32>, vector<64x8xf32>, vector<64x8xf32>, vector<64x16xf32> -> vector<64x176xf32>
    %269 = tpu.concatenate %253, %255, %256, %257, %259, %260, %261, %263, %264, %265, %267 in 1 : vector<64x8xf32>, vector<64x8xf32>, vector<64x16xf32>, vector<64x8xf32>, vector<64x8xf32>, vector<64x16xf32>, vector<64x8xf32>, vector<64x8xf32>, vector<64x16xf32>, vector<64x8xf32>, vector<64x8xf32> -> vector<64x112xf32>
    %270 = tpu.concatenate %268, %269 in 1 : vector<64x176xf32>, vector<64x112xf32> -> vector<64x288xf32>
    %271 = arith.truncf %270 : vector<64x288xf32> to vector<64x288xbf16>
    %c0_341 = arith.constant 0 : index
    %c0_342 = arith.constant 0 : index
    %272 = vector.load %arg15[%c0_341, %c0_342] : memref<288x32xbf16, #tpu.memory_space<vmem>>, vector<288x32xbf16>
    %cst_343 = arith.constant dense<0.000000e+00> : vector<64x32xf32>
    %273 = tpu.matmul %271, %272, %cst_343 {dimension_numbers = #tpu.dot_dimension_numbers<[1], [0], [0], [1], [0, 0, 1, 1], [], []>} : vector<64x288xbf16>, vector<288x32xbf16>, vector<64x32xf32> -> vector<64x32xf32>
    %c0_344 = arith.constant 0 : index
    %c0_345 = arith.constant 0 : index
    %274 = vector.load %arg16[%c0_344, %c0_345] : memref<1x32xf32, #tpu.memory_space<vmem>>, vector<1x32xf32>
    %275 = vector.broadcast %274 : vector<1x32xf32> to vector<64x32xf32>
    %276 = arith.addf %273, %275 : vector<64x32xf32>
    %277 = arith.negf %276 : vector<64x32xf32>
    %278 = math.exp %277 : vector<64x32xf32>
    %cst_346 = arith.constant 1.000000e+00 : f32
    %279 = vector.broadcast %cst_346 : f32 to vector<64x32xf32>
    %280 = arith.addf %279, %278 : vector<64x32xf32>
    %281 = arith.divf %279, %280 : vector<64x32xf32>
    %c24_347 = arith.constant 24 : index
    %c0_348 = arith.constant 0 : index
    %282 = vector.load %arg25[%c24_347, %c0_348] : memref<112x16xf32, #tpu.memory_space<vmem>>, vector<64x16xf32>
    %283 = vector.extract_strided_slice %281 {offsets = [0, 0], sizes = [64, 16], strides = [1, 1]} : vector<64x32xf32> to vector<64x16xf32>
    %284 = arith.mulf %283, %282 : vector<64x16xf32>
    %c24_349 = arith.constant 24 : index
    %c0_350 = arith.constant 0 : index
    %285 = vector.load %arg28[%c24_349, %c0_350] : memref<112x16xf32, #tpu.memory_space<vmem>>, vector<64x16xf32>
    tpu.vector_store %arg28[%c24_349, %c0_350], %284 {strides = array<i32>} : memref<112x16xf32, #tpu.memory_space<vmem>>, vector<64x16xf32>,
    %c15_351 = arith.constant 15 : index
    %c0_352 = arith.constant 0 : index
    %286 = vector.load %arg28[%c15_351, %c0_352] : memref<112x16xf32, #tpu.memory_space<vmem>>, vector<64x16xf32>
    %c15_353 = arith.constant 15 : index
    %c0_354 = arith.constant 0 : index
    %287 = vector.load %arg27[%c15_353, %c0_354] : memref<112x8xf32, #tpu.memory_space<vmem>>, vector<64x8xf32>
    %c0_355 = arith.constant 0 : index
    %c15_356 = arith.constant 15 : index
    %c0_357 = arith.constant 0 : index
    %288 = vector.load %arg4[%c0_355, %c15_356, %c0_357] : memref<1x112x8xf32, #tpu.memory_space<vmem>>, vector<1x64x8xf32>
    %289 = vector.shape_cast %288 : vector<1x64x8xf32> to vector<64x8xf32>
    %c16_358 = arith.constant 16 : index
    %c0_359 = arith.constant 0 : index
    %290 = vector.load %arg28[%c16_358, %c0_359] : memref<112x16xf32, #tpu.memory_space<vmem>>, vector<64x16xf32>
    %c16_360 = arith.constant 16 : index
    %c0_361 = arith.constant 0 : index
    %291 = vector.load %arg27[%c16_360, %c0_361] : memref<112x8xf32, #tpu.memory_space<vmem>>, vector<64x8xf32>
    %c0_362 = arith.constant 0 : index
    %c16_363 = arith.constant 16 : index
    %c0_364 = arith.constant 0 : index
    %292 = vector.load %arg4[%c0_362, %c16_363, %c0_364] : memref<1x112x8xf32, #tpu.memory_space<vmem>>, vector<1x64x8xf32>
    %293 = vector.shape_cast %292 : vector<1x64x8xf32> to vector<64x8xf32>
    %c17_365 = arith.constant 17 : index
    %c0_366 = arith.constant 0 : index
    %294 = vector.load %arg28[%c17_365, %c0_366] : memref<112x16xf32, #tpu.memory_space<vmem>>, vector<64x16xf32>
    %c17_367 = arith.constant 17 : index
    %c0_368 = arith.constant 0 : index
    %295 = vector.load %arg27[%c17_367, %c0_368] : memref<112x8xf32, #tpu.memory_space<vmem>>, vector<64x8xf32>
    %c0_369 = arith.constant 0 : index
    %c17_370 = arith.constant 17 : index
    %c0_371 = arith.constant 0 : index
    %296 = vector.load %arg4[%c0_369, %c17_370, %c0_371] : memref<1x112x8xf32, #tpu.memory_space<vmem>>, vector<1x64x8xf32>
    %297 = vector.shape_cast %296 : vector<1x64x8xf32> to vector<64x8xf32>
    %c23_372 = arith.constant 23 : index
    %c0_373 = arith.constant 0 : index
    %298 = vector.load %arg28[%c23_372, %c0_373] : memref<112x16xf32, #tpu.memory_space<vmem>>, vector<64x16xf32>
    %c23_374 = arith.constant 23 : index
    %c0_375 = arith.constant 0 : index
    %299 = vector.load %arg27[%c23_374, %c0_375] : memref<112x8xf32, #tpu.memory_space<vmem>>, vector<64x8xf32>
    %c0_376 = arith.constant 0 : index
    %c23_377 = arith.constant 23 : index
    %c0_378 = arith.constant 0 : index
    %300 = vector.load %arg4[%c0_376, %c23_377, %c0_378] : memref<1x112x8xf32, #tpu.memory_space<vmem>>, vector<1x64x8xf32>
    %301 = vector.shape_cast %300 : vector<1x64x8xf32> to vector<64x8xf32>
    %c24_379 = arith.constant 24 : index
    %c0_380 = arith.constant 0 : index
    %302 = vector.load %arg28[%c24_379, %c0_380] : memref<112x16xf32, #tpu.memory_space<vmem>>, vector<64x16xf32>
    %c24_381 = arith.constant 24 : index
    %c0_382 = arith.constant 0 : index
    %303 = vector.load %arg27[%c24_381, %c0_382] : memref<112x8xf32, #tpu.memory_space<vmem>>, vector<64x8xf32>
    %c0_383 = arith.constant 0 : index
    %c24_384 = arith.constant 24 : index
    %c0_385 = arith.constant 0 : index
    %304 = vector.load %arg4[%c0_383, %c24_384, %c0_385] : memref<1x112x8xf32, #tpu.memory_space<vmem>>, vector<1x64x8xf32>
    %305 = vector.shape_cast %304 : vector<1x64x8xf32> to vector<64x8xf32>
    %c25_386 = arith.constant 25 : index
    %c0_387 = arith.constant 0 : index
    %306 = vector.load %arg28[%c25_386, %c0_387] : memref<112x16xf32, #tpu.memory_space<vmem>>, vector<64x16xf32>
    %c25_388 = arith.constant 25 : index
    %c0_389 = arith.constant 0 : index
    %307 = vector.load %arg27[%c25_388, %c0_389] : memref<112x8xf32, #tpu.memory_space<vmem>>, vector<64x8xf32>
    %c0_390 = arith.constant 0 : index
    %c25_391 = arith.constant 25 : index
    %c0_392 = arith.constant 0 : index
    %308 = vector.load %arg4[%c0_390, %c25_391, %c0_392] : memref<1x112x8xf32, #tpu.memory_space<vmem>>, vector<1x64x8xf32>
    %309 = vector.shape_cast %308 : vector<1x64x8xf32> to vector<64x8xf32>
    %c31_393 = arith.constant 31 : index
    %c0_394 = arith.constant 0 : index
    %310 = vector.load %arg28[%c31_393, %c0_394] : memref<112x16xf32, #tpu.memory_space<vmem>>, vector<64x16xf32>
    %c31_395 = arith.constant 31 : index
    %c0_396 = arith.constant 0 : index
    %311 = vector.load %arg27[%c31_395, %c0_396] : memref<112x8xf32, #tpu.memory_space<vmem>>, vector<64x8xf32>
    %c0_397 = arith.constant 0 : index
    %c31_398 = arith.constant 31 : index
    %c0_399 = arith.constant 0 : index
    %312 = vector.load %arg4[%c0_397, %c31_398, %c0_399] : memref<1x112x8xf32, #tpu.memory_space<vmem>>, vector<1x64x8xf32>
    %313 = vector.shape_cast %312 : vector<1x64x8xf32> to vector<64x8xf32>
    %c32_400 = arith.constant 32 : index
    %c0_401 = arith.constant 0 : index
    %314 = vector.load %arg28[%c32_400, %c0_401] : memref<112x16xf32, #tpu.memory_space<vmem>>, vector<64x16xf32>
    %c32_402 = arith.constant 32 : index
    %c0_403 = arith.constant 0 : index
    %315 = vector.load %arg27[%c32_402, %c0_403] : memref<112x8xf32, #tpu.memory_space<vmem>>, vector<64x8xf32>
    %c0_404 = arith.constant 0 : index
    %c32_405 = arith.constant 32 : index
    %c0_406 = arith.constant 0 : index
    %316 = vector.load %arg4[%c0_404, %c32_405, %c0_406] : memref<1x112x8xf32, #tpu.memory_space<vmem>>, vector<1x64x8xf32>
    %317 = vector.shape_cast %316 : vector<1x64x8xf32> to vector<64x8xf32>
    %c33_407 = arith.constant 33 : index
    %c0_408 = arith.constant 0 : index
    %318 = vector.load %arg28[%c33_407, %c0_408] : memref<112x16xf32, #tpu.memory_space<vmem>>, vector<64x16xf32>
    %c33_409 = arith.constant 33 : index
    %c0_410 = arith.constant 0 : index
    %319 = vector.load %arg27[%c33_409, %c0_410] : memref<112x8xf32, #tpu.memory_space<vmem>>, vector<64x8xf32>
    %c0_411 = arith.constant 0 : index
    %c33_412 = arith.constant 33 : index
    %c0_413 = arith.constant 0 : index
    %320 = vector.load %arg4[%c0_411, %c33_412, %c0_413] : memref<1x112x8xf32, #tpu.memory_space<vmem>>, vector<1x64x8xf32>
    %321 = vector.shape_cast %320 : vector<1x64x8xf32> to vector<64x8xf32>
    %322 = tpu.concatenate %286, %287, %289, %290, %291, %293, %294, %295, %297, %298, %299, %301, %302, %303, %305, %306 in 1 : vector<64x16xf32>, vector<64x8xf32>, vector<64x8xf32>, vector<64x16xf32>, vector<64x8xf32>, vector<64x8xf32>, vector<64x16xf32>, vector<64x8xf32>, vector<64x8xf32>, vector<64x16xf32>, vector<64x8xf32>, vector<64x8xf32>, vector<64x16xf32>, vector<64x8xf32>, vector<64x8xf32>, vector<64x16xf32> -> vector<64x176xf32>
    %323 = tpu.concatenate %307, %309, %310, %311, %313, %314, %315, %317, %318, %319, %321 in 1 : vector<64x8xf32>, vector<64x8xf32>, vector<64x16xf32>, vector<64x8xf32>, vector<64x8xf32>, vector<64x16xf32>, vector<64x8xf32>, vector<64x8xf32>, vector<64x16xf32>, vector<64x8xf32>, vector<64x8xf32> -> vector<64x112xf32>
    %324 = tpu.concatenate %322, %323 in 1 : vector<64x176xf32>, vector<64x112xf32> -> vector<64x288xf32>
    %325 = arith.truncf %324 : vector<64x288xf32> to vector<64x288xbf16>
    %c0_414 = arith.constant 0 : index
    %c0_415 = arith.constant 0 : index
    %326 = vector.load %arg17[%c0_414, %c0_415] : memref<288x16xbf16, #tpu.memory_space<vmem>>, vector<288x16xbf16>
    %cst_416 = arith.constant dense<0.000000e+00> : vector<64x16xf32>
    %327 = tpu.matmul %325, %326, %cst_416 {dimension_numbers = #tpu.dot_dimension_numbers<[1], [0], [0], [1], [0, 0, 1, 1], [], []>} : vector<64x288xbf16>, vector<288x16xbf16>, vector<64x16xf32> -> vector<64x16xf32>
    %c0_417 = arith.constant 0 : index
    %c0_418 = arith.constant 0 : index
    %328 = vector.load %arg18[%c0_417, %c0_418] : memref<1x16xf32, #tpu.memory_space<vmem>>, vector<1x16xf32>
    %329 = vector.broadcast %328 : vector<1x16xf32> to vector<64x16xf32>
    %330 = arith.addf %327, %329 : vector<64x16xf32>
    %331 = math.tanh %330 : vector<64x16xf32>
    %332 = vector.extract_strided_slice %281 {offsets = [0, 16], sizes = [64, 16], strides = [1, 1]} : vector<64x32xf32> to vector<64x16xf32>
    %cst_419 = arith.constant 1.000000e+00 : f32
    %333 = vector.broadcast %cst_419 : f32 to vector<64x16xf32>
    %334 = arith.subf %333, %332 : vector<64x16xf32>
    %335 = arith.mulf %334, %282 : vector<64x16xf32>
    %336 = arith.mulf %332, %331 : vector<64x16xf32>
    %337 = arith.addf %335, %336 : vector<64x16xf32>
    %338 = vector.broadcast %0 : vector<64x1xf32> to vector<64x16xf32>
    %339 = arith.mulf %337, %338 : vector<64x16xf32>
    %c24_420 = arith.constant 24 : index
    %c0_421 = arith.constant 0 : index
    %340 = vector.load %arg25[%c24_420, %c0_421] : memref<112x16xf32, #tpu.memory_space<vmem>>, vector<64x16xf32>
    tpu.vector_store %arg25[%c24_420, %c0_421], %339 {strides = array<i32>} : memref<112x16xf32, #tpu.memory_space<vmem>>, vector<64x16xf32>,
    %c0_422 = arith.constant 0 : index
    %c0_423 = arith.constant 0 : index
    %341 = vector.load %arg29[%c0_422, %c0_423] : memref<64x256xf32, #tpu.memory_space<vmem>>, vector<64x256xf32>
    %342 = arith.truncf %339 : vector<64x16xf32> to vector<64x16xbf16>
    %c0_424 = arith.constant 0 : index
    %c0_425 = arith.constant 0 : index
    %343 = vector.load %arg19[%c0_424, %c0_425] : memref<16x256xbf16, #tpu.memory_space<vmem>>, vector<16x256xbf16>
    %cst_426 = arith.constant dense<0.000000e+00> : vector<64x256xf32>
    %344 = tpu.matmul %342, %343, %cst_426 {dimension_numbers = #tpu.dot_dimension_numbers<[1], [0], [0], [1], [0, 0, 1, 1], [], []>} : vector<64x16xbf16>, vector<16x256xbf16>, vector<64x256xf32> -> vector<64x256xf32>
    %345 = arith.addf %341, %344 : vector<64x256xf32>
    %c0_427 = arith.constant 0 : index
    %c0_428 = arith.constant 0 : index
    %346 = vector.load %arg29[%c0_427, %c0_428] : memref<64x256xf32, #tpu.memory_space<vmem>>, vector<64x256xf32>
    tpu.vector_store %arg29[%c0_427, %c0_428], %345 {strides = array<i32>} : memref<64x256xf32, #tpu.memory_space<vmem>>, vector<64x256xf32>,
    %c0_429 = arith.constant 0 : index
    %c0_430 = arith.constant 0 : index
    %c0_431 = arith.constant 0 : index
    %347 = vector.load %arg23[%c0_429, %c0_430, %c0_431] : memref<1x64x8xf32, #tpu.memory_space<vmem>>, vector<1x64x8xf32>
    %348 = vector.shape_cast %347 : vector<1x64x8xf32> to vector<64x8xf32>
    %349 = math.log %49 : vector<64x8xf32>
    %350 = math.log %224 : vector<64x8xf32>
    %351 = arith.subf %349, %350 : vector<64x8xf32>
    %352 = arith.mulf %224, %224 : vector<64x8xf32>
    %353 = arith.subf %213, %38 : vector<64x8xf32>
    %354 = arith.mulf %353, %353 : vector<64x8xf32>
    %355 = arith.addf %352, %354 : vector<64x8xf32>
    %cst_432 = arith.constant 2.000000e+00 : f32
    %356 = vector.broadcast %cst_432 : f32 to vector<64x8xf32>
    %357 = arith.mulf %356, %49 : vector<64x8xf32>
    %358 = arith.mulf %357, %49 : vector<64x8xf32>
    %359 = arith.divf %355, %358 : vector<64x8xf32>
    %360 = arith.addf %351, %359 : vector<64x8xf32>
    %cst_433 = arith.constant 5.000000e-01 : f32
    %361 = vector.broadcast %cst_433 : f32 to vector<64x8xf32>
    %362 = arith.subf %360, %361 : vector<64x8xf32>
    %363 = arith.addf %348, %362 : vector<64x8xf32>
    %c0_434 = arith.constant 0 : index
    %c0_435 = arith.constant 0 : index
    %c0_436 = arith.constant 0 : index
    %364 = vector.load %arg23[%c0_434, %c0_435, %c0_436] : memref<1x64x8xf32, #tpu.memory_space<vmem>>, vector<1x64x8xf32>
    %365 = vector.shape_cast %364 : vector<1x64x8xf32> to vector<64x8xf32>
    %366 = vector.shape_cast %363 : vector<64x8xf32> to vector<1x64x8xf32>
    tpu.vector_store %arg23[%c0_434, %c0_435, %c0_436], %366 {strides = array<i32>} : memref<1x64x8xf32, #tpu.memory_space<vmem>>, vector<1x64x8xf32>,
    %c1_i32 = arith.constant 1 : i32
    %367 = arith.cmpi eq, %arg1, %c1_i32 : i32
    %368 = arith.extui %367 : i1 to i32
    %c0_i32_437 = arith.constant 0 : i32
    %369 = arith.cmpi ne, %368, %c0_i32_437 : i32
    scf.if %369 {
      %c0_438 = arith.constant 0 : index
      %c0_439 = arith.constant 0 : index
      %370 = vector.load %arg29[%c0_438, %c0_439] : memref<64x256xf32, #tpu.memory_space<vmem>>, vector<64x256xf32>
      %371 = arith.truncf %370 : vector<64x256xf32> to vector<64x256xbf16>
      %c0_440 = arith.constant 0 : index
      %c0_441 = arith.constant 0 : index
      %372 = vector.load %arg20[%c0_440, %c0_441] : memref<256x48xbf16, #tpu.memory_space<vmem>>, vector<256x48xbf16>
      %cst_442 = arith.constant dense<0.000000e+00> : vector<64x48xf32>
      %373 = tpu.matmul %371, %372, %cst_442 {dimension_numbers = #tpu.dot_dimension_numbers<[1], [0], [0], [1], [0, 0, 1, 1], [], []>} : vector<64x256xbf16>, vector<256x48xbf16>, vector<64x48xf32> -> vector<64x48xf32>
      %c0_443 = arith.constant 0 : index
      %c0_444 = arith.constant 0 : index
      %374 = vector.load %arg21[%c0_443, %c0_444] : memref<1x48xf32, #tpu.memory_space<vmem>>, vector<1x48xf32>
      %375 = vector.broadcast %374 : vector<1x48xf32> to vector<64x48xf32>
      %376 = arith.addf %373, %375 : vector<64x48xf32>
      %377 = arith.negf %376 : vector<64x48xf32>
      %378 = math.exp %377 : vector<64x48xf32>
      %cst_445 = arith.constant 1.000000e+00 : f32
      %379 = vector.broadcast %cst_445 : f32 to vector<64x48xf32>
      %380 = arith.addf %379, %378 : vector<64x48xf32>
      %381 = arith.divf %379, %380 : vector<64x48xf32>
      %c0_446 = arith.constant 0 : index
      %c0_447 = arith.constant 0 : index
      %c0_448 = arith.constant 0 : index
      %382 = vector.load %arg22[%c0_446, %c0_447, %c0_448] : memref<1x64x48xf32, #tpu.memory_space<vmem>>, vector<1x64x48xf32>
      %383 = vector.shape_cast %382 : vector<1x64x48xf32> to vector<64x48xf32>
      %384 = vector.shape_cast %381 : vector<64x48xf32> to vector<1x64x48xf32>
      tpu.vector_store %arg22[%c0_446, %c0_447, %c0_448], %384 {strides = array<i32>} : memref<1x64x48xf32, #tpu.memory_space<vmem>>, vector<1x64x48xf32>,
    } else {
    }
    return
  }
  func.func @transform_0(%arg0: i32, %arg1: i32) -> (i32, i32) {
    %c0_i32 = arith.constant 0 : i32
    %c0_i32_0 = arith.constant 0 : i32
    %c0_i32_1 = arith.constant 0 : i32
    return %c0_i32, %c0_i32_0 : i32, i32
  }
  func.func @transform_1(%arg0: i32, %arg1: i32) -> (i32, i32, i32) {
    %c0_i32 = arith.constant 0 : i32
    %c0_i32_0 = arith.constant 0 : i32
    %c0_i32_1 = arith.constant 0 : i32
    return %arg0, %c0_i32, %c0_i32_0 : i32, i32, i32
  }
  func.func @transform_2(%arg0: i32, %arg1: i32) -> (i32, i32, i32) {
    %c0_i32 = arith.constant 0 : i32
    %c0_i32_0 = arith.constant 0 : i32
    %c0_i32_1 = arith.constant 0 : i32
    return %arg0, %c0_i32, %c0_i32_0 : i32, i32, i32
  }
  func.func @transform_3(%arg0: i32, %arg1: i32) -> (i32, i32, i32, i32) {
    %c0_i32 = arith.constant 0 : i32
    %c0_i32_0 = arith.constant 0 : i32
    %c0_i32_1 = arith.constant 0 : i32
    return %arg0, %arg1, %c0_i32, %c0_i32_0 : i32, i32, i32, i32
  }
  func.func @transform_4(%arg0: i32, %arg1: i32) -> (i32, i32) {
    %c0_i32 = arith.constant 0 : i32
    %c0_i32_0 = arith.constant 0 : i32
    %c0_i32_1 = arith.constant 0 : i32
    return %c0_i32, %c0_i32_0 : i32, i32
  }
  func.func @transform_5(%arg0: i32, %arg1: i32) -> (i32, i32) {
    %c0_i32 = arith.constant 0 : i32
    %c0_i32_0 = arith.constant 0 : i32
    %c0_i32_1 = arith.constant 0 : i32
    return %c0_i32, %c0_i32_0 : i32, i32
  }
  func.func @transform_6(%arg0: i32, %arg1: i32) -> (i32, i32) {
    %c0_i32 = arith.constant 0 : i32
    %c0_i32_0 = arith.constant 0 : i32
    %c0_i32_1 = arith.constant 0 : i32
    return %c0_i32, %c0_i32_0 : i32, i32
  }
  func.func @transform_7(%arg0: i32, %arg1: i32) -> (i32, i32) {
    %c0_i32 = arith.constant 0 : i32
    %c0_i32_0 = arith.constant 0 : i32
    %c0_i32_1 = arith.constant 0 : i32
    return %c0_i32, %c0_i32_0 : i32, i32
  }
  func.func @transform_8(%arg0: i32, %arg1: i32) -> (i32, i32) {
    %c0_i32 = arith.constant 0 : i32
    %c0_i32_0 = arith.constant 0 : i32
    %c0_i32_1 = arith.constant 0 : i32
    return %c0_i32, %c0_i32_0 : i32, i32
  }
  func.func @transform_9(%arg0: i32, %arg1: i32) -> (i32, i32) {
    %c0_i32 = arith.constant 0 : i32
    %c0_i32_0 = arith.constant 0 : i32
    %c0_i32_1 = arith.constant 0 : i32
    return %c0_i32, %c0_i32_0 : i32, i32
  }
  func.func @transform_10(%arg0: i32, %arg1: i32) -> (i32, i32) {
    %c0_i32 = arith.constant 0 : i32
    %c0_i32_0 = arith.constant 0 : i32
    %c0_i32_1 = arith.constant 0 : i32
    return %c0_i32, %c0_i32_0 : i32, i32
  }
  func.func @transform_11(%arg0: i32, %arg1: i32) -> (i32, i32) {
    %c0_i32 = arith.constant 0 : i32
    %c0_i32_0 = arith.constant 0 : i32
    %c0_i32_1 = arith.constant 0 : i32
    return %c0_i32, %c0_i32_0 : i32, i32
  }
  func.func @transform_12(%arg0: i32, %arg1: i32) -> (i32, i32) {
    %c0_i32 = arith.constant 0 : i32
    %c0_i32_0 = arith.constant 0 : i32
    %c0_i32_1 = arith.constant 0 : i32
    return %c0_i32, %c0_i32_0 : i32, i32
  }
  func.func @transform_13(%arg0: i32, %arg1: i32) -> (i32, i32) {
    %c0_i32 = arith.constant 0 : i32
    %c0_i32_0 = arith.constant 0 : i32
    %c0_i32_1 = arith.constant 0 : i32
    return %c0_i32, %c0_i32_0 : i32, i32
  }
  func.func @transform_14(%arg0: i32, %arg1: i32) -> (i32, i32) {
    %c0_i32 = arith.constant 0 : i32
    %c0_i32_0 = arith.constant 0 : i32
    %c0_i32_1 = arith.constant 0 : i32
    return %c0_i32, %c0_i32_0 : i32, i32
  }
  func.func @transform_15(%arg0: i32, %arg1: i32) -> (i32, i32) {
    %c0_i32 = arith.constant 0 : i32
    %c0_i32_0 = arith.constant 0 : i32
    %c0_i32_1 = arith.constant 0 : i32
    return %c0_i32, %c0_i32_0 : i32, i32
  }
  func.func @transform_16(%arg0: i32, %arg1: i32) -> (i32, i32) {
    %c0_i32 = arith.constant 0 : i32
    %c0_i32_0 = arith.constant 0 : i32
    %c0_i32_1 = arith.constant 0 : i32
    return %c0_i32, %c0_i32_0 : i32, i32
  }
  func.func @transform_17(%arg0: i32, %arg1: i32) -> (i32, i32) {
    %c0_i32 = arith.constant 0 : i32
    %c0_i32_0 = arith.constant 0 : i32
    %c0_i32_1 = arith.constant 0 : i32
    return %c0_i32, %c0_i32_0 : i32, i32
  }
  func.func @transform_18(%arg0: i32, %arg1: i32) -> (i32, i32) {
    %c0_i32 = arith.constant 0 : i32
    %c0_i32_0 = arith.constant 0 : i32
    %c0_i32_1 = arith.constant 0 : i32
    return %c0_i32, %c0_i32_0 : i32, i32
  }
  func.func @transform_19(%arg0: i32, %arg1: i32) -> (i32, i32) {
    %c0_i32 = arith.constant 0 : i32
    %c0_i32_0 = arith.constant 0 : i32
    %c0_i32_1 = arith.constant 0 : i32
    return %c0_i32, %c0_i32_0 : i32, i32
  }
  func.func @transform_20(%arg0: i32, %arg1: i32) -> (i32, i32, i32) {
    %c0_i32 = arith.constant 0 : i32
    %c0_i32_0 = arith.constant 0 : i32
    %c0_i32_1 = arith.constant 0 : i32
    return %arg0, %c0_i32, %c0_i32_0 : i32, i32, i32
  }
  func.func @transform_21(%arg0: i32, %arg1: i32) -> (i32, i32, i32) {
    %c0_i32 = arith.constant 0 : i32
    %c0_i32_0 = arith.constant 0 : i32
    %c0_i32_1 = arith.constant 0 : i32
    return %arg0, %c0_i32, %c0_i32_0 : i32, i32, i32
  }
}

</mosaic_0001>

<llo_original>
// kernel: tile.8
$region0: #{tile.8}
  #allocation0 [shape = 's32[1]{0}', space=sflag, size = 0x4, scoped, tag = 'scoped memory for tile.8']
  %s0 = inlined_call_operand.vmem [shape: f32[3], index: 0, kind: input, shape index: {}]
  %s1 = inlined_call_operand.vmem [shape: f32[16,3], index: 1, kind: output, shape index: {}]
  // Predicated region
  $region2: #{tile.8} parent=0 // pred_check
    _
  $region3: #{tile.8} parent=0 // pred_check_branch
    %3 = sbr.rel (0) target = $region5
  $region4: #{tile.8} parent=0 // pred_region
    _
  $region5: #{tile.8} parent=0 // pred_fallthru
    _
  %v4 = vld [vmem:[%s0] ss:$0 sm:$0xff]
  %5 = vst [vmem:[%s1] sm:$0xff] %v4
  %s6 = scalar_lea.vmem %s1, 8
  %7 = vst [vmem:[%s6] sm:$0xff] %v4

// kernel: tile.9
$region0: #{tile.9}
  %s0 = inlined_call_operand.vmem [shape: f32[16,3], index: 0, kind: input, shape index: {}]
  %s1 = inlined_call_operand.vmem [shape: f32[1,48], index: 1, kind: output, shape index: {}]
  $region1: #{tile.9} parent=0
    #allocation0 [shape = 'u8[4096]{0}', space=vmem, size = 0x1000, scoped, tag = 'scoped mem for output reshape']
    %v2 = vld [vmem:[%s0] sm:$0x1]
    %vm3 = vcmask 23552
    %4 = vst.msk [vmem:[#allocation0] sm:$0x1] %vm3, %v2
    %s5 = scalar_lea.vmem %s0, 15
    %v6 = vld [vmem:[%s5] sm:$0x1]
    %7 = vrot.lane.b32.xlu0 %v6, 45
    %v8 = vpop.permute.xlu0 %7
    %vm9 = vcmask 392552
    %10 = vst.msk [vmem:[#allocation0] sm:$0x1] %vm9, %v8
    %s11 = scalar_lea.vmem %s0, 14
    %v12 = vld [vmem:[%s11] sm:$0x1]
    %13 = vrot.lane.b32.xlu0 %v12, 42
    %v14 = vpop.permute.xlu0 %13
    %vm15 = vcmask 367952
    %16 = vst.msk [vmem:[#allocation0] sm:$0x1] %vm15, %v14
    %s17 = scalar_lea.vmem %s0, 13
    %v18 = vld [vmem:[%s17] sm:$0x1]
    %19 = vrot.lane.b32.xlu0 %v18, 39
    %v20 = vpop.permute.xlu0 %19
    %vm21 = vcmask 343352
    %22 = vst.msk [vmem:[#allocation0] sm:$0x1] %vm21, %v20
    %s23 = scalar_lea.vmem %s0, 12
    %v24 = vld [vmem:[%s23] sm:$0x1]
    %25 = vrot.lane.b32.xlu0 %v24, 36
    %v26 = vpop.permute.xlu0 %25
    %vm27 = vcmask 318752
    %28 = vst.msk [vmem:[#allocation0] sm:$0x1] %vm27, %v26
    %s29 = scalar_lea.vmem %s0, 11
    %v30 = vld [vmem:[%s29] sm:$0x1]
    %31 = vrot.lane.b32.xlu0 %v30, 33
    %v32 = vpop.permute.xlu0 %31
    %vm33 = vcmask 294152
    %34 = vst.msk [vmem:[#allocation0] sm:$0x1] %vm33, %v32
    %s35 = scalar_lea.vmem %s0, 10
    %v36 = vld [vmem:[%s35] sm:$0x1]
    %37 = vrot.lane.b32.xlu0 %v36, 30
    %v38 = vpop.permute.xlu0 %37
    %vm39 = vcmask 269552
    %40 = vst.msk [vmem:[#allocation0] sm:$0x1] %vm39, %v38
    %s41 = scalar_lea.vmem %s0, 9
    %v42 = vld [vmem:[%s41] sm:$0x1]
    %43 = vrot.lane.b32.xlu0 %v42, 27
    %v44 = vpop.permute.xlu0 %43
    %vm45 = vcmask 244952
    %46 = vst.msk [vmem:[#allocation0] sm:$0x1] %vm45, %v44
    %s47 = scalar_lea.vmem %s0, 8
    %v48 = vld [vmem:[%s47] sm:$0x1]
    %49 = vrot.lane.b32.xlu0 %v48, 24
    %v50 = vpop.permute.xlu0 %49
    %vm51 = vcmask 220352
    %52 = vst.msk [vmem:[#allocation0] sm:$0x1] %vm51, %v50
    %s53 = scalar_lea.vmem %s0, 7
    %v54 = vld [vmem:[%s53] sm:$0x1]
    %55 = vrot.lane.b32.xlu0 %v54, 21
    %v56 = vpop.permute.xlu0 %55
    %vm57 = vcmask 195752
    %58 = vst.msk [vmem:[#allocation0] sm:$0x1] %vm57, %v56
    %s59 = scalar_lea.vmem %s0, 6
    %v60 = vld [vmem:[%s59] sm:$0x1]
    %61 = vrot.lane.b32.xlu0 %v60, 18
    %v62 = vpop.permute.xlu0 %61
    %vm63 = vcmask 171152
    %64 = vst.msk [vmem:[#allocation0] sm:$0x1] %vm63, %v62
    %s65 = scalar_lea.vmem %s0, 5
    %v66 = vld [vmem:[%s65] sm:$0x1]
    %67 = vrot.lane.b32.xlu0 %v66, 15
    %v68 = vpop.permute.xlu0 %67
    %vm69 = vcmask 146552
    %70 = vst.msk [vmem:[#allocation0] sm:$0x1] %vm69, %v68
    %s71 = scalar_lea.vmem %s0, 4
    %v72 = vld [vmem:[%s71] sm:$0x1]
    %73 = vrot.lane.b32.xlu0 %v72, 12
    %v74 = vpop.permute.xlu0 %73
    %vm75 = vcmask 121952
    %76 = vst.msk [vmem:[#allocation0] sm:$0x1] %vm75, %v74
    %s77 = scalar_lea.vmem %s0, 3
    %v78 = vld [vmem:[%s77] sm:$0x1]
    %79 = vrot.lane.b32.xlu0 %v78, 9
    %v80 = vpop.permute.xlu0 %79
    %vm81 = vcmask 97352
    %82 = vst.msk [vmem:[#allocation0] sm:$0x1] %vm81, %v80
    %s83 = scalar_lea.vmem %s0, 2
    %v84 = vld [vmem:[%s83] sm:$0x1]
    %85 = vrot.lane.b32.xlu0 %v84, 6
    %v86 = vpop.permute.xlu0 %85
    %vm87 = vcmask 72752
    %88 = vst.msk [vmem:[#allocation0] sm:$0x1] %vm87, %v86
    %s89 = scalar_lea.vmem %s0, 1
    %v90 = vld [vmem:[%s89] sm:$0x1]
    %91 = vrot.lane.b32.xlu0 %v90, 3
    %v92 = vpop.permute.xlu0 %91
    %vm93 = vcmask 48152
    %94 = vst.msk [vmem:[#allocation0] sm:$0x1] %vm93, %v92
    %s96 = sshllo.u32 0, 1
    %v98 = vld [vmem:[#allocation0] sm:%s96]
    %s99 = sshllo.u32 0, 1
    %100 = vst [vmem:[%s1] sm:%s99] %v98

// kernel: generator_forward.1
$region0: #{generator_forward.1}
  #allocation0 [shape = 'u32[]', space=smem, size = 0x4, offset = 0x4, fixed_abs, tag = 'smem constant byte address 0x4 - core index']
  #allocation1 [shape = 'u32[144,128]{1,0:T(1,128)}', space=vmem, size = 0x12000, scoped, tag = 'internal scratch']
  #allocation2 [shape = 'f32[112,16]{1,0:T(8,128)}', space=vmem, size = 0xe000, scoped, tag = 'scratch operand']
  #allocation3 [shape = 'f32[112,16]{1,0:T(8,128)}', space=vmem, size = 0xe000, scoped, tag = 'scratch operand']
  #allocation4 [shape = 'f32[112,3]{1,0:T(8,128)}', space=vmem, size = 0xe000, scoped, tag = 'scratch operand']
  #allocation5 [shape = 'f32[112,8]{1,0:T(8,128)}', space=vmem, size = 0xe000, scoped, tag = 'scratch operand']
  #allocation6 [shape = 'f32[112,16]{1,0:T(8,128)}', space=vmem, size = 0xe000, scoped, tag = 'scratch operand']
  #allocation7 [shape = 'f32[64,256]{1,0:T(8,128)}', space=vmem, size = 0x10000, scoped, tag = 'scratch operand']
  %s0 = inlined_call_operand.vmem [shape: f32[64,1], index: 0, kind: input, shape index: {}]
  %s1 = inlined_call_operand.vmem [shape: f32[2,64,48], index: 1, kind: input, shape index: {}]
  %s2 = inlined_call_operand.vmem [shape: f32[2,112,8], index: 2, kind: input, shape index: {}]
  %s3 = inlined_call_operand.vmem [shape: f32[2,2,64,8], index: 3, kind: input, shape index: {}]
  %s4 = inlined_call_operand.vmem [shape: bf16[48,3], index: 4, kind: input, shape index: {}]
  %s5 = inlined_call_operand.vmem [shape: bf16[400,16], index: 5, kind: input, shape index: {}]
  %s6 = inlined_call_operand.vmem [shape: f32[1,16], index: 6, kind: input, shape index: {}]
  %s7 = inlined_call_operand.vmem [shape: bf16[400,16], index: 7, kind: input, shape index: {}]
  %s8 = inlined_call_operand.vmem [shape: f32[1,16], index: 8, kind: input, shape index: {}]
  %s9 = inlined_call_operand.vmem [shape: bf16[387,32], index: 9, kind: input, shape index: {}]
  %s10 = inlined_call_operand.vmem [shape: f32[1,32], index: 10, kind: input, shape index: {}]
  %s11 = inlined_call_operand.vmem [shape: bf16[387,16], index: 11, kind: input, shape index: {}]
  %s12 = inlined_call_operand.vmem [shape: f32[1,16], index: 12, kind: input, shape index: {}]
  %s13 = inlined_call_operand.vmem [shape: bf16[288,32], index: 13, kind: input, shape index: {}]
  %s14 = inlined_call_operand.vmem [shape: f32[1,32], index: 14, kind: input, shape index: {}]
  %s15 = inlined_call_operand.vmem [shape: bf16[288,16], index: 15, kind: input, shape index: {}]
  %s16 = inlined_call_operand.vmem [shape: f32[1,16], index: 16, kind: input, shape index: {}]
  %s17 = inlined_call_operand.vmem [shape: bf16[16,256], index: 17, kind: input, shape index: {}]
  %s18 = inlined_call_operand.vmem [shape: bf16[256,48], index: 18, kind: input, shape index: {}]
  %s19 = inlined_call_operand.vmem [shape: f32[1,48], index: 19, kind: input, shape index: {}]
  %s20 = inlined_call_operand.vmem [shape: f32[2,64,48], index: 20, kind: output, shape index: {0}]
  %s21 = inlined_call_operand.vmem [shape: f32[2,64,8], index: 21, kind: output, shape index: {1}]
  %22 = xla_tuple %s20, %s21
  %s23 = sld [smem:[#allocation0]]
  $region129: #{generator_forward.1} parent=0
    _
  %s25 = ssub.s32 1, %s23
  %s26 = scalar_select 0, %s25, %s23
  loop: start=0, step=1, limit=6
  $region2: #{generator_forward.1} parent=0 // loop_pre_header
    _
  $region3: #{generator_forward.1} parent=0 // loop_header
    %s28 = sphi 0, %s32
    %p29 = scmp.ge.s32.totalorder %s28, 6
    %s35 = sphi 0, %s47
    %s36 = sphi 0, %s43
    %s37 = sphi 0, %s35
    %s38 = sphi 0, %s36
    %s39 = sphi 0, %s37
    %s40 = sphi 0, %s38
    %s48 = sphi 0, %s48
    %s50 = sphi 0, %s48
    %s51 = sphi 0, %s50
    %s65 = sphi 0, %s51
    %s71 = sphi 0, %s73
    %s74 = sphi 0, %s71
    %s75 = sphi 0, %s74
    %s91 = sphi 0, %s75
    %s97 = sphi 0, %s99
    %s100 = sphi 0, %s97
    %s101 = sphi 0, %s100
    %s117 = sphi 0, %s101
    %s125 = sphi 0, %s127
    %s128 = sphi 0, %s125
    %s129 = sphi 0, %s128
    %s145 = sphi 0, %s129
    %s149 = sphi 0, %s149
    %s151 = sphi 0, %s149
    %s152 = sphi 0, %s151
    %s166 = sphi 0, %s152
    %s170 = sphi 0, %s170
    %s172 = sphi 0, %s170
    %s173 = sphi 0, %s172
    %s187 = sphi 0, %s173
    %s191 = sphi 0, %s191
    %s193 = sphi 0, %s191
    %s194 = sphi 0, %s193
    %s208 = sphi 0, %s194
    %s212 = sphi 0, %s212
    %s214 = sphi 0, %s212
    %s215 = sphi 0, %s214
    %s229 = sphi 0, %s215
    %s233 = sphi 0, %s233
    %s235 = sphi 0, %s233
    %s236 = sphi 0, %s235
    %s250 = sphi 0, %s236
    %s254 = sphi 0, %s254
    %s256 = sphi 0, %s254
    %s257 = sphi 0, %s256
    %s271 = sphi 0, %s257
    %s275 = sphi 0, %s275
    %s277 = sphi 0, %s275
    %s278 = sphi 0, %s277
    %s292 = sphi 0, %s278
    %s296 = sphi 0, %s296
    %s298 = sphi 0, %s296
    %s299 = sphi 0, %s298
    %s313 = sphi 0, %s299
    %s317 = sphi 0, %s317
    %s319 = sphi 0, %s317
    %s320 = sphi 0, %s319
    %s334 = sphi 0, %s320
    %s338 = sphi 0, %s338
    %s340 = sphi 0, %s338
    %s341 = sphi 0, %s340
    %s355 = sphi 0, %s341
    %s359 = sphi 0, %s359
    %s361 = sphi 0, %s359
    %s362 = sphi 0, %s361
    %s376 = sphi 0, %s362
    %s380 = sphi 0, %s380
    %s382 = sphi 0, %s380
    %s383 = sphi 0, %s382
    %s397 = sphi 0, %s383
    %s401 = sphi 0, %s401
    %s403 = sphi 0, %s401
    %s404 = sphi 0, %s403
    %s418 = sphi 0, %s404
    %s422 = sphi 0, %s422
    %s424 = sphi 0, %s422
    %s425 = sphi 0, %s424
    %s439 = sphi 0, %s425
    %s443 = sphi 0, %s443
    %s445 = sphi 0, %s443
    %s446 = sphi 0, %s445
    %s460 = sphi 0, %s446
    %s464 = sphi 0, %s464
    %s466 = sphi 0, %s464
    %s467 = sphi 0, %s466
    %s481 = sphi 0, %s467
    %s487 = sphi 0, %s489
    %s490 = sphi 0, %s487
    %s491 = sphi 0, %s490
    %s507 = sphi 0, %s491
    %s513 = sphi 0, %s515
    %s516 = sphi 0, %s513
    %s517 = sphi 0, %s516
    %s533 = sphi 0, %s517
  $region4: #{generator_forward.1} parent=0 // loop_header_branch
    %31 = sbr.rel (%p29) target = $region8
  $region5: #{generator_forward.1} parent=0 // loop_body
    %s33 = ssub.s32 %s28, 1
    %s34 = ssub.s32 %s28, 2
    %s41 = sadd.s32 1, %s36
    %p42 = scmp.ge.s32.totalorder %s41, 2
    %s43 = scalar_select %p42, 0, %s41
    %s44 = sadd.s32 1, %s35
    %s45 = scalar_select %p42, %s44, %s35
    %p46 = scmp.ge.s32.totalorder %s45, 2
    %s47 = scalar_select %p46, 0, %s45
    %s49 = sadd.s32 %s48, 1
    %p52 = scmp.eq.s32.totalorder %s28, 3
    %p53 = scmp.ne.s32.totalorder %s48, %s50
    %p54 = scmp.eq.s32.totalorder %s28, 0
    %p55 = por %p53, %p54
    %p56 = scmp.ne.s32.totalorder %s48, %s50
    %p57 = scmp.eq.s32.totalorder %s33, 3
    %p58 = por %p56, %p57
    %p59 = scmp.ne.s32.totalorder %s50, %s51
    %p60 = scmp.eq.s32.totalorder %s33, 0
    %p61 = por %p59, %p60
    %p62 = scmp.ne.s32.totalorder %s50, %s51
    %p63 = scmp.eq.s32.totalorder %s34, 3
    %p64 = por %p62, %p63
    %p66 = scmp.ne.s32.totalorder %s51, %s65
    %p67 = scmp.eq.s32.totalorder %s34, 0
    %p68 = por %p66, %p67
    %s69 = ssub.s32 %s35, %s47
    %p70 = scmp.eq.s32.totalorder %s69, 0
    %s72 = sadd.s32 %s71, 1
    %s73 = scalar_select %p70, %s71, %s72
    %p76 = pneg %p70
    %p77 = scmp.eq.s32.totalorder %s28, 3
    %p78 = por %p76, %p77
    %p79 = scmp.ne.s32.totalorder %s71, %s74
    %p80 = scmp.eq.s32.totalorder %s28, 0
    %p81 = por %p79, %p80
    %p82 = scmp.ne.s32.totalorder %s71, %s74
    %p83 = scmp.eq.s32.totalorder %s33, 3
    %p84 = por %p82, %p83
    %p85 = scmp.ne.s32.totalorder %s74, %s75
    %p86 = scmp.eq.s32.totalorder %s33, 0
    %p87 = por %p85, %p86
    %p88 = scmp.ne.s32.totalorder %s74, %s75
    %p89 = scmp.eq.s32.totalorder %s34, 3
    %p90 = por %p88, %p89
    %p92 = scmp.ne.s32.totalorder %s75, %s91
    %p93 = scmp.eq.s32.totalorder %s34, 0
    %p94 = por %p92, %p93
    %s95 = ssub.s32 %s35, %s47
    %p96 = scmp.eq.s32.totalorder %s95, 0
    %s98 = sadd.s32 %s97, 1
    %s99 = scalar_select %p96, %s97, %s98
    %p102 = pneg %p96
    %p103 = scmp.eq.s32.totalorder %s28, 3
    %p104 = por %p102, %p103
    %p105 = scmp.ne.s32.totalorder %s97, %s100
    %p106 = scmp.eq.s32.totalorder %s28, 0
    %p107 = por %p105, %p106
    %p108 = scmp.ne.s32.totalorder %s97, %s100
    %p109 = scmp.eq.s32.totalorder %s33, 3
    %p110 = por %p108, %p109
    %p111 = scmp.ne.s32.totalorder %s100, %s101
    %p112 = scmp.eq.s32.totalorder %s33, 0
    %p113 = por %p111, %p112
    %p114 = scmp.ne.s32.totalorder %s100, %s101
    %p115 = scmp.eq.s32.totalorder %s34, 3
    %p116 = por %p114, %p115
    %p118 = scmp.ne.s32.totalorder %s101, %s117
    %p119 = scmp.eq.s32.totalorder %s34, 0
    %p120 = por %p118, %p119
    %s121 = ssub.s32 %s35, %s47
    %s122 = ssub.s32 %s36, %s43
    %s123 = sor.u32 %s121, %s122
    %p124 = scmp.eq.s32.totalorder %s123, 0
    %s126 = sadd.s32 %s125, 1
    %s127 = scalar_select %p124, %s125, %s126
    %p130 = pneg %p124
    %p131 = scmp.eq.s32.totalorder %s28, 3
    %p132 = por %p130, %p131
    %p133 = scmp.ne.s32.totalorder %s125, %s128
    %p134 = scmp.eq.s32.totalorder %s28, 0
    %p135 = por %p133, %p134
    %p136 = scmp.ne.s32.totalorder %s125, %s128
    %p137 = scmp.eq.s32.totalorder %s33, 3
    %p138 = por %p136, %p137
    %p139 = scmp.ne.s32.totalorder %s128, %s129
    %p140 = scmp.eq.s32.totalorder %s33, 0
    %p141 = por %p139, %p140
    %p142 = scmp.ne.s32.totalorder %s128, %s129
    %p143 = scmp.eq.s32.totalorder %s34, 3
    %p144 = por %p142, %p143
    %p146 = scmp.ne.s32.totalorder %s129, %s145
    %p147 = scmp.eq.s32.totalorder %s34, 0
    %p148 = por %p146, %p147
    %s150 = sadd.s32 %s149, 1
    %p153 = scmp.eq.s32.totalorder %s28, 3
    %p154 = scmp.ne.s32.totalorder %s149, %s151
    %p155 = scmp.eq.s32.totalorder %s28, 0
    %p156 = por %p154, %p155
    %p157 = scmp.ne.s32.totalorder %s149, %s151
    %p158 = scmp.eq.s32.totalorder %s33, 3
    %p159 = por %p157, %p158
    %p160 = scmp.ne.s32.totalorder %s151, %s152
    %p161 = scmp.eq.s32.totalorder %s33, 0
    %p162 = por %p160, %p161
    %p163 = scmp.ne.s32.totalorder %s151, %s152
    %p164 = scmp.eq.s32.totalorder %s34, 3
    %p165 = por %p163, %p164
    %p167 = scmp.ne.s32.totalorder %s152, %s166
    %p168 = scmp.eq.s32.totalorder %s34, 0
    %p169 = por %p167, %p168
    %s171 = sadd.s32 %s170, 1
    %p174 = scmp.eq.s32.totalorder %s28, 3
    %p175 = scmp.ne.s32.totalorder %s170, %s172
    %p176 = scmp.eq.s32.totalorder %s28, 0
    %p177 = por %p175, %p176
    %p178 = scmp.ne.s32.totalorder %s170, %s172
    %p179 = scmp.eq.s32.totalorder %s33, 3
    %p180 = por %p178, %p179
    %p181 = scmp.ne.s32.totalorder %s172, %s173
    %p182 = scmp.eq.s32.totalorder %s33, 0
    %p183 = por %p181, %p182
    %p184 = scmp.ne.s32.totalorder %s172, %s173
    %p185 = scmp.eq.s32.totalorder %s34, 3
    %p186 = por %p184, %p185
    %p188 = scmp.ne.s32.totalorder %s173, %s187
    %p189 = scmp.eq.s32.totalorder %s34, 0
    %p190 = por %p188, %p189
    %s192 = sadd.s32 %s191, 1
    %p195 = scmp.eq.s32.totalorder %s28, 3
    %p196 = scmp.ne.s32.totalorder %s191, %s193
    %p197 = scmp.eq.s32.totalorder %s28, 0
    %p198 = por %p196, %p197
    %p199 = scmp.ne.s32.totalorder %s191, %s193
    %p200 = scmp.eq.s32.totalorder %s33, 3
    %p201 = por %p199, %p200
    %p202 = scmp.ne.s32.totalorder %s193, %s194
    %p203 = scmp.eq.s32.totalorder %s33, 0
    %p204 = por %p202, %p203
    %p205 = scmp.ne.s32.totalorder %s193, %s194
    %p206 = scmp.eq.s32.totalorder %s34, 3
    %p207 = por %p205, %p206
    %p209 = scmp.ne.s32.totalorder %s194, %s208
    %p210 = scmp.eq.s32.totalorder %s34, 0
    %p211 = por %p209, %p210
    %s213 = sadd.s32 %s212, 1
    %p216 = scmp.eq.s32.totalorder %s28, 3
    %p217 = scmp.ne.s32.totalorder %s212, %s214
    %p218 = scmp.eq.s32.totalorder %s28, 0
    %p219 = por %p217, %p218
    %p220 = scmp.ne.s32.totalorder %s212, %s214
    %p221 = scmp.eq.s32.totalorder %s33, 3
    %p222 = por %p220, %p221
    %p223 = scmp.ne.s32.totalorder %s214, %s215
    %p224 = scmp.eq.s32.totalorder %s33, 0
    %p225 = por %p223, %p224
    %p226 = scmp.ne.s32.totalorder %s214, %s215
    %p227 = scmp.eq.s32.totalorder %s34, 3
    %p228 = por %p226, %p227
    %p230 = scmp.ne.s32.totalorder %s215, %s229
    %p231 = scmp.eq.s32.totalorder %s34, 0
    %p232 = por %p230, %p231
    %s234 = sadd.s32 %s233, 1
    %p237 = scmp.eq.s32.totalorder %s28, 3
    %p238 = scmp.ne.s32.totalorder %s233, %s235
    %p239 = scmp.eq.s32.totalorder %s28, 0
    %p240 = por %p238, %p239
    %p241 = scmp.ne.s32.totalorder %s233, %s235
    %p242 = scmp.eq.s32.totalorder %s33, 3
    %p243 = por %p241, %p242
    %p244 = scmp.ne.s32.totalorder %s235, %s236
    %p245 = scmp.eq.s32.totalorder %s33, 0
    %p246 = por %p244, %p245
    %p247 = scmp.ne.s32.totalorder %s235, %s236
    %p248 = scmp.eq.s32.totalorder %s34, 3
    %p249 = por %p247, %p248
    %p251 = scmp.ne.s32.totalorder %s236, %s250
    %p252 = scmp.eq.s32.totalorder %s34, 0
    %p253 = por %p251, %p252
    %s255 = sadd.s32 %s254, 1
    %p258 = scmp.eq.s32.totalorder %s28, 3
    %p259 = scmp.ne.s32.totalorder %s254, %s256
    %p260 = scmp.eq.s32.totalorder %s28, 0
    %p261 = por %p259, %p260
    %p262 = scmp.ne.s32.totalorder %s254, %s256
    %p263 = scmp.eq.s32.totalorder %s33, 3
    %p264 = por %p262, %p263
    %p265 = scmp.ne.s32.totalorder %s256, %s257
    %p266 = scmp.eq.s32.totalorder %s33, 0
    %p267 = por %p265, %p266
    %p268 = scmp.ne.s32.totalorder %s256, %s257
    %p269 = scmp.eq.s32.totalorder %s34, 3
    %p270 = por %p268, %p269
    %p272 = scmp.ne.s32.totalorder %s257, %s271
    %p273 = scmp.eq.s32.totalorder %s34, 0
    %p274 = por %p272, %p273
    %s276 = sadd.s32 %s275, 1
    %p279 = scmp.eq.s32.totalorder %s28, 3
    %p280 = scmp.ne.s32.totalorder %s275, %s277
    %p281 = scmp.eq.s32.totalorder %s28, 0
    %p282 = por %p280, %p281
    %p283 = scmp.ne.s32.totalorder %s275, %s277
    %p284 = scmp.eq.s32.totalorder %s33, 3
    %p285 = por %p283, %p284
    %p286 = scmp.ne.s32.totalorder %s277, %s278
    %p287 = scmp.eq.s32.totalorder %s33, 0
    %p288 = por %p286, %p287
    %p289 = scmp.ne.s32.totalorder %s277, %s278
    %p290 = scmp.eq.s32.totalorder %s34, 3
    %p291 = por %p289, %p290
    %p293 = scmp.ne.s32.totalorder %s278, %s292
    %p294 = scmp.eq.s32.totalorder %s34, 0
    %p295 = por %p293, %p294
    %s297 = sadd.s32 %s296, 1
    %p300 = scmp.eq.s32.totalorder %s28, 3
    %p301 = scmp.ne.s32.totalorder %s296, %s298
    %p302 = scmp.eq.s32.totalorder %s28, 0
    %p303 = por %p301, %p302
    %p304 = scmp.ne.s32.totalorder %s296, %s298
    %p305 = scmp.eq.s32.totalorder %s33, 3
    %p306 = por %p304, %p305
    %p307 = scmp.ne.s32.totalorder %s298, %s299
    %p308 = scmp.eq.s32.totalorder %s33, 0
    %p309 = por %p307, %p308
    %p310 = scmp.ne.s32.totalorder %s298, %s299
    %p311 = scmp.eq.s32.totalorder %s34, 3
    %p312 = por %p310, %p311
    %p314 = scmp.ne.s32.totalorder %s299, %s313
    %p315 = scmp.eq.s32.totalorder %s34, 0
    %p316 = por %p314, %p315
    %s318 = sadd.s32 %s317, 1
    %p321 = scmp.eq.s32.totalorder %s28, 3
    %p322 = scmp.ne.s32.totalorder %s317, %s319
    %p323 = scmp.eq.s32.totalorder %s28, 0
    %p324 = por %p322, %p323
    %p325 = scmp.ne.s32.totalorder %s317, %s319
    %p326 = scmp.eq.s32.totalorder %s33, 3
    %p327 = por %p325, %p326
    %p328 = scmp.ne.s32.totalorder %s319, %s320
    %p329 = scmp.eq.s32.totalorder %s33, 0
    %p330 = por %p328, %p329
    %p331 = scmp.ne.s32.totalorder %s319, %s320
    %p332 = scmp.eq.s32.totalorder %s34, 3
    %p333 = por %p331, %p332
    %p335 = scmp.ne.s32.totalorder %s320, %s334
    %p336 = scmp.eq.s32.totalorder %s34, 0
    %p337 = por %p335, %p336
    %s339 = sadd.s32 %s338, 1
    %p342 = scmp.eq.s32.totalorder %s28, 3
    %p343 = scmp.ne.s32.totalorder %s338, %s340
    %p344 = scmp.eq.s32.totalorder %s28, 0
    %p345 = por %p343, %p344
    %p346 = scmp.ne.s32.totalorder %s338, %s340
    %p347 = scmp.eq.s32.totalorder %s33, 3
    %p348 = por %p346, %p347
    %p349 = scmp.ne.s32.totalorder %s340, %s341
    %p350 = scmp.eq.s32.totalorder %s33, 0
    %p351 = por %p349, %p350
    %p352 = scmp.ne.s32.totalorder %s340, %s341
    %p353 = scmp.eq.s32.totalorder %s34, 3
    %p354 = por %p352, %p353
    %p356 = scmp.ne.s32.totalorder %s341, %s355
    %p357 = scmp.eq.s32.totalorder %s34, 0
    %p358 = por %p356, %p357
    %s360 = sadd.s32 %s359, 1
    %p363 = scmp.eq.s32.totalorder %s28, 3
    %p364 = scmp.ne.s32.totalorder %s359, %s361
    %p365 = scmp.eq.s32.totalorder %s28, 0
    %p366 = por %p364, %p365
    %p367 = scmp.ne.s32.totalorder %s359, %s361
    %p368 = scmp.eq.s32.totalorder %s33, 3
    %p369 = por %p367, %p368
    %p370 = scmp.ne.s32.totalorder %s361, %s362
    %p371 = scmp.eq.s32.totalorder %s33, 0
    %p372 = por %p370, %p371
    %p373 = scmp.ne.s32.totalorder %s361, %s362
    %p374 = scmp.eq.s32.totalorder %s34, 3
    %p375 = por %p373, %p374
    %p377 = scmp.ne.s32.totalorder %s362, %s376
    %p378 = scmp.eq.s32.totalorder %s34, 0
    %p379 = por %p377, %p378
    %s381 = sadd.s32 %s380, 1
    %p384 = scmp.eq.s32.totalorder %s28, 3
    %p385 = scmp.ne.s32.totalorder %s380, %s382
    %p386 = scmp.eq.s32.totalorder %s28, 0
    %p387 = por %p385, %p386
    %p388 = scmp.ne.s32.totalorder %s380, %s382
    %p389 = scmp.eq.s32.totalorder %s33, 3
    %p390 = por %p388, %p389
    %p391 = scmp.ne.s32.totalorder %s382, %s383
    %p392 = scmp.eq.s32.totalorder %s33, 0
    %p393 = por %p391, %p392
    %p394 = scmp.ne.s32.totalorder %s382, %s383
    %p395 = scmp.eq.s32.totalorder %s34, 3
    %p396 = por %p394, %p395
    %p398 = scmp.ne.s32.totalorder %s383, %s397
    %p399 = scmp.eq.s32.totalorder %s34, 0
    %p400 = por %p398, %p399
    %s402 = sadd.s32 %s401, 1
    %p405 = scmp.eq.s32.totalorder %s28, 3
    %p406 = scmp.ne.s32.totalorder %s401, %s403
    %p407 = scmp.eq.s32.totalorder %s28, 0
    %p408 = por %p406, %p407
    %p409 = scmp.ne.s32.totalorder %s401, %s403
    %p410 = scmp.eq.s32.totalorder %s33, 3
    %p411 = por %p409, %p410
    %p412 = scmp.ne.s32.totalorder %s403, %s404
    %p413 = scmp.eq.s32.totalorder %s33, 0
    %p414 = por %p412, %p413
    %p415 = scmp.ne.s32.totalorder %s403, %s404
    %p416 = scmp.eq.s32.totalorder %s34, 3
    %p417 = por %p415, %p416
    %p419 = scmp.ne.s32.totalorder %s404, %s418
    %p420 = scmp.eq.s32.totalorder %s34, 0
    %p421 = por %p419, %p420
    %s423 = sadd.s32 %s422, 1
    %p426 = scmp.eq.s32.totalorder %s28, 3
    %p427 = scmp.ne.s32.totalorder %s422, %s424
    %p428 = scmp.eq.s32.totalorder %s28, 0
    %p429 = por %p427, %p428
    %p430 = scmp.ne.s32.totalorder %s422, %s424
    %p431 = scmp.eq.s32.totalorder %s33, 3
    %p432 = por %p430, %p431
    %p433 = scmp.ne.s32.totalorder %s424, %s425
    %p434 = scmp.eq.s32.totalorder %s33, 0
    %p435 = por %p433, %p434
    %p436 = scmp.ne.s32.totalorder %s424, %s425
    %p437 = scmp.eq.s32.totalorder %s34, 3
    %p438 = por %p436, %p437
    %p440 = scmp.ne.s32.totalorder %s425, %s439
    %p441 = scmp.eq.s32.totalorder %s34, 0
    %p442 = por %p440, %p441
    %s444 = sadd.s32 %s443, 1
    %p447 = scmp.eq.s32.totalorder %s28, 3
    %p448 = scmp.ne.s32.totalorder %s443, %s445
    %p449 = scmp.eq.s32.totalorder %s28, 0
    %p450 = por %p448, %p449
    %p451 = scmp.ne.s32.totalorder %s443, %s445
    %p452 = scmp.eq.s32.totalorder %s33, 3
    %p453 = por %p451, %p452
    %p454 = scmp.ne.s32.totalorder %s445, %s446
    %p455 = scmp.eq.s32.totalorder %s33, 0
    %p456 = por %p454, %p455
    %p457 = scmp.ne.s32.totalorder %s445, %s446
    %p458 = scmp.eq.s32.totalorder %s34, 3
    %p459 = por %p457, %p458
    %p461 = scmp.ne.s32.totalorder %s446, %s460
    %p462 = scmp.eq.s32.totalorder %s34, 0
    %p463 = por %p461, %p462
    %s465 = sadd.s32 %s464, 1
    %p468 = scmp.eq.s32.totalorder %s28, 3
    %p469 = scmp.ne.s32.totalorder %s464, %s466
    %p470 = scmp.eq.s32.totalorder %s28, 0
    %p471 = por %p469, %p470
    %p472 = scmp.ne.s32.totalorder %s464, %s466
    %p473 = scmp.eq.s32.totalorder %s33, 3
    %p474 = por %p472, %p473
    %p475 = scmp.ne.s32.totalorder %s466, %s467
    %p476 = scmp.eq.s32.totalorder %s33, 0
    %p477 = por %p475, %p476
    %p478 = scmp.ne.s32.totalorder %s466, %s467
    %p479 = scmp.eq.s32.totalorder %s34, 3
    %p480 = por %p478, %p479
    %p482 = scmp.ne.s32.totalorder %s467, %s481
    %p483 = scmp.eq.s32.totalorder %s34, 0
    %p484 = por %p482, %p483
    %s485 = ssub.s32 %s35, %s47
    %p486 = scmp.eq.s32.totalorder %s485, 0
    %s488 = sadd.s32 %s487, 1
    %s489 = scalar_select %p486, %s487, %s488
    %p492 = pneg %p486
    %p493 = scmp.eq.s32.totalorder %s28, 3
    %p494 = por %p492, %p493
    %p495 = scmp.ne.s32.totalorder %s487, %s490
    %p496 = scmp.eq.s32.totalorder %s28, 0
    %p497 = por %p495, %p496
    %p498 = scmp.ne.s32.totalorder %s487, %s490
    %p499 = scmp.eq.s32.totalorder %s33, 3
    %p500 = por %p498, %p499
    %p501 = scmp.ne.s32.totalorder %s490, %s491
    %p502 = scmp.eq.s32.totalorder %s33, 0
    %p503 = por %p501, %p502
    %p504 = scmp.ne.s32.totalorder %s490, %s491
    %p505 = scmp.eq.s32.totalorder %s34, 3
    %p506 = por %p504, %p505
    %p508 = scmp.ne.s32.totalorder %s491, %s507
    %p509 = scmp.eq.s32.totalorder %s34, 0
    %p510 = por %p508, %p509
    %s511 = ssub.s32 %s35, %s47
    %p512 = scmp.eq.s32.totalorder %s511, 0
    %s514 = sadd.s32 %s513, 1
    %s515 = scalar_select %p512, %s513, %s514
    %p518 = pneg %p512
    %p519 = scmp.eq.s32.totalorder %s28, 3
    %p520 = por %p518, %p519
    %p521 = scmp.ne.s32.totalorder %s513, %s516
    %p522 = scmp.eq.s32.totalorder %s28, 0
    %p523 = por %p521, %p522
    %p524 = scmp.ne.s32.totalorder %s513, %s516
    %p525 = scmp.eq.s32.totalorder %s33, 3
    %p526 = por %p524, %p525
    %p527 = scmp.ne.s32.totalorder %s516, %s517
    %p528 = scmp.eq.s32.totalorder %s33, 0
    %p529 = por %p527, %p528
    %p530 = scmp.ne.s32.totalorder %s516, %s517
    %p531 = scmp.eq.s32.totalorder %s34, 3
    %p532 = por %p530, %p531
    %p534 = scmp.ne.s32.totalorder %s517, %s533
    %p535 = scmp.eq.s32.totalorder %s34, 0
    %p536 = por %p534, %p535
    %p537 = scmp.le.s32.totalorder 1, %s28
    %p538 = scmp.lt.s32.totalorder %s28, 5
    %p539 = pnand %p537, %p538
    %p540 = pneg %p539
    // Predicated region
    $region9: #{generator_forward.1} parent=5 // pred_check
      _
    $region10: #{generator_forward.1} parent=5 // pred_check_branch
      %542 = sbr.rel (%p539) target = $region12
    $region11: #{generator_forward.1} parent=5 // pred_region
      %s543 = ssub.s32 %s28, 1
      // Predicated region
      $region13: #{generator_forward.1} parent=11 // pred_check
        %p544 = pneg %p61
      $region14: #{generator_forward.1} parent=11 // pred_check_branch
        %546 = sbr.rel (%p544) target = $region16
      $region15: #{generator_forward.1} parent=11 // pred_region
        _
      $region16: #{generator_forward.1} parent=11 // pred_fallthru
        _
      // Predicated region
      $region17: #{generator_forward.1} parent=11 // pred_check
        %p547 = pneg %p162
      $region18: #{generator_forward.1} parent=11 // pred_check_branch
        %549 = sbr.rel (%p547) target = $region20
      $region19: #{generator_forward.1} parent=11 // pred_region
        _
      $region20: #{generator_forward.1} parent=11 // pred_fallthru
        _
      // Predicated region
      $region21: #{generator_forward.1} parent=11 // pred_check
        %p550 = pneg %p183
      $region22: #{generator_forward.1} parent=11 // pred_check_branch
        %552 = sbr.rel (%p550) target = $region24
      $region23: #{generator_forward.1} parent=11 // pred_region
        _
      $region24: #{generator_forward.1} parent=11 // pred_fallthru
        _
      // Predicated region
      $region25: #{generator_forward.1} parent=11 // pred_check
        %p553 = pneg %p204
      $region26: #{generator_forward.1} parent=11 // pred_check_branch
        %555 = sbr.rel (%p553) target = $region28
      $region27: #{generator_forward.1} parent=11 // pred_region
        _
      $region28: #{generator_forward.1} parent=11 // pred_fallthru
        _
      // Predicated region
      $region29: #{generator_forward.1} parent=11 // pred_check
        %p556 = pneg %p225
      $region30: #{generator_forward.1} parent=11 // pred_check_branch
        %558 = sbr.rel (%p556) target = $region32
      $region31: #{generator_forward.1} parent=11 // pred_region
        _
      $region32: #{generator_forward.1} parent=11 // pred_fallthru
        _
      // Predicated region
      $region33: #{generator_forward.1} parent=11 // pred_check
        %p559 = pneg %p246
      $region34: #{generator_forward.1} parent=11 // pred_check_branch
        %561 = sbr.rel (%p559) target = $region36
      $region35: #{generator_forward.1} parent=11 // pred_region
        _
      $region36: #{generator_forward.1} parent=11 // pred_fallthru
        _
      // Predicated region
      $region37: #{generator_forward.1} parent=11 // pred_check
        %p562 = pneg %p267
      $region38: #{generator_forward.1} parent=11 // pred_check_branch
        %564 = sbr.rel (%p562) target = $region40
      $region39: #{generator_forward.1} parent=11 // pred_region
        _
      $region40: #{generator_forward.1} parent=11 // pred_fallthru
        _
      // Predicated region
      $region41: #{generator_forward.1} parent=11 // pred_check
        %p565 = pneg %p288
      $region42: #{generator_forward.1} parent=11 // pred_check_branch
        %567 = sbr.rel (%p565) target = $region44
      $region43: #{generator_forward.1} parent=11 // pred_region
        _
      $region44: #{generator_forward.1} parent=11 // pred_fallthru
        _
      // Predicated region
      $region45: #{generator_forward.1} parent=11 // pred_check
        %p568 = pneg %p309
      $region46: #{generator_forward.1} parent=11 // pred_check_branch
        %570 = sbr.rel (%p568) target = $region48
      $region47: #{generator_forward.1} parent=11 // pred_region
        _
      $region48: #{generator_forward.1} parent=11 // pred_fallthru
        _
      // Predicated region
      $region49: #{generator_forward.1} parent=11 // pred_check
        %p571 = pneg %p330
      $region50: #{generator_forward.1} parent=11 // pred_check_branch
        %573 = sbr.rel (%p571) target = $region52
      $region51: #{generator_forward.1} parent=11 // pred_region
        _
      $region52: #{generator_forward.1} parent=11 // pred_fallthru
        _
      // Predicated region
      $region53: #{generator_forward.1} parent=11 // pred_check
        %p574 = pneg %p351
      $region54: #{generator_forward.1} parent=11 // pred_check_branch
        %576 = sbr.rel (%p574) target = $region56
      $region55: #{generator_forward.1} parent=11 // pred_region
        _
      $region56: #{generator_forward.1} parent=11 // pred_fallthru
        _
      // Predicated region
      $region57: #{generator_forward.1} parent=11 // pred_check
        %p577 = pneg %p372
      $region58: #{generator_forward.1} parent=11 // pred_check_branch
        %579 = sbr.rel (%p577) target = $region60
      $region59: #{generator_forward.1} parent=11 // pred_region
        _
      $region60: #{generator_forward.1} parent=11 // pred_fallthru
        _
      // Predicated region
      $region61: #{generator_forward.1} parent=11 // pred_check
        %p580 = pneg %p393
      $region62: #{generator_forward.1} parent=11 // pred_check_branch
        %582 = sbr.rel (%p580) target = $region64
      $region63: #{generator_forward.1} parent=11 // pred_region
        _
      $region64: #{generator_forward.1} parent=11 // pred_fallthru
        _
      // Predicated region
      $region65: #{generator_forward.1} parent=11 // pred_check
        %p583 = pneg %p414
      $region66: #{generator_forward.1} parent=11 // pred_check_branch
        %585 = sbr.rel (%p583) target = $region68
      $region67: #{generator_forward.1} parent=11 // pred_region
        _
      $region68: #{generator_forward.1} parent=11 // pred_fallthru
        _
      // Predicated region
      $region69: #{generator_forward.1} parent=11 // pred_check
        %p586 = pneg %p435
      $region70: #{generator_forward.1} parent=11 // pred_check_branch
        %588 = sbr.rel (%p586) target = $region72
      $region71: #{generator_forward.1} parent=11 // pred_region
        _
      $region72: #{generator_forward.1} parent=11 // pred_fallthru
        _
      // Predicated region
      $region73: #{generator_forward.1} parent=11 // pred_check
        %p589 = pneg %p456
      $region74: #{generator_forward.1} parent=11 // pred_check_branch
        %591 = sbr.rel (%p589) target = $region76
      $region75: #{generator_forward.1} parent=11 // pred_region
        _
      $region76: #{generator_forward.1} parent=11 // pred_fallthru
        _
      // Predicated region
      $region77: #{generator_forward.1} parent=11 // pred_check
        %p592 = pneg %p477
      $region78: #{generator_forward.1} parent=11 // pred_check_branch
        %594 = sbr.rel (%p592) target = $region80
      $region79: #{generator_forward.1} parent=11 // pred_region
        _
      $region80: #{generator_forward.1} parent=11 // pred_fallthru
        _
    $region12: #{generator_forward.1} parent=5 // pred_fallthru
      _
    %p595 = scmp.lt.s32.totalorder %s28, 4
    // Predicated region
    $region81: #{generator_forward.1} parent=5 // pred_check
      %p596 = pneg %p595
    $region82: #{generator_forward.1} parent=5 // pred_check_branch
      %598 = sbr.rel (%p596) target = $region84
    $region83: #{generator_forward.1} parent=5 // pred_region
      // Predicated region
      $region85: #{generator_forward.1} parent=83 // pred_check
        %p599 = pneg %p81
      $region86: #{generator_forward.1} parent=83 // pred_check_branch
        %601 = sbr.rel (%p599) target = $region88
      $region87: #{generator_forward.1} parent=83 // pred_region
        %p602 = scmp.lt.s32.totalorder %s35, 1
        %s603 = scalar_select %p602, %s35, 1
        %s604 = smul.addr %s603, 8
        %s605 = smul.addr %s604, 8
        %s606 = scalar_lea.vmem %s1, %s605
      $region88: #{generator_forward.1} parent=83 // pred_fallthru
        _
      // Predicated region
      $region89: #{generator_forward.1} parent=83 // pred_check
        %p607 = pneg %p107
      $region90: #{generator_forward.1} parent=83 // pred_check_branch
        %609 = sbr.rel (%p607) target = $region92
      $region91: #{generator_forward.1} parent=83 // pred_region
        %p610 = scmp.lt.s32.totalorder %s35, 1
        %s611 = scalar_select %p610, %s35, 1
        %s612 = smul.addr %s611, 14
        %s613 = smul.addr %s612, 8
        %s614 = scalar_lea.vmem %s2, %s613
      $region92: #{generator_forward.1} parent=83 // pred_fallthru
        _
      // Predicated region
      $region93: #{generator_forward.1} parent=83 // pred_check
        %p615 = pneg %p135
      $region94: #{generator_forward.1} parent=83 // pred_check_branch
        %617 = sbr.rel (%p615) target = $region96
      $region95: #{generator_forward.1} parent=83 // pred_region
        %p618 = scmp.lt.s32.totalorder %s35, 1
        %s619 = scalar_select %p618, %s35, 1
        %p620 = scmp.lt.s32.totalorder %s36, 1
        %s621 = scalar_select %p620, %s36, 1
        %s622 = smul.addr %s621, 8
        %s623 = smul.addr %s619, 16
        %s624 = sadd.s32 %s622, %s623
        %s625 = smul.addr %s624, 8
        %s626 = scalar_lea.vmem %s3, %s625
      $region96: #{generator_forward.1} parent=83 // pred_fallthru
        _
    $region84: #{generator_forward.1} parent=5 // pred_fallthru
      _
    %p627 = scmp.le.s32.totalorder 1, %s28
    %p628 = scmp.lt.s32.totalorder %s28, 5
    %p629 = pnand %p627, %p628
    %p630 = pneg %p629
    // Predicated region
    $region97: #{generator_forward.1} parent=5 // pred_check
      _
    $region98: #{generator_forward.1} parent=5 // pred_check_branch
      %632 = sbr.rel (%p629) target = $region100
    $region99: #{generator_forward.1} parent=5 // pred_region
      %s633 = ssub.s32 %s28, 1
      %p634 = pneg %p61
      %p635 = pneg %p58
      %p636 = scmp.lt.s32.totalorder %s37, 1
      %s637 = scalar_select %p636, %s37, 1
      %s638 = smul.addr %s637, 8
      %s639 = smul.addr %s638, 8
      %s640 = scalar_lea.vmem %s1, %s639
      %p641 = pneg %p87
      %p642 = pneg %p84
      %p643 = scmp.lt.s32.totalorder %s37, 1
      %s644 = scalar_select %p643, %s37, 1
      %s645 = smul.addr %s644, 14
      %s646 = smul.addr %s645, 8
      %s647 = scalar_lea.vmem %s2, %s646
      %p648 = pneg %p113
      %p649 = pneg %p110
      %p650 = scmp.lt.s32.totalorder %s37, 1
      %s651 = scalar_select %p650, %s37, 1
      %p652 = scmp.lt.s32.totalorder %s38, 1
      %s653 = scalar_select %p652, %s38, 1
      %s654 = smul.addr %s653, 8
      %s655 = smul.addr %s651, 16
      %s656 = sadd.s32 %s654, %s655
      %s657 = smul.addr %s656, 8
      %s658 = scalar_lea.vmem %s3, %s657
      %p659 = pneg %p141
      %p660 = pneg %p138
      %p661 = pneg %p162
      %p662 = pneg %p159
      %p663 = pneg %p183
      %p664 = pneg %p180
      %p665 = pneg %p204
      %p666 = pneg %p201
      %p667 = pneg %p225
      %p668 = pneg %p222
      %p669 = pneg %p246
      %p670 = pneg %p243
      %p671 = pneg %p267
      %p672 = pneg %p264
      %p673 = pneg %p288
      %p674 = pneg %p285
      %p675 = pneg %p309
      %p676 = pneg %p306
      %p677 = pneg %p330
      %p678 = pneg %p327
      %p679 = pneg %p351
      %p680 = pneg %p348
      %p681 = pneg %p372
      %p682 = pneg %p369
      %p683 = pneg %p393
      %p684 = pneg %p390
      %p685 = pneg %p414
      %p686 = pneg %p411
      %p687 = pneg %p435
      %p688 = pneg %p432
      %p689 = pneg %p456
      %p690 = pneg %p453
      %p691 = pneg %p477
      %p692 = pneg %p474
      %p693 = pneg %p503
      %p694 = pneg %p500
      %p695 = scmp.lt.s32.totalorder %s37, 1
      %s696 = scalar_select %p695, %s37, 1
      %s697 = smul.addr %s696, 8
      %s698 = smul.addr %s697, 8
      %s699 = scalar_lea.vmem %s20, %s698
      %p700 = pneg %p529
      %p701 = pneg %p526
      %p702 = scmp.lt.s32.totalorder %s37, 1
      %s703 = scalar_select %p702, %s37, 1
      %s704 = smul.addr %s703, 8
      %s705 = smul.addr %s704, 8
      %s706 = scalar_lea.vmem %s21, %s705
      %p707 = scmp.lt.s32.totalorder %s37, 1
      %s708 = scalar_select %p707, %s37, 1
      %s709 = smul.addr %s708, 8
      %s710 = smul.addr %s709, 8
      %s711 = scalar_lea.vmem %s1, %s710
      %p712 = scmp.lt.s32.totalorder %s37, 1
      %s713 = scalar_select %p712, %s37, 1
      %s714 = smul.addr %s713, 14
      %s715 = smul.addr %s714, 8
      %s716 = scalar_lea.vmem %s2, %s715
      %p717 = scmp.lt.s32.totalorder %s37, 1
      %s718 = scalar_select %p717, %s37, 1
      %p719 = scmp.lt.s32.totalorder %s38, 1
      %s720 = scalar_select %p719, %s38, 1
      %s721 = smul.addr %s720, 8
      %s722 = smul.addr %s718, 16
      %s723 = sadd.s32 %s721, %s722
      %s724 = smul.addr %s723, 8
      %s725 = scalar_lea.vmem %s3, %s724
      %p726 = scmp.lt.s32.totalorder %s37, 1
      %s727 = scalar_select %p726, %s37, 1
      %s728 = smul.addr %s727, 8
      %s729 = smul.addr %s728, 8
      %s730 = scalar_lea.vmem %s20, %s729
      %p731 = scmp.lt.s32.totalorder %s37, 1
      %s732 = scalar_select %p731, %s37, 1
      %s733 = smul.addr %s732, 8
      %s734 = smul.addr %s733, 8
      %s735 = scalar_lea.vmem %s21, %s734
      %v737 = vld [vmem:[%s0] sm:$0xff]
      %v738 = vld [vmem:[%s0 + $0x8] sm:$0xff]
      %v739 = vld [vmem:[%s0 + $0x10] sm:$0xff]
      %v740 = vld [vmem:[%s0 + $0x18] sm:$0xff]
      %v741 = vld [vmem:[%s0 + $0x20] sm:$0xff]
      %v742 = vld [vmem:[%s0 + $0x28] sm:$0xff]
      %v743 = vld [vmem:[%s0 + $0x30] sm:$0xff]
      %v744 = vld [vmem:[%s0 + $0x38] sm:$0xff]
      %p745 = scmp.eq.s32.totalorder %s38, 0
      // Predicated region
      $region101: #{generator_forward.1} parent=99 // pred_check
        %p746 = pneg %p745
      $region102: #{generator_forward.1} parent=99 // pred_check_branch
        %748 = sbr.rel (%p746) target = $region104
      $region103: #{generator_forward.1} parent=99 // pred_region
        %vm749 = vcmask 130048
        %750 = vst.msk [vmem:[#allocation2] sm:$0xff] %vm749, 0.0
        %751 = vst.msk [vmem:[#allocation2 + $0x8] sm:$0xff] %vm749, 0.0
        %752 = vst.msk [vmem:[#allocation2 + $0x10] sm:$0xff] %vm749, 0.0
        %753 = vst.msk [vmem:[#allocation2 + $0x18] sm:$0xff] %vm749, 0.0
        %754 = vst.msk [vmem:[#allocation2 + $0x20] sm:$0xff] %vm749, 0.0
        %755 = vst.msk [vmem:[#allocation2 + $0x28] sm:$0xff] %vm749, 0.0
        %756 = vst.msk [vmem:[#allocation2 + $0x30] sm:$0xff] %vm749, 0.0
        %757 = vst.msk [vmem:[#allocation2 + $0x38] sm:$0xff] %vm749, 0.0
        %758 = vst.msk [vmem:[#allocation2 + $0x40] sm:$0xff] %vm749, 0.0
        %759 = vst.msk [vmem:[#allocation2 + $0x48] sm:$0xff] %vm749, 0.0
        %760 = vst.msk [vmem:[#allocation2 + $0x50] sm:$0xff] %vm749, 0.0
        %761 = vst.msk [vmem:[#allocation2 + $0x58] sm:$0xff] %vm749, 0.0
        %762 = vst.msk [vmem:[#allocation2 + $0x60] sm:$0xff] %vm749, 0.0
        %763 = vst.msk [vmem:[#allocation2 + $0x68] sm:$0xff] %vm749, 0.0
        %764 = vst.msk [vmem:[#allocation3] sm:$0xff] %vm749, 0.0
        %765 = vst.msk [vmem:[#allocation3 + $0x8] sm:$0xff] %vm749, 0.0
        %766 = vst.msk [vmem:[#allocation3 + $0x10] sm:$0xff] %vm749, 0.0
        %767 = vst.msk [vmem:[#allocation3 + $0x18] sm:$0xff] %vm749, 0.0
        %768 = vst.msk [vmem:[#allocation3 + $0x20] sm:$0xff] %vm749, 0.0
        %769 = vst.msk [vmem:[#allocation3 + $0x28] sm:$0xff] %vm749, 0.0
        %770 = vst.msk [vmem:[#allocation3 + $0x30] sm:$0xff] %vm749, 0.0
        %771 = vst.msk [vmem:[#allocation3 + $0x38] sm:$0xff] %vm749, 0.0
        %772 = vst.msk [vmem:[#allocation3 + $0x40] sm:$0xff] %vm749, 0.0
        %773 = vst.msk [vmem:[#allocation3 + $0x48] sm:$0xff] %vm749, 0.0
        %774 = vst.msk [vmem:[#allocation3 + $0x50] sm:$0xff] %vm749, 0.0
        %775 = vst.msk [vmem:[#allocation3 + $0x58] sm:$0xff] %vm749, 0.0
        %776 = vst.msk [vmem:[#allocation3 + $0x60] sm:$0xff] %vm749, 0.0
        %777 = vst.msk [vmem:[#allocation3 + $0x68] sm:$0xff] %vm749, 0.0
        %vm778 = vcmask 23552
        %779 = vst.msk [vmem:[#allocation4] sm:$0xff] %vm778, 0.0
        %780 = vst.msk [vmem:[#allocation4 + $0x8] sm:$0xff] %vm778, 0.0
        %781 = vst.msk [vmem:[#allocation4 + $0x10] sm:$0xff] %vm778, 0.0
        %782 = vst.msk [vmem:[#allocation4 + $0x18] sm:$0xff] %vm778, 0.0
        %783 = vst.msk [vmem:[#allocation4 + $0x20] sm:$0xff] %vm778, 0.0
        %784 = vst.msk [vmem:[#allocation4 + $0x28] sm:$0xff] %vm778, 0.0
        %785 = vst.msk [vmem:[#allocation4 + $0x30] sm:$0xff] %vm778, 0.0
        %786 = vst.msk [vmem:[#allocation4 + $0x38] sm:$0xff] %vm778, 0.0
        %787 = vst.msk [vmem:[#allocation4 + $0x40] sm:$0xff] %vm778, 0.0
        %788 = vst.msk [vmem:[#allocation4 + $0x48] sm:$0xff] %vm778, 0.0
        %789 = vst.msk [vmem:[#allocation4 + $0x50] sm:$0xff] %vm778, 0.0
        %790 = vst.msk [vmem:[#allocation4 + $0x58] sm:$0xff] %vm778, 0.0
        %791 = vst.msk [vmem:[#allocation4 + $0x60] sm:$0xff] %vm778, 0.0
        %792 = vst.msk [vmem:[#allocation4 + $0x68] sm:$0xff] %vm778, 0.0
        %vm793 = vcmask 64512
        %794 = vst.msk [vmem:[#allocation5] sm:$0xff] %vm793, 0.0
        %795 = vst.msk [vmem:[#allocation5 + $0x8] sm:$0xff] %vm793, 0.0
        %796 = vst.msk [vmem:[#allocation5 + $0x10] sm:$0xff] %vm793, 0.0
        %797 = vst.msk [vmem:[#allocation5 + $0x18] sm:$0xff] %vm793, 0.0
        %798 = vst.msk [vmem:[#allocation5 + $0x20] sm:$0xff] %vm793, 0.0
        %799 = vst.msk [vmem:[#allocation5 + $0x28] sm:$0xff] %vm793, 0.0
        %800 = vst.msk [vmem:[#allocation5 + $0x30] sm:$0xff] %vm793, 0.0
        %801 = vst.msk [vmem:[#allocation5 + $0x38] sm:$0xff] %vm793, 0.0
        %802 = vst.msk [vmem:[#allocation5 + $0x40] sm:$0xff] %vm793, 0.0
        %803 = vst.msk [vmem:[#allocation5 + $0x48] sm:$0xff] %vm793, 0.0
        %804 = vst.msk [vmem:[#allocation5 + $0x50] sm:$0xff] %vm793, 0.0
        %805 = vst.msk [vmem:[#allocation5 + $0x58] sm:$0xff] %vm793, 0.0
        %806 = vst.msk [vmem:[#allocation5 + $0x60] sm:$0xff] %vm793, 0.0
        %807 = vst.msk [vmem:[#allocation5 + $0x68] sm:$0xff] %vm793, 0.0
        %808 = vst.msk [vmem:[#allocation6] sm:$0xff] %vm749, 0.0
        %809 = vst.msk [vmem:[#allocation6 + $0x8] sm:$0xff] %vm749, 0.0
        %810 = vst.msk [vmem:[#allocation6 + $0x10] sm:$0xff] %vm749, 0.0
        %811 = vst.msk [vmem:[#allocation6 + $0x18] sm:$0xff] %vm749, 0.0
        %812 = vst.msk [vmem:[#allocation6 + $0x20] sm:$0xff] %vm749, 0.0
        %813 = vst.msk [vmem:[#allocation6 + $0x28] sm:$0xff] %vm749, 0.0
        %814 = vst.msk [vmem:[#allocation6 + $0x30] sm:$0xff] %vm749, 0.0
        %815 = vst.msk [vmem:[#allocation6 + $0x38] sm:$0xff] %vm749, 0.0
        %816 = vst.msk [vmem:[#allocation6 + $0x40] sm:$0xff] %vm749, 0.0
        %817 = vst.msk [vmem:[#allocation6 + $0x48] sm:$0xff] %vm749, 0.0
        %818 = vst.msk [vmem:[#allocation6 + $0x50] sm:$0xff] %vm749, 0.0
        %819 = vst.msk [vmem:[#allocation6 + $0x58] sm:$0xff] %vm749, 0.0
        %820 = vst.msk [vmem:[#allocation6 + $0x60] sm:$0xff] %vm749, 0.0
        %821 = vst.msk [vmem:[#allocation6 + $0x68] sm:$0xff] %vm749, 0.0
        %822 = vst [vmem:[#allocation7] sm:$0xff] 0.0
        %823 = vst [vmem:[#allocation7 + $0x8] sm:$0xff] 0.0
        %824 = vst [vmem:[#allocation7 + $0x10] sm:$0xff] 0.0
        %825 = vst [vmem:[#allocation7 + $0x18] sm:$0xff] 0.0
        %826 = vst [vmem:[#allocation7 + $0x20] sm:$0xff] 0.0
        %827 = vst [vmem:[#allocation7 + $0x28] sm:$0xff] 0.0
        %828 = vst [vmem:[#allocation7 + $0x30] sm:$0xff] 0.0
        %829 = vst [vmem:[#allocation7 + $0x38] sm:$0xff] 0.0
        %830 = vst [vmem:[#allocation7 + $0x40] sm:$0xff] 0.0
        %831 = vst [vmem:[#allocation7 + $0x48] sm:$0xff] 0.0
        %832 = vst [vmem:[#allocation7 + $0x50] sm:$0xff] 0.0
        %833 = vst [vmem:[#allocation7 + $0x58] sm:$0xff] 0.0
        %834 = vst [vmem:[#allocation7 + $0x60] sm:$0xff] 0.0
        %835 = vst [vmem:[#allocation7 + $0x68] sm:$0xff] 0.0
        %836 = vst [vmem:[#allocation7 + $0x70] sm:$0xff] 0.0
        %837 = vst [vmem:[#allocation7 + $0x78] sm:$0xff] 0.0
        %838 = vst.msk [vmem:[%s735] sm:$0xff] %vm793, 0.0
        %839 = vst.msk [vmem:[%s735 + $0x8] sm:$0xff] %vm793, 0.0
        %840 = vst.msk [vmem:[%s735 + $0x10] sm:$0xff] %vm793, 0.0
        %841 = vst.msk [vmem:[%s735 + $0x18] sm:$0xff] %vm793, 0.0
        %842 = vst.msk [vmem:[%s735 + $0x20] sm:$0xff] %vm793, 0.0
        %843 = vst.msk [vmem:[%s735 + $0x28] sm:$0xff] %vm793, 0.0
        %844 = vst.msk [vmem:[%s735 + $0x30] sm:$0xff] %vm793, 0.0
        %845 = vst.msk [vmem:[%s735 + $0x38] sm:$0xff] %vm793, 0.0
        %v846 = vld [vmem:[%s711] sm:$0xff]
        %v847 = vld [vmem:[%s711 + $0x8] sm:$0xff]
        %v848 = vld [vmem:[%s711 + $0x10] sm:$0xff]
        %v849 = vld [vmem:[%s711 + $0x18] sm:$0xff]
        %v850 = vld [vmem:[%s711 + $0x20] sm:$0xff]
        %v851 = vld [vmem:[%s711 + $0x28] sm:$0xff]
        %v852 = vld [vmem:[%s711 + $0x30] sm:$0xff]
        %v853 = vld [vmem:[%s711 + $0x38] sm:$0xff]
        %v854 = vpack.c.bf16 %v847, %v846
        %v855 = vpack.c.bf16 %v849, %v848
        %v856 = vpack.c.bf16 %v851, %v850
        %v857 = vpack.c.bf16 %v853, %v852
        %v858 = vld [vmem:[%s4] sm:$0xf]
        %v859 = vld [vmem:[%s4 + $0x4] sm:$0xf]
        %v860 = vld [vmem:[%s4 + $0x8] sm:$0xf]
        %v861 = vld [vmem:[%s4 + $0xc] sm:$0xf]
        %v862 = vld [vmem:[%s4 + $0x10] sm:$0xf]
        %v863 = vld [vmem:[%s4 + $0x14] sm:$0xf]
        %v870 = vunpack.c.l.b16 %v858
        %v871 = vunpack.c.l.b16 %v859
        %v872 = vunpack.c.l.b16 %v860
        %v873 = vunpack.c.l.b16 %v861
        %v874 = vunpack.c.l.b16 %v862
        %v875 = vunpack.c.l.b16 %v863
        %v876 = vpack.c.b16 %v871, %v870
        %v877 = vpack.c.b16 %v873, %v872
        %v878 = vpack.c.b16 %v875, %v874
        %vm882 = vcmask 392192
        %v884 = vsel %vm882, %v854, 0
        %v887 = vsel %vm882, %v855, 0
        %v890 = vsel %vm882, %v856, 0
        %v893 = vsel %vm882, %v857, 0
        %895 = vmatprep.subr.bf16.mxu0 0
        %896 = vmatpush1.bf16.msra.mxu0 %v876
        %897 = vmatprep.subr.bf16.mxu0 0
        %898 = vmatpush1.bf16.msra.mxu0 %v877
        %899 = vmatprep.subr.bf16.mxu0 0
        %900 = vmatpush1.bf16.msra.mxu0 %v878
        %901 = vmatprep.subr.bf16.mxu0 0
        %902 = vmatpush1.bf16.msra.mxu0 0
        %903 = vmatprep.subr.bf16.mxu0 0
        %904 = vmatpush1.bf16.msra.mxu0 0
        %905 = vmatprep.subr.bf16.mxu0 0
        %906 = vmatpush1.bf16.msra.mxu0 0
        %907 = vmatprep.subr.bf16.mxu0 0
        %908 = vmatpush1.bf16.msra.mxu0 0
        %909 = vmatprep.subr.bf16.mxu0 0
        %910 = vmatpush1.bf16.msra.mxu0 0
        %911 = vmatprep.subr.bf16.mxu0 0
        %912 = vmatpush1.bf16.msra.mxu0 0
        %913 = vmatprep.subr.bf16.mxu0 0
        %914 = vmatpush1.bf16.msra.mxu0 0
        %915 = vmatprep.subr.bf16.mxu0 0
        %916 = vmatpush1.bf16.msra.mxu0 0
        %917 = vmatprep.subr.bf16.mxu0 0
        %918 = vmatpush1.bf16.msra.mxu0 0
        %919 = vmatprep.subr.bf16.mxu0 0
        %920 = vmatpush1.bf16.msra.mxu0 0
        %921 = vmatprep.subr.bf16.mxu0 0
        %922 = vmatpush1.bf16.msra.mxu0 0
        %923 = vmatprep.subr.bf16.mxu0 0
        %924 = vmatpush1.bf16.msra.mxu0 0
        %925 = vmatprep.subr.bf16.mxu0 0
        %926 = vmatpush1.bf16.msra.mxu0 0
        %927 = vmatprep.mubr.bf16.mxu0 0
        %928 = vmatmul.mubr.bf16.gmra.mrb[0].mxu0 %v884
        %v929 = vpop.f32.mrb[0].mxu0
        %v930 = vadd.f32 0.0, %v929
        %v931 = vpop.f32.mrb[0].mxu0
        %v932 = vpop.f32.mrb[0].mxu0
        %v933 = vadd.f32 0.0, %v932
        %v934 = vpop.f32.mrb[0].mxu0
        %935 = vmatprep.mubr.bf16.mxu0 0
        %936 = vmatmul.mubr.bf16.gmra.mrb[0].mxu0 %v887
        %v937 = vpop.f32.mrb[0].mxu0
        %v938 = vadd.f32 0.0, %v937
        %v939 = vpop.f32.mrb[0].mxu0
        %v940 = vpop.f32.mrb[0].mxu0
        %v941 = vadd.f32 0.0, %v940
        %v942 = vpop.f32.mrb[0].mxu0
        %943 = vmatprep.mubr.bf16.mxu0 0
        %944 = vmatmul.mubr.bf16.gmra.mrb[0].mxu0 %v890
        %v945 = vpop.f32.mrb[0].mxu0
        %v946 = vadd.f32 0.0, %v945
        %v947 = vpop.f32.mrb[0].mxu0
        %v948 = vpop.f32.mrb[0].mxu0
        %v949 = vadd.f32 0.0, %v948
        %v950 = vpop.f32.mrb[0].mxu0
        %951 = vmatprep.mubr.bf16.mxu0 0
        %952 = vmatmul.mubr.bf16.gmra.mrb[0].mxu0 %v893
        %v953 = vpop.f32.mrb[0].mxu0
        %v954 = vadd.f32 0.0, %v953
        %v955 = vpop.f32.mrb[0].mxu0
        %v956 = vpop.f32.mrb[0].mxu0
        %v957 = vadd.f32 0.0, %v956
        %v958 = vpop.f32.mrb[0].mxu0
        %959 = vdwg.mxu0
        %961 = vset.pattern.permute.xlu0 0
        %962 = vperm.xlu0 %961, %v737
        %v963 = vpop.permute.xlu0 %962
        %966 = vset.pattern.permute.xlu0 0
        %967 = vperm.xlu0 %966, %v738
        %v968 = vpop.permute.xlu0 %967
        %971 = vset.pattern.permute.xlu0 0
        %972 = vperm.xlu0 %971, %v739
        %v973 = vpop.permute.xlu0 %972
        %976 = vset.pattern.permute.xlu0 0
        %977 = vperm.xlu0 %976, %v740
        %v978 = vpop.permute.xlu0 %977
        %981 = vset.pattern.permute.xlu0 0
        %982 = vperm.xlu0 %981, %v741
        %v983 = vpop.permute.xlu0 %982
        %986 = vset.pattern.permute.xlu0 0
        %987 = vperm.xlu0 %986, %v742
        %v988 = vpop.permute.xlu0 %987
        %991 = vset.pattern.permute.xlu0 0
        %992 = vperm.xlu0 %991, %v743
        %v993 = vpop.permute.xlu0 %992
        %996 = vset.pattern.permute.xlu0 0
        %997 = vperm.xlu0 %996, %v744
        %v998 = vpop.permute.xlu0 %997
        %v1000 = vmul.f32 %v930, %v963
        %v1001 = vmul.f32 %v933, %v968
        %v1002 = vmul.f32 %v938, %v973
        %v1003 = vmul.f32 %v941, %v978
        %v1004 = vmul.f32 %v946, %v983
        %v1005 = vmul.f32 %v949, %v988
        %v1006 = vmul.f32 %v954, %v993
        %v1007 = vmul.f32 %v957, %v998
        %1008 = vst.msk [vmem:[#allocation4 + $0x18] sm:$0xff] %vm778, %v1000
        %1009 = vst.msk [vmem:[#allocation4 + $0x20] sm:$0xff] %vm778, %v1001
        %1010 = vst.msk [vmem:[#allocation4 + $0x28] sm:$0xff] %vm778, %v1002
        %1011 = vst.msk [vmem:[#allocation4 + $0x30] sm:$0xff] %vm778, %v1003
        %1012 = vst.msk [vmem:[#allocation4 + $0x38] sm:$0xff] %vm778, %v1004
        %1013 = vst.msk [vmem:[#allocation4 + $0x40] sm:$0xff] %vm778, %v1005
        %1014 = vst.msk [vmem:[#allocation4 + $0x48] sm:$0xff] %vm778, %v1006
        %1015 = vst.msk [vmem:[#allocation4 + $0x50] sm:$0xff] %vm778, %v1007
      $region104: #{generator_forward.1} parent=99 // pred_fallthru
        _
      %v1016 = vld [vmem:[#allocation3 + $0x6] sm:$0xff]
      %v1017 = vld [vmem:[#allocation3 + $0xe] sm:$0xff]
      %v1018 = vld [vmem:[#allocation3 + $0x16] sm:$0xff]
      %v1019 = vld [vmem:[#allocation3 + $0x1e] sm:$0xff]
      %v1020 = vld [vmem:[#allocation3 + $0x26] sm:$0xff]
      %v1021 = vld [vmem:[#allocation3 + $0x2e] sm:$0xff]
      %v1022 = vld [vmem:[#allocation3 + $0x36] sm:$0xff]
      %v1023 = vld [vmem:[#allocation3 + $0x3e] sm:$0xff]
      %v1024 = vld [vmem:[#allocation3 + $0x7] sm:$0xff]
      %v1025 = vld [vmem:[#allocation3 + $0xf] sm:$0xff]
      %v1026 = vld [vmem:[#allocation3 + $0x17] sm:$0xff]
      %v1027 = vld [vmem:[#allocation3 + $0x1f] sm:$0xff]
      %v1028 = vld [vmem:[#allocation3 + $0x27] sm:$0xff]
      %v1029 = vld [vmem:[#allocation3 + $0x2f] sm:$0xff]
      %v1030 = vld [vmem:[#allocation3 + $0x37] sm:$0xff]
      %v1031 = vld [vmem:[#allocation3 + $0x3f] sm:$0xff]
      %v1032 = vld [vmem:[#allocation3 + $0x8] sm:$0xff]
      %v1033 = vld [vmem:[#allocation3 + $0x10] sm:$0xff]
      %v1034 = vld [vmem:[#allocation3 + $0x18] sm:$0xff]
      %v1035 = vld [vmem:[#allocation3 + $0x20] sm:$0xff]
      %v1036 = vld [vmem:[#allocation3 + $0x28] sm:$0xff]
      %v1037 = vld [vmem:[#allocation3 + $0x30] sm:$0xff]
      %v1038 = vld [vmem:[#allocation3 + $0x38] sm:$0xff]
      %v1039 = vld [vmem:[#allocation3 + $0x40] sm:$0xff]
      %v1040 = vld [vmem:[#allocation3 + $0x9] sm:$0xff]
      %v1041 = vld [vmem:[#allocation3 + $0x11] sm:$0xff]
      %v1042 = vld [vmem:[#allocation3 + $0x19] sm:$0xff]
      %v1043 = vld [vmem:[#allocation3 + $0x21] sm:$0xff]
      %v1044 = vld [vmem:[#allocation3 + $0x29] sm:$0xff]
      %v1045 = vld [vmem:[#allocation3 + $0x31] sm:$0xff]
      %v1046 = vld [vmem:[#allocation3 + $0x39] sm:$0xff]
      %v1047 = vld [vmem:[#allocation3 + $0x41] sm:$0xff]
      %v1048 = vld [vmem:[#allocation3 + $0xa] sm:$0xff]
      %v1049 = vld [vmem:[#allocation3 + $0x12] sm:$0xff]
      %v1050 = vld [vmem:[#allocation3 + $0x1a] sm:$0xff]
      %v1051 = vld [vmem:[#allocation3 + $0x22] sm:$0xff]
      %v1052 = vld [vmem:[#allocation3 + $0x2a] sm:$0xff]
      %v1053 = vld [vmem:[#allocation3 + $0x32] sm:$0xff]
      %v1054 = vld [vmem:[#allocation3 + $0x3a] sm:$0xff]
      %v1055 = vld [vmem:[#allocation3 + $0x42] sm:$0xff]
      %v1056 = vld [vmem:[#allocation3 + $0x46] sm:$0xff]
      %v1057 = vld [vmem:[#allocation3 + $0x47] sm:$0xff]
      %v1058 = vld [vmem:[#allocation3 + $0x48] sm:$0xff]
      %v1059 = vld [vmem:[#allocation3 + $0x49] sm:$0xff]
      %v1060 = vld [vmem:[#allocation3 + $0x4a] sm:$0xff]
      %v1061 = vld [vmem:[#allocation3 + $0x4e] sm:$0xff]
      %v1062 = vld [vmem:[#allocation3 + $0x4f] sm:$0xff]
      %v1063 = vld [vmem:[#allocation3 + $0x50] sm:$0xff]
      %v1064 = vld [vmem:[#allocation3 + $0x51] sm:$0xff]
      %v1065 = vld [vmem:[#allocation3 + $0x52] sm:$0xff]
      %v1066 = vld [vmem:[#allocation3 + $0x56] sm:$0xff]
      %v1067 = vld [vmem:[#allocation3 + $0x57] sm:$0xff]
      %v1068 = vld [vmem:[#allocation3 + $0x58] sm:$0xff]
      %v1069 = vld [vmem:[#allocation3 + $0x59] sm:$0xff]
      %v1070 = vld [vmem:[#allocation3 + $0x5a] sm:$0xff]
      %v1071 = vld [vmem:[#allocation3 + $0x5e] sm:$0xff]
      %v1072 = vld [vmem:[#allocation3 + $0x5f] sm:$0xff]
      %v1073 = vld [vmem:[#allocation3 + $0x60] sm:$0xff]
      %v1074 = vld [vmem:[#allocation3 + $0x61] sm:$0xff]
      %v1075 = vld [vmem:[#allocation3 + $0x62] sm:$0xff]
      %1084 = vrot.lane.b32.xlu0 %v1024, 16
      %v1085 = vpop.permute.xlu0 %1084
      %1086 = vrot.lane.b32.xlu0 %v1025, 16
      %v1087 = vpop.permute.xlu0 %1086
      %1088 = vrot.lane.b32.xlu0 %v1026, 16
      %v1089 = vpop.permute.xlu0 %1088
      %1090 = vrot.lane.b32.xlu0 %v1027, 16
      %v1091 = vpop.permute.xlu0 %1090
      %1092 = vrot.lane.b32.xlu0 %v1028, 16
      %v1093 = vpop.permute.xlu0 %1092
      %1094 = vrot.lane.b32.xlu0 %v1029, 16
      %v1095 = vpop.permute.xlu0 %1094
      %1096 = vrot.lane.b32.xlu0 %v1030, 16
      %v1097 = vpop.permute.xlu0 %1096
      %1098 = vrot.lane.b32.xlu0 %v1031, 16
      %v1099 = vpop.permute.xlu0 %1098
      %1116 = vrot.lane.b32.xlu0 %v1032, 32
      %v1117 = vpop.permute.xlu0 %1116
      %1118 = vrot.lane.b32.xlu0 %v1033, 32
      %v1119 = vpop.permute.xlu0 %1118
      %1120 = vrot.lane.b32.xlu0 %v1034, 32
      %v1121 = vpop.permute.xlu0 %1120
      %1122 = vrot.lane.b32.xlu0 %v1035, 32
      %v1123 = vpop.permute.xlu0 %1122
      %1124 = vrot.lane.b32.xlu0 %v1036, 32
      %v1125 = vpop.permute.xlu0 %1124
      %1126 = vrot.lane.b32.xlu0 %v1037, 32
      %v1127 = vpop.permute.xlu0 %1126
      %1128 = vrot.lane.b32.xlu0 %v1038, 32
      %v1129 = vpop.permute.xlu0 %1128
      %1130 = vrot.lane.b32.xlu0 %v1039, 32
      %v1131 = vpop.permute.xlu0 %1130
      %1148 = vrot.lane.b32.xlu0 %v1040, 48
      %v1149 = vpop.permute.xlu0 %1148
      %1150 = vrot.lane.b32.xlu0 %v1041, 48
      %v1151 = vpop.permute.xlu0 %1150
      %1152 = vrot.lane.b32.xlu0 %v1042, 48
      %v1153 = vpop.permute.xlu0 %1152
      %1154 = vrot.lane.b32.xlu0 %v1043, 48
      %v1155 = vpop.permute.xlu0 %1154
      %1156 = vrot.lane.b32.xlu0 %v1044, 48
      %v1157 = vpop.permute.xlu0 %1156
      %1158 = vrot.lane.b32.xlu0 %v1045, 48
      %v1159 = vpop.permute.xlu0 %1158
      %1160 = vrot.lane.b32.xlu0 %v1046, 48
      %v1161 = vpop.permute.xlu0 %1160
      %1162 = vrot.lane.b32.xlu0 %v1047, 48
      %v1163 = vpop.permute.xlu0 %1162
      %1180 = vrot.lane.b32.xlu0 %v1048, 64
      %v1181 = vpop.permute.xlu0 %1180
      %1182 = vrot.lane.b32.xlu0 %v1049, 64
      %v1183 = vpop.permute.xlu0 %1182
      %1184 = vrot.lane.b32.xlu0 %v1050, 64
      %v1185 = vpop.permute.xlu0 %1184
      %1186 = vrot.lane.b32.xlu0 %v1051, 64
      %v1187 = vpop.permute.xlu0 %1186
      %1188 = vrot.lane.b32.xlu0 %v1052, 64
      %v1189 = vpop.permute.xlu0 %1188
      %1190 = vrot.lane.b32.xlu0 %v1053, 64
      %v1191 = vpop.permute.xlu0 %1190
      %1192 = vrot.lane.b32.xlu0 %v1054, 64
      %v1193 = vpop.permute.xlu0 %1192
      %1194 = vrot.lane.b32.xlu0 %v1055, 64
      %v1195 = vpop.permute.xlu0 %1194
      %1212 = vrot.lane.b32.xlu0 %v1017, 80
      %v1213 = vpop.permute.xlu0 %1212
      %1214 = vrot.lane.b32.xlu0 %v1018, 80
      %v1215 = vpop.permute.xlu0 %1214
      %1216 = vrot.lane.b32.xlu0 %v1019, 80
      %v1217 = vpop.permute.xlu0 %1216
      %1218 = vrot.lane.b32.xlu0 %v1020, 80
      %v1219 = vpop.permute.xlu0 %1218
      %1220 = vrot.lane.b32.xlu0 %v1021, 80
      %v1221 = vpop.permute.xlu0 %1220
      %1222 = vrot.lane.b32.xlu0 %v1022, 80
      %v1223 = vpop.permute.xlu0 %1222
      %1224 = vrot.lane.b32.xlu0 %v1023, 80
      %v1225 = vpop.permute.xlu0 %1224
      %1226 = vrot.lane.b32.xlu0 %v1056, 80
      %v1227 = vpop.permute.xlu0 %1226
      %1237 = vrot.lane.b32.xlu0 %v1025, 96
      %v1238 = vpop.permute.xlu0 %1237
      %1239 = vrot.lane.b32.xlu0 %v1026, 96
      %v1240 = vpop.permute.xlu0 %1239
      %1241 = vrot.lane.b32.xlu0 %v1027, 96
      %v1242 = vpop.permute.xlu0 %1241
      %1243 = vrot.lane.b32.xlu0 %v1028, 96
      %v1244 = vpop.permute.xlu0 %1243
      %1245 = vrot.lane.b32.xlu0 %v1029, 96
      %v1246 = vpop.permute.xlu0 %1245
      %1247 = vrot.lane.b32.xlu0 %v1030, 96
      %v1248 = vpop.permute.xlu0 %1247
      %1249 = vrot.lane.b32.xlu0 %v1031, 96
      %v1250 = vpop.permute.xlu0 %1249
      %1251 = vrot.lane.b32.xlu0 %v1057, 96
      %v1252 = vpop.permute.xlu0 %1251
      %1262 = vrot.lane.b32.xlu0 %v1033, 112
      %v1263 = vpop.permute.xlu0 %1262
      %1264 = vrot.lane.b32.xlu0 %v1034, 112
      %v1265 = vpop.permute.xlu0 %1264
      %1266 = vrot.lane.b32.xlu0 %v1035, 112
      %v1267 = vpop.permute.xlu0 %1266
      %1268 = vrot.lane.b32.xlu0 %v1036, 112
      %v1269 = vpop.permute.xlu0 %1268
      %1270 = vrot.lane.b32.xlu0 %v1037, 112
      %v1271 = vpop.permute.xlu0 %1270
      %1272 = vrot.lane.b32.xlu0 %v1038, 112
      %v1273 = vpop.permute.xlu0 %1272
      %1274 = vrot.lane.b32.xlu0 %v1039, 112
      %v1275 = vpop.permute.xlu0 %1274
      %1276 = vrot.lane.b32.xlu0 %v1058, 112
      %v1277 = vpop.permute.xlu0 %1276
      %1287 = vrot.lane.b32.xlu0 %v1049, 16
      %v1288 = vpop.permute.xlu0 %1287
      %1289 = vrot.lane.b32.xlu0 %v1050, 16
      %v1290 = vpop.permute.xlu0 %1289
      %1291 = vrot.lane.b32.xlu0 %v1051, 16
      %v1292 = vpop.permute.xlu0 %1291
      %1293 = vrot.lane.b32.xlu0 %v1052, 16
      %v1294 = vpop.permute.xlu0 %1293
      %1295 = vrot.lane.b32.xlu0 %v1053, 16
      %v1296 = vpop.permute.xlu0 %1295
      %1297 = vrot.lane.b32.xlu0 %v1054, 16
      %v1298 = vpop.permute.xlu0 %1297
      %1299 = vrot.lane.b32.xlu0 %v1055, 16
      %v1300 = vpop.permute.xlu0 %1299
      %1301 = vrot.lane.b32.xlu0 %v1060, 16
      %v1302 = vpop.permute.xlu0 %1301
      %1312 = vrot.lane.b32.xlu0 %v1018, 32
      %v1313 = vpop.permute.xlu0 %1312
      %1314 = vrot.lane.b32.xlu0 %v1019, 32
      %v1315 = vpop.permute.xlu0 %1314
      %1316 = vrot.lane.b32.xlu0 %v1020, 32
      %v1317 = vpop.permute.xlu0 %1316
      %1318 = vrot.lane.b32.xlu0 %v1021, 32
      %v1319 = vpop.permute.xlu0 %1318
      %1320 = vrot.lane.b32.xlu0 %v1022, 32
      %v1321 = vpop.permute.xlu0 %1320
      %1322 = vrot.lane.b32.xlu0 %v1023, 32
      %v1323 = vpop.permute.xlu0 %1322
      %1324 = vrot.lane.b32.xlu0 %v1056, 32
      %v1325 = vpop.permute.xlu0 %1324
      %1326 = vrot.lane.b32.xlu0 %v1061, 32
      %v1327 = vpop.permute.xlu0 %1326
      %1337 = vrot.lane.b32.xlu0 %v1026, 48
      %v1338 = vpop.permute.xlu0 %1337
      %1339 = vrot.lane.b32.xlu0 %v1027, 48
      %v1340 = vpop.permute.xlu0 %1339
      %1341 = vrot.lane.b32.xlu0 %v1028, 48
      %v1342 = vpop.permute.xlu0 %1341
      %1343 = vrot.lane.b32.xlu0 %v1029, 48
      %v1344 = vpop.permute.xlu0 %1343
      %1345 = vrot.lane.b32.xlu0 %v1030, 48
      %v1346 = vpop.permute.xlu0 %1345
      %1347 = vrot.lane.b32.xlu0 %v1031, 48
      %v1348 = vpop.permute.xlu0 %1347
      %1349 = vrot.lane.b32.xlu0 %v1057, 48
      %v1350 = vpop.permute.xlu0 %1349
      %1351 = vrot.lane.b32.xlu0 %v1062, 48
      %v1352 = vpop.permute.xlu0 %1351
      %1362 = vrot.lane.b32.xlu0 %v1034, 64
      %v1363 = vpop.permute.xlu0 %1362
      %1364 = vrot.lane.b32.xlu0 %v1035, 64
      %v1365 = vpop.permute.xlu0 %1364
      %1366 = vrot.lane.b32.xlu0 %v1036, 64
      %v1367 = vpop.permute.xlu0 %1366
      %1368 = vrot.lane.b32.xlu0 %v1037, 64
      %v1369 = vpop.permute.xlu0 %1368
      %1370 = vrot.lane.b32.xlu0 %v1038, 64
      %v1371 = vpop.permute.xlu0 %1370
      %1372 = vrot.lane.b32.xlu0 %v1039, 64
      %v1373 = vpop.permute.xlu0 %1372
      %1374 = vrot.lane.b32.xlu0 %v1058, 64
      %v1375 = vpop.permute.xlu0 %1374
      %1376 = vrot.lane.b32.xlu0 %v1063, 64
      %v1377 = vpop.permute.xlu0 %1376
      %1388 = vrot.lane.b32.xlu0 %v1042, 80
      %v1389 = vpop.permute.xlu0 %1388
      %1390 = vrot.lane.b32.xlu0 %v1043, 80
      %v1391 = vpop.permute.xlu0 %1390
      %1392 = vrot.lane.b32.xlu0 %v1044, 80
      %v1393 = vpop.permute.xlu0 %1392
      %1394 = vrot.lane.b32.xlu0 %v1045, 80
      %v1395 = vpop.permute.xlu0 %1394
      %1396 = vrot.lane.b32.xlu0 %v1046, 80
      %v1397 = vpop.permute.xlu0 %1396
      %1398 = vrot.lane.b32.xlu0 %v1047, 80
      %v1399 = vpop.permute.xlu0 %1398
      %1400 = vrot.lane.b32.xlu0 %v1059, 80
      %v1401 = vpop.permute.xlu0 %1400
      %1402 = vrot.lane.b32.xlu0 %v1064, 80
      %v1403 = vpop.permute.xlu0 %1402
      %1413 = vrot.lane.b32.xlu0 %v1050, 96
      %v1414 = vpop.permute.xlu0 %1413
      %1415 = vrot.lane.b32.xlu0 %v1051, 96
      %v1416 = vpop.permute.xlu0 %1415
      %1417 = vrot.lane.b32.xlu0 %v1052, 96
      %v1418 = vpop.permute.xlu0 %1417
      %1419 = vrot.lane.b32.xlu0 %v1053, 96
      %v1420 = vpop.permute.xlu0 %1419
      %1421 = vrot.lane.b32.xlu0 %v1054, 96
      %v1422 = vpop.permute.xlu0 %1421
      %1423 = vrot.lane.b32.xlu0 %v1055, 96
      %v1424 = vpop.permute.xlu0 %1423
      %1425 = vrot.lane.b32.xlu0 %v1060, 96
      %v1426 = vpop.permute.xlu0 %1425
      %1427 = vrot.lane.b32.xlu0 %v1065, 96
      %v1428 = vpop.permute.xlu0 %1427
      %1438 = vrot.lane.b32.xlu0 %v1019, 112
      %v1439 = vpop.permute.xlu0 %1438
      %1440 = vrot.lane.b32.xlu0 %v1020, 112
      %v1441 = vpop.permute.xlu0 %1440
      %1442 = vrot.lane.b32.xlu0 %v1021, 112
      %v1443 = vpop.permute.xlu0 %1442
      %1444 = vrot.lane.b32.xlu0 %v1022, 112
      %v1445 = vpop.permute.xlu0 %1444
      %1446 = vrot.lane.b32.xlu0 %v1023, 112
      %v1447 = vpop.permute.xlu0 %1446
      %1448 = vrot.lane.b32.xlu0 %v1056, 112
      %v1449 = vpop.permute.xlu0 %1448
      %1450 = vrot.lane.b32.xlu0 %v1061, 112
      %v1451 = vpop.permute.xlu0 %1450
      %1452 = vrot.lane.b32.xlu0 %v1066, 112
      %v1453 = vpop.permute.xlu0 %1452
      %vm1462 = vcmask 130048
      %v1463 = vsel %vm1462, %v1016, %v1085
      %v1464 = vsel %vm1462, %v1017, %v1087
      %v1465 = vsel %vm1462, %v1018, %v1089
      %v1466 = vsel %vm1462, %v1019, %v1091
      %v1467 = vsel %vm1462, %v1020, %v1093
      %v1468 = vsel %vm1462, %v1021, %v1095
      %v1469 = vsel %vm1462, %v1022, %v1097
      %v1470 = vsel %vm1462, %v1023, %v1099
      %vm1471 = vcmask 261120
      %v1472 = vsel %vm1471, %v1463, %v1117
      %v1473 = vsel %vm1471, %v1464, %v1119
      %v1474 = vsel %vm1471, %v1465, %v1121
      %v1475 = vsel %vm1471, %v1466, %v1123
      %v1476 = vsel %vm1471, %v1467, %v1125
      %v1477 = vsel %vm1471, %v1468, %v1127
      %v1478 = vsel %vm1471, %v1469, %v1129
      %v1479 = vsel %vm1471, %v1470, %v1131
      %vm1480 = vcmask 392192
      %v1481 = vsel %vm1480, %v1472, %v1149
      %v1482 = vsel %vm1480, %v1473, %v1151
      %v1483 = vsel %vm1480, %v1474, %v1153
      %v1484 = vsel %vm1480, %v1475, %v1155
      %v1485 = vsel %vm1480, %v1476, %v1157
      %v1486 = vsel %vm1480, %v1477, %v1159
      %v1487 = vsel %vm1480, %v1478, %v1161
      %v1488 = vsel %vm1480, %v1479, %v1163
      %vm1489 = vcmask 523264
      %v1490 = vsel %vm1489, %v1481, %v1181
      %v1491 = vsel %vm1489, %v1482, %v1183
      %v1492 = vsel %vm1489, %v1483, %v1185
      %v1493 = vsel %vm1489, %v1484, %v1187
      %v1494 = vsel %vm1489, %v1485, %v1189
      %v1495 = vsel %vm1489, %v1486, %v1191
      %v1496 = vsel %vm1489, %v1487, %v1193
      %v1497 = vsel %vm1489, %v1488, %v1195
      %vm1498 = vcmask 654336
      %v1499 = vsel %vm1498, %v1490, %v1213
      %v1500 = vsel %vm1498, %v1491, %v1215
      %v1501 = vsel %vm1498, %v1492, %v1217
      %v1502 = vsel %vm1498, %v1493, %v1219
      %v1503 = vsel %vm1498, %v1494, %v1221
      %v1504 = vsel %vm1498, %v1495, %v1223
      %v1505 = vsel %vm1498, %v1496, %v1225
      %v1506 = vsel %vm1498, %v1497, %v1227
      %vm1507 = vcmask 785408
      %v1508 = vsel %vm1507, %v1499, %v1238
      %v1509 = vsel %vm1507, %v1500, %v1240
      %v1510 = vsel %vm1507, %v1501, %v1242
      %v1511 = vsel %vm1507, %v1502, %v1244
      %v1512 = vsel %vm1507, %v1503, %v1246
      %v1513 = vsel %vm1507, %v1504, %v1248
      %v1514 = vsel %vm1507, %v1505, %v1250
      %v1515 = vsel %vm1507, %v1506, %v1252
      %vm1516 = vcmask 916480
      %v1517 = vsel %vm1516, %v1508, %v1263
      %v1518 = vsel %vm1516, %v1509, %v1265
      %v1519 = vsel %vm1516, %v1510, %v1267
      %v1520 = vsel %vm1516, %v1511, %v1269
      %v1521 = vsel %vm1516, %v1512, %v1271
      %v1522 = vsel %vm1516, %v1513, %v1273
      %v1523 = vsel %vm1516, %v1514, %v1275
      %v1524 = vsel %vm1516, %v1515, %v1277
      %v1525 = vsel %vm1462, %v1041, %v1288
      %v1526 = vsel %vm1462, %v1042, %v1290
      %v1527 = vsel %vm1462, %v1043, %v1292
      %v1528 = vsel %vm1462, %v1044, %v1294
      %v1529 = vsel %vm1462, %v1045, %v1296
      %v1530 = vsel %vm1462, %v1046, %v1298
      %v1531 = vsel %vm1462, %v1047, %v1300
      %v1532 = vsel %vm1462, %v1059, %v1302
      %v1533 = vsel %vm1471, %v1525, %v1313
      %v1534 = vsel %vm1471, %v1526, %v1315
      %v1535 = vsel %vm1471, %v1527, %v1317
      %v1536 = vsel %vm1471, %v1528, %v1319
      %v1537 = vsel %vm1471, %v1529, %v1321
      %v1538 = vsel %vm1471, %v1530, %v1323
      %v1539 = vsel %vm1471, %v1531, %v1325
      %v1540 = vsel %vm1471, %v1532, %v1327
      %v1541 = vsel %vm1480, %v1533, %v1338
      %v1542 = vsel %vm1480, %v1534, %v1340
      %v1543 = vsel %vm1480, %v1535, %v1342
      %v1544 = vsel %vm1480, %v1536, %v1344
      %v1545 = vsel %vm1480, %v1537, %v1346
      %v1546 = vsel %vm1480, %v1538, %v1348
      %v1547 = vsel %vm1480, %v1539, %v1350
      %v1548 = vsel %vm1480, %v1540, %v1352
      %v1549 = vsel %vm1489, %v1541, %v1363
      %v1550 = vsel %vm1489, %v1542, %v1365
      %v1551 = vsel %vm1489, %v1543, %v1367
      %v1552 = vsel %vm1489, %v1544, %v1369
      %v1553 = vsel %vm1489, %v1545, %v1371
      %v1554 = vsel %vm1489, %v1546, %v1373
      %v1555 = vsel %vm1489, %v1547, %v1375
      %v1556 = vsel %vm1489, %v1548, %v1377
      %v1557 = vsel %vm1498, %v1549, %v1389
      %v1558 = vsel %vm1498, %v1550, %v1391
      %v1559 = vsel %vm1498, %v1551, %v1393
      %v1560 = vsel %vm1498, %v1552, %v1395
      %v1561 = vsel %vm1498, %v1553, %v1397
      %v1562 = vsel %vm1498, %v1554, %v1399
      %v1563 = vsel %vm1498, %v1555, %v1401
      %v1564 = vsel %vm1498, %v1556, %v1403
      %v1565 = vsel %vm1507, %v1557, %v1414
      %v1566 = vsel %vm1507, %v1558, %v1416
      %v1567 = vsel %vm1507, %v1559, %v1418
      %v1568 = vsel %vm1507, %v1560, %v1420
      %v1569 = vsel %vm1507, %v1561, %v1422
      %v1570 = vsel %vm1507, %v1562, %v1424
      %v1571 = vsel %vm1507, %v1563, %v1426
      %v1572 = vsel %vm1507, %v1564, %v1428
      %v1573 = vsel %vm1516, %v1565, %v1439
      %v1574 = vsel %vm1516, %v1566, %v1441
      %v1575 = vsel %vm1516, %v1567, %v1443
      %v1576 = vsel %vm1516, %v1568, %v1445
      %v1577 = vsel %vm1516, %v1569, %v1447
      %v1578 = vsel %vm1516, %v1570, %v1449
      %v1579 = vsel %vm1516, %v1571, %v1451
      %v1580 = vsel %vm1516, %v1572, %v1453
      %1582 = vrot.lane.b32.xlu0 %v1035, 16
      %v1583 = vpop.permute.xlu0 %1582
      %1584 = vrot.lane.b32.xlu0 %v1036, 16
      %v1585 = vpop.permute.xlu0 %1584
      %1586 = vrot.lane.b32.xlu0 %v1037, 16
      %v1587 = vpop.permute.xlu0 %1586
      %1588 = vrot.lane.b32.xlu0 %v1038, 16
      %v1589 = vpop.permute.xlu0 %1588
      %1590 = vrot.lane.b32.xlu0 %v1039, 16
      %v1591 = vpop.permute.xlu0 %1590
      %1592 = vrot.lane.b32.xlu0 %v1058, 16
      %v1593 = vpop.permute.xlu0 %1592
      %1594 = vrot.lane.b32.xlu0 %v1063, 16
      %v1595 = vpop.permute.xlu0 %1594
      %1596 = vrot.lane.b32.xlu0 %v1068, 16
      %v1597 = vpop.permute.xlu0 %1596
      %1607 = vrot.lane.b32.xlu0 %v1043, 32
      %v1608 = vpop.permute.xlu0 %1607
      %1609 = vrot.lane.b32.xlu0 %v1044, 32
      %v1610 = vpop.permute.xlu0 %1609
      %1611 = vrot.lane.b32.xlu0 %v1045, 32
      %v1612 = vpop.permute.xlu0 %1611
      %1613 = vrot.lane.b32.xlu0 %v1046, 32
      %v1614 = vpop.permute.xlu0 %1613
      %1615 = vrot.lane.b32.xlu0 %v1047, 32
      %v1616 = vpop.permute.xlu0 %1615
      %1617 = vrot.lane.b32.xlu0 %v1059, 32
      %v1618 = vpop.permute.xlu0 %1617
      %1619 = vrot.lane.b32.xlu0 %v1064, 32
      %v1620 = vpop.permute.xlu0 %1619
      %1621 = vrot.lane.b32.xlu0 %v1069, 32
      %v1622 = vpop.permute.xlu0 %1621
      %1632 = vrot.lane.b32.xlu0 %v1051, 48
      %v1633 = vpop.permute.xlu0 %1632
      %1634 = vrot.lane.b32.xlu0 %v1052, 48
      %v1635 = vpop.permute.xlu0 %1634
      %1636 = vrot.lane.b32.xlu0 %v1053, 48
      %v1637 = vpop.permute.xlu0 %1636
      %1638 = vrot.lane.b32.xlu0 %v1054, 48
      %v1639 = vpop.permute.xlu0 %1638
      %1640 = vrot.lane.b32.xlu0 %v1055, 48
      %v1641 = vpop.permute.xlu0 %1640
      %1642 = vrot.lane.b32.xlu0 %v1060, 48
      %v1643 = vpop.permute.xlu0 %1642
      %1644 = vrot.lane.b32.xlu0 %v1065, 48
      %v1645 = vpop.permute.xlu0 %1644
      %1646 = vrot.lane.b32.xlu0 %v1070, 48
      %v1647 = vpop.permute.xlu0 %1646
      %1657 = vrot.lane.b32.xlu0 %v1020, 64
      %v1658 = vpop.permute.xlu0 %1657
      %1659 = vrot.lane.b32.xlu0 %v1021, 64
      %v1660 = vpop.permute.xlu0 %1659
      %1661 = vrot.lane.b32.xlu0 %v1022, 64
      %v1662 = vpop.permute.xlu0 %1661
      %1663 = vrot.lane.b32.xlu0 %v1023, 64
      %v1664 = vpop.permute.xlu0 %1663
      %1665 = vrot.lane.b32.xlu0 %v1056, 64
      %v1666 = vpop.permute.xlu0 %1665
      %1667 = vrot.lane.b32.xlu0 %v1061, 64
      %v1668 = vpop.permute.xlu0 %1667
      %1669 = vrot.lane.b32.xlu0 %v1066, 64
      %v1670 = vpop.permute.xlu0 %1669
      %1671 = vrot.lane.b32.xlu0 %v1071, 64
      %v1672 = vpop.permute.xlu0 %1671
      %1683 = vrot.lane.b32.xlu0 %v1028, 80
      %v1684 = vpop.permute.xlu0 %1683
      %1685 = vrot.lane.b32.xlu0 %v1029, 80
      %v1686 = vpop.permute.xlu0 %1685
      %1687 = vrot.lane.b32.xlu0 %v1030, 80
      %v1688 = vpop.permute.xlu0 %1687
      %1689 = vrot.lane.b32.xlu0 %v1031, 80
      %v1690 = vpop.permute.xlu0 %1689
      %1691 = vrot.lane.b32.xlu0 %v1057, 80
      %v1692 = vpop.permute.xlu0 %1691
      %1693 = vrot.lane.b32.xlu0 %v1062, 80
      %v1694 = vpop.permute.xlu0 %1693
      %1695 = vrot.lane.b32.xlu0 %v1067, 80
      %v1696 = vpop.permute.xlu0 %1695
      %1697 = vrot.lane.b32.xlu0 %v1072, 80
      %v1698 = vpop.permute.xlu0 %1697
      %1708 = vrot.lane.b32.xlu0 %v1036, 96
      %v1709 = vpop.permute.xlu0 %1708
      %1710 = vrot.lane.b32.xlu0 %v1037, 96
      %v1711 = vpop.permute.xlu0 %1710
      %1712 = vrot.lane.b32.xlu0 %v1038, 96
      %v1713 = vpop.permute.xlu0 %1712
      %1714 = vrot.lane.b32.xlu0 %v1039, 96
      %v1715 = vpop.permute.xlu0 %1714
      %1716 = vrot.lane.b32.xlu0 %v1058, 96
      %v1717 = vpop.permute.xlu0 %1716
      %1718 = vrot.lane.b32.xlu0 %v1063, 96
      %v1719 = vpop.permute.xlu0 %1718
      %1720 = vrot.lane.b32.xlu0 %v1068, 96
      %v1721 = vpop.permute.xlu0 %1720
      %1722 = vrot.lane.b32.xlu0 %v1073, 96
      %v1723 = vpop.permute.xlu0 %1722
      %1733 = vrot.lane.b32.xlu0 %v1044, 112
      %v1734 = vpop.permute.xlu0 %1733
      %1735 = vrot.lane.b32.xlu0 %v1045, 112
      %v1736 = vpop.permute.xlu0 %1735
      %1737 = vrot.lane.b32.xlu0 %v1046, 112
      %v1738 = vpop.permute.xlu0 %1737
      %1739 = vrot.lane.b32.xlu0 %v1047, 112
      %v1740 = vpop.permute.xlu0 %1739
      %1741 = vrot.lane.b32.xlu0 %v1059, 112
      %v1742 = vpop.permute.xlu0 %1741
      %1743 = vrot.lane.b32.xlu0 %v1064, 112
      %v1744 = vpop.permute.xlu0 %1743
      %1745 = vrot.lane.b32.xlu0 %v1069, 112
      %v1746 = vpop.permute.xlu0 %1745
      %1747 = vrot.lane.b32.xlu0 %v1074, 112
      %v1748 = vpop.permute.xlu0 %1747
      %v1757 = vsel %vm1462, %v1027, %v1583
      %v1758 = vsel %vm1462, %v1028, %v1585
      %v1759 = vsel %vm1462, %v1029, %v1587
      %v1760 = vsel %vm1462, %v1030, %v1589
      %v1761 = vsel %vm1462, %v1031, %v1591
      %v1762 = vsel %vm1462, %v1057, %v1593
      %v1763 = vsel %vm1462, %v1062, %v1595
      %v1764 = vsel %vm1462, %v1067, %v1597
      %v1765 = vsel %vm1471, %v1757, %v1608
      %v1766 = vsel %vm1471, %v1758, %v1610
      %v1767 = vsel %vm1471, %v1759, %v1612
      %v1768 = vsel %vm1471, %v1760, %v1614
      %v1769 = vsel %vm1471, %v1761, %v1616
      %v1770 = vsel %vm1471, %v1762, %v1618
      %v1771 = vsel %vm1471, %v1763, %v1620
      %v1772 = vsel %vm1471, %v1764, %v1622
      %v1773 = vsel %vm1480, %v1765, %v1633
      %v1774 = vsel %vm1480, %v1766, %v1635
      %v1775 = vsel %vm1480, %v1767, %v1637
      %v1776 = vsel %vm1480, %v1768, %v1639
      %v1777 = vsel %vm1480, %v1769, %v1641
      %v1778 = vsel %vm1480, %v1770, %v1643
      %v1779 = vsel %vm1480, %v1771, %v1645
      %v1780 = vsel %vm1480, %v1772, %v1647
      %v1781 = vsel %vm1489, %v1773, %v1658
      %v1782 = vsel %vm1489, %v1774, %v1660
      %v1783 = vsel %vm1489, %v1775, %v1662
      %v1784 = vsel %vm1489, %v1776, %v1664
      %v1785 = vsel %vm1489, %v1777, %v1666
      %v1786 = vsel %vm1489, %v1778, %v1668
      %v1787 = vsel %vm1489, %v1779, %v1670
      %v1788 = vsel %vm1489, %v1780, %v1672
      %v1789 = vsel %vm1498, %v1781, %v1684
      %v1790 = vsel %vm1498, %v1782, %v1686
      %v1791 = vsel %vm1498, %v1783, %v1688
      %v1792 = vsel %vm1498, %v1784, %v1690
      %v1793 = vsel %vm1498, %v1785, %v1692
      %v1794 = vsel %vm1498, %v1786, %v1694
      %v1795 = vsel %vm1498, %v1787, %v1696
      %v1796 = vsel %vm1498, %v1788, %v1698
      %v1797 = vsel %vm1507, %v1789, %v1709
      %v1798 = vsel %vm1507, %v1790, %v1711
      %v1799 = vsel %vm1507, %v1791, %v1713
      %v1800 = vsel %vm1507, %v1792, %v1715
      %v1801 = vsel %vm1507, %v1793, %v1717
      %v1802 = vsel %vm1507, %v1794, %v1719
      %v1803 = vsel %vm1507, %v1795, %v1721
      %v1804 = vsel %vm1507, %v1796, %v1723
      %v1805 = vsel %vm1516, %v1797, %v1734
      %v1806 = vsel %vm1516, %v1798, %v1736
      %v1807 = vsel %vm1516, %v1799, %v1738
      %v1808 = vsel %vm1516, %v1800, %v1740
      %v1809 = vsel %vm1516, %v1801, %v1742
      %v1810 = vsel %vm1516, %v1802, %v1744
      %v1811 = vsel %vm1516, %v1803, %v1746
      %v1812 = vsel %vm1516, %v1804, %v1748
      %v1813 = vpack.c.bf16 %v1518, %v1517
      %v1814 = vpack.c.bf16 %v1574, %v1573
      %v1815 = vpack.c.bf16 %v1806, %v1805
      %v1816 = vpack.c.bf16 %v1053, %v1052
      %v1817 = vpack.c.bf16 %v1520, %v1519
      %v1818 = vpack.c.bf16 %v1576, %v1575
      %v1819 = vpack.c.bf16 %v1808, %v1807
      %v1820 = vpack.c.bf16 %v1055, %v1054
      %v1821 = vpack.c.bf16 %v1522, %v1521
      %v1822 = vpack.c.bf16 %v1578, %v1577
      %v1823 = vpack.c.bf16 %v1810, %v1809
      %v1824 = vpack.c.bf16 %v1065, %v1060
      %v1825 = vpack.c.bf16 %v1524, %v1523
      %v1826 = vpack.c.bf16 %v1580, %v1579
      %v1827 = vpack.c.bf16 %v1812, %v1811
      %v1828 = vpack.c.bf16 %v1075, %v1070
      %v1829 = vld [vmem:[%s5] sm:$0xf]
      %v1830 = vld [vmem:[%s5 + $0x4] sm:$0xf]
      %v1831 = vld [vmem:[%s5 + $0x8] sm:$0xf]
      %v1832 = vld [vmem:[%s5 + $0xc] sm:$0xf]
      %v1833 = vld [vmem:[%s5 + $0x10] sm:$0xf]
      %v1834 = vld [vmem:[%s5 + $0x14] sm:$0xf]
      %v1835 = vld [vmem:[%s5 + $0x18] sm:$0xf]
      %v1836 = vld [vmem:[%s5 + $0x1c] sm:$0xf]
      %v1837 = vld [vmem:[%s5 + $0x20] sm:$0xf]
      %v1838 = vld [vmem:[%s5 + $0x24] sm:$0xf]
      %v1839 = vld [vmem:[%s5 + $0x28] sm:$0xf]
      %v1840 = vld [vmem:[%s5 + $0x2c] sm:$0xf]
      %v1841 = vld [vmem:[%s5 + $0x30] sm:$0xf]
      %v1842 = vld [vmem:[%s5 + $0x34] sm:$0xf]
      %v1843 = vld [vmem:[%s5 + $0x38] sm:$0xf]
      %v1844 = vld [vmem:[%s5 + $0x3c] sm:$0xf]
      %v1845 = vld [vmem:[%s5 + $0x40] sm:$0xf]
      %v1846 = vld [vmem:[%s5 + $0x44] sm:$0xf]
      %v1847 = vld [vmem:[%s5 + $0x48] sm:$0xf]
      %v1848 = vld [vmem:[%s5 + $0x4c] sm:$0xf]
      %v1849 = vld [vmem:[%s5 + $0x50] sm:$0xf]
      %v1850 = vld [vmem:[%s5 + $0x54] sm:$0xf]
      %v1851 = vld [vmem:[%s5 + $0x58] sm:$0xf]
      %v1852 = vld [vmem:[%s5 + $0x5c] sm:$0xf]
      %v1853 = vld [vmem:[%s5 + $0x60] sm:$0xf]
      %v1854 = vld [vmem:[%s5 + $0x64] sm:$0xf]
      %v1855 = vld [vmem:[%s5 + $0x68] sm:$0xf]
      %v1856 = vld [vmem:[%s5 + $0x6c] sm:$0xf]
      %v1857 = vld [vmem:[%s5 + $0x70] sm:$0xf]
      %v1858 = vld [vmem:[%s5 + $0x74] sm:$0xf]
      %v1859 = vld [vmem:[%s5 + $0x78] sm:$0xf]
      %v1860 = vld [vmem:[%s5 + $0x7c] sm:$0xf]
      %v1861 = vld [vmem:[%s5 + $0x80] sm:$0xf]
      %v1862 = vld [vmem:[%s5 + $0x84] sm:$0xf]
      %v1863 = vld [vmem:[%s5 + $0x88] sm:$0xf]
      %v1864 = vld [vmem:[%s5 + $0x8c] sm:$0xf]
      %v1865 = vld [vmem:[%s5 + $0x90] sm:$0xf]
      %v1866 = vld [vmem:[%s5 + $0x94] sm:$0xf]
      %v1867 = vld [vmem:[%s5 + $0x98] sm:$0xf]
      %v1868 = vld [vmem:[%s5 + $0x9c] sm:$0xf]
      %v1869 = vld [vmem:[%s5 + $0xa0] sm:$0xf]
      %v1870 = vld [vmem:[%s5 + $0xa4] sm:$0xf]
      %v1871 = vld [vmem:[%s5 + $0xa8] sm:$0xf]
      %v1872 = vld [vmem:[%s5 + $0xac] sm:$0xf]
      %v1873 = vld [vmem:[%s5 + $0xb0] sm:$0xf]
      %v1874 = vld [vmem:[%s5 + $0xb4] sm:$0xf]
      %v1875 = vld [vmem:[%s5 + $0xb8] sm:$0xf]
      %v1876 = vld [vmem:[%s5 + $0xbc] sm:$0xf]
      %v1877 = vld [vmem:[%s5 + $0xc0] sm:$0xf]
      %v1878 = vld [vmem:[%s5 + $0xc4] sm:$0xf]
      %v1879 = vld [vmem:[%s6] sm:$0x1]
      %v1881 = vlaneseq
      %v1882 = vshrl.u32 %v1881, 7
      %v1883 = vsub.s32 0, %v1882
      %v1884 = vrot.slane %v1879, %v1883
      %v1936 = vunpack.c.l.b16 %v1829
      %v1937 = vunpack.c.l.b16 %v1830
      %v1938 = vunpack.c.l.b16 %v1831
      %v1939 = vunpack.c.l.b16 %v1832
      %v1940 = vunpack.c.l.b16 %v1833
      %v1941 = vunpack.c.l.b16 %v1834
      %v1942 = vunpack.c.l.b16 %v1835
      %v1943 = vunpack.c.l.b16 %v1836
      %v1944 = vunpack.c.l.b16 %v1837
      %v1945 = vunpack.c.l.b16 %v1838
      %v1946 = vunpack.c.l.b16 %v1839
      %v1947 = vunpack.c.l.b16 %v1840
      %v1948 = vunpack.c.l.b16 %v1841
      %v1949 = vunpack.c.l.b16 %v1842
      %v1950 = vunpack.c.l.b16 %v1843
      %v1951 = vunpack.c.l.b16 %v1844
      %v1952 = vunpack.c.l.b16 %v1845
      %v1953 = vunpack.c.l.b16 %v1846
      %v1954 = vunpack.c.l.b16 %v1847
      %v1955 = vunpack.c.l.b16 %v1848
      %v1956 = vunpack.c.l.b16 %v1849
      %v1957 = vunpack.c.l.b16 %v1850
      %v1958 = vunpack.c.l.b16 %v1851
      %v1959 = vunpack.c.l.b16 %v1852
      %v1960 = vunpack.c.l.b16 %v1853
      %v1961 = vunpack.c.l.b16 %v1854
      %v1962 = vunpack.c.l.b16 %v1855
      %v1963 = vunpack.c.l.b16 %v1856
      %v1964 = vunpack.c.l.b16 %v1857
      %v1965 = vunpack.c.l.b16 %v1858
      %v1966 = vunpack.c.l.b16 %v1859
      %v1967 = vunpack.c.l.b16 %v1860
      %v1968 = vunpack.c.l.b16 %v1861
      %v1969 = vunpack.c.l.b16 %v1862
      %v1970 = vunpack.c.l.b16 %v1863
      %v1971 = vunpack.c.l.b16 %v1864
      %v1972 = vunpack.c.l.b16 %v1865
      %v1973 = vunpack.c.l.b16 %v1866
      %v1974 = vunpack.c.l.b16 %v1867
      %v1975 = vunpack.c.l.b16 %v1868
      %v1976 = vunpack.c.l.b16 %v1869
      %v1977 = vunpack.c.l.b16 %v1870
      %v1978 = vunpack.c.l.b16 %v1871
      %v1979 = vunpack.c.l.b16 %v1872
      %v1980 = vunpack.c.l.b16 %v1873
      %v1981 = vunpack.c.l.b16 %v1874
      %v1982 = vunpack.c.l.b16 %v1875
      %v1983 = vunpack.c.l.b16 %v1876
      %v1984 = vunpack.c.l.b16 %v1877
      %v1985 = vunpack.c.l.b16 %v1878
      %v1986 = vpack.c.b16 %v1937, %v1936
      %v1987 = vpack.c.b16 %v1939, %v1938
      %v1988 = vpack.c.b16 %v1941, %v1940
      %v1989 = vpack.c.b16 %v1943, %v1942
      %v1990 = vpack.c.b16 %v1945, %v1944
      %v1991 = vpack.c.b16 %v1947, %v1946
      %v1992 = vpack.c.b16 %v1949, %v1948
      %v1993 = vpack.c.b16 %v1951, %v1950
      %v1994 = vpack.c.b16 %v1953, %v1952
      %v1995 = vpack.c.b16 %v1955, %v1954
      %v1996 = vpack.c.b16 %v1957, %v1956
      %v1997 = vpack.c.b16 %v1959, %v1958
      %v1998 = vpack.c.b16 %v1961, %v1960
      %v1999 = vpack.c.b16 %v1963, %v1962
      %v2000 = vpack.c.b16 %v1965, %v1964
      %v2001 = vpack.c.b16 %v1967, %v1966
      %v2002 = vpack.c.b16 %v1969, %v1968
      %v2003 = vpack.c.b16 %v1971, %v1970
      %v2004 = vpack.c.b16 %v1973, %v1972
      %v2005 = vpack.c.b16 %v1975, %v1974
      %v2006 = vpack.c.b16 %v1977, %v1976
      %v2007 = vpack.c.b16 %v1979, %v1978
      %v2008 = vpack.c.b16 %v1981, %v1980
      %v2009 = vpack.c.b16 %v1983, %v1982
      %v2010 = vpack.c.b16 %v1985, %v1984
      %v2037 = vsel %vm1462, %v1816, 0
      %v2040 = vsel %vm1462, %v1820, 0
      %v2043 = vsel %vm1462, %v1824, 0
      %v2046 = vsel %vm1462, %v1828, 0
      %2048 = vmatprep.subr.bf16.mxu0 0
      %2049 = vmatpush1.bf16.msra.mxu0 %v1986
      %2050 = vmatprep.subr.bf16.mxu0 0
      %2051 = vmatpush1.bf16.msra.mxu0 %v1987
      %2052 = vmatprep.subr.bf16.mxu0 0
      %2053 = vmatpush1.bf16.msra.mxu0 %v1988
      %2054 = vmatprep.subr.bf16.mxu0 0
      %2055 = vmatpush1.bf16.msra.mxu0 %v1989
      %2056 = vmatprep.subr.bf16.mxu0 0
      %2057 = vmatpush1.bf16.msra.mxu0 %v1990
      %2058 = vmatprep.subr.bf16.mxu0 0
      %2059 = vmatpush1.bf16.msra.mxu0 %v1991
      %2060 = vmatprep.subr.bf16.mxu0 0
      %2061 = vmatpush1.bf16.msra.mxu0 %v1992
      %2062 = vmatprep.subr.bf16.mxu0 0
      %2063 = vmatpush1.bf16.msra.mxu0 %v1993
      %2064 = vmatprep.subr.bf16.mxu0 0
      %2065 = vmatpush1.bf16.msra.mxu0 %v1994
      %2066 = vmatprep.subr.bf16.mxu0 0
      %2067 = vmatpush1.bf16.msra.mxu0 %v1995
      %2068 = vmatprep.subr.bf16.mxu0 0
      %2069 = vmatpush1.bf16.msra.mxu0 %v1996
      %2070 = vmatprep.subr.bf16.mxu0 0
      %2071 = vmatpush1.bf16.msra.mxu0 %v1997
      %2072 = vmatprep.subr.bf16.mxu0 0
      %2073 = vmatpush1.bf16.msra.mxu0 %v1998
      %2074 = vmatprep.subr.bf16.mxu0 0
      %2075 = vmatpush1.bf16.msra.mxu0 %v1999
      %2076 = vmatprep.subr.bf16.mxu0 0
      %2077 = vmatpush1.bf16.msra.mxu0 %v2000
      %2078 = vmatprep.subr.bf16.mxu0 0
      %2079 = vmatpush1.bf16.msra.mxu0 %v2001
      %2080 = vmatprep.mubr.bf16.mxu0 %v1814
      %2081 = vmatmul.mubr.bf16.gmra.mrb[0].mxu0 %v1813
      %v2082 = vpop.f32.mrb[0].mxu0
      %v2083 = vadd.f32 %v1884, %v2082
      %v2084 = vpop.f32.mrb[0].mxu0
      %v2085 = vpop.f32.mrb[0].mxu0
      %v2086 = vadd.f32 %v1884, %v2085
      %v2087 = vpop.f32.mrb[0].mxu0
      %2088 = vmatprep.mubr.bf16.mxu0 %v1818
      %2089 = vmatmul.mubr.bf16.gmra.mrb[0].mxu0 %v1817
      %v2090 = vpop.f32.mrb[0].mxu0
      %v2091 = vadd.f32 %v1884, %v2090
      %v2092 = vpop.f32.mrb[0].mxu0
      %v2093 = vpop.f32.mrb[0].mxu0
      %v2094 = vadd.f32 %v1884, %v2093
      %v2095 = vpop.f32.mrb[0].mxu0
      %2096 = vmatprep.mubr.bf16.mxu0 %v1822
      %2097 = vmatmul.mubr.bf16.gmra.mrb[0].mxu0 %v1821
      %v2098 = vpop.f32.mrb[0].mxu0
      %v2099 = vadd.f32 %v1884, %v2098
      %v2100 = vpop.f32.mrb[0].mxu0
      %v2101 = vpop.f32.mrb[0].mxu0
      %v2102 = vadd.f32 %v1884, %v2101
      %v2103 = vpop.f32.mrb[0].mxu0
      %2104 = vmatprep.mubr.bf16.mxu0 %v1826
      %2105 = vmatmul.mubr.bf16.gmra.mrb[0].mxu0 %v1825
      %v2106 = vpop.f32.mrb[0].mxu0
      %v2107 = vadd.f32 %v1884, %v2106
      %v2108 = vpop.f32.mrb[0].mxu0
      %v2109 = vpop.f32.mrb[0].mxu0
      %v2110 = vadd.f32 %v1884, %v2109
      %v2111 = vpop.f32.mrb[0].mxu0
      %2112 = vdwg.mxu0
      %2113 = vmatprep.subr.bf16.mxu0 0
      %2114 = vmatpush1.bf16.msra.mxu0 %v2002
      %2115 = vmatprep.subr.bf16.mxu0 0
      %2116 = vmatpush1.bf16.msra.mxu0 %v2003
      %2117 = vmatprep.subr.bf16.mxu0 0
      %2118 = vmatpush1.bf16.msra.mxu0 %v2004
      %2119 = vmatprep.subr.bf16.mxu0 0
      %2120 = vmatpush1.bf16.msra.mxu0 %v2005
      %2121 = vmatprep.subr.bf16.mxu0 0
      %2122 = vmatpush1.bf16.msra.mxu0 %v2006
      %2123 = vmatprep.subr.bf16.mxu0 0
      %2124 = vmatpush1.bf16.msra.mxu0 %v2007
      %2125 = vmatprep.subr.bf16.mxu0 0
      %2126 = vmatpush1.bf16.msra.mxu0 %v2008
      %2127 = vmatprep.subr.bf16.mxu0 0
      %2128 = vmatpush1.bf16.msra.mxu0 %v2009
      %2129 = vmatprep.subr.bf16.mxu0 0
      %2130 = vmatpush1.bf16.msra.mxu0 %v2010
      %2131 = vmatprep.subr.bf16.mxu0 0
      %2132 = vmatpush1.bf16.msra.mxu0 0
      %2133 = vmatprep.subr.bf16.mxu0 0
      %2134 = vmatpush1.bf16.msra.mxu0 0
      %2135 = vmatprep.subr.bf16.mxu0 0
      %2136 = vmatpush1.bf16.msra.mxu0 0
      %2137 = vmatprep.subr.bf16.mxu0 0
      %2138 = vmatpush1.bf16.msra.mxu0 0
      %2139 = vmatprep.subr.bf16.mxu0 0
      %2140 = vmatpush1.bf16.msra.mxu0 0
      %2141 = vmatprep.subr.bf16.mxu0 0
      %2142 = vmatpush1.bf16.msra.mxu0 0
      %2143 = vmatprep.subr.bf16.mxu0 0
      %2144 = vmatpush1.bf16.msra.mxu0 0
      %2145 = vmatprep.mubr.bf16.mxu0 %v2037
      %2146 = vmatmul.mubr.bf16.gmra.mrb[0].mxu0 %v1815
      %v2147 = vpop.f32.mrb[0].mxu0
      %v2148 = vadd.f32 %v2083, %v2147
      %v2149 = vpop.f32.mrb[0].mxu0
      %v2150 = vpop.f32.mrb[0].mxu0
      %v2151 = vadd.f32 %v2086, %v2150
      %v2152 = vpop.f32.mrb[0].mxu0
      %2153 = vmatprep.mubr.bf16.mxu0 %v2040
      %2154 = vmatmul.mubr.bf16.gmra.mrb[0].mxu0 %v1819
      %v2155 = vpop.f32.mrb[0].mxu0
      %v2156 = vadd.f32 %v2091, %v2155
      %v2157 = vpop.f32.mrb[0].mxu0
      %v2158 = vpop.f32.mrb[0].mxu0
      %v2159 = vadd.f32 %v2094, %v2158
      %v2160 = vpop.f32.mrb[0].mxu0
      %2161 = vmatprep.mubr.bf16.mxu0 %v2043
      %2162 = vmatmul.mubr.bf16.gmra.mrb[0].mxu0 %v1823
      %v2163 = vpop.f32.mrb[0].mxu0
      %v2164 = vadd.f32 %v2099, %v2163
      %v2165 = vpop.f32.mrb[0].mxu0
      %v2166 = vpop.f32.mrb[0].mxu0
      %v2167 = vadd.f32 %v2102, %v2166
      %v2168 = vpop.f32.mrb[0].mxu0
      %2169 = vmatprep.mubr.bf16.mxu0 %v2046
      %2170 = vmatmul.mubr.bf16.gmra.mrb[0].mxu0 %v1827
      %v2171 = vpop.f32.mrb[0].mxu0
      %v2172 = vadd.f32 %v2107, %v2171
      %v2173 = vpop.f32.mrb[0].mxu0
      %v2174 = vpop.f32.mrb[0].mxu0
      %v2175 = vadd.f32 %v2110, %v2174
      %v2176 = vpop.f32.mrb[0].mxu0
      %2177 = vdwg.mxu0
      %v2178 = vmax.f32 %v2148, 0.0
      %v2179 = vmax.f32 %v2151, 0.0
      %v2180 = vmax.f32 %v2156, 0.0
      %v2181 = vmax.f32 %v2159, 0.0
      %v2182 = vmax.f32 %v2164, 0.0
      %v2183 = vmax.f32 %v2167, 0.0
      %v2184 = vmax.f32 %v2172, 0.0
      %v2185 = vmax.f32 %v2175, 0.0
      %v2186 = vand.u32 2147483647, %v2148
      %v2187 = vand.u32 2147483647, %v2151
      %v2188 = vand.u32 2147483647, %v2156
      %v2189 = vand.u32 2147483647, %v2159
      %v2190 = vand.u32 2147483647, %v2164
      %v2191 = vand.u32 2147483647, %v2167
      %v2192 = vand.u32 2147483647, %v2172
      %v2193 = vand.u32 2147483647, %v2175
      %v2194 = vsub.f32 0.0, %v2186
      %v2195 = vsub.f32 0.0, %v2187
      %v2196 = vsub.f32 0.0, %v2188
      %v2197 = vsub.f32 0.0, %v2189
      %v2198 = vsub.f32 0.0, %v2190
      %v2199 = vsub.f32 0.0, %v2191
      %v2200 = vsub.f32 0.0, %v2192
      %v2201 = vsub.f32 0.0, %v2193
      %v2202 = vmul.f32 %v2194, 1.442695
      %v2203 = vpow.pop %v2202
      %v2204 = vmul.f32 %v2195, 1.442695
      %v2205 = vpow.pop %v2204
      %v2206 = vmul.f32 %v2196, 1.442695
      %v2207 = vpow.pop %v2206
      %v2208 = vmul.f32 %v2197, 1.442695
      %v2209 = vpow.pop %v2208
      %v2210 = vmul.f32 %v2198, 1.442695
      %v2211 = vpow.pop %v2210
      %v2212 = vmul.f32 %v2199, 1.442695
      %v2213 = vpow.pop %v2212
      %v2214 = vmul.f32 %v2200, 1.442695
      %v2215 = vpow.pop %v2214
      %v2216 = vmul.f32 %v2201, 1.442695
      %v2217 = vpow.pop %v2216
      %v2218 = vadd.f32 %v2203, 1.0
      %v2219 = vadd.f32 %v2205, 1.0
      %v2220 = vadd.f32 %v2207, 1.0
      %v2221 = vadd.f32 %v2209, 1.0
      %v2222 = vadd.f32 %v2211, 1.0
      %v2223 = vadd.f32 %v2213, 1.0
      %v2224 = vadd.f32 %v2215, 1.0
      %v2225 = vadd.f32 %v2217, 1.0
      %v2226 = vlog2.pop %v2218
      %v2227 = vmul.f32 %v2226, 0.6931472
      %v2228 = vlog2.pop %v2219
      %v2229 = vmul.f32 %v2228, 0.6931472
      %v2230 = vlog2.pop %v2220
      %v2231 = vmul.f32 %v2230, 0.6931472
      %v2232 = vlog2.pop %v2221
      %v2233 = vmul.f32 %v2232, 0.6931472
      %v2234 = vlog2.pop %v2222
      %v2235 = vmul.f32 %v2234, 0.6931472
      %v2236 = vlog2.pop %v2223
      %v2237 = vmul.f32 %v2236, 0.6931472
      %v2238 = vlog2.pop %v2224
      %v2239 = vmul.f32 %v2238, 0.6931472
      %v2240 = vlog2.pop %v2225
      %v2241 = vmul.f32 %v2240, 0.6931472
      %v2242 = vadd.f32 %v2178, %v2227
      %v2243 = vadd.f32 %v2179, %v2229
      %v2244 = vadd.f32 %v2180, %v2231
      %v2245 = vadd.f32 %v2181, %v2233
      %v2246 = vadd.f32 %v2182, %v2235
      %v2247 = vadd.f32 %v2183, %v2237
      %v2248 = vadd.f32 %v2184, %v2239
      %v2249 = vadd.f32 %v2185, %v2241
      %v2250 = vld [vmem:[#allocation2 + $0xf] sm:$0xff]
      %v2251 = vld [vmem:[#allocation2 + $0x17] sm:$0xff]
      %v2252 = vld [vmem:[#allocation2 + $0x1f] sm:$0xff]
      %v2253 = vld [vmem:[#allocation2 + $0x27] sm:$0xff]
      %v2254 = vld [vmem:[#allocation2 + $0x2f] sm:$0xff]
      %v2255 = vld [vmem:[#allocation2 + $0x37] sm:$0xff]
      %v2256 = vld [vmem:[#allocation2 + $0x3f] sm:$0xff]
      %v2257 = vld [vmem:[#allocation2 + $0x47] sm:$0xff]
      %v2258 = vld [vmem:[#allocation4 + $0xf] sm:$0xff]
      %v2259 = vld [vmem:[#allocation4 + $0x17] sm:$0xff]
      %v2260 = vld [vmem:[#allocation4 + $0x1f] sm:$0xff]
      %v2261 = vld [vmem:[#allocation4 + $0x27] sm:$0xff]
      %v2262 = vld [vmem:[#allocation4 + $0x2f] sm:$0xff]
      %v2263 = vld [vmem:[#allocation4 + $0x37] sm:$0xff]
      %v2264 = vld [vmem:[#allocation4 + $0x3f] sm:$0xff]
      %v2265 = vld [vmem:[#allocation4 + $0x47] sm:$0xff]
      %v2266 = vld [vmem:[%s716 + $0xf] sm:$0xff]
      %v2267 = vld [vmem:[%s716 + $0x17] sm:$0xff]
      %v2268 = vld [vmem:[%s716 + $0x1f] sm:$0xff]
      %v2269 = vld [vmem:[%s716 + $0x27] sm:$0xff]
      %v2270 = vld [vmem:[%s716 + $0x2f] sm:$0xff]
      %v2271 = vld [vmem:[%s716 + $0x37] sm:$0xff]
      %v2272 = vld [vmem:[%s716 + $0x3f] sm:$0xff]
      %v2273 = vld [vmem:[%s716 + $0x47] sm:$0xff]
      %v2274 = vld [vmem:[#allocation2 + $0x10] sm:$0xff]
      %v2275 = vld [vmem:[#allocation2 + $0x18] sm:$0xff]
      %v2276 = vld [vmem:[#allocation2 + $0x20] sm:$0xff]
      %v2277 = vld [vmem:[#allocation2 + $0x28] sm:$0xff]
      %v2278 = vld [vmem:[#allocation2 + $0x30] sm:$0xff]
      %v2279 = vld [vmem:[#allocation2 + $0x38] sm:$0xff]
      %v2280 = vld [vmem:[#allocation2 + $0x40] sm:$0xff]
      %v2281 = vld [vmem:[#allocation2 + $0x48] sm:$0xff]
      %v2282 = vld [vmem:[#allocation4 + $0x10] sm:$0xff]
      %v2283 = vld [vmem:[#allocation4 + $0x18] sm:$0xff]
      %v2284 = vld [vmem:[#allocation4 + $0x20] sm:$0xff]
      %v2285 = vld [vmem:[#allocation4 + $0x28] sm:$0xff]
      %v2286 = vld [vmem:[#allocation4 + $0x30] sm:$0xff]
      %v2287 = vld [vmem:[#allocation4 + $0x38] sm:$0xff]
      %v2288 = vld [vmem:[#allocation4 + $0x40] sm:$0xff]
      %v2289 = vld [vmem:[#allocation4 + $0x48] sm:$0xff]
      %v2290 = vld [vmem:[%s716 + $0x10] sm:$0xff]
      %v2291 = vld [vmem:[%s716 + $0x18] sm:$0xff]
      %v2292 = vld [vmem:[%s716 + $0x20] sm:$0xff]
      %v2293 = vld [vmem:[%s716 + $0x28] sm:$0xff]
      %v2294 = vld [vmem:[%s716 + $0x30] sm:$0xff]
      %v2295 = vld [vmem:[%s716 + $0x38] sm:$0xff]
      %v2296 = vld [vmem:[%s716 + $0x40] sm:$0xff]
      %v2297 = vld [vmem:[%s716 + $0x48] sm:$0xff]
      %v2298 = vld [vmem:[#allocation2 + $0x11] sm:$0xff]
      %v2299 = vld [vmem:[#allocation2 + $0x19] sm:$0xff]
      %v2300 = vld [vmem:[#allocation2 + $0x21] sm:$0xff]
      %v2301 = vld [vmem:[#allocation2 + $0x29] sm:$0xff]
      %v2302 = vld [vmem:[#allocation2 + $0x31] sm:$0xff]
      %v2303 = vld [vmem:[#allocation2 + $0x39] sm:$0xff]
      %v2304 = vld [vmem:[#allocation2 + $0x41] sm:$0xff]
      %v2305 = vld [vmem:[#allocation2 + $0x49] sm:$0xff]
      %v2306 = vld [vmem:[#allocation4 + $0x11] sm:$0xff]
      %v2307 = vld [vmem:[#allocation4 + $0x19] sm:$0xff]
      %v2308 = vld [vmem:[#allocation4 + $0x21] sm:$0xff]
      %v2309 = vld [vmem:[#allocation4 + $0x29] sm:$0xff]
      %v2310 = vld [vmem:[#allocation4 + $0x31] sm:$0xff]
      %v2311 = vld [vmem:[#allocation4 + $0x39] sm:$0xff]
      %v2312 = vld [vmem:[#allocation4 + $0x41] sm:$0xff]
      %v2313 = vld [vmem:[#allocation4 + $0x49] sm:$0xff]
      %v2314 = vld [vmem:[%s716 + $0x11] sm:$0xff]
      %v2315 = vld [vmem:[%s716 + $0x19] sm:$0xff]
      %v2316 = vld [vmem:[%s716 + $0x21] sm:$0xff]
      %v2317 = vld [vmem:[%s716 + $0x29] sm:$0xff]
      %v2318 = vld [vmem:[%s716 + $0x31] sm:$0xff]
      %v2319 = vld [vmem:[%s716 + $0x39] sm:$0xff]
      %v2320 = vld [vmem:[%s716 + $0x41] sm:$0xff]
      %v2321 = vld [vmem:[%s716 + $0x49] sm:$0xff]
      %v2322 = vld [vmem:[#allocation2 + $0x4f] sm:$0xff]
      %v2323 = vld [vmem:[#allocation4 + $0x4f] sm:$0xff]
      %v2324 = vld [vmem:[%s716 + $0x4f] sm:$0xff]
      %v2325 = vld [vmem:[#allocation2 + $0x50] sm:$0xff]
      %v2326 = vld [vmem:[#allocation4 + $0x50] sm:$0xff]
      %v2327 = vld [vmem:[%s716 + $0x50] sm:$0xff]
      %v2328 = vld [vmem:[#allocation2 + $0x51] sm:$0xff]
      %v2329 = vld [vmem:[#allocation4 + $0x51] sm:$0xff]
      %v2330 = vld [vmem:[%s716 + $0x51] sm:$0xff]
      %v2331 = vld [vmem:[#allocation2 + $0x57] sm:$0xff]
      %v2332 = vld [vmem:[#allocation4 + $0x57] sm:$0xff]
      %v2333 = vld [vmem:[%s716 + $0x57] sm:$0xff]
      %v2334 = vld [vmem:[#allocation2 + $0x58] sm:$0xff]
      %v2335 = vld [vmem:[#allocation4 + $0x58] sm:$0xff]
      %v2336 = vld [vmem:[%s716 + $0x58] sm:$0xff]
      %v2337 = vld [vmem:[#allocation2 + $0x59] sm:$0xff]
      %v2338 = vld [vmem:[#allocation4 + $0x59] sm:$0xff]
      %v2339 = vld [vmem:[%s716 + $0x59] sm:$0xff]
      %2340 = vrot.lane.b32.xlu0 %v1057, 16
      %v2341 = vpop.permute.xlu0 %2340
      %2351 = vrot.lane.b32.xlu0 %v2258, 32
      %v2352 = vpop.permute.xlu0 %2351
      %2353 = vrot.lane.b32.xlu0 %v2259, 32
      %v2354 = vpop.permute.xlu0 %2353
      %2355 = vrot.lane.b32.xlu0 %v2260, 32
      %v2356 = vpop.permute.xlu0 %2355
      %2357 = vrot.lane.b32.xlu0 %v2261, 32
      %v2358 = vpop.permute.xlu0 %2357
      %2359 = vrot.lane.b32.xlu0 %v2262, 32
      %v2360 = vpop.permute.xlu0 %2359
      %2361 = vrot.lane.b32.xlu0 %v2263, 32
      %v2362 = vpop.permute.xlu0 %2361
      %2363 = vrot.lane.b32.xlu0 %v2264, 32
      %v2364 = vpop.permute.xlu0 %2363
      %2365 = vrot.lane.b32.xlu0 %v2265, 32
      %v2366 = vpop.permute.xlu0 %2365
      %2383 = vrot.lane.b32.xlu0 %v2266, 35
      %v2384 = vpop.permute.xlu0 %2383
      %2385 = vrot.lane.b32.xlu0 %v2267, 35
      %v2386 = vpop.permute.xlu0 %2385
      %2387 = vrot.lane.b32.xlu0 %v2268, 35
      %v2388 = vpop.permute.xlu0 %2387
      %2389 = vrot.lane.b32.xlu0 %v2269, 35
      %v2390 = vpop.permute.xlu0 %2389
      %2391 = vrot.lane.b32.xlu0 %v2270, 35
      %v2392 = vpop.permute.xlu0 %2391
      %2393 = vrot.lane.b32.xlu0 %v2271, 35
      %v2394 = vpop.permute.xlu0 %2393
      %2395 = vrot.lane.b32.xlu0 %v2272, 35
      %v2396 = vpop.permute.xlu0 %2395
      %2397 = vrot.lane.b32.xlu0 %v2273, 35
      %v2398 = vpop.permute.xlu0 %2397
      %2415 = vrot.lane.b32.xlu0 %v2274, 43
      %v2416 = vpop.permute.xlu0 %2415
      %2417 = vrot.lane.b32.xlu0 %v2275, 43
      %v2418 = vpop.permute.xlu0 %2417
      %2419 = vrot.lane.b32.xlu0 %v2276, 43
      %v2420 = vpop.permute.xlu0 %2419
      %2421 = vrot.lane.b32.xlu0 %v2277, 43
      %v2422 = vpop.permute.xlu0 %2421
      %2423 = vrot.lane.b32.xlu0 %v2278, 43
      %v2424 = vpop.permute.xlu0 %2423
      %2425 = vrot.lane.b32.xlu0 %v2279, 43
      %v2426 = vpop.permute.xlu0 %2425
      %2427 = vrot.lane.b32.xlu0 %v2280, 43
      %v2428 = vpop.permute.xlu0 %2427
      %2429 = vrot.lane.b32.xlu0 %v2281, 43
      %v2430 = vpop.permute.xlu0 %2429
      %2439 = vrot.lane.b32.xlu0 %v1033, 59
      %v2440 = vpop.permute.xlu0 %2439
      %2441 = vrot.lane.b32.xlu0 %v1034, 59
      %v2442 = vpop.permute.xlu0 %2441
      %2443 = vrot.lane.b32.xlu0 %v1035, 59
      %v2444 = vpop.permute.xlu0 %2443
      %2445 = vrot.lane.b32.xlu0 %v1036, 59
      %v2446 = vpop.permute.xlu0 %2445
      %2447 = vrot.lane.b32.xlu0 %v1037, 59
      %v2448 = vpop.permute.xlu0 %2447
      %2449 = vrot.lane.b32.xlu0 %v1038, 59
      %v2450 = vpop.permute.xlu0 %2449
      %2451 = vrot.lane.b32.xlu0 %v1039, 59
      %v2452 = vpop.permute.xlu0 %2451
      %2453 = vrot.lane.b32.xlu0 %v1058, 59
      %v2454 = vpop.permute.xlu0 %2453
      %2471 = vrot.lane.b32.xlu0 %v2282, 75
      %v2472 = vpop.permute.xlu0 %2471
      %2473 = vrot.lane.b32.xlu0 %v2283, 75
      %v2474 = vpop.permute.xlu0 %2473
      %2475 = vrot.lane.b32.xlu0 %v2284, 75
      %v2476 = vpop.permute.xlu0 %2475
      %2477 = vrot.lane.b32.xlu0 %v2285, 75
      %v2478 = vpop.permute.xlu0 %2477
      %2479 = vrot.lane.b32.xlu0 %v2286, 75
      %v2480 = vpop.permute.xlu0 %2479
      %2481 = vrot.lane.b32.xlu0 %v2287, 75
      %v2482 = vpop.permute.xlu0 %2481
      %2483 = vrot.lane.b32.xlu0 %v2288, 75
      %v2484 = vpop.permute.xlu0 %2483
      %2485 = vrot.lane.b32.xlu0 %v2289, 75
      %v2486 = vpop.permute.xlu0 %2485
      %2503 = vrot.lane.b32.xlu0 %v2290, 78
      %v2504 = vpop.permute.xlu0 %2503
      %2505 = vrot.lane.b32.xlu0 %v2291, 78
      %v2506 = vpop.permute.xlu0 %2505
      %2507 = vrot.lane.b32.xlu0 %v2292, 78
      %v2508 = vpop.permute.xlu0 %2507
      %2509 = vrot.lane.b32.xlu0 %v2293, 78
      %v2510 = vpop.permute.xlu0 %2509
      %2511 = vrot.lane.b32.xlu0 %v2294, 78
      %v2512 = vpop.permute.xlu0 %2511
      %2513 = vrot.lane.b32.xlu0 %v2295, 78
      %v2514 = vpop.permute.xlu0 %2513
      %2515 = vrot.lane.b32.xlu0 %v2296, 78
      %v2516 = vpop.permute.xlu0 %2515
      %2517 = vrot.lane.b32.xlu0 %v2297, 78
      %v2518 = vpop.permute.xlu0 %2517
      %2535 = vrot.lane.b32.xlu0 %v2298, 86
      %v2536 = vpop.permute.xlu0 %2535
      %2537 = vrot.lane.b32.xlu0 %v2299, 86
      %v2538 = vpop.permute.xlu0 %2537
      %2539 = vrot.lane.b32.xlu0 %v2300, 86
      %v2540 = vpop.permute.xlu0 %2539
      %2541 = vrot.lane.b32.xlu0 %v2301, 86
      %v2542 = vpop.permute.xlu0 %2541
      %2543 = vrot.lane.b32.xlu0 %v2302, 86
      %v2544 = vpop.permute.xlu0 %2543
      %2545 = vrot.lane.b32.xlu0 %v2303, 86
      %v2546 = vpop.permute.xlu0 %2545
      %2547 = vrot.lane.b32.xlu0 %v2304, 86
      %v2548 = vpop.permute.xlu0 %2547
      %2549 = vrot.lane.b32.xlu0 %v2305, 86
      %v2550 = vpop.permute.xlu0 %2549
      %2559 = vrot.lane.b32.xlu0 %v1041, 102
      %v2560 = vpop.permute.xlu0 %2559
      %2561 = vrot.lane.b32.xlu0 %v1042, 102
      %v2562 = vpop.permute.xlu0 %2561
      %2563 = vrot.lane.b32.xlu0 %v1043, 102
      %v2564 = vpop.permute.xlu0 %2563
      %2565 = vrot.lane.b32.xlu0 %v1044, 102
      %v2566 = vpop.permute.xlu0 %2565
      %2567 = vrot.lane.b32.xlu0 %v1045, 102
      %v2568 = vpop.permute.xlu0 %2567
      %2569 = vrot.lane.b32.xlu0 %v1046, 102
      %v2570 = vpop.permute.xlu0 %2569
      %2571 = vrot.lane.b32.xlu0 %v1047, 102
      %v2572 = vpop.permute.xlu0 %2571
      %2573 = vrot.lane.b32.xlu0 %v1059, 102
      %v2574 = vpop.permute.xlu0 %2573
      %2591 = vrot.lane.b32.xlu0 %v2306, 118
      %v2592 = vpop.permute.xlu0 %2591
      %2593 = vrot.lane.b32.xlu0 %v2307, 118
      %v2594 = vpop.permute.xlu0 %2593
      %2595 = vrot.lane.b32.xlu0 %v2308, 118
      %v2596 = vpop.permute.xlu0 %2595
      %2597 = vrot.lane.b32.xlu0 %v2309, 118
      %v2598 = vpop.permute.xlu0 %2597
      %2599 = vrot.lane.b32.xlu0 %v2310, 118
      %v2600 = vpop.permute.xlu0 %2599
      %2601 = vrot.lane.b32.xlu0 %v2311, 118
      %v2602 = vpop.permute.xlu0 %2601
      %2603 = vrot.lane.b32.xlu0 %v2312, 118
      %v2604 = vpop.permute.xlu0 %2603
      %2605 = vrot.lane.b32.xlu0 %v2313, 118
      %v2606 = vpop.permute.xlu0 %2605
      %2623 = vrot.lane.b32.xlu0 %v2314, 121
      %v2624 = vpop.permute.xlu0 %2623
      %2625 = vrot.lane.b32.xlu0 %v2315, 121
      %v2626 = vpop.permute.xlu0 %2625
      %2627 = vrot.lane.b32.xlu0 %v2316, 121
      %v2628 = vpop.permute.xlu0 %2627
      %2629 = vrot.lane.b32.xlu0 %v2317, 121
      %v2630 = vpop.permute.xlu0 %2629
      %2631 = vrot.lane.b32.xlu0 %v2318, 121
      %v2632 = vpop.permute.xlu0 %2631
      %2633 = vrot.lane.b32.xlu0 %v2319, 121
      %v2634 = vpop.permute.xlu0 %2633
      %2635 = vrot.lane.b32.xlu0 %v2320, 121
      %v2636 = vpop.permute.xlu0 %2635
      %2637 = vrot.lane.b32.xlu0 %v2321, 121
      %v2638 = vpop.permute.xlu0 %2637
      %2655 = vrot.lane.b32.xlu0 %v2251, 1
      %v2656 = vpop.permute.xlu0 %2655
      %2657 = vrot.lane.b32.xlu0 %v2252, 1
      %v2658 = vpop.permute.xlu0 %2657
      %2659 = vrot.lane.b32.xlu0 %v2253, 1
      %v2660 = vpop.permute.xlu0 %2659
      %2661 = vrot.lane.b32.xlu0 %v2254, 1
      %v2662 = vpop.permute.xlu0 %2661
      %2663 = vrot.lane.b32.xlu0 %v2255, 1
      %v2664 = vpop.permute.xlu0 %2663
      %2665 = vrot.lane.b32.xlu0 %v2256, 1
      %v2666 = vpop.permute.xlu0 %2665
      %2667 = vrot.lane.b32.xlu0 %v2257, 1
      %v2668 = vpop.permute.xlu0 %2667
      %2669 = vrot.lane.b32.xlu0 %v2322, 1
      %v2670 = vpop.permute.xlu0 %2669
      %2679 = vrot.lane.b32.xlu0 %v1026, 17
      %v2680 = vpop.permute.xlu0 %2679
      %2681 = vrot.lane.b32.xlu0 %v1027, 17
      %v2682 = vpop.permute.xlu0 %2681
      %2683 = vrot.lane.b32.xlu0 %v1028, 17
      %v2684 = vpop.permute.xlu0 %2683
      %2685 = vrot.lane.b32.xlu0 %v1029, 17
      %v2686 = vpop.permute.xlu0 %2685
      %2687 = vrot.lane.b32.xlu0 %v1030, 17
      %v2688 = vpop.permute.xlu0 %2687
      %2689 = vrot.lane.b32.xlu0 %v1031, 17
      %v2690 = vpop.permute.xlu0 %2689
      %2691 = vrot.lane.b32.xlu0 %v1057, 17
      %v2692 = vpop.permute.xlu0 %2691
      %2693 = vrot.lane.b32.xlu0 %v1062, 17
      %v2694 = vpop.permute.xlu0 %2693
      %2704 = vrot.lane.b32.xlu0 %v2259, 33
      %v2705 = vpop.permute.xlu0 %2704
      %2706 = vrot.lane.b32.xlu0 %v2260, 33
      %v2707 = vpop.permute.xlu0 %2706
      %2708 = vrot.lane.b32.xlu0 %v2261, 33
      %v2709 = vpop.permute.xlu0 %2708
      %2710 = vrot.lane.b32.xlu0 %v2262, 33
      %v2711 = vpop.permute.xlu0 %2710
      %2712 = vrot.lane.b32.xlu0 %v2263, 33
      %v2713 = vpop.permute.xlu0 %2712
      %2714 = vrot.lane.b32.xlu0 %v2264, 33
      %v2715 = vpop.permute.xlu0 %2714
      %2716 = vrot.lane.b32.xlu0 %v2265, 33
      %v2717 = vpop.permute.xlu0 %2716
      %2718 = vrot.lane.b32.xlu0 %v2323, 33
      %v2719 = vpop.permute.xlu0 %2718
      %2729 = vrot.lane.b32.xlu0 %v2267, 36
      %v2730 = vpop.permute.xlu0 %2729
      %2731 = vrot.lane.b32.xlu0 %v2268, 36
      %v2732 = vpop.permute.xlu0 %2731
      %2733 = vrot.lane.b32.xlu0 %v2269, 36
      %v2734 = vpop.permute.xlu0 %2733
      %2735 = vrot.lane.b32.xlu0 %v2270, 36
      %v2736 = vpop.permute.xlu0 %2735
      %2737 = vrot.lane.b32.xlu0 %v2271, 36
      %v2738 = vpop.permute.xlu0 %2737
      %2739 = vrot.lane.b32.xlu0 %v2272, 36
      %v2740 = vpop.permute.xlu0 %2739
      %2741 = vrot.lane.b32.xlu0 %v2273, 36
      %v2742 = vpop.permute.xlu0 %2741
      %2743 = vrot.lane.b32.xlu0 %v2324, 36
      %v2744 = vpop.permute.xlu0 %2743
      %v2753 = vsel %vm1462, %v2250, %v1087
      %v2754 = vsel %vm1462, %v2251, %v1089
      %v2755 = vsel %vm1462, %v2252, %v1091
      %v2756 = vsel %vm1462, %v2253, %v1093
      %v2757 = vsel %vm1462, %v2254, %v1095
      %v2758 = vsel %vm1462, %v2255, %v1097
      %v2759 = vsel %vm1462, %v2256, %v1099
      %v2760 = vsel %vm1462, %v2257, %v2341
      %v2761 = vsel %vm1471, %v2753, %v2352
      %v2762 = vsel %vm1471, %v2754, %v2354
      %v2763 = vsel %vm1471, %v2755, %v2356
      %v2764 = vsel %vm1471, %v2756, %v2358
      %v2765 = vsel %vm1471, %v2757, %v2360
      %v2766 = vsel %vm1471, %v2758, %v2362
      %v2767 = vsel %vm1471, %v2759, %v2364
      %v2768 = vsel %vm1471, %v2760, %v2366
      %vm2769 = vcmask 285696
      %v2770 = vsel %vm2769, %v2761, %v2384
      %v2771 = vsel %vm2769, %v2762, %v2386
      %v2772 = vsel %vm2769, %v2763, %v2388
      %v2773 = vsel %vm2769, %v2764, %v2390
      %v2774 = vsel %vm2769, %v2765, %v2392
      %v2775 = vsel %vm2769, %v2766, %v2394
      %v2776 = vsel %vm2769, %v2767, %v2396
      %v2777 = vsel %vm2769, %v2768, %v2398
      %vm2778 = vcmask 351232
      %v2779 = vsel %vm2778, %v2770, %v2416
      %v2780 = vsel %vm2778, %v2771, %v2418
      %v2781 = vsel %vm2778, %v2772, %v2420
      %v2782 = vsel %vm2778, %v2773, %v2422
      %v2783 = vsel %vm2778, %v2774, %v2424
      %v2784 = vsel %vm2778, %v2775, %v2426
      %v2785 = vsel %vm2778, %v2776, %v2428
      %v2786 = vsel %vm2778, %v2777, %v2430
      %vm2787 = vcmask 482304
      %v2788 = vsel %vm2787, %v2779, %v2440
      %v2789 = vsel %vm2787, %v2780, %v2442
      %v2790 = vsel %vm2787, %v2781, %v2444
      %v2791 = vsel %vm2787, %v2782, %v2446
      %v2792 = vsel %vm2787, %v2783, %v2448
      %v2793 = vsel %vm2787, %v2784, %v2450
      %v2794 = vsel %vm2787, %v2785, %v2452
      %v2795 = vsel %vm2787, %v2786, %v2454
      %vm2796 = vcmask 613376
      %v2797 = vsel %vm2796, %v2788, %v2472
      %v2798 = vsel %vm2796, %v2789, %v2474
      %v2799 = vsel %vm2796, %v2790, %v2476
      %v2800 = vsel %vm2796, %v2791, %v2478
      %v2801 = vsel %vm2796, %v2792, %v2480
      %v2802 = vsel %vm2796, %v2793, %v2482
      %v2803 = vsel %vm2796, %v2794, %v2484
      %v2804 = vsel %vm2796, %v2795, %v2486
      %vm2805 = vcmask 637952
      %v2806 = vsel %vm2805, %v2797, %v2504
      %v2807 = vsel %vm2805, %v2798, %v2506
      %v2808 = vsel %vm2805, %v2799, %v2508
      %v2809 = vsel %vm2805, %v2800, %v2510
      %v2810 = vsel %vm2805, %v2801, %v2512
      %v2811 = vsel %vm2805, %v2802, %v2514
      %v2812 = vsel %vm2805, %v2803, %v2516
      %v2813 = vsel %vm2805, %v2804, %v2518
      %vm2814 = vcmask 703488
      %v2815 = vsel %vm2814, %v2806, %v2536
      %v2816 = vsel %vm2814, %v2807, %v2538
      %v2817 = vsel %vm2814, %v2808, %v2540
      %v2818 = vsel %vm2814, %v2809, %v2542
      %v2819 = vsel %vm2814, %v2810, %v2544
      %v2820 = vsel %vm2814, %v2811, %v2546
      %v2821 = vsel %vm2814, %v2812, %v2548
      %v2822 = vsel %vm2814, %v2813, %v2550
      %vm2823 = vcmask 834560
      %v2824 = vsel %vm2823, %v2815, %v2560
      %v2825 = vsel %vm2823, %v2816, %v2562
      %v2826 = vsel %vm2823, %v2817, %v2564
      %v2827 = vsel %vm2823, %v2818, %v2566
      %v2828 = vsel %vm2823, %v2819, %v2568
      %v2829 = vsel %vm2823, %v2820, %v2570
      %v2830 = vsel %vm2823, %v2821, %v2572
      %v2831 = vsel %vm2823, %v2822, %v2574
      %vm2832 = vcmask 965632
      %v2833 = vsel %vm2832, %v2824, %v2592
      %v2834 = vsel %vm2832, %v2825, %v2594
      %v2835 = vsel %vm2832, %v2826, %v2596
      %v2836 = vsel %vm2832, %v2827, %v2598
      %v2837 = vsel %vm2832, %v2828, %v2600
      %v2838 = vsel %vm2832, %v2829, %v2602
      %v2839 = vsel %vm2832, %v2830, %v2604
      %v2840 = vsel %vm2832, %v2831, %v2606
      %vm2841 = vcmask 990208
      %v2842 = vsel %vm2841, %v2833, %v2624
      %v2843 = vsel %vm2841, %v2834, %v2626
      %v2844 = vsel %vm2841, %v2835, %v2628
      %v2845 = vsel %vm2841, %v2836, %v2630
      %v2846 = vsel %vm2841, %v2837, %v2632
      %v2847 = vsel %vm2841, %v2838, %v2634
      %v2848 = vsel %vm2841, %v2839, %v2636
      %v2849 = vsel %vm2841, %v2840, %v2638
      %vm2850 = vcmask 7168
      %v2851 = vsel %vm2850, %v2624, %v2656
      %v2852 = vsel %vm2850, %v2626, %v2658
      %v2853 = vsel %vm2850, %v2628, %v2660
      %v2854 = vsel %vm2850, %v2630, %v2662
      %v2855 = vsel %vm2850, %v2632, %v2664
      %v2856 = vsel %vm2850, %v2634, %v2666
      %v2857 = vsel %vm2850, %v2636, %v2668
      %v2858 = vsel %vm2850, %v2638, %v2670
      %vm2859 = vcmask 138240
      %v2860 = vsel %vm2859, %v2851, %v2680
      %v2861 = vsel %vm2859, %v2852, %v2682
      %v2862 = vsel %vm2859, %v2853, %v2684
      %v2863 = vsel %vm2859, %v2854, %v2686
      %v2864 = vsel %vm2859, %v2855, %v2688
      %v2865 = vsel %vm2859, %v2856, %v2690
      %v2866 = vsel %vm2859, %v2857, %v2692
      %v2867 = vsel %vm2859, %v2858, %v2694
      %vm2868 = vcmask 269312
      %v2869 = vsel %vm2868, %v2860, %v2705
      %v2870 = vsel %vm2868, %v2861, %v2707
      %v2871 = vsel %vm2868, %v2862, %v2709
      %v2872 = vsel %vm2868, %v2863, %v2711
      %v2873 = vsel %vm2868, %v2864, %v2713
      %v2874 = vsel %vm2868, %v2865, %v2715
      %v2875 = vsel %vm2868, %v2866, %v2717
      %v2876 = vsel %vm2868, %v2867, %v2719
      %vm2877 = vcmask 293888
      %v2878 = vsel %vm2877, %v2869, %v2730
      %v2879 = vsel %vm2877, %v2870, %v2732
      %v2880 = vsel %vm2877, %v2871, %v2734
      %v2881 = vsel %vm2877, %v2872, %v2736
      %v2882 = vsel %vm2877, %v2873, %v2738
      %v2883 = vsel %vm2877, %v2874, %v2740
      %v2884 = vsel %vm2877, %v2875, %v2742
      %v2885 = vsel %vm2877, %v2876, %v2744
      %2886 = vrot.lane.b32.xlu0 %v1034, 16
      %v2887 = vpop.permute.xlu0 %2886
      %2890 = vrot.lane.b32.xlu0 %v2283, 32
      %v2891 = vpop.permute.xlu0 %2890
      %2892 = vrot.lane.b32.xlu0 %v2284, 32
      %v2893 = vpop.permute.xlu0 %2892
      %2894 = vrot.lane.b32.xlu0 %v2285, 32
      %v2895 = vpop.permute.xlu0 %2894
      %2896 = vrot.lane.b32.xlu0 %v2286, 32
      %v2897 = vpop.permute.xlu0 %2896
      %2898 = vrot.lane.b32.xlu0 %v2287, 32
      %v2899 = vpop.permute.xlu0 %2898
      %2900 = vrot.lane.b32.xlu0 %v2288, 32
      %v2901 = vpop.permute.xlu0 %2900
      %2902 = vrot.lane.b32.xlu0 %v2289, 32
      %v2903 = vpop.permute.xlu0 %2902
      %2904 = vrot.lane.b32.xlu0 %v2326, 32
      %v2905 = vpop.permute.xlu0 %2904
      %2915 = vrot.lane.b32.xlu0 %v2291, 35
      %v2916 = vpop.permute.xlu0 %2915
      %2917 = vrot.lane.b32.xlu0 %v2292, 35
      %v2918 = vpop.permute.xlu0 %2917
      %2919 = vrot.lane.b32.xlu0 %v2293, 35
      %v2920 = vpop.permute.xlu0 %2919
      %2921 = vrot.lane.b32.xlu0 %v2294, 35
      %v2922 = vpop.permute.xlu0 %2921
      %2923 = vrot.lane.b32.xlu0 %v2295, 35
      %v2924 = vpop.permute.xlu0 %2923
      %2925 = vrot.lane.b32.xlu0 %v2296, 35
      %v2926 = vpop.permute.xlu0 %2925
      %2927 = vrot.lane.b32.xlu0 %v2297, 35
      %v2928 = vpop.permute.xlu0 %2927
      %2929 = vrot.lane.b32.xlu0 %v2327, 35
      %v2930 = vpop.permute.xlu0 %2929
      %2940 = vrot.lane.b32.xlu0 %v2299, 43
      %v2941 = vpop.permute.xlu0 %2940
      %2942 = vrot.lane.b32.xlu0 %v2300, 43
      %v2943 = vpop.permute.xlu0 %2942
      %2944 = vrot.lane.b32.xlu0 %v2301, 43
      %v2945 = vpop.permute.xlu0 %2944
      %2946 = vrot.lane.b32.xlu0 %v2302, 43
      %v2947 = vpop.permute.xlu0 %2946
      %2948 = vrot.lane.b32.xlu0 %v2303, 43
      %v2949 = vpop.permute.xlu0 %2948
      %2950 = vrot.lane.b32.xlu0 %v2304, 43
      %v2951 = vpop.permute.xlu0 %2950
      %2952 = vrot.lane.b32.xlu0 %v2305, 43
      %v2953 = vpop.permute.xlu0 %2952
      %2954 = vrot.lane.b32.xlu0 %v2328, 43
      %v2955 = vpop.permute.xlu0 %2954
      %2964 = vrot.lane.b32.xlu0 %v1042, 59
      %v2965 = vpop.permute.xlu0 %2964
      %2966 = vrot.lane.b32.xlu0 %v1043, 59
      %v2967 = vpop.permute.xlu0 %2966
      %2968 = vrot.lane.b32.xlu0 %v1044, 59
      %v2969 = vpop.permute.xlu0 %2968
      %2970 = vrot.lane.b32.xlu0 %v1045, 59
      %v2971 = vpop.permute.xlu0 %2970
      %2972 = vrot.lane.b32.xlu0 %v1046, 59
      %v2973 = vpop.permute.xlu0 %2972
      %2974 = vrot.lane.b32.xlu0 %v1047, 59
      %v2975 = vpop.permute.xlu0 %2974
      %2976 = vrot.lane.b32.xlu0 %v1059, 59
      %v2977 = vpop.permute.xlu0 %2976
      %2978 = vrot.lane.b32.xlu0 %v1064, 59
      %v2979 = vpop.permute.xlu0 %2978
      %2989 = vrot.lane.b32.xlu0 %v2307, 75
      %v2990 = vpop.permute.xlu0 %2989
      %2991 = vrot.lane.b32.xlu0 %v2308, 75
      %v2992 = vpop.permute.xlu0 %2991
      %2993 = vrot.lane.b32.xlu0 %v2309, 75
      %v2994 = vpop.permute.xlu0 %2993
      %2995 = vrot.lane.b32.xlu0 %v2310, 75
      %v2996 = vpop.permute.xlu0 %2995
      %2997 = vrot.lane.b32.xlu0 %v2311, 75
      %v2998 = vpop.permute.xlu0 %2997
      %2999 = vrot.lane.b32.xlu0 %v2312, 75
      %v3000 = vpop.permute.xlu0 %2999
      %3001 = vrot.lane.b32.xlu0 %v2313, 75
      %v3002 = vpop.permute.xlu0 %3001
      %3003 = vrot.lane.b32.xlu0 %v2329, 75
      %v3004 = vpop.permute.xlu0 %3003
      %3014 = vrot.lane.b32.xlu0 %v2315, 78
      %v3015 = vpop.permute.xlu0 %3014
      %3016 = vrot.lane.b32.xlu0 %v2316, 78
      %v3017 = vpop.permute.xlu0 %3016
      %3018 = vrot.lane.b32.xlu0 %v2317, 78
      %v3019 = vpop.permute.xlu0 %3018
      %3020 = vrot.lane.b32.xlu0 %v2318, 78
      %v3021 = vpop.permute.xlu0 %3020
      %3022 = vrot.lane.b32.xlu0 %v2319, 78
      %v3023 = vpop.permute.xlu0 %3022
      %3024 = vrot.lane.b32.xlu0 %v2320, 78
      %v3025 = vpop.permute.xlu0 %3024
      %3026 = vrot.lane.b32.xlu0 %v2321, 78
      %v3027 = vpop.permute.xlu0 %3026
      %3028 = vrot.lane.b32.xlu0 %v2330, 78
      %v3029 = vpop.permute.xlu0 %3028
      %3039 = vrot.lane.b32.xlu0 %v2252, 86
      %v3040 = vpop.permute.xlu0 %3039
      %3041 = vrot.lane.b32.xlu0 %v2253, 86
      %v3042 = vpop.permute.xlu0 %3041
      %3043 = vrot.lane.b32.xlu0 %v2254, 86
      %v3044 = vpop.permute.xlu0 %3043
      %3045 = vrot.lane.b32.xlu0 %v2255, 86
      %v3046 = vpop.permute.xlu0 %3045
      %3047 = vrot.lane.b32.xlu0 %v2256, 86
      %v3048 = vpop.permute.xlu0 %3047
      %3049 = vrot.lane.b32.xlu0 %v2257, 86
      %v3050 = vpop.permute.xlu0 %3049
      %3051 = vrot.lane.b32.xlu0 %v2322, 86
      %v3052 = vpop.permute.xlu0 %3051
      %3053 = vrot.lane.b32.xlu0 %v2331, 86
      %v3054 = vpop.permute.xlu0 %3053
      %3063 = vrot.lane.b32.xlu0 %v1027, 102
      %v3064 = vpop.permute.xlu0 %3063
      %3065 = vrot.lane.b32.xlu0 %v1028, 102
      %v3066 = vpop.permute.xlu0 %3065
      %3067 = vrot.lane.b32.xlu0 %v1029, 102
      %v3068 = vpop.permute.xlu0 %3067
      %3069 = vrot.lane.b32.xlu0 %v1030, 102
      %v3070 = vpop.permute.xlu0 %3069
      %3071 = vrot.lane.b32.xlu0 %v1031, 102
      %v3072 = vpop.permute.xlu0 %3071
      %3073 = vrot.lane.b32.xlu0 %v1057, 102
      %v3074 = vpop.permute.xlu0 %3073
      %3075 = vrot.lane.b32.xlu0 %v1062, 102
      %v3076 = vpop.permute.xlu0 %3075
      %3077 = vrot.lane.b32.xlu0 %v1067, 102
      %v3078 = vpop.permute.xlu0 %3077
      %3088 = vrot.lane.b32.xlu0 %v2260, 118
      %v3089 = vpop.permute.xlu0 %3088
      %3090 = vrot.lane.b32.xlu0 %v2261, 118
      %v3091 = vpop.permute.xlu0 %3090
      %3092 = vrot.lane.b32.xlu0 %v2262, 118
      %v3093 = vpop.permute.xlu0 %3092
      %3094 = vrot.lane.b32.xlu0 %v2263, 118
      %v3095 = vpop.permute.xlu0 %3094
      %3096 = vrot.lane.b32.xlu0 %v2264, 118
      %v3097 = vpop.permute.xlu0 %3096
      %3098 = vrot.lane.b32.xlu0 %v2265, 118
      %v3099 = vpop.permute.xlu0 %3098
      %3100 = vrot.lane.b32.xlu0 %v2323, 118
      %v3101 = vpop.permute.xlu0 %3100
      %3102 = vrot.lane.b32.xlu0 %v2332, 118
      %v3103 = vpop.permute.xlu0 %3102
      %3113 = vrot.lane.b32.xlu0 %v2268, 121
      %v3114 = vpop.permute.xlu0 %3113
      %3115 = vrot.lane.b32.xlu0 %v2269, 121
      %v3116 = vpop.permute.xlu0 %3115
      %3117 = vrot.lane.b32.xlu0 %v2270, 121
      %v3118 = vpop.permute.xlu0 %3117
      %3119 = vrot.lane.b32.xlu0 %v2271, 121
      %v3120 = vpop.permute.xlu0 %3119
      %3121 = vrot.lane.b32.xlu0 %v2272, 121
      %v3122 = vpop.permute.xlu0 %3121
      %3123 = vrot.lane.b32.xlu0 %v2273, 121
      %v3124 = vpop.permute.xlu0 %3123
      %3125 = vrot.lane.b32.xlu0 %v2324, 121
      %v3126 = vpop.permute.xlu0 %3125
      %3127 = vrot.lane.b32.xlu0 %v2333, 121
      %v3128 = vpop.permute.xlu0 %3127
      %3139 = vrot.lane.b32.xlu0 %v2276, 1
      %v3140 = vpop.permute.xlu0 %3139
      %3141 = vrot.lane.b32.xlu0 %v2277, 1
      %v3142 = vpop.permute.xlu0 %3141
      %3143 = vrot.lane.b32.xlu0 %v2278, 1
      %v3144 = vpop.permute.xlu0 %3143
      %3145 = vrot.lane.b32.xlu0 %v2279, 1
      %v3146 = vpop.permute.xlu0 %3145
      %3147 = vrot.lane.b32.xlu0 %v2280, 1
      %v3148 = vpop.permute.xlu0 %3147
      %3149 = vrot.lane.b32.xlu0 %v2281, 1
      %v3150 = vpop.permute.xlu0 %3149
      %3151 = vrot.lane.b32.xlu0 %v2325, 1
      %v3152 = vpop.permute.xlu0 %3151
      %3153 = vrot.lane.b32.xlu0 %v2334, 1
      %v3154 = vpop.permute.xlu0 %3153
      %3163 = vrot.lane.b32.xlu0 %v1035, 17
      %v3164 = vpop.permute.xlu0 %3163
      %3165 = vrot.lane.b32.xlu0 %v1036, 17
      %v3166 = vpop.permute.xlu0 %3165
      %3167 = vrot.lane.b32.xlu0 %v1037, 17
      %v3168 = vpop.permute.xlu0 %3167
      %3169 = vrot.lane.b32.xlu0 %v1038, 17
      %v3170 = vpop.permute.xlu0 %3169
      %3171 = vrot.lane.b32.xlu0 %v1039, 17
      %v3172 = vpop.permute.xlu0 %3171
      %3173 = vrot.lane.b32.xlu0 %v1058, 17
      %v3174 = vpop.permute.xlu0 %3173
      %3175 = vrot.lane.b32.xlu0 %v1063, 17
      %v3176 = vpop.permute.xlu0 %3175
      %3177 = vrot.lane.b32.xlu0 %v1068, 17
      %v3178 = vpop.permute.xlu0 %3177
      %3188 = vrot.lane.b32.xlu0 %v2284, 33
      %v3189 = vpop.permute.xlu0 %3188
      %3190 = vrot.lane.b32.xlu0 %v2285, 33
      %v3191 = vpop.permute.xlu0 %3190
      %3192 = vrot.lane.b32.xlu0 %v2286, 33
      %v3193 = vpop.permute.xlu0 %3192
      %3194 = vrot.lane.b32.xlu0 %v2287, 33
      %v3195 = vpop.permute.xlu0 %3194
      %3196 = vrot.lane.b32.xlu0 %v2288, 33
      %v3197 = vpop.permute.xlu0 %3196
      %3198 = vrot.lane.b32.xlu0 %v2289, 33
      %v3199 = vpop.permute.xlu0 %3198
      %3200 = vrot.lane.b32.xlu0 %v2326, 33
      %v3201 = vpop.permute.xlu0 %3200
      %3202 = vrot.lane.b32.xlu0 %v2335, 33
      %v3203 = vpop.permute.xlu0 %3202
      %3213 = vrot.lane.b32.xlu0 %v2292, 36
      %v3214 = vpop.permute.xlu0 %3213
      %3215 = vrot.lane.b32.xlu0 %v2293, 36
      %v3216 = vpop.permute.xlu0 %3215
      %3217 = vrot.lane.b32.xlu0 %v2294, 36
      %v3218 = vpop.permute.xlu0 %3217
      %3219 = vrot.lane.b32.xlu0 %v2295, 36
      %v3220 = vpop.permute.xlu0 %3219
      %3221 = vrot.lane.b32.xlu0 %v2296, 36
      %v3222 = vpop.permute.xlu0 %3221
      %3223 = vrot.lane.b32.xlu0 %v2297, 36
      %v3224 = vpop.permute.xlu0 %3223
      %3225 = vrot.lane.b32.xlu0 %v2327, 36
      %v3226 = vpop.permute.xlu0 %3225
      %3227 = vrot.lane.b32.xlu0 %v2336, 36
      %v3228 = vpop.permute.xlu0 %3227
      %v3237 = vsel %vm1462, %v2275, %v2887
      %v3238 = vsel %vm1462, %v2276, %v1583
      %v3239 = vsel %vm1462, %v2277, %v1585
      %v3240 = vsel %vm1462, %v2278, %v1587
      %v3241 = vsel %vm1462, %v2279, %v1589
      %v3242 = vsel %vm1462, %v2280, %v1591
      %v3243 = vsel %vm1462, %v2281, %v1593
      %v3244 = vsel %vm1462, %v2325, %v1595
      %v3245 = vsel %vm1471, %v3237, %v2891
      %v3246 = vsel %vm1471, %v3238, %v2893
      %v3247 = vsel %vm1471, %v3239, %v2895
      %v3248 = vsel %vm1471, %v3240, %v2897
      %v3249 = vsel %vm1471, %v3241, %v2899
      %v3250 = vsel %vm1471, %v3242, %v2901
      %v3251 = vsel %vm1471, %v3243, %v2903
      %v3252 = vsel %vm1471, %v3244, %v2905
      %v3253 = vsel %vm2769, %v3245, %v2916
      %v3254 = vsel %vm2769, %v3246, %v2918
      %v3255 = vsel %vm2769, %v3247, %v2920
      %v3256 = vsel %vm2769, %v3248, %v2922
      %v3257 = vsel %vm2769, %v3249, %v2924
      %v3258 = vsel %vm2769, %v3250, %v2926
      %v3259 = vsel %vm2769, %v3251, %v2928
      %v3260 = vsel %vm2769, %v3252, %v2930
      %v3261 = vsel %vm2778, %v3253, %v2941
      %v3262 = vsel %vm2778, %v3254, %v2943
      %v3263 = vsel %vm2778, %v3255, %v2945
      %v3264 = vsel %vm2778, %v3256, %v2947
      %v3265 = vsel %vm2778, %v3257, %v2949
      %v3266 = vsel %vm2778, %v3258, %v2951
      %v3267 = vsel %vm2778, %v3259, %v2953
      %v3268 = vsel %vm2778, %v3260, %v2955
      %v3269 = vsel %vm2787, %v3261, %v2965
      %v3270 = vsel %vm2787, %v3262, %v2967
      %v3271 = vsel %vm2787, %v3263, %v2969
      %v3272 = vsel %vm2787, %v3264, %v2971
      %v3273 = vsel %vm2787, %v3265, %v2973
      %v3274 = vsel %vm2787, %v3266, %v2975
      %v3275 = vsel %vm2787, %v3267, %v2977
      %v3276 = vsel %vm2787, %v3268, %v2979
      %v3277 = vsel %vm2796, %v3269, %v2990
      %v3278 = vsel %vm2796, %v3270, %v2992
      %v3279 = vsel %vm2796, %v3271, %v2994
      %v3280 = vsel %vm2796, %v3272, %v2996
      %v3281 = vsel %vm2796, %v3273, %v2998
      %v3282 = vsel %vm2796, %v3274, %v3000
      %v3283 = vsel %vm2796, %v3275, %v3002
      %v3284 = vsel %vm2796, %v3276, %v3004
      %v3285 = vsel %vm2805, %v3277, %v3015
      %v3286 = vsel %vm2805, %v3278, %v3017
      %v3287 = vsel %vm2805, %v3279, %v3019
      %v3288 = vsel %vm2805, %v3280, %v3021
      %v3289 = vsel %vm2805, %v3281, %v3023
      %v3290 = vsel %vm2805, %v3282, %v3025
      %v3291 = vsel %vm2805, %v3283, %v3027
      %v3292 = vsel %vm2805, %v3284, %v3029
      %v3293 = vsel %vm2814, %v3285, %v3040
      %v3294 = vsel %vm2814, %v3286, %v3042
      %v3295 = vsel %vm2814, %v3287, %v3044
      %v3296 = vsel %vm2814, %v3288, %v3046
      %v3297 = vsel %vm2814, %v3289, %v3048
      %v3298 = vsel %vm2814, %v3290, %v3050
      %v3299 = vsel %vm2814, %v3291, %v3052
      %v3300 = vsel %vm2814, %v3292, %v3054
      %v3301 = vsel %vm2823, %v3293, %v3064
      %v3302 = vsel %vm2823, %v3294, %v3066
      %v3303 = vsel %vm2823, %v3295, %v3068
      %v3304 = vsel %vm2823, %v3296, %v3070
      %v3305 = vsel %vm2823, %v3297, %v3072
      %v3306 = vsel %vm2823, %v3298, %v3074
      %v3307 = vsel %vm2823, %v3299, %v3076
      %v3308 = vsel %vm2823, %v3300, %v3078
      %v3309 = vsel %vm2832, %v3301, %v3089
      %v3310 = vsel %vm2832, %v3302, %v3091
      %v3311 = vsel %vm2832, %v3303, %v3093
      %v3312 = vsel %vm2832, %v3304, %v3095
      %v3313 = vsel %vm2832, %v3305, %v3097
      %v3314 = vsel %vm2832, %v3306, %v3099
      %v3315 = vsel %vm2832, %v3307, %v3101
      %v3316 = vsel %vm2832, %v3308, %v3103
      %v3317 = vsel %vm2841, %v3309, %v3114
      %v3318 = vsel %vm2841, %v3310, %v3116
      %v3319 = vsel %vm2841, %v3311, %v3118
      %v3320 = vsel %vm2841, %v3312, %v3120
      %v3321 = vsel %vm2841, %v3313, %v3122
      %v3322 = vsel %vm2841, %v3314, %v3124
      %v3323 = vsel %vm2841, %v3315, %v3126
      %v3324 = vsel %vm2841, %v3316, %v3128
      %v3325 = vsel %vm2850, %v3114, %v3140
      %v3326 = vsel %vm2850, %v3116, %v3142
      %v3327 = vsel %vm2850, %v3118, %v3144
      %v3328 = vsel %vm2850, %v3120, %v3146
      %v3329 = vsel %vm2850, %v3122, %v3148
      %v3330 = vsel %vm2850, %v3124, %v3150
      %v3331 = vsel %vm2850, %v3126, %v3152
      %v3332 = vsel %vm2850, %v3128, %v3154
      %v3333 = vsel %vm2859, %v3325, %v3164
      %v3334 = vsel %vm2859, %v3326, %v3166
      %v3335 = vsel %vm2859, %v3327, %v3168
      %v3336 = vsel %vm2859, %v3328, %v3170
      %v3337 = vsel %vm2859, %v3329, %v3172
      %v3338 = vsel %vm2859, %v3330, %v3174
      %v3339 = vsel %vm2859, %v3331, %v3176
      %v3340 = vsel %vm2859, %v3332, %v3178
      %v3341 = vsel %vm2868, %v3333, %v3189
      %v3342 = vsel %vm2868, %v3334, %v3191
      %v3343 = vsel %vm2868, %v3335, %v3193
      %v3344 = vsel %vm2868, %v3336, %v3195
      %v3345 = vsel %vm2868, %v3337, %v3197
      %v3346 = vsel %vm2868, %v3338, %v3199
      %v3347 = vsel %vm2868, %v3339, %v3201
      %v3348 = vsel %vm2868, %v3340, %v3203
      %v3349 = vsel %vm2877, %v3341, %v3214
      %v3350 = vsel %vm2877, %v3342, %v3216
      %v3351 = vsel %vm2877, %v3343, %v3218
      %v3352 = vsel %vm2877, %v3344, %v3220
      %v3353 = vsel %vm2877, %v3345, %v3222
      %v3354 = vsel %vm2877, %v3346, %v3224
      %v3355 = vsel %vm2877, %v3347, %v3226
      %v3356 = vsel %vm2877, %v3348, %v3228
      %3357 = vrot.lane.b32.xlu0 %v1043, 16
      %v3358 = vpop.permute.xlu0 %3357
      %3359 = vrot.lane.b32.xlu0 %v1044, 16
      %v3360 = vpop.permute.xlu0 %3359
      %3361 = vrot.lane.b32.xlu0 %v1045, 16
      %v3362 = vpop.permute.xlu0 %3361
      %3363 = vrot.lane.b32.xlu0 %v1046, 16
      %v3364 = vpop.permute.xlu0 %3363
      %3365 = vrot.lane.b32.xlu0 %v1047, 16
      %v3366 = vpop.permute.xlu0 %3365
      %3367 = vrot.lane.b32.xlu0 %v1059, 16
      %v3368 = vpop.permute.xlu0 %3367
      %3369 = vrot.lane.b32.xlu0 %v1064, 16
      %v3370 = vpop.permute.xlu0 %3369
      %3371 = vrot.lane.b32.xlu0 %v1069, 16
      %v3372 = vpop.permute.xlu0 %3371
      %3382 = vrot.lane.b32.xlu0 %v2308, 32
      %v3383 = vpop.permute.xlu0 %3382
      %3384 = vrot.lane.b32.xlu0 %v2309, 32
      %v3385 = vpop.permute.xlu0 %3384
      %3386 = vrot.lane.b32.xlu0 %v2310, 32
      %v3387 = vpop.permute.xlu0 %3386
      %3388 = vrot.lane.b32.xlu0 %v2311, 32
      %v3389 = vpop.permute.xlu0 %3388
      %3390 = vrot.lane.b32.xlu0 %v2312, 32
      %v3391 = vpop.permute.xlu0 %3390
      %3392 = vrot.lane.b32.xlu0 %v2313, 32
      %v3393 = vpop.permute.xlu0 %3392
      %3394 = vrot.lane.b32.xlu0 %v2329, 32
      %v3395 = vpop.permute.xlu0 %3394
      %3396 = vrot.lane.b32.xlu0 %v2338, 32
      %v3397 = vpop.permute.xlu0 %3396
      %3407 = vrot.lane.b32.xlu0 %v2316, 35
      %v3408 = vpop.permute.xlu0 %3407
      %3409 = vrot.lane.b32.xlu0 %v2317, 35
      %v3410 = vpop.permute.xlu0 %3409
      %3411 = vrot.lane.b32.xlu0 %v2318, 35
      %v3412 = vpop.permute.xlu0 %3411
      %3413 = vrot.lane.b32.xlu0 %v2319, 35
      %v3414 = vpop.permute.xlu0 %3413
      %3415 = vrot.lane.b32.xlu0 %v2320, 35
      %v3416 = vpop.permute.xlu0 %3415
      %3417 = vrot.lane.b32.xlu0 %v2321, 35
      %v3418 = vpop.permute.xlu0 %3417
      %3419 = vrot.lane.b32.xlu0 %v2330, 35
      %v3420 = vpop.permute.xlu0 %3419
      %3421 = vrot.lane.b32.xlu0 %v2339, 35
      %v3422 = vpop.permute.xlu0 %3421
      %v3431 = vsel %vm1462, %v2300, %v3358
      %v3432 = vsel %vm1462, %v2301, %v3360
      %v3433 = vsel %vm1462, %v2302, %v3362
      %v3434 = vsel %vm1462, %v2303, %v3364
      %v3435 = vsel %vm1462, %v2304, %v3366
      %v3436 = vsel %vm1462, %v2305, %v3368
      %v3437 = vsel %vm1462, %v2328, %v3370
      %v3438 = vsel %vm1462, %v2337, %v3372
      %v3439 = vsel %vm1471, %v3431, %v3383
      %v3440 = vsel %vm1471, %v3432, %v3385
      %v3441 = vsel %vm1471, %v3433, %v3387
      %v3442 = vsel %vm1471, %v3434, %v3389
      %v3443 = vsel %vm1471, %v3435, %v3391
      %v3444 = vsel %vm1471, %v3436, %v3393
      %v3445 = vsel %vm1471, %v3437, %v3395
      %v3446 = vsel %vm1471, %v3438, %v3397
      %v3447 = vsel %vm2769, %v3439, %v3408
      %v3448 = vsel %vm2769, %v3440, %v3410
      %v3449 = vsel %vm2769, %v3441, %v3412
      %v3450 = vsel %vm2769, %v3442, %v3414
      %v3451 = vsel %vm2769, %v3443, %v3416
      %v3452 = vsel %vm2769, %v3444, %v3418
      %v3453 = vsel %vm2769, %v3445, %v3420
      %v3454 = vsel %vm2769, %v3446, %v3422
      %3471 = vrot.lane.b32.xlu0 %v3317, 44
      %v3472 = vpop.permute.xlu0 %3471
      %3473 = vrot.lane.b32.xlu0 %v3349, 44
      %v3474 = vpop.permute.xlu0 %3473
      %3475 = vrot.lane.b32.xlu0 %v3318, 44
      %v3476 = vpop.permute.xlu0 %3475
      %3477 = vrot.lane.b32.xlu0 %v3350, 44
      %v3478 = vpop.permute.xlu0 %3477
      %3479 = vrot.lane.b32.xlu0 %v3319, 44
      %v3480 = vpop.permute.xlu0 %3479
      %3481 = vrot.lane.b32.xlu0 %v3351, 44
      %v3482 = vpop.permute.xlu0 %3481
      %3483 = vrot.lane.b32.xlu0 %v3320, 44
      %v3484 = vpop.permute.xlu0 %3483
      %3485 = vrot.lane.b32.xlu0 %v3352, 44
      %v3486 = vpop.permute.xlu0 %3485
      %3487 = vrot.lane.b32.xlu0 %v3321, 44
      %v3488 = vpop.permute.xlu0 %3487
      %3489 = vrot.lane.b32.xlu0 %v3353, 44
      %v3490 = vpop.permute.xlu0 %3489
      %3491 = vrot.lane.b32.xlu0 %v3322, 44
      %v3492 = vpop.permute.xlu0 %3491
      %3493 = vrot.lane.b32.xlu0 %v3354, 44
      %v3494 = vpop.permute.xlu0 %3493
      %3495 = vrot.lane.b32.xlu0 %v3323, 44
      %v3496 = vpop.permute.xlu0 %3495
      %3497 = vrot.lane.b32.xlu0 %v3355, 44
      %v3498 = vpop.permute.xlu0 %3497
      %3499 = vrot.lane.b32.xlu0 %v3324, 44
      %v3500 = vpop.permute.xlu0 %3499
      %3501 = vrot.lane.b32.xlu0 %v3356, 44
      %v3502 = vpop.permute.xlu0 %3501
      %vm3503 = vcmask 359424
      %v3504 = vsel %vm3503, %v3472, %v3474
      %v3505 = vsel %vm3503, %v3476, %v3478
      %v3506 = vsel %vm3503, %v3480, %v3482
      %v3507 = vsel %vm3503, %v3484, %v3486
      %v3508 = vsel %vm3503, %v3488, %v3490
      %v3509 = vsel %vm3503, %v3492, %v3494
      %v3510 = vsel %vm3503, %v3496, %v3498
      %v3511 = vsel %vm3503, %v3500, %v3502
      %3536 = vrot.lane.b32.xlu0 %v3447, 88
      %v3537 = vpop.permute.xlu0 %3536
      %3538 = vrot.lane.b32.xlu0 %v3448, 88
      %v3539 = vpop.permute.xlu0 %3538
      %3540 = vrot.lane.b32.xlu0 %v3449, 88
      %v3541 = vpop.permute.xlu0 %3540
      %3542 = vrot.lane.b32.xlu0 %v3450, 88
      %v3543 = vpop.permute.xlu0 %3542
      %3544 = vrot.lane.b32.xlu0 %v3451, 88
      %v3545 = vpop.permute.xlu0 %3544
      %3546 = vrot.lane.b32.xlu0 %v3452, 88
      %v3547 = vpop.permute.xlu0 %3546
      %3548 = vrot.lane.b32.xlu0 %v3453, 88
      %v3549 = vpop.permute.xlu0 %3548
      %3550 = vrot.lane.b32.xlu0 %v3454, 88
      %v3551 = vpop.permute.xlu0 %3550
      %v3560 = vsel %vm3503, %v2878, %v3472
      %v3561 = vsel %vm3503, %v2879, %v3476
      %v3562 = vsel %vm3503, %v2880, %v3480
      %v3563 = vsel %vm3503, %v2881, %v3484
      %v3564 = vsel %vm3503, %v2882, %v3488
      %v3565 = vsel %vm3503, %v2883, %v3492
      %v3566 = vsel %vm3503, %v2884, %v3496
      %v3567 = vsel %vm3503, %v2885, %v3500
      %vm3568 = vcmask 719872
      %v3569 = vsel %vm3568, %v3504, %v3537
      %v3570 = vsel %vm3568, %v3505, %v3539
      %v3571 = vsel %vm3568, %v3506, %v3541
      %v3572 = vsel %vm3568, %v3507, %v3543
      %v3573 = vsel %vm3568, %v3508, %v3545
      %v3574 = vsel %vm3568, %v3509, %v3547
      %v3575 = vsel %vm3568, %v3510, %v3549
      %v3576 = vsel %vm3568, %v3511, %v3551
      %v3577 = vpack.c.bf16 %v2843, %v2842
      %v3578 = vpack.c.bf16 %v3561, %v3560
      %v3579 = vpack.c.bf16 %v3570, %v3569
      %v3580 = vpack.c.bf16 %v3539, %v3537
      %v3581 = vpack.c.bf16 %v2845, %v2844
      %v3582 = vpack.c.bf16 %v3563, %v3562
      %v3583 = vpack.c.bf16 %v3572, %v3571
      %v3584 = vpack.c.bf16 %v3543, %v3541
      %v3585 = vpack.c.bf16 %v2847, %v2846
      %v3586 = vpack.c.bf16 %v3565, %v3564
      %v3587 = vpack.c.bf16 %v3574, %v3573
      %v3588 = vpack.c.bf16 %v3547, %v3545
      %v3589 = vpack.c.bf16 %v2849, %v2848
      %v3590 = vpack.c.bf16 %v3567, %v3566
      %v3591 = vpack.c.bf16 %v3576, %v3575
      %v3592 = vpack.c.bf16 %v3551, %v3549
      %v3593 = vld [vmem:[%s9] sm:$0xf]
      %v3594 = vld [vmem:[%s9 + $0x4] sm:$0xf]
      %v3595 = vld [vmem:[%s9 + $0x8] sm:$0xf]
      %v3596 = vld [vmem:[%s9 + $0xc] sm:$0xf]
      %v3597 = vld [vmem:[%s9 + $0x10] sm:$0xf]
      %v3598 = vld [vmem:[%s9 + $0x14] sm:$0xf]
      %v3599 = vld [vmem:[%s9 + $0x18] sm:$0xf]
      %v3600 = vld [vmem:[%s9 + $0x1c] sm:$0xf]
      %v3601 = vld [vmem:[%s9 + $0x20] sm:$0xf]
      %v3602 = vld [vmem:[%s9 + $0x24] sm:$0xf]
      %v3603 = vld [vmem:[%s9 + $0x28] sm:$0xf]
      %v3604 = vld [vmem:[%s9 + $0x2c] sm:$0xf]
      %v3605 = vld [vmem:[%s9 + $0x30] sm:$0xf]
      %v3606 = vld [vmem:[%s9 + $0x34] sm:$0xf]
      %v3607 = vld [vmem:[%s9 + $0x38] sm:$0xf]
      %v3608 = vld [vmem:[%s9 + $0x3c] sm:$0xf]
      %v3609 = vld [vmem:[%s9 + $0x40] sm:$0xf]
      %v3610 = vld [vmem:[%s9 + $0x44] sm:$0xf]
      %v3611 = vld [vmem:[%s9 + $0x48] sm:$0xf]
      %v3612 = vld [vmem:[%s9 + $0x4c] sm:$0xf]
      %v3613 = vld [vmem:[%s9 + $0x50] sm:$0xf]
      %v3614 = vld [vmem:[%s9 + $0x54] sm:$0xf]
      %v3615 = vld [vmem:[%s9 + $0x58] sm:$0xf]
      %v3616 = vld [vmem:[%s9 + $0x5c] sm:$0xf]
      %v3617 = vld [vmem:[%s9 + $0x60] sm:$0xf]
      %v3618 = vld [vmem:[%s9 + $0x64] sm:$0xf]
      %v3619 = vld [vmem:[%s9 + $0x68] sm:$0xf]
      %v3620 = vld [vmem:[%s9 + $0x6c] sm:$0xf]
      %v3621 = vld [vmem:[%s9 + $0x70] sm:$0xf]
      %v3622 = vld [vmem:[%s9 + $0x74] sm:$0xf]
      %v3623 = vld [vmem:[%s9 + $0x78] sm:$0xf]
      %v3624 = vld [vmem:[%s9 + $0x7c] sm:$0xf]
      %v3625 = vld [vmem:[%s9 + $0x80] sm:$0xf]
      %v3626 = vld [vmem:[%s9 + $0x84] sm:$0xf]
      %v3627 = vld [vmem:[%s9 + $0x88] sm:$0xf]
      %v3628 = vld [vmem:[%s9 + $0x8c] sm:$0xf]
      %v3629 = vld [vmem:[%s9 + $0x90] sm:$0xf]
      %v3630 = vld [vmem:[%s9 + $0x94] sm:$0xf]
      %v3631 = vld [vmem:[%s9 + $0x98] sm:$0xf]
      %v3632 = vld [vmem:[%s9 + $0x9c] sm:$0xf]
      %v3633 = vld [vmem:[%s9 + $0xa0] sm:$0xf]
      %v3634 = vld [vmem:[%s9 + $0xa4] sm:$0xf]
      %v3635 = vld [vmem:[%s9 + $0xa8] sm:$0xf]
      %v3636 = vld [vmem:[%s9 + $0xac] sm:$0xf]
      %v3637 = vld [vmem:[%s9 + $0xb0] sm:$0xf]
      %v3638 = vld [vmem:[%s9 + $0xb4] sm:$0xf]
      %v3639 = vld [vmem:[%s9 + $0xb8] sm:$0xf]
      %v3640 = vld [vmem:[%s9 + $0xbc] sm:$0xf]
      %v3641 = vld [vmem:[%s9 + $0xc0] sm:$0x3]
      %v3642 = vld [vmem:[%s10] sm:$0x1]
      %v3644 = vlaneseq
      %v3645 = vshrl.u32 %v3644, 7
      %v3646 = vsub.s32 0, %v3645
      %v3647 = vrot.slane %v3642, %v3646
      %v3698 = vunpack.c.l.b16 %v3593
      %v3699 = vunpack.c.l.b16 %v3594
      %v3700 = vunpack.c.l.b16 %v3595
      %v3701 = vunpack.c.l.b16 %v3596
      %v3702 = vunpack.c.l.b16 %v3597
      %v3703 = vunpack.c.l.b16 %v3598
      %v3704 = vunpack.c.l.b16 %v3599
      %v3705 = vunpack.c.l.b16 %v3600
      %v3706 = vunpack.c.l.b16 %v3601
      %v3707 = vunpack.c.l.b16 %v3602
      %v3708 = vunpack.c.l.b16 %v3603
      %v3709 = vunpack.c.l.b16 %v3604
      %v3710 = vunpack.c.l.b16 %v3605
      %v3711 = vunpack.c.l.b16 %v3606
      %v3712 = vunpack.c.l.b16 %v3607
      %v3713 = vunpack.c.l.b16 %v3608
      %v3714 = vunpack.c.l.b16 %v3609
      %v3715 = vunpack.c.l.b16 %v3610
      %v3716 = vunpack.c.l.b16 %v3611
      %v3717 = vunpack.c.l.b16 %v3612
      %v3718 = vunpack.c.l.b16 %v3613
      %v3719 = vunpack.c.l.b16 %v3614
      %v3720 = vunpack.c.l.b16 %v3615
      %v3721 = vunpack.c.l.b16 %v3616
      %v3722 = vunpack.c.l.b16 %v3617
      %v3723 = vunpack.c.l.b16 %v3618
      %v3724 = vunpack.c.l.b16 %v3619
      %v3725 = vunpack.c.l.b16 %v3620
      %v3726 = vunpack.c.l.b16 %v3621
      %v3727 = vunpack.c.l.b16 %v3622
      %v3728 = vunpack.c.l.b16 %v3623
      %v3729 = vunpack.c.l.b16 %v3624
      %v3730 = vunpack.c.l.b16 %v3625
      %v3731 = vunpack.c.l.b16 %v3626
      %v3732 = vunpack.c.l.b16 %v3627
      %v3733 = vunpack.c.l.b16 %v3628
      %v3734 = vunpack.c.l.b16 %v3629
      %v3735 = vunpack.c.l.b16 %v3630
      %v3736 = vunpack.c.l.b16 %v3631
      %v3737 = vunpack.c.l.b16 %v3632
      %v3738 = vunpack.c.l.b16 %v3633
      %v3739 = vunpack.c.l.b16 %v3634
      %v3740 = vunpack.c.l.b16 %v3635
      %v3741 = vunpack.c.l.b16 %v3636
      %v3742 = vunpack.c.l.b16 %v3637
      %v3743 = vunpack.c.l.b16 %v3638
      %v3744 = vunpack.c.l.b16 %v3639
      %v3745 = vunpack.c.l.b16 %v3640
      %v3746 = vunpack.c.l.b16 %v3641
      %v3747 = vpack.c.b16 %v3699, %v3698
      %v3748 = vpack.c.b16 %v3701, %v3700
      %v3749 = vpack.c.b16 %v3703, %v3702
      %v3750 = vpack.c.b16 %v3705, %v3704
      %v3751 = vpack.c.b16 %v3707, %v3706
      %v3752 = vpack.c.b16 %v3709, %v3708
      %v3753 = vpack.c.b16 %v3711, %v3710
      %v3754 = vpack.c.b16 %v3713, %v3712
      %v3755 = vpack.c.b16 %v3715, %v3714
      %v3756 = vpack.c.b16 %v3717, %v3716
      %v3757 = vpack.c.b16 %v3719, %v3718
      %v3758 = vpack.c.b16 %v3721, %v3720
      %v3759 = vpack.c.b16 %v3723, %v3722
      %v3760 = vpack.c.b16 %v3725, %v3724
      %v3761 = vpack.c.b16 %v3727, %v3726
      %v3762 = vpack.c.b16 %v3729, %v3728
      %v3763 = vpack.c.b16 %v3731, %v3730
      %v3764 = vpack.c.b16 %v3733, %v3732
      %v3765 = vpack.c.b16 %v3735, %v3734
      %v3766 = vpack.c.b16 %v3737, %v3736
      %v3767 = vpack.c.b16 %v3739, %v3738
      %v3768 = vpack.c.b16 %v3741, %v3740
      %v3769 = vpack.c.b16 %v3743, %v3742
      %v3770 = vpack.c.b16 %v3745, %v3744
      %v3771 = vpack.c.b16 %v3746, %v3746
      %vm3796 = vcmask 23552
      %v3798 = vsel %vm3796, %v3580, 0
      %v3801 = vsel %vm3796, %v3584, 0
      %v3804 = vsel %vm3796, %v3588, 0
      %v3807 = vsel %vm3796, %v3592, 0
      %vm3809 = vcmask 1040384
      %vm3810 = vcmask 1041408
      %v3811 = vsel %vm3809, 4294967295, 65535
      %v3812 = vsel %vm3810, %v3811, 0
      %v3814 = vand.u32 %v3771, %v3812
      %3816 = vmatprep.subr.bf16.mxu0 0
      %3817 = vmatpush1.bf16.msra.mxu0 %v3747
      %3818 = vmatprep.subr.bf16.mxu0 0
      %3819 = vmatpush1.bf16.msra.mxu0 %v3748
      %3820 = vmatprep.subr.bf16.mxu0 0
      %3821 = vmatpush1.bf16.msra.mxu0 %v3749
      %3822 = vmatprep.subr.bf16.mxu0 0
      %3823 = vmatpush1.bf16.msra.mxu0 %v3750
      %3824 = vmatprep.subr.bf16.mxu0 0
      %3825 = vmatpush1.bf16.msra.mxu0 %v3751
      %3826 = vmatprep.subr.bf16.mxu0 0
      %3827 = vmatpush1.bf16.msra.mxu0 %v3752
      %3828 = vmatprep.subr.bf16.mxu0 0
      %3829 = vmatpush1.bf16.msra.mxu0 %v3753
      %3830 = vmatprep.subr.bf16.mxu0 0
      %3831 = vmatpush1.bf16.msra.mxu0 %v3754
      %3832 = vmatprep.subr.bf16.mxu0 0
      %3833 = vmatpush1.bf16.msra.mxu0 %v3755
      %3834 = vmatprep.subr.bf16.mxu0 0
      %3835 = vmatpush1.bf16.msra.mxu0 %v3756
      %3836 = vmatprep.subr.bf16.mxu0 0
      %3837 = vmatpush1.bf16.msra.mxu0 %v3757
      %3838 = vmatprep.subr.bf16.mxu0 0
      %3839 = vmatpush1.bf16.msra.mxu0 %v3758
      %3840 = vmatprep.subr.bf16.mxu0 0
      %3841 = vmatpush1.bf16.msra.mxu0 %v3759
      %3842 = vmatprep.subr.bf16.mxu0 0
      %3843 = vmatpush1.bf16.msra.mxu0 %v3760
      %3844 = vmatprep.subr.bf16.mxu0 0
      %3845 = vmatpush1.bf16.msra.mxu0 %v3761
      %3846 = vmatprep.subr.bf16.mxu0 0
      %3847 = vmatpush1.bf16.msra.mxu0 %v3762
      %3848 = vmatprep.mubr.bf16.mxu0 %v3578
      %3849 = vmatmul.mubr.bf16.gmra.mrb[0].mxu0 %v3577
      %v3850 = vpop.f32.mrb[0].mxu0
      %v3851 = vadd.f32 %v3647, %v3850
      %v3852 = vpop.f32.mrb[0].mxu0
      %v3853 = vpop.f32.mrb[0].mxu0
      %v3854 = vadd.f32 %v3647, %v3853
      %v3855 = vpop.f32.mrb[0].mxu0
      %3856 = vmatprep.mubr.bf16.mxu0 %v3582
      %3857 = vmatmul.mubr.bf16.gmra.mrb[0].mxu0 %v3581
      %v3858 = vpop.f32.mrb[0].mxu0
      %v3859 = vadd.f32 %v3647, %v3858
      %v3860 = vpop.f32.mrb[0].mxu0
      %v3861 = vpop.f32.mrb[0].mxu0
      %v3862 = vadd.f32 %v3647, %v3861
      %v3863 = vpop.f32.mrb[0].mxu0
      %3864 = vmatprep.mubr.bf16.mxu0 %v3586
      %3865 = vmatmul.mubr.bf16.gmra.mrb[0].mxu0 %v3585
      %v3866 = vpop.f32.mrb[0].mxu0
      %v3867 = vadd.f32 %v3647, %v3866
      %v3868 = vpop.f32.mrb[0].mxu0
      %v3869 = vpop.f32.mrb[0].mxu0
      %v3870 = vadd.f32 %v3647, %v3869
      %v3871 = vpop.f32.mrb[0].mxu0
      %3872 = vmatprep.mubr.bf16.mxu0 %v3590
      %3873 = vmatmul.mubr.bf16.gmra.mrb[0].mxu0 %v3589
      %v3874 = vpop.f32.mrb[0].mxu0
      %v3875 = vadd.f32 %v3647, %v3874
      %v3876 = vpop.f32.mrb[0].mxu0
      %v3877 = vpop.f32.mrb[0].mxu0
      %v3878 = vadd.f32 %v3647, %v3877
      %v3879 = vpop.f32.mrb[0].mxu0
      %3880 = vdwg.mxu0
      %3881 = vmatprep.subr.bf16.mxu0 0
      %3882 = vmatpush1.bf16.msra.mxu0 %v3763
      %3883 = vmatprep.subr.bf16.mxu0 0
      %3884 = vmatpush1.bf16.msra.mxu0 %v3764
      %3885 = vmatprep.subr.bf16.mxu0 0
      %3886 = vmatpush1.bf16.msra.mxu0 %v3765
      %3887 = vmatprep.subr.bf16.mxu0 0
      %3888 = vmatpush1.bf16.msra.mxu0 %v3766
      %3889 = vmatprep.subr.bf16.mxu0 0
      %3890 = vmatpush1.bf16.msra.mxu0 %v3767
      %3891 = vmatprep.subr.bf16.mxu0 0
      %3892 = vmatpush1.bf16.msra.mxu0 %v3768
      %3893 = vmatprep.subr.bf16.mxu0 0
      %3894 = vmatpush1.bf16.msra.mxu0 %v3769
      %3895 = vmatprep.subr.bf16.mxu0 0
      %3896 = vmatpush1.bf16.msra.mxu0 %v3770
      %3897 = vmatprep.subr.bf16.mxu0 0
      %3898 = vmatpush1.bf16.msra.mxu0 %v3814
      %3899 = vmatprep.subr.bf16.mxu0 0
      %3900 = vmatpush1.bf16.msra.mxu0 0
      %3901 = vmatprep.subr.bf16.mxu0 0
      %3902 = vmatpush1.bf16.msra.mxu0 0
      %3903 = vmatprep.subr.bf16.mxu0 0
      %3904 = vmatpush1.bf16.msra.mxu0 0
      %3905 = vmatprep.subr.bf16.mxu0 0
      %3906 = vmatpush1.bf16.msra.mxu0 0
      %3907 = vmatprep.subr.bf16.mxu0 0
      %3908 = vmatpush1.bf16.msra.mxu0 0
      %3909 = vmatprep.subr.bf16.mxu0 0
      %3910 = vmatpush1.bf16.msra.mxu0 0
      %3911 = vmatprep.subr.bf16.mxu0 0
      %3912 = vmatpush1.bf16.msra.mxu0 0
      %3913 = vmatprep.mubr.bf16.mxu0 %v3798
      %3914 = vmatmul.mubr.bf16.gmra.mrb[0].mxu0 %v3579
      %v3915 = vpop.f32.mrb[0].mxu0
      %v3916 = vadd.f32 %v3851, %v3915
      %v3917 = vpop.f32.mrb[0].mxu0
      %v3918 = vpop.f32.mrb[0].mxu0
      %v3919 = vadd.f32 %v3854, %v3918
      %v3920 = vpop.f32.mrb[0].mxu0
      %3921 = vmatprep.mubr.bf16.mxu0 %v3801
      %3922 = vmatmul.mubr.bf16.gmra.mrb[0].mxu0 %v3583
      %v3923 = vpop.f32.mrb[0].mxu0
      %v3924 = vadd.f32 %v3859, %v3923
      %v3925 = vpop.f32.mrb[0].mxu0
      %v3926 = vpop.f32.mrb[0].mxu0
      %v3927 = vadd.f32 %v3862, %v3926
      %v3928 = vpop.f32.mrb[0].mxu0
      %3929 = vmatprep.mubr.bf16.mxu0 %v3804
      %3930 = vmatmul.mubr.bf16.gmra.mrb[0].mxu0 %v3587
      %v3931 = vpop.f32.mrb[0].mxu0
      %v3932 = vadd.f32 %v3867, %v3931
      %v3933 = vpop.f32.mrb[0].mxu0
      %v3934 = vpop.f32.mrb[0].mxu0
      %v3935 = vadd.f32 %v3870, %v3934
      %v3936 = vpop.f32.mrb[0].mxu0
      %3937 = vmatprep.mubr.bf16.mxu0 %v3807
      %3938 = vmatmul.mubr.bf16.gmra.mrb[0].mxu0 %v3591
      %v3939 = vpop.f32.mrb[0].mxu0
      %v3940 = vadd.f32 %v3875, %v3939
      %v3941 = vpop.f32.mrb[0].mxu0
      %v3942 = vpop.f32.mrb[0].mxu0
      %v3943 = vadd.f32 %v3878, %v3942
      %v3944 = vpop.f32.mrb[0].mxu0
      %3945 = vdwg.mxu0
      %v3946 = vxor.u32 %v3916, 2147483648
      %v3947 = vxor.u32 %v3919, 2147483648
      %v3948 = vxor.u32 %v3924, 2147483648
      %v3949 = vxor.u32 %v3927, 2147483648
      %v3950 = vxor.u32 %v3932, 2147483648
      %v3951 = vxor.u32 %v3935, 2147483648
      %v3952 = vxor.u32 %v3940, 2147483648
      %v3953 = vxor.u32 %v3943, 2147483648
      %v3954 = vmul.f32 %v3946, 1.442695
      %v3955 = vpow.pop %v3954
      %v3956 = vmul.f32 %v3947, 1.442695
      %v3957 = vpow.pop %v3956
      %v3958 = vmul.f32 %v3948, 1.442695
      %v3959 = vpow.pop %v3958
      %v3960 = vmul.f32 %v3949, 1.442695
      %v3961 = vpow.pop %v3960
      %v3962 = vmul.f32 %v3950, 1.442695
      %v3963 = vpow.pop %v3962
      %v3964 = vmul.f32 %v3951, 1.442695
      %v3965 = vpow.pop %v3964
      %v3966 = vmul.f32 %v3952, 1.442695
      %v3967 = vpow.pop %v3966
      %v3968 = vmul.f32 %v3953, 1.442695
      %v3969 = vpow.pop %v3968
      %v3970 = vadd.f32 %v3955, 1.0
      %v3971 = vadd.f32 %v3957, 1.0
      %v3972 = vadd.f32 %v3959, 1.0
      %v3973 = vadd.f32 %v3961, 1.0
      %v3974 = vadd.f32 %v3963, 1.0
      %v3975 = vadd.f32 %v3965, 1.0
      %v3976 = vadd.f32 %v3967, 1.0
      %v3977 = vadd.f32 %v3969, 1.0
      %v3978 = vrcp.pop %v3970
      %v3979 = vmul.f32 1.0, %v3978
      %v3980 = vrcp.pop %v3971
      %v3981 = vmul.f32 1.0, %v3980
      %v3982 = vrcp.pop %v3972
      %v3983 = vmul.f32 1.0, %v3982
      %v3984 = vrcp.pop %v3973
      %v3985 = vmul.f32 1.0, %v3984
      %v3986 = vrcp.pop %v3974
      %v3987 = vmul.f32 1.0, %v3986
      %v3988 = vrcp.pop %v3975
      %v3989 = vmul.f32 1.0, %v3988
      %v3990 = vrcp.pop %v3976
      %v3991 = vmul.f32 1.0, %v3990
      %v3992 = vrcp.pop %v3977
      %v3993 = vmul.f32 1.0, %v3992
      %v3994 = vmul.f32 %v3979, %v2275
      %v3995 = vmul.f32 %v3981, %v2276
      %v3996 = vmul.f32 %v3983, %v2277
      %v3997 = vmul.f32 %v3985, %v2278
      %v3998 = vmul.f32 %v3987, %v2279
      %v3999 = vmul.f32 %v3989, %v2280
      %v4000 = vmul.f32 %v3991, %v2281
      %v4001 = vmul.f32 %v3993, %v2325
      %4002 = vst.msk [vmem:[#allocation6 + $0x18] sm:$0xff] %vm1462, %v3994
      %4003 = vst.msk [vmem:[#allocation6 + $0x20] sm:$0xff] %vm1462, %v3995
      %4004 = vst.msk [vmem:[#allocation6 + $0x28] sm:$0xff] %vm1462, %v3996
      %4005 = vst.msk [vmem:[#allocation6 + $0x30] sm:$0xff] %vm1462, %v3997
      %4006 = vst.msk [vmem:[#allocation6 + $0x38] sm:$0xff] %vm1462, %v3998
      %4007 = vst.msk [vmem:[#allocation6 + $0x40] sm:$0xff] %vm1462, %v3999
      %4008 = vst.msk [vmem:[#allocation6 + $0x48] sm:$0xff] %vm1462, %v4000
      %4009 = vst.msk [vmem:[#allocation6 + $0x50] sm:$0xff] %vm1462, %v4001
      %v4010 = vld [vmem:[#allocation6 + $0xf] sm:$0xff]
      %v4011 = vld [vmem:[#allocation6 + $0x17] sm:$0xff]
      %v4012 = vld [vmem:[#allocation6 + $0x1f] sm:$0xff]
      %v4013 = vld [vmem:[#allocation6 + $0x27] sm:$0xff]
      %v4014 = vld [vmem:[#allocation6 + $0x2f] sm:$0xff]
      %v4015 = vld [vmem:[#allocation6 + $0x37] sm:$0xff]
      %v4016 = vld [vmem:[#allocation6 + $0x3f] sm:$0xff]
      %v4017 = vld [vmem:[#allocation6 + $0x47] sm:$0xff]
      %v4018 = vld [vmem:[#allocation3 + $0xf] sm:$0xff]
      %v4019 = vld [vmem:[#allocation3 + $0x17] sm:$0xff]
      %v4020 = vld [vmem:[#allocation3 + $0x1f] sm:$0xff]
      %v4021 = vld [vmem:[#allocation3 + $0x27] sm:$0xff]
      %v4022 = vld [vmem:[#allocation3 + $0x2f] sm:$0xff]
      %v4023 = vld [vmem:[#allocation3 + $0x37] sm:$0xff]
      %v4024 = vld [vmem:[#allocation3 + $0x3f] sm:$0xff]
      %v4025 = vld [vmem:[#allocation3 + $0x47] sm:$0xff]
      %v4026 = vld [vmem:[#allocation4 + $0xf] sm:$0xff]
      %v4027 = vld [vmem:[#allocation4 + $0x17] sm:$0xff]
      %v4028 = vld [vmem:[#allocation4 + $0x1f] sm:$0xff]
      %v4029 = vld [vmem:[#allocation4 + $0x27] sm:$0xff]
      %v4030 = vld [vmem:[#allocation4 + $0x2f] sm:$0xff]
      %v4031 = vld [vmem:[#allocation4 + $0x37] sm:$0xff]
      %v4032 = vld [vmem:[#allocation4 + $0x3f] sm:$0xff]
      %v4033 = vld [vmem:[#allocation4 + $0x47] sm:$0xff]
      %v4034 = vld [vmem:[%s716 + $0xf] sm:$0xff]
      %v4035 = vld [vmem:[%s716 + $0x17] sm:$0xff]
      %v4036 = vld [vmem:[%s716 + $0x1f] sm:$0xff]
      %v4037 = vld [vmem:[%s716 + $0x27] sm:$0xff]
      %v4038 = vld [vmem:[%s716 + $0x2f] sm:$0xff]
      %v4039 = vld [vmem:[%s716 + $0x37] sm:$0xff]
      %v4040 = vld [vmem:[%s716 + $0x3f] sm:$0xff]
      %v4041 = vld [vmem:[%s716 + $0x47] sm:$0xff]
      %v4042 = vld [vmem:[#allocation6 + $0x10] sm:$0xff]
      %v4043 = vld [vmem:[#allocation6 + $0x18] sm:$0xff]
      %v4044 = vld [vmem:[#allocation6 + $0x20] sm:$0xff]
      %v4045 = vld [vmem:[#allocation6 + $0x28] sm:$0xff]
      %v4046 = vld [vmem:[#allocation6 + $0x30] sm:$0xff]
      %v4047 = vld [vmem:[#allocation6 + $0x38] sm:$0xff]
      %v4048 = vld [vmem:[#allocation6 + $0x40] sm:$0xff]
      %v4049 = vld [vmem:[#allocation6 + $0x48] sm:$0xff]
      %v4050 = vld [vmem:[#allocation3 + $0x10] sm:$0xff]
      %v4051 = vld [vmem:[#allocation3 + $0x18] sm:$0xff]
      %v4052 = vld [vmem:[#allocation3 + $0x20] sm:$0xff]
      %v4053 = vld [vmem:[#allocation3 + $0x28] sm:$0xff]
      %v4054 = vld [vmem:[#allocation3 + $0x30] sm:$0xff]
      %v4055 = vld [vmem:[#allocation3 + $0x38] sm:$0xff]
      %v4056 = vld [vmem:[#allocation3 + $0x40] sm:$0xff]
      %v4057 = vld [vmem:[#allocation3 + $0x48] sm:$0xff]
      %v4058 = vld [vmem:[#allocation4 + $0x10] sm:$0xff]
      %v4059 = vld [vmem:[#allocation4 + $0x18] sm:$0xff]
      %v4060 = vld [vmem:[#allocation4 + $0x20] sm:$0xff]
      %v4061 = vld [vmem:[#allocation4 + $0x28] sm:$0xff]
      %v4062 = vld [vmem:[#allocation4 + $0x30] sm:$0xff]
      %v4063 = vld [vmem:[#allocation4 + $0x38] sm:$0xff]
      %v4064 = vld [vmem:[#allocation4 + $0x40] sm:$0xff]
      %v4065 = vld [vmem:[#allocation4 + $0x48] sm:$0xff]
      %v4066 = vld [vmem:[%s716 + $0x10] sm:$0xff]
      %v4067 = vld [vmem:[%s716 + $0x18] sm:$0xff]
      %v4068 = vld [vmem:[%s716 + $0x20] sm:$0xff]
      %v4069 = vld [vmem:[%s716 + $0x28] sm:$0xff]
      %v4070 = vld [vmem:[%s716 + $0x30] sm:$0xff]
      %v4071 = vld [vmem:[%s716 + $0x38] sm:$0xff]
      %v4072 = vld [vmem:[%s716 + $0x40] sm:$0xff]
      %v4073 = vld [vmem:[%s716 + $0x48] sm:$0xff]
      %v4074 = vld [vmem:[#allocation6 + $0x11] sm:$0xff]
      %v4075 = vld [vmem:[#allocation6 + $0x19] sm:$0xff]
      %v4076 = vld [vmem:[#allocation6 + $0x21] sm:$0xff]
      %v4077 = vld [vmem:[#allocation6 + $0x29] sm:$0xff]
      %v4078 = vld [vmem:[#allocation6 + $0x31] sm:$0xff]
      %v4079 = vld [vmem:[#allocation6 + $0x39] sm:$0xff]
      %v4080 = vld [vmem:[#allocation6 + $0x41] sm:$0xff]
      %v4081 = vld [vmem:[#allocation6 + $0x49] sm:$0xff]
      %v4082 = vld [vmem:[#allocation3 + $0x11] sm:$0xff]
      %v4083 = vld [vmem:[#allocation3 + $0x19] sm:$0xff]
      %v4084 = vld [vmem:[#allocation3 + $0x21] sm:$0xff]
      %v4085 = vld [vmem:[#allocation3 + $0x29] sm:$0xff]
      %v4086 = vld [vmem:[#allocation3 + $0x31] sm:$0xff]
      %v4087 = vld [vmem:[#allocation3 + $0x39] sm:$0xff]
      %v4088 = vld [vmem:[#allocation3 + $0x41] sm:$0xff]
      %v4089 = vld [vmem:[#allocation3 + $0x49] sm:$0xff]
      %v4090 = vld [vmem:[#allocation4 + $0x11] sm:$0xff]
      %v4091 = vld [vmem:[#allocation4 + $0x19] sm:$0xff]
      %v4092 = vld [vmem:[#allocation4 + $0x21] sm:$0xff]
      %v4093 = vld [vmem:[#allocation4 + $0x29] sm:$0xff]
      %v4094 = vld [vmem:[#allocation4 + $0x31] sm:$0xff]
      %v4095 = vld [vmem:[#allocation4 + $0x39] sm:$0xff]
      %v4096 = vld [vmem:[#allocation4 + $0x41] sm:$0xff]
      %v4097 = vld [vmem:[#allocation4 + $0x49] sm:$0xff]
      %v4098 = vld [vmem:[%s716 + $0x11] sm:$0xff]
      %v4099 = vld [vmem:[%s716 + $0x19] sm:$0xff]
      %v4100 = vld [vmem:[%s716 + $0x21] sm:$0xff]
      %v4101 = vld [vmem:[%s716 + $0x29] sm:$0xff]
      %v4102 = vld [vmem:[%s716 + $0x31] sm:$0xff]
      %v4103 = vld [vmem:[%s716 + $0x39] sm:$0xff]
      %v4104 = vld [vmem:[%s716 + $0x41] sm:$0xff]
      %v4105 = vld [vmem:[%s716 + $0x49] sm:$0xff]
      %v4106 = vld [vmem:[#allocation6 + $0x4f] sm:$0xff]
      %v4107 = vld [vmem:[#allocation3 + $0x4f] sm:$0xff]
      %v4108 = vld [vmem:[#allocation4 + $0x4f] sm:$0xff]
      %v4109 = vld [vmem:[%s716 + $0x4f] sm:$0xff]
      %v4110 = vld [vmem:[#allocation6 + $0x50] sm:$0xff]
      %v4111 = vld [vmem:[#allocation3 + $0x50] sm:$0xff]
      %v4112 = vld [vmem:[#allocation4 + $0x50] sm:$0xff]
      %v4113 = vld [vmem:[%s716 + $0x50] sm:$0xff]
      %v4114 = vld [vmem:[#allocation6 + $0x51] sm:$0xff]
      %v4115 = vld [vmem:[#allocation3 + $0x51] sm:$0xff]
      %v4116 = vld [vmem:[#allocation4 + $0x51] sm:$0xff]
      %v4117 = vld [vmem:[%s716 + $0x51] sm:$0xff]
      %v4118 = vld [vmem:[#allocation6 + $0x57] sm:$0xff]
      %v4119 = vld [vmem:[#allocation3 + $0x57] sm:$0xff]
      %v4120 = vld [vmem:[#allocation4 + $0x57] sm:$0xff]
      %v4121 = vld [vmem:[%s716 + $0x57] sm:$0xff]
      %v4122 = vld [vmem:[#allocation6 + $0x58] sm:$0xff]
      %v4123 = vld [vmem:[#allocation3 + $0x58] sm:$0xff]
      %v4124 = vld [vmem:[#allocation4 + $0x58] sm:$0xff]
      %v4125 = vld [vmem:[%s716 + $0x58] sm:$0xff]
      %v4126 = vld [vmem:[#allocation6 + $0x59] sm:$0xff]
      %v4127 = vld [vmem:[#allocation3 + $0x59] sm:$0xff]
      %v4128 = vld [vmem:[#allocation4 + $0x59] sm:$0xff]
      %v4129 = vld [vmem:[%s716 + $0x59] sm:$0xff]
      %4138 = vrot.lane.b32.xlu0 %v4018, 16
      %v4139 = vpop.permute.xlu0 %4138
      %4140 = vrot.lane.b32.xlu0 %v4019, 16
      %v4141 = vpop.permute.xlu0 %4140
      %4142 = vrot.lane.b32.xlu0 %v4020, 16
      %v4143 = vpop.permute.xlu0 %4142
      %4144 = vrot.lane.b32.xlu0 %v4021, 16
      %v4145 = vpop.permute.xlu0 %4144
      %4146 = vrot.lane.b32.xlu0 %v4022, 16
      %v4147 = vpop.permute.xlu0 %4146
      %4148 = vrot.lane.b32.xlu0 %v4023, 16
      %v4149 = vpop.permute.xlu0 %4148
      %4150 = vrot.lane.b32.xlu0 %v4024, 16
      %v4151 = vpop.permute.xlu0 %4150
      %4152 = vrot.lane.b32.xlu0 %v4025, 16
      %v4153 = vpop.permute.xlu0 %4152
      %4170 = vrot.lane.b32.xlu0 %v4026, 32
      %v4171 = vpop.permute.xlu0 %4170
      %4172 = vrot.lane.b32.xlu0 %v4027, 32
      %v4173 = vpop.permute.xlu0 %4172
      %4174 = vrot.lane.b32.xlu0 %v4028, 32
      %v4175 = vpop.permute.xlu0 %4174
      %4176 = vrot.lane.b32.xlu0 %v4029, 32
      %v4177 = vpop.permute.xlu0 %4176
      %4178 = vrot.lane.b32.xlu0 %v4030, 32
      %v4179 = vpop.permute.xlu0 %4178
      %4180 = vrot.lane.b32.xlu0 %v4031, 32
      %v4181 = vpop.permute.xlu0 %4180
      %4182 = vrot.lane.b32.xlu0 %v4032, 32
      %v4183 = vpop.permute.xlu0 %4182
      %4184 = vrot.lane.b32.xlu0 %v4033, 32
      %v4185 = vpop.permute.xlu0 %4184
      %4202 = vrot.lane.b32.xlu0 %v4034, 35
      %v4203 = vpop.permute.xlu0 %4202
      %4204 = vrot.lane.b32.xlu0 %v4035, 35
      %v4205 = vpop.permute.xlu0 %4204
      %4206 = vrot.lane.b32.xlu0 %v4036, 35
      %v4207 = vpop.permute.xlu0 %4206
      %4208 = vrot.lane.b32.xlu0 %v4037, 35
      %v4209 = vpop.permute.xlu0 %4208
      %4210 = vrot.lane.b32.xlu0 %v4038, 35
      %v4211 = vpop.permute.xlu0 %4210
      %4212 = vrot.lane.b32.xlu0 %v4039, 35
      %v4213 = vpop.permute.xlu0 %4212
      %4214 = vrot.lane.b32.xlu0 %v4040, 35
      %v4215 = vpop.permute.xlu0 %4214
      %4216 = vrot.lane.b32.xlu0 %v4041, 35
      %v4217 = vpop.permute.xlu0 %4216
      %4234 = vrot.lane.b32.xlu0 %v4042, 43
      %v4235 = vpop.permute.xlu0 %4234
      %4236 = vrot.lane.b32.xlu0 %v4043, 43
      %v4237 = vpop.permute.xlu0 %4236
      %4238 = vrot.lane.b32.xlu0 %v4044, 43
      %v4239 = vpop.permute.xlu0 %4238
      %4240 = vrot.lane.b32.xlu0 %v4045, 43
      %v4241 = vpop.permute.xlu0 %4240
      %4242 = vrot.lane.b32.xlu0 %v4046, 43
      %v4243 = vpop.permute.xlu0 %4242
      %4244 = vrot.lane.b32.xlu0 %v4047, 43
      %v4245 = vpop.permute.xlu0 %4244
      %4246 = vrot.lane.b32.xlu0 %v4048, 43
      %v4247 = vpop.permute.xlu0 %4246
      %4248 = vrot.lane.b32.xlu0 %v4049, 43
      %v4249 = vpop.permute.xlu0 %4248
      %4266 = vrot.lane.b32.xlu0 %v4050, 59
      %v4267 = vpop.permute.xlu0 %4266
      %4268 = vrot.lane.b32.xlu0 %v4051, 59
      %v4269 = vpop.permute.xlu0 %4268
      %4270 = vrot.lane.b32.xlu0 %v4052, 59
      %v4271 = vpop.permute.xlu0 %4270
      %4272 = vrot.lane.b32.xlu0 %v4053, 59
      %v4273 = vpop.permute.xlu0 %4272
      %4274 = vrot.lane.b32.xlu0 %v4054, 59
      %v4275 = vpop.permute.xlu0 %4274
      %4276 = vrot.lane.b32.xlu0 %v4055, 59
      %v4277 = vpop.permute.xlu0 %4276
      %4278 = vrot.lane.b32.xlu0 %v4056, 59
      %v4279 = vpop.permute.xlu0 %4278
      %4280 = vrot.lane.b32.xlu0 %v4057, 59
      %v4281 = vpop.permute.xlu0 %4280
      %4298 = vrot.lane.b32.xlu0 %v4058, 75
      %v4299 = vpop.permute.xlu0 %4298
      %4300 = vrot.lane.b32.xlu0 %v4059, 75
      %v4301 = vpop.permute.xlu0 %4300
      %4302 = vrot.lane.b32.xlu0 %v4060, 75
      %v4303 = vpop.permute.xlu0 %4302
      %4304 = vrot.lane.b32.xlu0 %v4061, 75
      %v4305 = vpop.permute.xlu0 %4304
      %4306 = vrot.lane.b32.xlu0 %v4062, 75
      %v4307 = vpop.permute.xlu0 %4306
      %4308 = vrot.lane.b32.xlu0 %v4063, 75
      %v4309 = vpop.permute.xlu0 %4308
      %4310 = vrot.lane.b32.xlu0 %v4064, 75
      %v4311 = vpop.permute.xlu0 %4310
      %4312 = vrot.lane.b32.xlu0 %v4065, 75
      %v4313 = vpop.permute.xlu0 %4312
      %4330 = vrot.lane.b32.xlu0 %v4066, 78
      %v4331 = vpop.permute.xlu0 %4330
      %4332 = vrot.lane.b32.xlu0 %v4067, 78
      %v4333 = vpop.permute.xlu0 %4332
      %4334 = vrot.lane.b32.xlu0 %v4068, 78
      %v4335 = vpop.permute.xlu0 %4334
      %4336 = vrot.lane.b32.xlu0 %v4069, 78
      %v4337 = vpop.permute.xlu0 %4336
      %4338 = vrot.lane.b32.xlu0 %v4070, 78
      %v4339 = vpop.permute.xlu0 %4338
      %4340 = vrot.lane.b32.xlu0 %v4071, 78
      %v4341 = vpop.permute.xlu0 %4340
      %4342 = vrot.lane.b32.xlu0 %v4072, 78
      %v4343 = vpop.permute.xlu0 %4342
      %4344 = vrot.lane.b32.xlu0 %v4073, 78
      %v4345 = vpop.permute.xlu0 %4344
      %4362 = vrot.lane.b32.xlu0 %v4074, 86
      %v4363 = vpop.permute.xlu0 %4362
      %4364 = vrot.lane.b32.xlu0 %v4075, 86
      %v4365 = vpop.permute.xlu0 %4364
      %4366 = vrot.lane.b32.xlu0 %v4076, 86
      %v4367 = vpop.permute.xlu0 %4366
      %4368 = vrot.lane.b32.xlu0 %v4077, 86
      %v4369 = vpop.permute.xlu0 %4368
      %4370 = vrot.lane.b32.xlu0 %v4078, 86
      %v4371 = vpop.permute.xlu0 %4370
      %4372 = vrot.lane.b32.xlu0 %v4079, 86
      %v4373 = vpop.permute.xlu0 %4372
      %4374 = vrot.lane.b32.xlu0 %v4080, 86
      %v4375 = vpop.permute.xlu0 %4374
      %4376 = vrot.lane.b32.xlu0 %v4081, 86
      %v4377 = vpop.permute.xlu0 %4376
      %4394 = vrot.lane.b32.xlu0 %v4082, 102
      %v4395 = vpop.permute.xlu0 %4394
      %4396 = vrot.lane.b32.xlu0 %v4083, 102
      %v4397 = vpop.permute.xlu0 %4396
      %4398 = vrot.lane.b32.xlu0 %v4084, 102
      %v4399 = vpop.permute.xlu0 %4398
      %4400 = vrot.lane.b32.xlu0 %v4085, 102
      %v4401 = vpop.permute.xlu0 %4400
      %4402 = vrot.lane.b32.xlu0 %v4086, 102
      %v4403 = vpop.permute.xlu0 %4402
      %4404 = vrot.lane.b32.xlu0 %v4087, 102
      %v4405 = vpop.permute.xlu0 %4404
      %4406 = vrot.lane.b32.xlu0 %v4088, 102
      %v4407 = vpop.permute.xlu0 %4406
      %4408 = vrot.lane.b32.xlu0 %v4089, 102
      %v4409 = vpop.permute.xlu0 %4408
      %4426 = vrot.lane.b32.xlu0 %v4090, 118
      %v4427 = vpop.permute.xlu0 %4426
      %4428 = vrot.lane.b32.xlu0 %v4091, 118
      %v4429 = vpop.permute.xlu0 %4428
      %4430 = vrot.lane.b32.xlu0 %v4092, 118
      %v4431 = vpop.permute.xlu0 %4430
      %4432 = vrot.lane.b32.xlu0 %v4093, 118
      %v4433 = vpop.permute.xlu0 %4432
      %4434 = vrot.lane.b32.xlu0 %v4094, 118
      %v4435 = vpop.permute.xlu0 %4434
      %4436 = vrot.lane.b32.xlu0 %v4095, 118
      %v4437 = vpop.permute.xlu0 %4436
      %4438 = vrot.lane.b32.xlu0 %v4096, 118
      %v4439 = vpop.permute.xlu0 %4438
      %4440 = vrot.lane.b32.xlu0 %v4097, 118
      %v4441 = vpop.permute.xlu0 %4440
      %4458 = vrot.lane.b32.xlu0 %v4098, 121
      %v4459 = vpop.permute.xlu0 %4458
      %4460 = vrot.lane.b32.xlu0 %v4099, 121
      %v4461 = vpop.permute.xlu0 %4460
      %4462 = vrot.lane.b32.xlu0 %v4100, 121
      %v4463 = vpop.permute.xlu0 %4462
      %4464 = vrot.lane.b32.xlu0 %v4101, 121
      %v4465 = vpop.permute.xlu0 %4464
      %4466 = vrot.lane.b32.xlu0 %v4102, 121
      %v4467 = vpop.permute.xlu0 %4466
      %4468 = vrot.lane.b32.xlu0 %v4103, 121
      %v4469 = vpop.permute.xlu0 %4468
      %4470 = vrot.lane.b32.xlu0 %v4104, 121
      %v4471 = vpop.permute.xlu0 %4470
      %4472 = vrot.lane.b32.xlu0 %v4105, 121
      %v4473 = vpop.permute.xlu0 %4472
      %4490 = vrot.lane.b32.xlu0 %v4011, 1
      %v4491 = vpop.permute.xlu0 %4490
      %4492 = vrot.lane.b32.xlu0 %v4012, 1
      %v4493 = vpop.permute.xlu0 %4492
      %4494 = vrot.lane.b32.xlu0 %v4013, 1
      %v4495 = vpop.permute.xlu0 %4494
      %4496 = vrot.lane.b32.xlu0 %v4014, 1
      %v4497 = vpop.permute.xlu0 %4496
      %4498 = vrot.lane.b32.xlu0 %v4015, 1
      %v4499 = vpop.permute.xlu0 %4498
      %4500 = vrot.lane.b32.xlu0 %v4016, 1
      %v4501 = vpop.permute.xlu0 %4500
      %4502 = vrot.lane.b32.xlu0 %v4017, 1
      %v4503 = vpop.permute.xlu0 %4502
      %4504 = vrot.lane.b32.xlu0 %v4106, 1
      %v4505 = vpop.permute.xlu0 %4504
      %4515 = vrot.lane.b32.xlu0 %v4019, 17
      %v4516 = vpop.permute.xlu0 %4515
      %4517 = vrot.lane.b32.xlu0 %v4020, 17
      %v4518 = vpop.permute.xlu0 %4517
      %4519 = vrot.lane.b32.xlu0 %v4021, 17
      %v4520 = vpop.permute.xlu0 %4519
      %4521 = vrot.lane.b32.xlu0 %v4022, 17
      %v4522 = vpop.permute.xlu0 %4521
      %4523 = vrot.lane.b32.xlu0 %v4023, 17
      %v4524 = vpop.permute.xlu0 %4523
      %4525 = vrot.lane.b32.xlu0 %v4024, 17
      %v4526 = vpop.permute.xlu0 %4525
      %4527 = vrot.lane.b32.xlu0 %v4025, 17
      %v4528 = vpop.permute.xlu0 %4527
      %4529 = vrot.lane.b32.xlu0 %v4107, 17
      %v4530 = vpop.permute.xlu0 %4529
      %4540 = vrot.lane.b32.xlu0 %v4027, 33
      %v4541 = vpop.permute.xlu0 %4540
      %4542 = vrot.lane.b32.xlu0 %v4028, 33
      %v4543 = vpop.permute.xlu0 %4542
      %4544 = vrot.lane.b32.xlu0 %v4029, 33
      %v4545 = vpop.permute.xlu0 %4544
      %4546 = vrot.lane.b32.xlu0 %v4030, 33
      %v4547 = vpop.permute.xlu0 %4546
      %4548 = vrot.lane.b32.xlu0 %v4031, 33
      %v4549 = vpop.permute.xlu0 %4548
      %4550 = vrot.lane.b32.xlu0 %v4032, 33
      %v4551 = vpop.permute.xlu0 %4550
      %4552 = vrot.lane.b32.xlu0 %v4033, 33
      %v4553 = vpop.permute.xlu0 %4552
      %4554 = vrot.lane.b32.xlu0 %v4108, 33
      %v4555 = vpop.permute.xlu0 %4554
      %4565 = vrot.lane.b32.xlu0 %v4035, 36
      %v4566 = vpop.permute.xlu0 %4565
      %4567 = vrot.lane.b32.xlu0 %v4036, 36
      %v4568 = vpop.permute.xlu0 %4567
      %4569 = vrot.lane.b32.xlu0 %v4037, 36
      %v4570 = vpop.permute.xlu0 %4569
      %4571 = vrot.lane.b32.xlu0 %v4038, 36
      %v4572 = vpop.permute.xlu0 %4571
      %4573 = vrot.lane.b32.xlu0 %v4039, 36
      %v4574 = vpop.permute.xlu0 %4573
      %4575 = vrot.lane.b32.xlu0 %v4040, 36
      %v4576 = vpop.permute.xlu0 %4575
      %4577 = vrot.lane.b32.xlu0 %v4041, 36
      %v4578 = vpop.permute.xlu0 %4577
      %4579 = vrot.lane.b32.xlu0 %v4109, 36
      %v4580 = vpop.permute.xlu0 %4579
      %v4589 = vsel %vm1462, %v4010, %v4139
      %v4590 = vsel %vm1462, %v4011, %v4141
      %v4591 = vsel %vm1462, %v4012, %v4143
      %v4592 = vsel %vm1462, %v4013, %v4145
      %v4593 = vsel %vm1462, %v4014, %v4147
      %v4594 = vsel %vm1462, %v4015, %v4149
      %v4595 = vsel %vm1462, %v4016, %v4151
      %v4596 = vsel %vm1462, %v4017, %v4153
      %v4597 = vsel %vm1471, %v4589, %v4171
      %v4598 = vsel %vm1471, %v4590, %v4173
      %v4599 = vsel %vm1471, %v4591, %v4175
      %v4600 = vsel %vm1471, %v4592, %v4177
      %v4601 = vsel %vm1471, %v4593, %v4179
      %v4602 = vsel %vm1471, %v4594, %v4181
      %v4603 = vsel %vm1471, %v4595, %v4183
      %v4604 = vsel %vm1471, %v4596, %v4185
      %v4605 = vsel %vm2769, %v4597, %v4203
      %v4606 = vsel %vm2769, %v4598, %v4205
      %v4607 = vsel %vm2769, %v4599, %v4207
      %v4608 = vsel %vm2769, %v4600, %v4209
      %v4609 = vsel %vm2769, %v4601, %v4211
      %v4610 = vsel %vm2769, %v4602, %v4213
      %v4611 = vsel %vm2769, %v4603, %v4215
      %v4612 = vsel %vm2769, %v4604, %v4217
      %v4613 = vsel %vm2778, %v4605, %v4235
      %v4614 = vsel %vm2778, %v4606, %v4237
      %v4615 = vsel %vm2778, %v4607, %v4239
      %v4616 = vsel %vm2778, %v4608, %v4241
      %v4617 = vsel %vm2778, %v4609, %v4243
      %v4618 = vsel %vm2778, %v4610, %v4245
      %v4619 = vsel %vm2778, %v4611, %v4247
      %v4620 = vsel %vm2778, %v4612, %v4249
      %v4621 = vsel %vm2787, %v4613, %v4267
      %v4622 = vsel %vm2787, %v4614, %v4269
      %v4623 = vsel %vm2787, %v4615, %v4271
      %v4624 = vsel %vm2787, %v4616, %v4273
      %v4625 = vsel %vm2787, %v4617, %v4275
      %v4626 = vsel %vm2787, %v4618, %v4277
      %v4627 = vsel %vm2787, %v4619, %v4279
      %v4628 = vsel %vm2787, %v4620, %v4281
      %v4629 = vsel %vm2796, %v4621, %v4299
      %v4630 = vsel %vm2796, %v4622, %v4301
      %v4631 = vsel %vm2796, %v4623, %v4303
      %v4632 = vsel %vm2796, %v4624, %v4305
      %v4633 = vsel %vm2796, %v4625, %v4307
      %v4634 = vsel %vm2796, %v4626, %v4309
      %v4635 = vsel %vm2796, %v4627, %v4311
      %v4636 = vsel %vm2796, %v4628, %v4313
      %v4637 = vsel %vm2805, %v4629, %v4331
      %v4638 = vsel %vm2805, %v4630, %v4333
      %v4639 = vsel %vm2805, %v4631, %v4335
      %v4640 = vsel %vm2805, %v4632, %v4337
      %v4641 = vsel %vm2805, %v4633, %v4339
      %v4642 = vsel %vm2805, %v4634, %v4341
      %v4643 = vsel %vm2805, %v4635, %v4343
      %v4644 = vsel %vm2805, %v4636, %v4345
      %v4645 = vsel %vm2814, %v4637, %v4363
      %v4646 = vsel %vm2814, %v4638, %v4365
      %v4647 = vsel %vm2814, %v4639, %v4367
      %v4648 = vsel %vm2814, %v4640, %v4369
      %v4649 = vsel %vm2814, %v4641, %v4371
      %v4650 = vsel %vm2814, %v4642, %v4373
      %v4651 = vsel %vm2814, %v4643, %v4375
      %v4652 = vsel %vm2814, %v4644, %v4377
      %v4653 = vsel %vm2823, %v4645, %v4395
      %v4654 = vsel %vm2823, %v4646, %v4397
      %v4655 = vsel %vm2823, %v4647, %v4399
      %v4656 = vsel %vm2823, %v4648, %v4401
      %v4657 = vsel %vm2823, %v4649, %v4403
      %v4658 = vsel %vm2823, %v4650, %v4405
      %v4659 = vsel %vm2823, %v4651, %v4407
      %v4660 = vsel %vm2823, %v4652, %v4409
      %v4661 = vsel %vm2832, %v4653, %v4427
      %v4662 = vsel %vm2832, %v4654, %v4429
      %v4663 = vsel %vm2832, %v4655, %v4431
      %v4664 = vsel %vm2832, %v4656, %v4433
      %v4665 = vsel %vm2832, %v4657, %v4435
      %v4666 = vsel %vm2832, %v4658, %v4437
      %v4667 = vsel %vm2832, %v4659, %v4439
      %v4668 = vsel %vm2832, %v4660, %v4441
      %v4669 = vsel %vm2841, %v4661, %v4459
      %v4670 = vsel %vm2841, %v4662, %v4461
      %v4671 = vsel %vm2841, %v4663, %v4463
      %v4672 = vsel %vm2841, %v4664, %v4465
      %v4673 = vsel %vm2841, %v4665, %v4467
      %v4674 = vsel %vm2841, %v4666, %v4469
      %v4675 = vsel %vm2841, %v4667, %v4471
      %v4676 = vsel %vm2841, %v4668, %v4473
      %v4677 = vsel %vm2850, %v4459, %v4491
      %v4678 = vsel %vm2850, %v4461, %v4493
      %v4679 = vsel %vm2850, %v4463, %v4495
      %v4680 = vsel %vm2850, %v4465, %v4497
      %v4681 = vsel %vm2850, %v4467, %v4499
      %v4682 = vsel %vm2850, %v4469, %v4501
      %v4683 = vsel %vm2850, %v4471, %v4503
      %v4684 = vsel %vm2850, %v4473, %v4505
      %v4685 = vsel %vm2859, %v4677, %v4516
      %v4686 = vsel %vm2859, %v4678, %v4518
      %v4687 = vsel %vm2859, %v4679, %v4520
      %v4688 = vsel %vm2859, %v4680, %v4522
      %v4689 = vsel %vm2859, %v4681, %v4524
      %v4690 = vsel %vm2859, %v4682, %v4526
      %v4691 = vsel %vm2859, %v4683, %v4528
      %v4692 = vsel %vm2859, %v4684, %v4530
      %v4693 = vsel %vm2868, %v4685, %v4541
      %v4694 = vsel %vm2868, %v4686, %v4543
      %v4695 = vsel %vm2868, %v4687, %v4545
      %v4696 = vsel %vm2868, %v4688, %v4547
      %v4697 = vsel %vm2868, %v4689, %v4549
      %v4698 = vsel %vm2868, %v4690, %v4551
      %v4699 = vsel %vm2868, %v4691, %v4553
      %v4700 = vsel %vm2868, %v4692, %v4555
      %v4701 = vsel %vm2877, %v4693, %v4566
      %v4702 = vsel %vm2877, %v4694, %v4568
      %v4703 = vsel %vm2877, %v4695, %v4570
      %v4704 = vsel %vm2877, %v4696, %v4572
      %v4705 = vsel %vm2877, %v4697, %v4574
      %v4706 = vsel %vm2877, %v4698, %v4576
      %v4707 = vsel %vm2877, %v4699, %v4578
      %v4708 = vsel %vm2877, %v4700, %v4580
      %4710 = vrot.lane.b32.xlu0 %v4051, 16
      %v4711 = vpop.permute.xlu0 %4710
      %4712 = vrot.lane.b32.xlu0 %v4052, 16
      %v4713 = vpop.permute.xlu0 %4712
      %4714 = vrot.lane.b32.xlu0 %v4053, 16
      %v4715 = vpop.permute.xlu0 %4714
      %4716 = vrot.lane.b32.xlu0 %v4054, 16
      %v4717 = vpop.permute.xlu0 %4716
      %4718 = vrot.lane.b32.xlu0 %v4055, 16
      %v4719 = vpop.permute.xlu0 %4718
      %4720 = vrot.lane.b32.xlu0 %v4056, 16
      %v4721 = vpop.permute.xlu0 %4720
      %4722 = vrot.lane.b32.xlu0 %v4057, 16
      %v4723 = vpop.permute.xlu0 %4722
      %4724 = vrot.lane.b32.xlu0 %v4111, 16
      %v4725 = vpop.permute.xlu0 %4724
      %4735 = vrot.lane.b32.xlu0 %v4059, 32
      %v4736 = vpop.permute.xlu0 %4735
      %4737 = vrot.lane.b32.xlu0 %v4060, 32
      %v4738 = vpop.permute.xlu0 %4737
      %4739 = vrot.lane.b32.xlu0 %v4061, 32
      %v4740 = vpop.permute.xlu0 %4739
      %4741 = vrot.lane.b32.xlu0 %v4062, 32
      %v4742 = vpop.permute.xlu0 %4741
      %4743 = vrot.lane.b32.xlu0 %v4063, 32
      %v4744 = vpop.permute.xlu0 %4743
      %4745 = vrot.lane.b32.xlu0 %v4064, 32
      %v4746 = vpop.permute.xlu0 %4745
      %4747 = vrot.lane.b32.xlu0 %v4065, 32
      %v4748 = vpop.permute.xlu0 %4747
      %4749 = vrot.lane.b32.xlu0 %v4112, 32
      %v4750 = vpop.permute.xlu0 %4749
      %4760 = vrot.lane.b32.xlu0 %v4067, 35
      %v4761 = vpop.permute.xlu0 %4760
      %4762 = vrot.lane.b32.xlu0 %v4068, 35
      %v4763 = vpop.permute.xlu0 %4762
      %4764 = vrot.lane.b32.xlu0 %v4069, 35
      %v4765 = vpop.permute.xlu0 %4764
      %4766 = vrot.lane.b32.xlu0 %v4070, 35
      %v4767 = vpop.permute.xlu0 %4766
      %4768 = vrot.lane.b32.xlu0 %v4071, 35
      %v4769 = vpop.permute.xlu0 %4768
      %4770 = vrot.lane.b32.xlu0 %v4072, 35
      %v4771 = vpop.permute.xlu0 %4770
      %4772 = vrot.lane.b32.xlu0 %v4073, 35
      %v4773 = vpop.permute.xlu0 %4772
      %4774 = vrot.lane.b32.xlu0 %v4113, 35
      %v4775 = vpop.permute.xlu0 %4774
      %4785 = vrot.lane.b32.xlu0 %v4075, 43
      %v4786 = vpop.permute.xlu0 %4785
      %4787 = vrot.lane.b32.xlu0 %v4076, 43
      %v4788 = vpop.permute.xlu0 %4787
      %4789 = vrot.lane.b32.xlu0 %v4077, 43
      %v4790 = vpop.permute.xlu0 %4789
      %4791 = vrot.lane.b32.xlu0 %v4078, 43
      %v4792 = vpop.permute.xlu0 %4791
      %4793 = vrot.lane.b32.xlu0 %v4079, 43
      %v4794 = vpop.permute.xlu0 %4793
      %4795 = vrot.lane.b32.xlu0 %v4080, 43
      %v4796 = vpop.permute.xlu0 %4795
      %4797 = vrot.lane.b32.xlu0 %v4081, 43
      %v4798 = vpop.permute.xlu0 %4797
      %4799 = vrot.lane.b32.xlu0 %v4114, 43
      %v4800 = vpop.permute.xlu0 %4799
      %4810 = vrot.lane.b32.xlu0 %v4083, 59
      %v4811 = vpop.permute.xlu0 %4810
      %4812 = vrot.lane.b32.xlu0 %v4084, 59
      %v4813 = vpop.permute.xlu0 %4812
      %4814 = vrot.lane.b32.xlu0 %v4085, 59
      %v4815 = vpop.permute.xlu0 %4814
      %4816 = vrot.lane.b32.xlu0 %v4086, 59
      %v4817 = vpop.permute.xlu0 %4816
      %4818 = vrot.lane.b32.xlu0 %v4087, 59
      %v4819 = vpop.permute.xlu0 %4818
      %4820 = vrot.lane.b32.xlu0 %v4088, 59
      %v4821 = vpop.permute.xlu0 %4820
      %4822 = vrot.lane.b32.xlu0 %v4089, 59
      %v4823 = vpop.permute.xlu0 %4822
      %4824 = vrot.lane.b32.xlu0 %v4115, 59
      %v4825 = vpop.permute.xlu0 %4824
      %4835 = vrot.lane.b32.xlu0 %v4091, 75
      %v4836 = vpop.permute.xlu0 %4835
      %4837 = vrot.lane.b32.xlu0 %v4092, 75
      %v4838 = vpop.permute.xlu0 %4837
      %4839 = vrot.lane.b32.xlu0 %v4093, 75
      %v4840 = vpop.permute.xlu0 %4839
      %4841 = vrot.lane.b32.xlu0 %v4094, 75
      %v4842 = vpop.permute.xlu0 %4841
      %4843 = vrot.lane.b32.xlu0 %v4095, 75
      %v4844 = vpop.permute.xlu0 %4843
      %4845 = vrot.lane.b32.xlu0 %v4096, 75
      %v4846 = vpop.permute.xlu0 %4845
      %4847 = vrot.lane.b32.xlu0 %v4097, 75
      %v4848 = vpop.permute.xlu0 %4847
      %4849 = vrot.lane.b32.xlu0 %v4116, 75
      %v4850 = vpop.permute.xlu0 %4849
      %4860 = vrot.lane.b32.xlu0 %v4099, 78
      %v4861 = vpop.permute.xlu0 %4860
      %4862 = vrot.lane.b32.xlu0 %v4100, 78
      %v4863 = vpop.permute.xlu0 %4862
      %4864 = vrot.lane.b32.xlu0 %v4101, 78
      %v4865 = vpop.permute.xlu0 %4864
      %4866 = vrot.lane.b32.xlu0 %v4102, 78
      %v4867 = vpop.permute.xlu0 %4866
      %4868 = vrot.lane.b32.xlu0 %v4103, 78
      %v4869 = vpop.permute.xlu0 %4868
      %4870 = vrot.lane.b32.xlu0 %v4104, 78
      %v4871 = vpop.permute.xlu0 %4870
      %4872 = vrot.lane.b32.xlu0 %v4105, 78
      %v4873 = vpop.permute.xlu0 %4872
      %4874 = vrot.lane.b32.xlu0 %v4117, 78
      %v4875 = vpop.permute.xlu0 %4874
      %4885 = vrot.lane.b32.xlu0 %v4012, 86
      %v4886 = vpop.permute.xlu0 %4885
      %4887 = vrot.lane.b32.xlu0 %v4013, 86
      %v4888 = vpop.permute.xlu0 %4887
      %4889 = vrot.lane.b32.xlu0 %v4014, 86
      %v4890 = vpop.permute.xlu0 %4889
      %4891 = vrot.lane.b32.xlu0 %v4015, 86
      %v4892 = vpop.permute.xlu0 %4891
      %4893 = vrot.lane.b32.xlu0 %v4016, 86
      %v4894 = vpop.permute.xlu0 %4893
      %4895 = vrot.lane.b32.xlu0 %v4017, 86
      %v4896 = vpop.permute.xlu0 %4895
      %4897 = vrot.lane.b32.xlu0 %v4106, 86
      %v4898 = vpop.permute.xlu0 %4897
      %4899 = vrot.lane.b32.xlu0 %v4118, 86
      %v4900 = vpop.permute.xlu0 %4899
      %4910 = vrot.lane.b32.xlu0 %v4020, 102
      %v4911 = vpop.permute.xlu0 %4910
      %4912 = vrot.lane.b32.xlu0 %v4021, 102
      %v4913 = vpop.permute.xlu0 %4912
      %4914 = vrot.lane.b32.xlu0 %v4022, 102
      %v4915 = vpop.permute.xlu0 %4914
      %4916 = vrot.lane.b32.xlu0 %v4023, 102
      %v4917 = vpop.permute.xlu0 %4916
      %4918 = vrot.lane.b32.xlu0 %v4024, 102
      %v4919 = vpop.permute.xlu0 %4918
      %4920 = vrot.lane.b32.xlu0 %v4025, 102
      %v4921 = vpop.permute.xlu0 %4920
      %4922 = vrot.lane.b32.xlu0 %v4107, 102
      %v4923 = vpop.permute.xlu0 %4922
      %4924 = vrot.lane.b32.xlu0 %v4119, 102
      %v4925 = vpop.permute.xlu0 %4924
      %4935 = vrot.lane.b32.xlu0 %v4028, 118
      %v4936 = vpop.permute.xlu0 %4935
      %4937 = vrot.lane.b32.xlu0 %v4029, 118
      %v4938 = vpop.permute.xlu0 %4937
      %4939 = vrot.lane.b32.xlu0 %v4030, 118
      %v4940 = vpop.permute.xlu0 %4939
      %4941 = vrot.lane.b32.xlu0 %v4031, 118
      %v4942 = vpop.permute.xlu0 %4941
      %4943 = vrot.lane.b32.xlu0 %v4032, 118
      %v4944 = vpop.permute.xlu0 %4943
      %4945 = vrot.lane.b32.xlu0 %v4033, 118
      %v4946 = vpop.permute.xlu0 %4945
      %4947 = vrot.lane.b32.xlu0 %v4108, 118
      %v4948 = vpop.permute.xlu0 %4947
      %4949 = vrot.lane.b32.xlu0 %v4120, 118
      %v4950 = vpop.permute.xlu0 %4949
      %4960 = vrot.lane.b32.xlu0 %v4036, 121
      %v4961 = vpop.permute.xlu0 %4960
      %4962 = vrot.lane.b32.xlu0 %v4037, 121
      %v4963 = vpop.permute.xlu0 %4962
      %4964 = vrot.lane.b32.xlu0 %v4038, 121
      %v4965 = vpop.permute.xlu0 %4964
      %4966 = vrot.lane.b32.xlu0 %v4039, 121
      %v4967 = vpop.permute.xlu0 %4966
      %4968 = vrot.lane.b32.xlu0 %v4040, 121
      %v4969 = vpop.permute.xlu0 %4968
      %4970 = vrot.lane.b32.xlu0 %v4041, 121
      %v4971 = vpop.permute.xlu0 %4970
      %4972 = vrot.lane.b32.xlu0 %v4109, 121
      %v4973 = vpop.permute.xlu0 %4972
      %4974 = vrot.lane.b32.xlu0 %v4121, 121
      %v4975 = vpop.permute.xlu0 %4974
      %4986 = vrot.lane.b32.xlu0 %v4044, 1
      %v4987 = vpop.permute.xlu0 %4986
      %4988 = vrot.lane.b32.xlu0 %v4045, 1
      %v4989 = vpop.permute.xlu0 %4988
      %4990 = vrot.lane.b32.xlu0 %v4046, 1
      %v4991 = vpop.permute.xlu0 %4990
      %4992 = vrot.lane.b32.xlu0 %v4047, 1
      %v4993 = vpop.permute.xlu0 %4992
      %4994 = vrot.lane.b32.xlu0 %v4048, 1
      %v4995 = vpop.permute.xlu0 %4994
      %4996 = vrot.lane.b32.xlu0 %v4049, 1
      %v4997 = vpop.permute.xlu0 %4996
      %4998 = vrot.lane.b32.xlu0 %v4110, 1
      %v4999 = vpop.permute.xlu0 %4998
      %5000 = vrot.lane.b32.xlu0 %v4122, 1
      %v5001 = vpop.permute.xlu0 %5000
      %5011 = vrot.lane.b32.xlu0 %v4052, 17
      %v5012 = vpop.permute.xlu0 %5011
      %5013 = vrot.lane.b32.xlu0 %v4053, 17
      %v5014 = vpop.permute.xlu0 %5013
      %5015 = vrot.lane.b32.xlu0 %v4054, 17
      %v5016 = vpop.permute.xlu0 %5015
      %5017 = vrot.lane.b32.xlu0 %v4055, 17
      %v5018 = vpop.permute.xlu0 %5017
      %5019 = vrot.lane.b32.xlu0 %v4056, 17
      %v5020 = vpop.permute.xlu0 %5019
      %5021 = vrot.lane.b32.xlu0 %v4057, 17
      %v5022 = vpop.permute.xlu0 %5021
      %5023 = vrot.lane.b32.xlu0 %v4111, 17
      %v5024 = vpop.permute.xlu0 %5023
      %5025 = vrot.lane.b32.xlu0 %v4123, 17
      %v5026 = vpop.permute.xlu0 %5025
      %5036 = vrot.lane.b32.xlu0 %v4060, 33
      %v5037 = vpop.permute.xlu0 %5036
      %5038 = vrot.lane.b32.xlu0 %v4061, 33
      %v5039 = vpop.permute.xlu0 %5038
      %5040 = vrot.lane.b32.xlu0 %v4062, 33
      %v5041 = vpop.permute.xlu0 %5040
      %5042 = vrot.lane.b32.xlu0 %v4063, 33
      %v5043 = vpop.permute.xlu0 %5042
      %5044 = vrot.lane.b32.xlu0 %v4064, 33
      %v5045 = vpop.permute.xlu0 %5044
      %5046 = vrot.lane.b32.xlu0 %v4065, 33
      %v5047 = vpop.permute.xlu0 %5046
      %5048 = vrot.lane.b32.xlu0 %v4112, 33
      %v5049 = vpop.permute.xlu0 %5048
      %5050 = vrot.lane.b32.xlu0 %v4124, 33
      %v5051 = vpop.permute.xlu0 %5050
      %5061 = vrot.lane.b32.xlu0 %v4068, 36
      %v5062 = vpop.permute.xlu0 %5061
      %5063 = vrot.lane.b32.xlu0 %v4069, 36
      %v5064 = vpop.permute.xlu0 %5063
      %5065 = vrot.lane.b32.xlu0 %v4070, 36
      %v5066 = vpop.permute.xlu0 %5065
      %5067 = vrot.lane.b32.xlu0 %v4071, 36
      %v5068 = vpop.permute.xlu0 %5067
      %5069 = vrot.lane.b32.xlu0 %v4072, 36
      %v5070 = vpop.permute.xlu0 %5069
      %5071 = vrot.lane.b32.xlu0 %v4073, 36
      %v5072 = vpop.permute.xlu0 %5071
      %5073 = vrot.lane.b32.xlu0 %v4113, 36
      %v5074 = vpop.permute.xlu0 %5073
      %5075 = vrot.lane.b32.xlu0 %v4125, 36
      %v5076 = vpop.permute.xlu0 %5075
      %v5085 = vsel %vm1462, %v4043, %v4711
      %v5086 = vsel %vm1462, %v4044, %v4713
      %v5087 = vsel %vm1462, %v4045, %v4715
      %v5088 = vsel %vm1462, %v4046, %v4717
      %v5089 = vsel %vm1462, %v4047, %v4719
      %v5090 = vsel %vm1462, %v4048, %v4721
      %v5091 = vsel %vm1462, %v4049, %v4723
      %v5092 = vsel %vm1462, %v4110, %v4725
      %v5093 = vsel %vm1471, %v5085, %v4736
      %v5094 = vsel %vm1471, %v5086, %v4738
      %v5095 = vsel %vm1471, %v5087, %v4740
      %v5096 = vsel %vm1471, %v5088, %v4742
      %v5097 = vsel %vm1471, %v5089, %v4744
      %v5098 = vsel %vm1471, %v5090, %v4746
      %v5099 = vsel %vm1471, %v5091, %v4748
      %v5100 = vsel %vm1471, %v5092, %v4750
      %v5101 = vsel %vm2769, %v5093, %v4761
      %v5102 = vsel %vm2769, %v5094, %v4763
      %v5103 = vsel %vm2769, %v5095, %v4765
      %v5104 = vsel %vm2769, %v5096, %v4767
      %v5105 = vsel %vm2769, %v5097, %v4769
      %v5106 = vsel %vm2769, %v5098, %v4771
      %v5107 = vsel %vm2769, %v5099, %v4773
      %v5108 = vsel %vm2769, %v5100, %v4775
      %v5109 = vsel %vm2778, %v5101, %v4786
      %v5110 = vsel %vm2778, %v5102, %v4788
      %v5111 = vsel %vm2778, %v5103, %v4790
      %v5112 = vsel %vm2778, %v5104, %v4792
      %v5113 = vsel %vm2778, %v5105, %v4794
      %v5114 = vsel %vm2778, %v5106, %v4796
      %v5115 = vsel %vm2778, %v5107, %v4798
      %v5116 = vsel %vm2778, %v5108, %v4800
      %v5117 = vsel %vm2787, %v5109, %v4811
      %v5118 = vsel %vm2787, %v5110, %v4813
      %v5119 = vsel %vm2787, %v5111, %v4815
      %v5120 = vsel %vm2787, %v5112, %v4817
      %v5121 = vsel %vm2787, %v5113, %v4819
      %v5122 = vsel %vm2787, %v5114, %v4821
      %v5123 = vsel %vm2787, %v5115, %v4823
      %v5124 = vsel %vm2787, %v5116, %v4825
      %v5125 = vsel %vm2796, %v5117, %v4836
      %v5126 = vsel %vm2796, %v5118, %v4838
      %v5127 = vsel %vm2796, %v5119, %v4840
      %v5128 = vsel %vm2796, %v5120, %v4842
      %v5129 = vsel %vm2796, %v5121, %v4844
      %v5130 = vsel %vm2796, %v5122, %v4846
      %v5131 = vsel %vm2796, %v5123, %v4848
      %v5132 = vsel %vm2796, %v5124, %v4850
      %v5133 = vsel %vm2805, %v5125, %v4861
      %v5134 = vsel %vm2805, %v5126, %v4863
      %v5135 = vsel %vm2805, %v5127, %v4865
      %v5136 = vsel %vm2805, %v5128, %v4867
      %v5137 = vsel %vm2805, %v5129, %v4869
      %v5138 = vsel %vm2805, %v5130, %v4871
      %v5139 = vsel %vm2805, %v5131, %v4873
      %v5140 = vsel %vm2805, %v5132, %v4875
      %v5141 = vsel %vm2814, %v5133, %v4886
      %v5142 = vsel %vm2814, %v5134, %v4888
      %v5143 = vsel %vm2814, %v5135, %v4890
      %v5144 = vsel %vm2814, %v5136, %v4892
      %v5145 = vsel %vm2814, %v5137, %v4894
      %v5146 = vsel %vm2814, %v5138, %v4896
      %v5147 = vsel %vm2814, %v5139, %v4898
      %v5148 = vsel %vm2814, %v5140, %v4900
      %v5149 = vsel %vm2823, %v5141, %v4911
      %v5150 = vsel %vm2823, %v5142, %v4913
      %v5151 = vsel %vm2823, %v5143, %v4915
      %v5152 = vsel %vm2823, %v5144, %v4917
      %v5153 = vsel %vm2823, %v5145, %v4919
      %v5154 = vsel %vm2823, %v5146, %v4921
      %v5155 = vsel %vm2823, %v5147, %v4923
      %v5156 = vsel %vm2823, %v5148, %v4925
      %v5157 = vsel %vm2832, %v5149, %v4936
      %v5158 = vsel %vm2832, %v5150, %v4938
      %v5159 = vsel %vm2832, %v5151, %v4940
      %v5160 = vsel %vm2832, %v5152, %v4942
      %v5161 = vsel %vm2832, %v5153, %v4944
      %v5162 = vsel %vm2832, %v5154, %v4946
      %v5163 = vsel %vm2832, %v5155, %v4948
      %v5164 = vsel %vm2832, %v5156, %v4950
      %v5165 = vsel %vm2841, %v5157, %v4961
      %v5166 = vsel %vm2841, %v5158, %v4963
      %v5167 = vsel %vm2841, %v5159, %v4965
      %v5168 = vsel %vm2841, %v5160, %v4967
      %v5169 = vsel %vm2841, %v5161, %v4969
      %v5170 = vsel %vm2841, %v5162, %v4971
      %v5171 = vsel %vm2841, %v5163, %v4973
      %v5172 = vsel %vm2841, %v5164, %v4975
      %v5173 = vsel %vm2850, %v4961, %v4987
      %v5174 = vsel %vm2850, %v4963, %v4989
      %v5175 = vsel %vm2850, %v4965, %v4991
      %v5176 = vsel %vm2850, %v4967, %v4993
      %v5177 = vsel %vm2850, %v4969, %v4995
      %v5178 = vsel %vm2850, %v4971, %v4997
      %v5179 = vsel %vm2850, %v4973, %v4999
      %v5180 = vsel %vm2850, %v4975, %v5001
      %v5181 = vsel %vm2859, %v5173, %v5012
      %v5182 = vsel %vm2859, %v5174, %v5014
      %v5183 = vsel %vm2859, %v5175, %v5016
      %v5184 = vsel %vm2859, %v5176, %v5018
      %v5185 = vsel %vm2859, %v5177, %v5020
      %v5186 = vsel %vm2859, %v5178, %v5022
      %v5187 = vsel %vm2859, %v5179, %v5024
      %v5188 = vsel %vm2859, %v5180, %v5026
      %v5189 = vsel %vm2868, %v5181, %v5037
      %v5190 = vsel %vm2868, %v5182, %v5039
      %v5191 = vsel %vm2868, %v5183, %v5041
      %v5192 = vsel %vm2868, %v5184, %v5043
      %v5193 = vsel %vm2868, %v5185, %v5045
      %v5194 = vsel %vm2868, %v5186, %v5047
      %v5195 = vsel %vm2868, %v5187, %v5049
      %v5196 = vsel %vm2868, %v5188, %v5051
      %v5197 = vsel %vm2877, %v5189, %v5062
      %v5198 = vsel %vm2877, %v5190, %v5064
      %v5199 = vsel %vm2877, %v5191, %v5066
      %v5200 = vsel %vm2877, %v5192, %v5068
      %v5201 = vsel %vm2877, %v5193, %v5070
      %v5202 = vsel %vm2877, %v5194, %v5072
      %v5203 = vsel %vm2877, %v5195, %v5074
      %v5204 = vsel %vm2877, %v5196, %v5076
      %5206 = vrot.lane.b32.xlu0 %v4084, 16
      %v5207 = vpop.permute.xlu0 %5206
      %5208 = vrot.lane.b32.xlu0 %v4085, 16
      %v5209 = vpop.permute.xlu0 %5208
      %5210 = vrot.lane.b32.xlu0 %v4086, 16
      %v5211 = vpop.permute.xlu0 %5210
      %5212 = vrot.lane.b32.xlu0 %v4087, 16
      %v5213 = vpop.permute.xlu0 %5212
      %5214 = vrot.lane.b32.xlu0 %v4088, 16
      %v5215 = vpop.permute.xlu0 %5214
      %5216 = vrot.lane.b32.xlu0 %v4089, 16
      %v5217 = vpop.permute.xlu0 %5216
      %5218 = vrot.lane.b32.xlu0 %v4115, 16
      %v5219 = vpop.permute.xlu0 %5218
      %5220 = vrot.lane.b32.xlu0 %v4127, 16
      %v5221 = vpop.permute.xlu0 %5220
      %5231 = vrot.lane.b32.xlu0 %v4092, 32
      %v5232 = vpop.permute.xlu0 %5231
      %5233 = vrot.lane.b32.xlu0 %v4093, 32
      %v5234 = vpop.permute.xlu0 %5233
      %5235 = vrot.lane.b32.xlu0 %v4094, 32
      %v5236 = vpop.permute.xlu0 %5235
      %5237 = vrot.lane.b32.xlu0 %v4095, 32
      %v5238 = vpop.permute.xlu0 %5237
      %5239 = vrot.lane.b32.xlu0 %v4096, 32
      %v5240 = vpop.permute.xlu0 %5239
      %5241 = vrot.lane.b32.xlu0 %v4097, 32
      %v5242 = vpop.permute.xlu0 %5241
      %5243 = vrot.lane.b32.xlu0 %v4116, 32
      %v5244 = vpop.permute.xlu0 %5243
      %5245 = vrot.lane.b32.xlu0 %v4128, 32
      %v5246 = vpop.permute.xlu0 %5245
      %5256 = vrot.lane.b32.xlu0 %v4100, 35
      %v5257 = vpop.permute.xlu0 %5256
      %5258 = vrot.lane.b32.xlu0 %v4101, 35
      %v5259 = vpop.permute.xlu0 %5258
      %5260 = vrot.lane.b32.xlu0 %v4102, 35
      %v5261 = vpop.permute.xlu0 %5260
      %5262 = vrot.lane.b32.xlu0 %v4103, 35
      %v5263 = vpop.permute.xlu0 %5262
      %5264 = vrot.lane.b32.xlu0 %v4104, 35
      %v5265 = vpop.permute.xlu0 %5264
      %5266 = vrot.lane.b32.xlu0 %v4105, 35
      %v5267 = vpop.permute.xlu0 %5266
      %5268 = vrot.lane.b32.xlu0 %v4117, 35
      %v5269 = vpop.permute.xlu0 %5268
      %5270 = vrot.lane.b32.xlu0 %v4129, 35
      %v5271 = vpop.permute.xlu0 %5270
      %v5280 = vsel %vm1462, %v4076, %v5207
      %v5281 = vsel %vm1462, %v4077, %v5209
      %v5282 = vsel %vm1462, %v4078, %v5211
      %v5283 = vsel %vm1462, %v4079, %v5213
      %v5284 = vsel %vm1462, %v4080, %v5215
      %v5285 = vsel %vm1462, %v4081, %v5217
      %v5286 = vsel %vm1462, %v4114, %v5219
      %v5287 = vsel %vm1462, %v4126, %v5221
      %v5288 = vsel %vm1471, %v5280, %v5232
      %v5289 = vsel %vm1471, %v5281, %v5234
      %v5290 = vsel %vm1471, %v5282, %v5236
      %v5291 = vsel %vm1471, %v5283, %v5238
      %v5292 = vsel %vm1471, %v5284, %v5240
      %v5293 = vsel %vm1471, %v5285, %v5242
      %v5294 = vsel %vm1471, %v5286, %v5244
      %v5295 = vsel %vm1471, %v5287, %v5246
      %v5296 = vsel %vm2769, %v5288, %v5257
      %v5297 = vsel %vm2769, %v5289, %v5259
      %v5298 = vsel %vm2769, %v5290, %v5261
      %v5299 = vsel %vm2769, %v5291, %v5263
      %v5300 = vsel %vm2769, %v5292, %v5265
      %v5301 = vsel %vm2769, %v5293, %v5267
      %v5302 = vsel %vm2769, %v5294, %v5269
      %v5303 = vsel %vm2769, %v5295, %v5271
      %5320 = vrot.lane.b32.xlu0 %v5165, 44
      %v5321 = vpop.permute.xlu0 %5320
      %5322 = vrot.lane.b32.xlu0 %v5197, 44
      %v5323 = vpop.permute.xlu0 %5322
      %5324 = vrot.lane.b32.xlu0 %v5166, 44
      %v5325 = vpop.permute.xlu0 %5324
      %5326 = vrot.lane.b32.xlu0 %v5198, 44
      %v5327 = vpop.permute.xlu0 %5326
      %5328 = vrot.lane.b32.xlu0 %v5167, 44
      %v5329 = vpop.permute.xlu0 %5328
      %5330 = vrot.lane.b32.xlu0 %v5199, 44
      %v5331 = vpop.permute.xlu0 %5330
      %5332 = vrot.lane.b32.xlu0 %v5168, 44
      %v5333 = vpop.permute.xlu0 %5332
      %5334 = vrot.lane.b32.xlu0 %v5200, 44
      %v5335 = vpop.permute.xlu0 %5334
      %5336 = vrot.lane.b32.xlu0 %v5169, 44
      %v5337 = vpop.permute.xlu0 %5336
      %5338 = vrot.lane.b32.xlu0 %v5201, 44
      %v5339 = vpop.permute.xlu0 %5338
      %5340 = vrot.lane.b32.xlu0 %v5170, 44
      %v5341 = vpop.permute.xlu0 %5340
      %5342 = vrot.lane.b32.xlu0 %v5202, 44
      %v5343 = vpop.permute.xlu0 %5342
      %5344 = vrot.lane.b32.xlu0 %v5171, 44
      %v5345 = vpop.permute.xlu0 %5344
      %5346 = vrot.lane.b32.xlu0 %v5203, 44
      %v5347 = vpop.permute.xlu0 %5346
      %5348 = vrot.lane.b32.xlu0 %v5172, 44
      %v5349 = vpop.permute.xlu0 %5348
      %5350 = vrot.lane.b32.xlu0 %v5204, 44
      %v5351 = vpop.permute.xlu0 %5350
      %v5352 = vsel %vm3503, %v5321, %v5323
      %v5353 = vsel %vm3503, %v5325, %v5327
      %v5354 = vsel %vm3503, %v5329, %v5331
      %v5355 = vsel %vm3503, %v5333, %v5335
      %v5356 = vsel %vm3503, %v5337, %v5339
      %v5357 = vsel %vm3503, %v5341, %v5343
      %v5358 = vsel %vm3503, %v5345, %v5347
      %v5359 = vsel %vm3503, %v5349, %v5351
      %5384 = vrot.lane.b32.xlu0 %v5296, 88
      %v5385 = vpop.permute.xlu0 %5384
      %5386 = vrot.lane.b32.xlu0 %v5297, 88
      %v5387 = vpop.permute.xlu0 %5386
      %5388 = vrot.lane.b32.xlu0 %v5298, 88
      %v5389 = vpop.permute.xlu0 %5388
      %5390 = vrot.lane.b32.xlu0 %v5299, 88
      %v5391 = vpop.permute.xlu0 %5390
      %5392 = vrot.lane.b32.xlu0 %v5300, 88
      %v5393 = vpop.permute.xlu0 %5392
      %5394 = vrot.lane.b32.xlu0 %v5301, 88
      %v5395 = vpop.permute.xlu0 %5394
      %5396 = vrot.lane.b32.xlu0 %v5302, 88
      %v5397 = vpop.permute.xlu0 %5396
      %5398 = vrot.lane.b32.xlu0 %v5303, 88
      %v5399 = vpop.permute.xlu0 %5398
      %v5408 = vsel %vm3503, %v4701, %v5321
      %v5409 = vsel %vm3503, %v4702, %v5325
      %v5410 = vsel %vm3503, %v4703, %v5329
      %v5411 = vsel %vm3503, %v4704, %v5333
      %v5412 = vsel %vm3503, %v4705, %v5337
      %v5413 = vsel %vm3503, %v4706, %v5341
      %v5414 = vsel %vm3503, %v4707, %v5345
      %v5415 = vsel %vm3503, %v4708, %v5349
      %v5416 = vsel %vm3568, %v5352, %v5385
      %v5417 = vsel %vm3568, %v5353, %v5387
      %v5418 = vsel %vm3568, %v5354, %v5389
      %v5419 = vsel %vm3568, %v5355, %v5391
      %v5420 = vsel %vm3568, %v5356, %v5393
      %v5421 = vsel %vm3568, %v5357, %v5395
      %v5422 = vsel %vm3568, %v5358, %v5397
      %v5423 = vsel %vm3568, %v5359, %v5399
      %v5424 = vpack.c.bf16 %v4670, %v4669
      %v5425 = vpack.c.bf16 %v5409, %v5408
      %v5426 = vpack.c.bf16 %v5417, %v5416
      %v5427 = vpack.c.bf16 %v5387, %v5385
      %v5428 = vpack.c.bf16 %v4672, %v4671
      %v5429 = vpack.c.bf16 %v5411, %v5410
      %v5430 = vpack.c.bf16 %v5419, %v5418
      %v5431 = vpack.c.bf16 %v5391, %v5389
      %v5432 = vpack.c.bf16 %v4674, %v4673
      %v5433 = vpack.c.bf16 %v5413, %v5412
      %v5434 = vpack.c.bf16 %v5421, %v5420
      %v5435 = vpack.c.bf16 %v5395, %v5393
      %v5436 = vpack.c.bf16 %v4676, %v4675
      %v5437 = vpack.c.bf16 %v5415, %v5414
      %v5438 = vpack.c.bf16 %v5423, %v5422
      %v5439 = vpack.c.bf16 %v5399, %v5397
      %v5440 = vld [vmem:[%s11] sm:$0xf]
      %v5441 = vld [vmem:[%s11 + $0x4] sm:$0xf]
      %v5442 = vld [vmem:[%s11 + $0x8] sm:$0xf]
      %v5443 = vld [vmem:[%s11 + $0xc] sm:$0xf]
      %v5444 = vld [vmem:[%s11 + $0x10] sm:$0xf]
      %v5445 = vld [vmem:[%s11 + $0x14] sm:$0xf]
      %v5446 = vld [vmem:[%s11 + $0x18] sm:$0xf]
      %v5447 = vld [vmem:[%s11 + $0x1c] sm:$0xf]
      %v5448 = vld [vmem:[%s11 + $0x20] sm:$0xf]
      %v5449 = vld [vmem:[%s11 + $0x24] sm:$0xf]
      %v5450 = vld [vmem:[%s11 + $0x28] sm:$0xf]
      %v5451 = vld [vmem:[%s11 + $0x2c] sm:$0xf]
      %v5452 = vld [vmem:[%s11 + $0x30] sm:$0xf]
      %v5453 = vld [vmem:[%s11 + $0x34] sm:$0xf]
      %v5454 = vld [vmem:[%s11 + $0x38] sm:$0xf]
      %v5455 = vld [vmem:[%s11 + $0x3c] sm:$0xf]
      %v5456 = vld [vmem:[%s11 + $0x40] sm:$0xf]
      %v5457 = vld [vmem:[%s11 + $0x44] sm:$0xf]
      %v5458 = vld [vmem:[%s11 + $0x48] sm:$0xf]
      %v5459 = vld [vmem:[%s11 + $0x4c] sm:$0xf]
      %v5460 = vld [vmem:[%s11 + $0x50] sm:$0xf]
      %v5461 = vld [vmem:[%s11 + $0x54] sm:$0xf]
      %v5462 = vld [vmem:[%s11 + $0x58] sm:$0xf]
      %v5463 = vld [vmem:[%s11 + $0x5c] sm:$0xf]
      %v5464 = vld [vmem:[%s11 + $0x60] sm:$0xf]
      %v5465 = vld [vmem:[%s11 + $0x64] sm:$0xf]
      %v5466 = vld [vmem:[%s11 + $0x68] sm:$0xf]
      %v5467 = vld [vmem:[%s11 + $0x6c] sm:$0xf]
      %v5468 = vld [vmem:[%s11 + $0x70] sm:$0xf]
      %v5469 = vld [vmem:[%s11 + $0x74] sm:$0xf]
      %v5470 = vld [vmem:[%s11 + $0x78] sm:$0xf]
      %v5471 = vld [vmem:[%s11 + $0x7c] sm:$0xf]
      %v5472 = vld [vmem:[%s11 + $0x80] sm:$0xf]
      %v5473 = vld [vmem:[%s11 + $0x84] sm:$0xf]
      %v5474 = vld [vmem:[%s11 + $0x88] sm:$0xf]
      %v5475 = vld [vmem:[%s11 + $0x8c] sm:$0xf]
      %v5476 = vld [vmem:[%s11 + $0x90] sm:$0xf]
      %v5477 = vld [vmem:[%s11 + $0x94] sm:$0xf]
      %v5478 = vld [vmem:[%s11 + $0x98] sm:$0xf]
      %v5479 = vld [vmem:[%s11 + $0x9c] sm:$0xf]
      %v5480 = vld [vmem:[%s11 + $0xa0] sm:$0xf]
      %v5481 = vld [vmem:[%s11 + $0xa4] sm:$0xf]
      %v5482 = vld [vmem:[%s11 + $0xa8] sm:$0xf]
      %v5483 = vld [vmem:[%s11 + $0xac] sm:$0xf]
      %v5484 = vld [vmem:[%s11 + $0xb0] sm:$0xf]
      %v5485 = vld [vmem:[%s11 + $0xb4] sm:$0xf]
      %v5486 = vld [vmem:[%s11 + $0xb8] sm:$0xf]
      %v5487 = vld [vmem:[%s11 + $0xbc] sm:$0xf]
      %v5488 = vld [vmem:[%s11 + $0xc0] sm:$0x3]
      %v5489 = vld [vmem:[%s12] sm:$0x1]
      %v5491 = vlaneseq
      %v5492 = vshrl.u32 %v5491, 7
      %v5493 = vsub.s32 0, %v5492
      %v5494 = vrot.slane %v5489, %v5493
      %v5545 = vunpack.c.l.b16 %v5440
      %v5546 = vunpack.c.l.b16 %v5441
      %v5547 = vunpack.c.l.b16 %v5442
      %v5548 = vunpack.c.l.b16 %v5443
      %v5549 = vunpack.c.l.b16 %v5444
      %v5550 = vunpack.c.l.b16 %v5445
      %v5551 = vunpack.c.l.b16 %v5446
      %v5552 = vunpack.c.l.b16 %v5447
      %v5553 = vunpack.c.l.b16 %v5448
      %v5554 = vunpack.c.l.b16 %v5449
      %v5555 = vunpack.c.l.b16 %v5450
      %v5556 = vunpack.c.l.b16 %v5451
      %v5557 = vunpack.c.l.b16 %v5452
      %v5558 = vunpack.c.l.b16 %v5453
      %v5559 = vunpack.c.l.b16 %v5454
      %v5560 = vunpack.c.l.b16 %v5455
      %v5561 = vunpack.c.l.b16 %v5456
      %v5562 = vunpack.c.l.b16 %v5457
      %v5563 = vunpack.c.l.b16 %v5458
      %v5564 = vunpack.c.l.b16 %v5459
      %v5565 = vunpack.c.l.b16 %v5460
      %v5566 = vunpack.c.l.b16 %v5461
      %v5567 = vunpack.c.l.b16 %v5462
      %v5568 = vunpack.c.l.b16 %v5463
      %v5569 = vunpack.c.l.b16 %v5464
      %v5570 = vunpack.c.l.b16 %v5465
      %v5571 = vunpack.c.l.b16 %v5466
      %v5572 = vunpack.c.l.b16 %v5467
      %v5573 = vunpack.c.l.b16 %v5468
      %v5574 = vunpack.c.l.b16 %v5469
      %v5575 = vunpack.c.l.b16 %v5470
      %v5576 = vunpack.c.l.b16 %v5471
      %v5577 = vunpack.c.l.b16 %v5472
      %v5578 = vunpack.c.l.b16 %v5473
      %v5579 = vunpack.c.l.b16 %v5474
      %v5580 = vunpack.c.l.b16 %v5475
      %v5581 = vunpack.c.l.b16 %v5476
      %v5582 = vunpack.c.l.b16 %v5477
      %v5583 = vunpack.c.l.b16 %v5478
      %v5584 = vunpack.c.l.b16 %v5479
      %v5585 = vunpack.c.l.b16 %v5480
      %v5586 = vunpack.c.l.b16 %v5481
      %v5587 = vunpack.c.l.b16 %v5482
      %v5588 = vunpack.c.l.b16 %v5483
      %v5589 = vunpack.c.l.b16 %v5484
      %v5590 = vunpack.c.l.b16 %v5485
      %v5591 = vunpack.c.l.b16 %v5486
      %v5592 = vunpack.c.l.b16 %v5487
      %v5593 = vunpack.c.l.b16 %v5488
      %v5594 = vpack.c.b16 %v5546, %v5545
      %v5595 = vpack.c.b16 %v5548, %v5547
      %v5596 = vpack.c.b16 %v5550, %v5549
      %v5597 = vpack.c.b16 %v5552, %v5551
      %v5598 = vpack.c.b16 %v5554, %v5553
      %v5599 = vpack.c.b16 %v5556, %v5555
      %v5600 = vpack.c.b16 %v5558, %v5557
      %v5601 = vpack.c.b16 %v5560, %v5559
      %v5602 = vpack.c.b16 %v5562, %v5561
      %v5603 = vpack.c.b16 %v5564, %v5563
      %v5604 = vpack.c.b16 %v5566, %v5565
      %v5605 = vpack.c.b16 %v5568, %v5567
      %v5606 = vpack.c.b16 %v5570, %v5569
      %v5607 = vpack.c.b16 %v5572, %v5571
      %v5608 = vpack.c.b16 %v5574, %v5573
      %v5609 = vpack.c.b16 %v5576, %v5575
      %v5610 = vpack.c.b16 %v5578, %v5577
      %v5611 = vpack.c.b16 %v5580, %v5579
      %v5612 = vpack.c.b16 %v5582, %v5581
      %v5613 = vpack.c.b16 %v5584, %v5583
      %v5614 = vpack.c.b16 %v5586, %v5585
      %v5615 = vpack.c.b16 %v5588, %v5587
      %v5616 = vpack.c.b16 %v5590, %v5589
      %v5617 = vpack.c.b16 %v5592, %v5591
      %v5618 = vpack.c.b16 %v5593, %v5593
      %v5644 = vsel %vm3796, %v5427, 0
      %v5647 = vsel %vm3796, %v5431, 0
      %v5650 = vsel %vm3796, %v5435, 0
      %v5653 = vsel %vm3796, %v5439, 0
      %v5656 = vand.u32 %v5618, %v3812
      %5658 = vmatprep.subr.bf16.mxu0 0
      %5659 = vmatpush1.bf16.msra.mxu0 %v5594
      %5660 = vmatprep.subr.bf16.mxu0 0
      %5661 = vmatpush1.bf16.msra.mxu0 %v5595
      %5662 = vmatprep.subr.bf16.mxu0 0
      %5663 = vmatpush1.bf16.msra.mxu0 %v5596
      %5664 = vmatprep.subr.bf16.mxu0 0
      %5665 = vmatpush1.bf16.msra.mxu0 %v5597
      %5666 = vmatprep.subr.bf16.mxu0 0
      %5667 = vmatpush1.bf16.msra.mxu0 %v5598
      %5668 = vmatprep.subr.bf16.mxu0 0
      %5669 = vmatpush1.bf16.msra.mxu0 %v5599
      %5670 = vmatprep.subr.bf16.mxu0 0
      %5671 = vmatpush1.bf16.msra.mxu0 %v5600
      %5672 = vmatprep.subr.bf16.mxu0 0
      %5673 = vmatpush1.bf16.msra.mxu0 %v5601
      %5674 = vmatprep.subr.bf16.mxu0 0
      %5675 = vmatpush1.bf16.msra.mxu0 %v5602
      %5676 = vmatprep.subr.bf16.mxu0 0
      %5677 = vmatpush1.bf16.msra.mxu0 %v5603
      %5678 = vmatprep.subr.bf16.mxu0 0
      %5679 = vmatpush1.bf16.msra.mxu0 %v5604
      %5680 = vmatprep.subr.bf16.mxu0 0
      %5681 = vmatpush1.bf16.msra.mxu0 %v5605
      %5682 = vmatprep.subr.bf16.mxu0 0
      %5683 = vmatpush1.bf16.msra.mxu0 %v5606
      %5684 = vmatprep.subr.bf16.mxu0 0
      %5685 = vmatpush1.bf16.msra.mxu0 %v5607
      %5686 = vmatprep.subr.bf16.mxu0 0
      %5687 = vmatpush1.bf16.msra.mxu0 %v5608
      %5688 = vmatprep.subr.bf16.mxu0 0
      %5689 = vmatpush1.bf16.msra.mxu0 %v5609
      %5690 = vmatprep.mubr.bf16.mxu0 %v5425
      %5691 = vmatmul.mubr.bf16.gmra.mrb[0].mxu0 %v5424
      %v5692 = vpop.f32.mrb[0].mxu0
      %v5693 = vadd.f32 %v5494, %v5692
      %v5694 = vpop.f32.mrb[0].mxu0
      %v5695 = vpop.f32.mrb[0].mxu0
      %v5696 = vadd.f32 %v5494, %v5695
      %v5697 = vpop.f32.mrb[0].mxu0
      %5698 = vmatprep.mubr.bf16.mxu0 %v5429
      %5699 = vmatmul.mubr.bf16.gmra.mrb[0].mxu0 %v5428
      %v5700 = vpop.f32.mrb[0].mxu0
      %v5701 = vadd.f32 %v5494, %v5700
      %v5702 = vpop.f32.mrb[0].mxu0
      %v5703 = vpop.f32.mrb[0].mxu0
      %v5704 = vadd.f32 %v5494, %v5703
      %v5705 = vpop.f32.mrb[0].mxu0
      %5706 = vmatprep.mubr.bf16.mxu0 %v5433
      %5707 = vmatmul.mubr.bf16.gmra.mrb[0].mxu0 %v5432
      %v5708 = vpop.f32.mrb[0].mxu0
      %v5709 = vadd.f32 %v5494, %v5708
      %v5710 = vpop.f32.mrb[0].mxu0
      %v5711 = vpop.f32.mrb[0].mxu0
      %v5712 = vadd.f32 %v5494, %v5711
      %v5713 = vpop.f32.mrb[0].mxu0
      %5714 = vmatprep.mubr.bf16.mxu0 %v5437
      %5715 = vmatmul.mubr.bf16.gmra.mrb[0].mxu0 %v5436
      %v5716 = vpop.f32.mrb[0].mxu0
      %v5717 = vadd.f32 %v5494, %v5716
      %v5718 = vpop.f32.mrb[0].mxu0
      %v5719 = vpop.f32.mrb[0].mxu0
      %v5720 = vadd.f32 %v5494, %v5719
      %v5721 = vpop.f32.mrb[0].mxu0
      %5722 = vdwg.mxu0
      %5723 = vmatprep.subr.bf16.mxu0 0
      %5724 = vmatpush1.bf16.msra.mxu0 %v5610
      %5725 = vmatprep.subr.bf16.mxu0 0
      %5726 = vmatpush1.bf16.msra.mxu0 %v5611
      %5727 = vmatprep.subr.bf16.mxu0 0
      %5728 = vmatpush1.bf16.msra.mxu0 %v5612
      %5729 = vmatprep.subr.bf16.mxu0 0
      %5730 = vmatpush1.bf16.msra.mxu0 %v5613
      %5731 = vmatprep.subr.bf16.mxu0 0
      %5732 = vmatpush1.bf16.msra.mxu0 %v5614
      %5733 = vmatprep.subr.bf16.mxu0 0
      %5734 = vmatpush1.bf16.msra.mxu0 %v5615
      %5735 = vmatprep.subr.bf16.mxu0 0
      %5736 = vmatpush1.bf16.msra.mxu0 %v5616
      %5737 = vmatprep.subr.bf16.mxu0 0
      %5738 = vmatpush1.bf16.msra.mxu0 %v5617
      %5739 = vmatprep.subr.bf16.mxu0 0
      %5740 = vmatpush1.bf16.msra.mxu0 %v5656
      %5741 = vmatprep.subr.bf16.mxu0 0
      %5742 = vmatpush1.bf16.msra.mxu0 0
      %5743 = vmatprep.subr.bf16.mxu0 0
      %5744 = vmatpush1.bf16.msra.mxu0 0
      %5745 = vmatprep.subr.bf16.mxu0 0
      %5746 = vmatpush1.bf16.msra.mxu0 0
      %5747 = vmatprep.subr.bf16.mxu0 0
      %5748 = vmatpush1.bf16.msra.mxu0 0
      %5749 = vmatprep.subr.bf16.mxu0 0
      %5750 = vmatpush1.bf16.msra.mxu0 0
      %5751 = vmatprep.subr.bf16.mxu0 0
      %5752 = vmatpush1.bf16.msra.mxu0 0
      %5753 = vmatprep.subr.bf16.mxu0 0
      %5754 = vmatpush1.bf16.msra.mxu0 0
      %5755 = vmatprep.mubr.bf16.mxu0 %v5644
      %5756 = vmatmul.mubr.bf16.gmra.mrb[0].mxu0 %v5426
      %v5757 = vpop.f32.mrb[0].mxu0
      %v5758 = vadd.f32 %v5693, %v5757
      %v5759 = vpop.f32.mrb[0].mxu0
      %v5760 = vpop.f32.mrb[0].mxu0
      %v5761 = vadd.f32 %v5696, %v5760
      %v5762 = vpop.f32.mrb[0].mxu0
      %5763 = vmatprep.mubr.bf16.mxu0 %v5647
      %5764 = vmatmul.mubr.bf16.gmra.mrb[0].mxu0 %v5430
      %v5765 = vpop.f32.mrb[0].mxu0
      %v5766 = vadd.f32 %v5701, %v5765
      %v5767 = vpop.f32.mrb[0].mxu0
      %v5768 = vpop.f32.mrb[0].mxu0
      %v5769 = vadd.f32 %v5704, %v5768
      %v5770 = vpop.f32.mrb[0].mxu0
      %5771 = vmatprep.mubr.bf16.mxu0 %v5650
      %5772 = vmatmul.mubr.bf16.gmra.mrb[0].mxu0 %v5434
      %v5773 = vpop.f32.mrb[0].mxu0
      %v5774 = vadd.f32 %v5709, %v5773
      %v5775 = vpop.f32.mrb[0].mxu0
      %v5776 = vpop.f32.mrb[0].mxu0
      %v5777 = vadd.f32 %v5712, %v5776
      %v5778 = vpop.f32.mrb[0].mxu0
      %5779 = vmatprep.mubr.bf16.mxu0 %v5653
      %5780 = vmatmul.mubr.bf16.gmra.mrb[0].mxu0 %v5438
      %v5781 = vpop.f32.mrb[0].mxu0
      %v5782 = vadd.f32 %v5717, %v5781
      %v5783 = vpop.f32.mrb[0].mxu0
      %v5784 = vpop.f32.mrb[0].mxu0
      %v5785 = vadd.f32 %v5720, %v5784
      %v5786 = vpop.f32.mrb[0].mxu0
      %5787 = vdwg.mxu0
      %v5788 = vtanh.pop %v5758
      %v5789 = vtanh.pop %v5761
      %v5790 = vtanh.pop %v5766
      %v5791 = vtanh.pop %v5769
      %v5792 = vtanh.pop %v5774
      %v5793 = vtanh.pop %v5777
      %v5794 = vtanh.pop %v5782
      %v5795 = vtanh.pop %v5785
      %v5796 = vsub.f32 1.0, %v3979
      %v5797 = vsub.f32 1.0, %v3981
      %v5798 = vsub.f32 1.0, %v3983
      %v5799 = vsub.f32 1.0, %v3985
      %v5800 = vsub.f32 1.0, %v3987
      %v5801 = vsub.f32 1.0, %v3989
      %v5802 = vsub.f32 1.0, %v3991
      %v5803 = vsub.f32 1.0, %v3993
      %5804 = vrot.lane.b32.xlu0 %v2275, 16
      %v5805 = vpop.permute.xlu0 %5804
      %5806 = vrot.lane.b32.xlu0 %v2276, 16
      %v5807 = vpop.permute.xlu0 %5806
      %5808 = vrot.lane.b32.xlu0 %v2277, 16
      %v5809 = vpop.permute.xlu0 %5808
      %5810 = vrot.lane.b32.xlu0 %v2278, 16
      %v5811 = vpop.permute.xlu0 %5810
      %5812 = vrot.lane.b32.xlu0 %v2279, 16
      %v5813 = vpop.permute.xlu0 %5812
      %5814 = vrot.lane.b32.xlu0 %v2280, 16
      %v5815 = vpop.permute.xlu0 %5814
      %5816 = vrot.lane.b32.xlu0 %v2281, 16
      %v5817 = vpop.permute.xlu0 %5816
      %5818 = vrot.lane.b32.xlu0 %v2325, 16
      %v5819 = vpop.permute.xlu0 %5818
      %v5828 = vmul.f32 %v5796, %v5805
      %v5829 = vmul.f32 %v5797, %v5807
      %v5830 = vmul.f32 %v5798, %v5809
      %v5831 = vmul.f32 %v5799, %v5811
      %v5832 = vmul.f32 %v5800, %v5813
      %v5833 = vmul.f32 %v5801, %v5815
      %v5834 = vmul.f32 %v5802, %v5817
      %v5835 = vmul.f32 %v5803, %v5819
      %5844 = vrot.lane.b32.xlu0 %v5788, 16
      %v5845 = vpop.permute.xlu0 %5844
      %5846 = vrot.lane.b32.xlu0 %v5789, 16
      %v5847 = vpop.permute.xlu0 %5846
      %5848 = vrot.lane.b32.xlu0 %v5790, 16
      %v5849 = vpop.permute.xlu0 %5848
      %5850 = vrot.lane.b32.xlu0 %v5791, 16
      %v5851 = vpop.permute.xlu0 %5850
      %5852 = vrot.lane.b32.xlu0 %v5792, 16
      %v5853 = vpop.permute.xlu0 %5852
      %5854 = vrot.lane.b32.xlu0 %v5793, 16
      %v5855 = vpop.permute.xlu0 %5854
      %5856 = vrot.lane.b32.xlu0 %v5794, 16
      %v5857 = vpop.permute.xlu0 %5856
      %5858 = vrot.lane.b32.xlu0 %v5795, 16
      %v5859 = vpop.permute.xlu0 %5858
      %v5868 = vmul.f32 %v3979, %v5845
      %v5869 = vmul.f32 %v3981, %v5847
      %v5870 = vmul.f32 %v3983, %v5849
      %v5871 = vmul.f32 %v3985, %v5851
      %v5872 = vmul.f32 %v3987, %v5853
      %v5873 = vmul.f32 %v3989, %v5855
      %v5874 = vmul.f32 %v3991, %v5857
      %v5875 = vmul.f32 %v3993, %v5859
      %v5876 = vadd.f32 %v5828, %v5868
      %v5877 = vadd.f32 %v5829, %v5869
      %v5878 = vadd.f32 %v5830, %v5870
      %v5879 = vadd.f32 %v5831, %v5871
      %v5880 = vadd.f32 %v5832, %v5872
      %v5881 = vadd.f32 %v5833, %v5873
      %v5882 = vadd.f32 %v5834, %v5874
      %v5883 = vadd.f32 %v5835, %v5875
      %5885 = vset.pattern.permute.xlu0 0
      %5886 = vperm.xlu0 %5885, %v737
      %v5887 = vpop.permute.xlu0 %5886
      %5890 = vset.pattern.permute.xlu0 0
      %5891 = vperm.xlu0 %5890, %v738
      %v5892 = vpop.permute.xlu0 %5891
      %5895 = vset.pattern.permute.xlu0 0
      %5896 = vperm.xlu0 %5895, %v739
      %v5897 = vpop.permute.xlu0 %5896
      %5900 = vset.pattern.permute.xlu0 0
      %5901 = vperm.xlu0 %5900, %v740
      %v5902 = vpop.permute.xlu0 %5901
      %5905 = vset.pattern.permute.xlu0 0
      %5906 = vperm.xlu0 %5905, %v741
      %v5907 = vpop.permute.xlu0 %5906
      %5910 = vset.pattern.permute.xlu0 0
      %5911 = vperm.xlu0 %5910, %v742
      %v5912 = vpop.permute.xlu0 %5911
      %5915 = vset.pattern.permute.xlu0 0
      %5916 = vperm.xlu0 %5915, %v743
      %v5917 = vpop.permute.xlu0 %5916
      %5920 = vset.pattern.permute.xlu0 0
      %5921 = vperm.xlu0 %5920, %v744
      %v5922 = vpop.permute.xlu0 %5921
      %v5924 = vmul.f32 %v5876, %v5887
      %v5925 = vmul.f32 %v5877, %v5892
      %v5926 = vmul.f32 %v5878, %v5897
      %v5927 = vmul.f32 %v5879, %v5902
      %v5928 = vmul.f32 %v5880, %v5907
      %v5929 = vmul.f32 %v5881, %v5912
      %v5930 = vmul.f32 %v5882, %v5917
      %v5931 = vmul.f32 %v5883, %v5922
      %5940 = vrot.lane.b32.xlu0 %v5924, 112
      %v5941 = vpop.permute.xlu0 %5940
      %5942 = vrot.lane.b32.xlu0 %v5925, 112
      %v5943 = vpop.permute.xlu0 %5942
      %5944 = vrot.lane.b32.xlu0 %v5926, 112
      %v5945 = vpop.permute.xlu0 %5944
      %5946 = vrot.lane.b32.xlu0 %v5927, 112
      %v5947 = vpop.permute.xlu0 %5946
      %5948 = vrot.lane.b32.xlu0 %v5928, 112
      %v5949 = vpop.permute.xlu0 %5948
      %5950 = vrot.lane.b32.xlu0 %v5929, 112
      %v5951 = vpop.permute.xlu0 %5950
      %5952 = vrot.lane.b32.xlu0 %v5930, 112
      %v5953 = vpop.permute.xlu0 %5952
      %5954 = vrot.lane.b32.xlu0 %v5931, 112
      %v5955 = vpop.permute.xlu0 %5954
      %5964 = vst.msk [vmem:[#allocation2 + $0x18] sm:$0xff] %vm1462, %v5941
      %5965 = vst.msk [vmem:[#allocation2 + $0x20] sm:$0xff] %vm1462, %v5943
      %5966 = vst.msk [vmem:[#allocation2 + $0x28] sm:$0xff] %vm1462, %v5945
      %5967 = vst.msk [vmem:[#allocation2 + $0x30] sm:$0xff] %vm1462, %v5947
      %5968 = vst.msk [vmem:[#allocation2 + $0x38] sm:$0xff] %vm1462, %v5949
      %5969 = vst.msk [vmem:[#allocation2 + $0x40] sm:$0xff] %vm1462, %v5951
      %5970 = vst.msk [vmem:[#allocation2 + $0x48] sm:$0xff] %vm1462, %v5953
      %5971 = vst.msk [vmem:[#allocation2 + $0x50] sm:$0xff] %vm1462, %v5955
      %v5972 = vld [vmem:[#allocation2 + $0x6] sm:$0xff]
      %v5973 = vld [vmem:[#allocation2 + $0xe] sm:$0xff]
      %v5974 = vld [vmem:[#allocation2 + $0x16] sm:$0xff]
      %v5975 = vld [vmem:[#allocation2 + $0x1e] sm:$0xff]
      %v5976 = vld [vmem:[#allocation2 + $0x26] sm:$0xff]
      %v5977 = vld [vmem:[#allocation2 + $0x2e] sm:$0xff]
      %v5978 = vld [vmem:[#allocation2 + $0x36] sm:$0xff]
      %v5979 = vld [vmem:[#allocation2 + $0x3e] sm:$0xff]
      %v5980 = vld [vmem:[#allocation2 + $0x7] sm:$0xff]
      %v5981 = vld [vmem:[#allocation2 + $0xf] sm:$0xff]
      %v5982 = vld [vmem:[#allocation2 + $0x17] sm:$0xff]
      %v5983 = vld [vmem:[#allocation2 + $0x1f] sm:$0xff]
      %v5984 = vld [vmem:[#allocation2 + $0x27] sm:$0xff]
      %v5985 = vld [vmem:[#allocation2 + $0x2f] sm:$0xff]
      %v5986 = vld [vmem:[#allocation2 + $0x37] sm:$0xff]
      %v5987 = vld [vmem:[#allocation2 + $0x3f] sm:$0xff]
      %v5988 = vld [vmem:[#allocation2 + $0x8] sm:$0xff]
      %v5989 = vld [vmem:[#allocation2 + $0x10] sm:$0xff]
      %v5990 = vld [vmem:[#allocation2 + $0x18] sm:$0xff]
      %v5991 = vld [vmem:[#allocation2 + $0x20] sm:$0xff]
      %v5992 = vld [vmem:[#allocation2 + $0x28] sm:$0xff]
      %v5993 = vld [vmem:[#allocation2 + $0x30] sm:$0xff]
      %v5994 = vld [vmem:[#allocation2 + $0x38] sm:$0xff]
      %v5995 = vld [vmem:[#allocation2 + $0x40] sm:$0xff]
      %v5996 = vld [vmem:[#allocation2 + $0x9] sm:$0xff]
      %v5997 = vld [vmem:[#allocation2 + $0x11] sm:$0xff]
      %v5998 = vld [vmem:[#allocation2 + $0x19] sm:$0xff]
      %v5999 = vld [vmem:[#allocation2 + $0x21] sm:$0xff]
      %v6000 = vld [vmem:[#allocation2 + $0x29] sm:$0xff]
      %v6001 = vld [vmem:[#allocation2 + $0x31] sm:$0xff]
      %v6002 = vld [vmem:[#allocation2 + $0x39] sm:$0xff]
      %v6003 = vld [vmem:[#allocation2 + $0x41] sm:$0xff]
      %v6004 = vld [vmem:[#allocation2 + $0xa] sm:$0xff]
      %v6005 = vld [vmem:[#allocation2 + $0x12] sm:$0xff]
      %v6006 = vld [vmem:[#allocation2 + $0x1a] sm:$0xff]
      %v6007 = vld [vmem:[#allocation2 + $0x22] sm:$0xff]
      %v6008 = vld [vmem:[#allocation2 + $0x2a] sm:$0xff]
      %v6009 = vld [vmem:[#allocation2 + $0x32] sm:$0xff]
      %v6010 = vld [vmem:[#allocation2 + $0x3a] sm:$0xff]
      %v6011 = vld [vmem:[#allocation2 + $0x42] sm:$0xff]
      %v6012 = vld [vmem:[#allocation2 + $0x46] sm:$0xff]
      %v6013 = vld [vmem:[#allocation2 + $0x47] sm:$0xff]
      %v6014 = vld [vmem:[#allocation2 + $0x48] sm:$0xff]
      %v6015 = vld [vmem:[#allocation2 + $0x49] sm:$0xff]
      %v6016 = vld [vmem:[#allocation2 + $0x4a] sm:$0xff]
      %v6017 = vld [vmem:[#allocation2 + $0x4e] sm:$0xff]
      %v6018 = vld [vmem:[#allocation2 + $0x4f] sm:$0xff]
      %v6019 = vld [vmem:[#allocation2 + $0x50] sm:$0xff]
      %v6020 = vld [vmem:[#allocation2 + $0x51] sm:$0xff]
      %v6021 = vld [vmem:[#allocation2 + $0x52] sm:$0xff]
      %v6022 = vld [vmem:[#allocation2 + $0x56] sm:$0xff]
      %v6023 = vld [vmem:[#allocation2 + $0x57] sm:$0xff]
      %v6024 = vld [vmem:[#allocation2 + $0x58] sm:$0xff]
      %v6025 = vld [vmem:[#allocation2 + $0x59] sm:$0xff]
      %v6026 = vld [vmem:[#allocation2 + $0x5a] sm:$0xff]
      %v6027 = vld [vmem:[#allocation2 + $0x5e] sm:$0xff]
      %v6028 = vld [vmem:[#allocation2 + $0x5f] sm:$0xff]
      %v6029 = vld [vmem:[#allocation2 + $0x60] sm:$0xff]
      %v6030 = vld [vmem:[#allocation2 + $0x61] sm:$0xff]
      %v6031 = vld [vmem:[#allocation2 + $0x62] sm:$0xff]
      %6040 = vrot.lane.b32.xlu0 %v5980, 16
      %v6041 = vpop.permute.xlu0 %6040
      %6042 = vrot.lane.b32.xlu0 %v5981, 16
      %v6043 = vpop.permute.xlu0 %6042
      %6044 = vrot.lane.b32.xlu0 %v5982, 16
      %v6045 = vpop.permute.xlu0 %6044
      %6046 = vrot.lane.b32.xlu0 %v5983, 16
      %v6047 = vpop.permute.xlu0 %6046
      %6048 = vrot.lane.b32.xlu0 %v5984, 16
      %v6049 = vpop.permute.xlu0 %6048
      %6050 = vrot.lane.b32.xlu0 %v5985, 16
      %v6051 = vpop.permute.xlu0 %6050
      %6052 = vrot.lane.b32.xlu0 %v5986, 16
      %v6053 = vpop.permute.xlu0 %6052
      %6054 = vrot.lane.b32.xlu0 %v5987, 16
      %v6055 = vpop.permute.xlu0 %6054
      %6072 = vrot.lane.b32.xlu0 %v5988, 32
      %v6073 = vpop.permute.xlu0 %6072
      %6074 = vrot.lane.b32.xlu0 %v5989, 32
      %v6075 = vpop.permute.xlu0 %6074
      %6076 = vrot.lane.b32.xlu0 %v5990, 32
      %v6077 = vpop.permute.xlu0 %6076
      %6078 = vrot.lane.b32.xlu0 %v5991, 32
      %v6079 = vpop.permute.xlu0 %6078
      %6080 = vrot.lane.b32.xlu0 %v5992, 32
      %v6081 = vpop.permute.xlu0 %6080
      %6082 = vrot.lane.b32.xlu0 %v5993, 32
      %v6083 = vpop.permute.xlu0 %6082
      %6084 = vrot.lane.b32.xlu0 %v5994, 32
      %v6085 = vpop.permute.xlu0 %6084
      %6086 = vrot.lane.b32.xlu0 %v5995, 32
      %v6087 = vpop.permute.xlu0 %6086
      %6104 = vrot.lane.b32.xlu0 %v5996, 48
      %v6105 = vpop.permute.xlu0 %6104
      %6106 = vrot.lane.b32.xlu0 %v5997, 48
      %v6107 = vpop.permute.xlu0 %6106
      %6108 = vrot.lane.b32.xlu0 %v5998, 48
      %v6109 = vpop.permute.xlu0 %6108
      %6110 = vrot.lane.b32.xlu0 %v5999, 48
      %v6111 = vpop.permute.xlu0 %6110
      %6112 = vrot.lane.b32.xlu0 %v6000, 48
      %v6113 = vpop.permute.xlu0 %6112
      %6114 = vrot.lane.b32.xlu0 %v6001, 48
      %v6115 = vpop.permute.xlu0 %6114
      %6116 = vrot.lane.b32.xlu0 %v6002, 48
      %v6117 = vpop.permute.xlu0 %6116
      %6118 = vrot.lane.b32.xlu0 %v6003, 48
      %v6119 = vpop.permute.xlu0 %6118
      %6136 = vrot.lane.b32.xlu0 %v6004, 64
      %v6137 = vpop.permute.xlu0 %6136
      %6138 = vrot.lane.b32.xlu0 %v6005, 64
      %v6139 = vpop.permute.xlu0 %6138
      %6140 = vrot.lane.b32.xlu0 %v6006, 64
      %v6141 = vpop.permute.xlu0 %6140
      %6142 = vrot.lane.b32.xlu0 %v6007, 64
      %v6143 = vpop.permute.xlu0 %6142
      %6144 = vrot.lane.b32.xlu0 %v6008, 64
      %v6145 = vpop.permute.xlu0 %6144
      %6146 = vrot.lane.b32.xlu0 %v6009, 64
      %v6147 = vpop.permute.xlu0 %6146
      %6148 = vrot.lane.b32.xlu0 %v6010, 64
      %v6149 = vpop.permute.xlu0 %6148
      %6150 = vrot.lane.b32.xlu0 %v6011, 64
      %v6151 = vpop.permute.xlu0 %6150
      %6168 = vrot.lane.b32.xlu0 %v5973, 80
      %v6169 = vpop.permute.xlu0 %6168
      %6170 = vrot.lane.b32.xlu0 %v5974, 80
      %v6171 = vpop.permute.xlu0 %6170
      %6172 = vrot.lane.b32.xlu0 %v5975, 80
      %v6173 = vpop.permute.xlu0 %6172
      %6174 = vrot.lane.b32.xlu0 %v5976, 80
      %v6175 = vpop.permute.xlu0 %6174
      %6176 = vrot.lane.b32.xlu0 %v5977, 80
      %v6177 = vpop.permute.xlu0 %6176
      %6178 = vrot.lane.b32.xlu0 %v5978, 80
      %v6179 = vpop.permute.xlu0 %6178
      %6180 = vrot.lane.b32.xlu0 %v5979, 80
      %v6181 = vpop.permute.xlu0 %6180
      %6182 = vrot.lane.b32.xlu0 %v6012, 80
      %v6183 = vpop.permute.xlu0 %6182
      %6193 = vrot.lane.b32.xlu0 %v5981, 96
      %v6194 = vpop.permute.xlu0 %6193
      %6195 = vrot.lane.b32.xlu0 %v5982, 96
      %v6196 = vpop.permute.xlu0 %6195
      %6197 = vrot.lane.b32.xlu0 %v5983, 96
      %v6198 = vpop.permute.xlu0 %6197
      %6199 = vrot.lane.b32.xlu0 %v5984, 96
      %v6200 = vpop.permute.xlu0 %6199
      %6201 = vrot.lane.b32.xlu0 %v5985, 96
      %v6202 = vpop.permute.xlu0 %6201
      %6203 = vrot.lane.b32.xlu0 %v5986, 96
      %v6204 = vpop.permute.xlu0 %6203
      %6205 = vrot.lane.b32.xlu0 %v5987, 96
      %v6206 = vpop.permute.xlu0 %6205
      %6207 = vrot.lane.b32.xlu0 %v6013, 96
      %v6208 = vpop.permute.xlu0 %6207
      %6218 = vrot.lane.b32.xlu0 %v5989, 112
      %v6219 = vpop.permute.xlu0 %6218
      %6220 = vrot.lane.b32.xlu0 %v5990, 112
      %v6221 = vpop.permute.xlu0 %6220
      %6222 = vrot.lane.b32.xlu0 %v5991, 112
      %v6223 = vpop.permute.xlu0 %6222
      %6224 = vrot.lane.b32.xlu0 %v5992, 112
      %v6225 = vpop.permute.xlu0 %6224
      %6226 = vrot.lane.b32.xlu0 %v5993, 112
      %v6227 = vpop.permute.xlu0 %6226
      %6228 = vrot.lane.b32.xlu0 %v5994, 112
      %v6229 = vpop.permute.xlu0 %6228
      %6230 = vrot.lane.b32.xlu0 %v5995, 112
      %v6231 = vpop.permute.xlu0 %6230
      %6232 = vrot.lane.b32.xlu0 %v6014, 112
      %v6233 = vpop.permute.xlu0 %6232
      %6243 = vrot.lane.b32.xlu0 %v6005, 16
      %v6244 = vpop.permute.xlu0 %6243
      %6245 = vrot.lane.b32.xlu0 %v6006, 16
      %v6246 = vpop.permute.xlu0 %6245
      %6247 = vrot.lane.b32.xlu0 %v6007, 16
      %v6248 = vpop.permute.xlu0 %6247
      %6249 = vrot.lane.b32.xlu0 %v6008, 16
      %v6250 = vpop.permute.xlu0 %6249
      %6251 = vrot.lane.b32.xlu0 %v6009, 16
      %v6252 = vpop.permute.xlu0 %6251
      %6253 = vrot.lane.b32.xlu0 %v6010, 16
      %v6254 = vpop.permute.xlu0 %6253
      %6255 = vrot.lane.b32.xlu0 %v6011, 16
      %v6256 = vpop.permute.xlu0 %6255
      %6257 = vrot.lane.b32.xlu0 %v6016, 16
      %v6258 = vpop.permute.xlu0 %6257
      %6268 = vrot.lane.b32.xlu0 %v5974, 32
      %v6269 = vpop.permute.xlu0 %6268
      %6270 = vrot.lane.b32.xlu0 %v5975, 32
      %v6271 = vpop.permute.xlu0 %6270
      %6272 = vrot.lane.b32.xlu0 %v5976, 32
      %v6273 = vpop.permute.xlu0 %6272
      %6274 = vrot.lane.b32.xlu0 %v5977, 32
      %v6275 = vpop.permute.xlu0 %6274
      %6276 = vrot.lane.b32.xlu0 %v5978, 32
      %v6277 = vpop.permute.xlu0 %6276
      %6278 = vrot.lane.b32.xlu0 %v5979, 32
      %v6279 = vpop.permute.xlu0 %6278
      %6280 = vrot.lane.b32.xlu0 %v6012, 32
      %v6281 = vpop.permute.xlu0 %6280
      %6282 = vrot.lane.b32.xlu0 %v6017, 32
      %v6283 = vpop.permute.xlu0 %6282
      %6293 = vrot.lane.b32.xlu0 %v5982, 48
      %v6294 = vpop.permute.xlu0 %6293
      %6295 = vrot.lane.b32.xlu0 %v5983, 48
      %v6296 = vpop.permute.xlu0 %6295
      %6297 = vrot.lane.b32.xlu0 %v5984, 48
      %v6298 = vpop.permute.xlu0 %6297
      %6299 = vrot.lane.b32.xlu0 %v5985, 48
      %v6300 = vpop.permute.xlu0 %6299
      %6301 = vrot.lane.b32.xlu0 %v5986, 48
      %v6302 = vpop.permute.xlu0 %6301
      %6303 = vrot.lane.b32.xlu0 %v5987, 48
      %v6304 = vpop.permute.xlu0 %6303
      %6305 = vrot.lane.b32.xlu0 %v6013, 48
      %v6306 = vpop.permute.xlu0 %6305
      %6307 = vrot.lane.b32.xlu0 %v6018, 48
      %v6308 = vpop.permute.xlu0 %6307
      %6318 = vrot.lane.b32.xlu0 %v5990, 64
      %v6319 = vpop.permute.xlu0 %6318
      %6320 = vrot.lane.b32.xlu0 %v5991, 64
      %v6321 = vpop.permute.xlu0 %6320
      %6322 = vrot.lane.b32.xlu0 %v5992, 64
      %v6323 = vpop.permute.xlu0 %6322
      %6324 = vrot.lane.b32.xlu0 %v5993, 64
      %v6325 = vpop.permute.xlu0 %6324
      %6326 = vrot.lane.b32.xlu0 %v5994, 64
      %v6327 = vpop.permute.xlu0 %6326
      %6328 = vrot.lane.b32.xlu0 %v5995, 64
      %v6329 = vpop.permute.xlu0 %6328
      %6330 = vrot.lane.b32.xlu0 %v6014, 64
      %v6331 = vpop.permute.xlu0 %6330
      %6332 = vrot.lane.b32.xlu0 %v6019, 64
      %v6333 = vpop.permute.xlu0 %6332
      %6344 = vrot.lane.b32.xlu0 %v5998, 80
      %v6345 = vpop.permute.xlu0 %6344
      %6346 = vrot.lane.b32.xlu0 %v5999, 80
      %v6347 = vpop.permute.xlu0 %6346
      %6348 = vrot.lane.b32.xlu0 %v6000, 80
      %v6349 = vpop.permute.xlu0 %6348
      %6350 = vrot.lane.b32.xlu0 %v6001, 80
      %v6351 = vpop.permute.xlu0 %6350
      %6352 = vrot.lane.b32.xlu0 %v6002, 80
      %v6353 = vpop.permute.xlu0 %6352
      %6354 = vrot.lane.b32.xlu0 %v6003, 80
      %v6355 = vpop.permute.xlu0 %6354
      %6356 = vrot.lane.b32.xlu0 %v6015, 80
      %v6357 = vpop.permute.xlu0 %6356
      %6358 = vrot.lane.b32.xlu0 %v6020, 80
      %v6359 = vpop.permute.xlu0 %6358
      %6369 = vrot.lane.b32.xlu0 %v6006, 96
      %v6370 = vpop.permute.xlu0 %6369
      %6371 = vrot.lane.b32.xlu0 %v6007, 96
      %v6372 = vpop.permute.xlu0 %6371
      %6373 = vrot.lane.b32.xlu0 %v6008, 96
      %v6374 = vpop.permute.xlu0 %6373
      %6375 = vrot.lane.b32.xlu0 %v6009, 96
      %v6376 = vpop.permute.xlu0 %6375
      %6377 = vrot.lane.b32.xlu0 %v6010, 96
      %v6378 = vpop.permute.xlu0 %6377
      %6379 = vrot.lane.b32.xlu0 %v6011, 96
      %v6380 = vpop.permute.xlu0 %6379
      %6381 = vrot.lane.b32.xlu0 %v6016, 96
      %v6382 = vpop.permute.xlu0 %6381
      %6383 = vrot.lane.b32.xlu0 %v6021, 96
      %v6384 = vpop.permute.xlu0 %6383
      %6394 = vrot.lane.b32.xlu0 %v5975, 112
      %v6395 = vpop.permute.xlu0 %6394
      %6396 = vrot.lane.b32.xlu0 %v5976, 112
      %v6397 = vpop.permute.xlu0 %6396
      %6398 = vrot.lane.b32.xlu0 %v5977, 112
      %v6399 = vpop.permute.xlu0 %6398
      %6400 = vrot.lane.b32.xlu0 %v5978, 112
      %v6401 = vpop.permute.xlu0 %6400
      %6402 = vrot.lane.b32.xlu0 %v5979, 112
      %v6403 = vpop.permute.xlu0 %6402
      %6404 = vrot.lane.b32.xlu0 %v6012, 112
      %v6405 = vpop.permute.xlu0 %6404
      %6406 = vrot.lane.b32.xlu0 %v6017, 112
      %v6407 = vpop.permute.xlu0 %6406
      %6408 = vrot.lane.b32.xlu0 %v6022, 112
      %v6409 = vpop.permute.xlu0 %6408
      %v6418 = vsel %vm1462, %v5972, %v6041
      %v6419 = vsel %vm1462, %v5973, %v6043
      %v6420 = vsel %vm1462, %v5974, %v6045
      %v6421 = vsel %vm1462, %v5975, %v6047
      %v6422 = vsel %vm1462, %v5976, %v6049
      %v6423 = vsel %vm1462, %v5977, %v6051
      %v6424 = vsel %vm1462, %v5978, %v6053
      %v6425 = vsel %vm1462, %v5979, %v6055
      %v6426 = vsel %vm1471, %v6418, %v6073
      %v6427 = vsel %vm1471, %v6419, %v6075
      %v6428 = vsel %vm1471, %v6420, %v6077
      %v6429 = vsel %vm1471, %v6421, %v6079
      %v6430 = vsel %vm1471, %v6422, %v6081
      %v6431 = vsel %vm1471, %v6423, %v6083
      %v6432 = vsel %vm1471, %v6424, %v6085
      %v6433 = vsel %vm1471, %v6425, %v6087
      %v6434 = vsel %vm1480, %v6426, %v6105
      %v6435 = vsel %vm1480, %v6427, %v6107
      %v6436 = vsel %vm1480, %v6428, %v6109
      %v6437 = vsel %vm1480, %v6429, %v6111
      %v6438 = vsel %vm1480, %v6430, %v6113
      %v6439 = vsel %vm1480, %v6431, %v6115
      %v6440 = vsel %vm1480, %v6432, %v6117
      %v6441 = vsel %vm1480, %v6433, %v6119
      %v6442 = vsel %vm1489, %v6434, %v6137
      %v6443 = vsel %vm1489, %v6435, %v6139
      %v6444 = vsel %vm1489, %v6436, %v6141
      %v6445 = vsel %vm1489, %v6437, %v6143
      %v6446 = vsel %vm1489, %v6438, %v6145
      %v6447 = vsel %vm1489, %v6439, %v6147
      %v6448 = vsel %vm1489, %v6440, %v6149
      %v6449 = vsel %vm1489, %v6441, %v6151
      %v6450 = vsel %vm1498, %v6442, %v6169
      %v6451 = vsel %vm1498, %v6443, %v6171
      %v6452 = vsel %vm1498, %v6444, %v6173
      %v6453 = vsel %vm1498, %v6445, %v6175
      %v6454 = vsel %vm1498, %v6446, %v6177
      %v6455 = vsel %vm1498, %v6447, %v6179
      %v6456 = vsel %vm1498, %v6448, %v6181
      %v6457 = vsel %vm1498, %v6449, %v6183
      %v6458 = vsel %vm1507, %v6450, %v6194
      %v6459 = vsel %vm1507, %v6451, %v6196
      %v6460 = vsel %vm1507, %v6452, %v6198
      %v6461 = vsel %vm1507, %v6453, %v6200
      %v6462 = vsel %vm1507, %v6454, %v6202
      %v6463 = vsel %vm1507, %v6455, %v6204
      %v6464 = vsel %vm1507, %v6456, %v6206
      %v6465 = vsel %vm1507, %v6457, %v6208
      %v6466 = vsel %vm1516, %v6458, %v6219
      %v6467 = vsel %vm1516, %v6459, %v6221
      %v6468 = vsel %vm1516, %v6460, %v6223
      %v6469 = vsel %vm1516, %v6461, %v6225
      %v6470 = vsel %vm1516, %v6462, %v6227
      %v6471 = vsel %vm1516, %v6463, %v6229
      %v6472 = vsel %vm1516, %v6464, %v6231
      %v6473 = vsel %vm1516, %v6465, %v6233
      %v6474 = vsel %vm1462, %v5997, %v6244
      %v6475 = vsel %vm1462, %v5998, %v6246
      %v6476 = vsel %vm1462, %v5999, %v6248
      %v6477 = vsel %vm1462, %v6000, %v6250
      %v6478 = vsel %vm1462, %v6001, %v6252
      %v6479 = vsel %vm1462, %v6002, %v6254
      %v6480 = vsel %vm1462, %v6003, %v6256
      %v6481 = vsel %vm1462, %v6015, %v6258
      %v6482 = vsel %vm1471, %v6474, %v6269
      %v6483 = vsel %vm1471, %v6475, %v6271
      %v6484 = vsel %vm1471, %v6476, %v6273
      %v6485 = vsel %vm1471, %v6477, %v6275
      %v6486 = vsel %vm1471, %v6478, %v6277
      %v6487 = vsel %vm1471, %v6479, %v6279
      %v6488 = vsel %vm1471, %v6480, %v6281
      %v6489 = vsel %vm1471, %v6481, %v6283
      %v6490 = vsel %vm1480, %v6482, %v6294
      %v6491 = vsel %vm1480, %v6483, %v6296
      %v6492 = vsel %vm1480, %v6484, %v6298
      %v6493 = vsel %vm1480, %v6485, %v6300
      %v6494 = vsel %vm1480, %v6486, %v6302
      %v6495 = vsel %vm1480, %v6487, %v6304
      %v6496 = vsel %vm1480, %v6488, %v6306
      %v6497 = vsel %vm1480, %v6489, %v6308
      %v6498 = vsel %vm1489, %v6490, %v6319
      %v6499 = vsel %vm1489, %v6491, %v6321
      %v6500 = vsel %vm1489, %v6492, %v6323
      %v6501 = vsel %vm1489, %v6493, %v6325
      %v6502 = vsel %vm1489, %v6494, %v6327
      %v6503 = vsel %vm1489, %v6495, %v6329
      %v6504 = vsel %vm1489, %v6496, %v6331
      %v6505 = vsel %vm1489, %v6497, %v6333
      %v6506 = vsel %vm1498, %v6498, %v6345
      %v6507 = vsel %vm1498, %v6499, %v6347
      %v6508 = vsel %vm1498, %v6500, %v6349
      %v6509 = vsel %vm1498, %v6501, %v6351
      %v6510 = vsel %vm1498, %v6502, %v6353
      %v6511 = vsel %vm1498, %v6503, %v6355
      %v6512 = vsel %vm1498, %v6504, %v6357
      %v6513 = vsel %vm1498, %v6505, %v6359
      %v6514 = vsel %vm1507, %v6506, %v6370
      %v6515 = vsel %vm1507, %v6507, %v6372
      %v6516 = vsel %vm1507, %v6508, %v6374
      %v6517 = vsel %vm1507, %v6509, %v6376
      %v6518 = vsel %vm1507, %v6510, %v6378
      %v6519 = vsel %vm1507, %v6511, %v6380
      %v6520 = vsel %vm1507, %v6512, %v6382
      %v6521 = vsel %vm1507, %v6513, %v6384
      %v6522 = vsel %vm1516, %v6514, %v6395
      %v6523 = vsel %vm1516, %v6515, %v6397
      %v6524 = vsel %vm1516, %v6516, %v6399
      %v6525 = vsel %vm1516, %v6517, %v6401
      %v6526 = vsel %vm1516, %v6518, %v6403
      %v6527 = vsel %vm1516, %v6519, %v6405
      %v6528 = vsel %vm1516, %v6520, %v6407
      %v6529 = vsel %vm1516, %v6521, %v6409
      %6531 = vrot.lane.b32.xlu0 %v5991, 16
      %v6532 = vpop.permute.xlu0 %6531
      %6533 = vrot.lane.b32.xlu0 %v5992, 16
      %v6534 = vpop.permute.xlu0 %6533
      %6535 = vrot.lane.b32.xlu0 %v5993, 16
      %v6536 = vpop.permute.xlu0 %6535
      %6537 = vrot.lane.b32.xlu0 %v5994, 16
      %v6538 = vpop.permute.xlu0 %6537
      %6539 = vrot.lane.b32.xlu0 %v5995, 16
      %v6540 = vpop.permute.xlu0 %6539
      %6541 = vrot.lane.b32.xlu0 %v6014, 16
      %v6542 = vpop.permute.xlu0 %6541
      %6543 = vrot.lane.b32.xlu0 %v6019, 16
      %v6544 = vpop.permute.xlu0 %6543
      %6545 = vrot.lane.b32.xlu0 %v6024, 16
      %v6546 = vpop.permute.xlu0 %6545
      %6556 = vrot.lane.b32.xlu0 %v5999, 32
      %v6557 = vpop.permute.xlu0 %6556
      %6558 = vrot.lane.b32.xlu0 %v6000, 32
      %v6559 = vpop.permute.xlu0 %6558
      %6560 = vrot.lane.b32.xlu0 %v6001, 32
      %v6561 = vpop.permute.xlu0 %6560
      %6562 = vrot.lane.b32.xlu0 %v6002, 32
      %v6563 = vpop.permute.xlu0 %6562
      %6564 = vrot.lane.b32.xlu0 %v6003, 32
      %v6565 = vpop.permute.xlu0 %6564
      %6566 = vrot.lane.b32.xlu0 %v6015, 32
      %v6567 = vpop.permute.xlu0 %6566
      %6568 = vrot.lane.b32.xlu0 %v6020, 32
      %v6569 = vpop.permute.xlu0 %6568
      %6570 = vrot.lane.b32.xlu0 %v6025, 32
      %v6571 = vpop.permute.xlu0 %6570
      %6581 = vrot.lane.b32.xlu0 %v6007, 48
      %v6582 = vpop.permute.xlu0 %6581
      %6583 = vrot.lane.b32.xlu0 %v6008, 48
      %v6584 = vpop.permute.xlu0 %6583
      %6585 = vrot.lane.b32.xlu0 %v6009, 48
      %v6586 = vpop.permute.xlu0 %6585
      %6587 = vrot.lane.b32.xlu0 %v6010, 48
      %v6588 = vpop.permute.xlu0 %6587
      %6589 = vrot.lane.b32.xlu0 %v6011, 48
      %v6590 = vpop.permute.xlu0 %6589
      %6591 = vrot.lane.b32.xlu0 %v6016, 48
      %v6592 = vpop.permute.xlu0 %6591
      %6593 = vrot.lane.b32.xlu0 %v6021, 48
      %v6594 = vpop.permute.xlu0 %6593
      %6595 = vrot.lane.b32.xlu0 %v6026, 48
      %v6596 = vpop.permute.xlu0 %6595
      %6606 = vrot.lane.b32.xlu0 %v5976, 64
      %v6607 = vpop.permute.xlu0 %6606
      %6608 = vrot.lane.b32.xlu0 %v5977, 64
      %v6609 = vpop.permute.xlu0 %6608
      %6610 = vrot.lane.b32.xlu0 %v5978, 64
      %v6611 = vpop.permute.xlu0 %6610
      %6612 = vrot.lane.b32.xlu0 %v5979, 64
      %v6613 = vpop.permute.xlu0 %6612
      %6614 = vrot.lane.b32.xlu0 %v6012, 64
      %v6615 = vpop.permute.xlu0 %6614
      %6616 = vrot.lane.b32.xlu0 %v6017, 64
      %v6617 = vpop.permute.xlu0 %6616
      %6618 = vrot.lane.b32.xlu0 %v6022, 64
      %v6619 = vpop.permute.xlu0 %6618
      %6620 = vrot.lane.b32.xlu0 %v6027, 64
      %v6621 = vpop.permute.xlu0 %6620
      %6632 = vrot.lane.b32.xlu0 %v5984, 80
      %v6633 = vpop.permute.xlu0 %6632
      %6634 = vrot.lane.b32.xlu0 %v5985, 80
      %v6635 = vpop.permute.xlu0 %6634
      %6636 = vrot.lane.b32.xlu0 %v5986, 80
      %v6637 = vpop.permute.xlu0 %6636
      %6638 = vrot.lane.b32.xlu0 %v5987, 80
      %v6639 = vpop.permute.xlu0 %6638
      %6640 = vrot.lane.b32.xlu0 %v6013, 80
      %v6641 = vpop.permute.xlu0 %6640
      %6642 = vrot.lane.b32.xlu0 %v6018, 80
      %v6643 = vpop.permute.xlu0 %6642
      %6644 = vrot.lane.b32.xlu0 %v6023, 80
      %v6645 = vpop.permute.xlu0 %6644
      %6646 = vrot.lane.b32.xlu0 %v6028, 80
      %v6647 = vpop.permute.xlu0 %6646
      %6657 = vrot.lane.b32.xlu0 %v5992, 96
      %v6658 = vpop.permute.xlu0 %6657
      %6659 = vrot.lane.b32.xlu0 %v5993, 96
      %v6660 = vpop.permute.xlu0 %6659
      %6661 = vrot.lane.b32.xlu0 %v5994, 96
      %v6662 = vpop.permute.xlu0 %6661
      %6663 = vrot.lane.b32.xlu0 %v5995, 96
      %v6664 = vpop.permute.xlu0 %6663
      %6665 = vrot.lane.b32.xlu0 %v6014, 96
      %v6666 = vpop.permute.xlu0 %6665
      %6667 = vrot.lane.b32.xlu0 %v6019, 96
      %v6668 = vpop.permute.xlu0 %6667
      %6669 = vrot.lane.b32.xlu0 %v6024, 96
      %v6670 = vpop.permute.xlu0 %6669
      %6671 = vrot.lane.b32.xlu0 %v6029, 96
      %v6672 = vpop.permute.xlu0 %6671
      %6682 = vrot.lane.b32.xlu0 %v6000, 112
      %v6683 = vpop.permute.xlu0 %6682
      %6684 = vrot.lane.b32.xlu0 %v6001, 112
      %v6685 = vpop.permute.xlu0 %6684
      %6686 = vrot.lane.b32.xlu0 %v6002, 112
      %v6687 = vpop.permute.xlu0 %6686
      %6688 = vrot.lane.b32.xlu0 %v6003, 112
      %v6689 = vpop.permute.xlu0 %6688
      %6690 = vrot.lane.b32.xlu0 %v6015, 112
      %v6691 = vpop.permute.xlu0 %6690
      %6692 = vrot.lane.b32.xlu0 %v6020, 112
      %v6693 = vpop.permute.xlu0 %6692
      %6694 = vrot.lane.b32.xlu0 %v6025, 112
      %v6695 = vpop.permute.xlu0 %6694
      %6696 = vrot.lane.b32.xlu0 %v6030, 112
      %v6697 = vpop.permute.xlu0 %6696
      %v6706 = vsel %vm1462, %v5983, %v6532
      %v6707 = vsel %vm1462, %v5984, %v6534
      %v6708 = vsel %vm1462, %v5985, %v6536
      %v6709 = vsel %vm1462, %v5986, %v6538
      %v6710 = vsel %vm1462, %v5987, %v6540
      %v6711 = vsel %vm1462, %v6013, %v6542
      %v6712 = vsel %vm1462, %v6018, %v6544
      %v6713 = vsel %vm1462, %v6023, %v6546
      %v6714 = vsel %vm1471, %v6706, %v6557
      %v6715 = vsel %vm1471, %v6707, %v6559
      %v6716 = vsel %vm1471, %v6708, %v6561
      %v6717 = vsel %vm1471, %v6709, %v6563
      %v6718 = vsel %vm1471, %v6710, %v6565
      %v6719 = vsel %vm1471, %v6711, %v6567
      %v6720 = vsel %vm1471, %v6712, %v6569
      %v6721 = vsel %vm1471, %v6713, %v6571
      %v6722 = vsel %vm1480, %v6714, %v6582
      %v6723 = vsel %vm1480, %v6715, %v6584
      %v6724 = vsel %vm1480, %v6716, %v6586
      %v6725 = vsel %vm1480, %v6717, %v6588
      %v6726 = vsel %vm1480, %v6718, %v6590
      %v6727 = vsel %vm1480, %v6719, %v6592
      %v6728 = vsel %vm1480, %v6720, %v6594
      %v6729 = vsel %vm1480, %v6721, %v6596
      %v6730 = vsel %vm1489, %v6722, %v6607
      %v6731 = vsel %vm1489, %v6723, %v6609
      %v6732 = vsel %vm1489, %v6724, %v6611
      %v6733 = vsel %vm1489, %v6725, %v6613
      %v6734 = vsel %vm1489, %v6726, %v6615
      %v6735 = vsel %vm1489, %v6727, %v6617
      %v6736 = vsel %vm1489, %v6728, %v6619
      %v6737 = vsel %vm1489, %v6729, %v6621
      %v6738 = vsel %vm1498, %v6730, %v6633
      %v6739 = vsel %vm1498, %v6731, %v6635
      %v6740 = vsel %vm1498, %v6732, %v6637
      %v6741 = vsel %vm1498, %v6733, %v6639
      %v6742 = vsel %vm1498, %v6734, %v6641
      %v6743 = vsel %vm1498, %v6735, %v6643
      %v6744 = vsel %vm1498, %v6736, %v6645
      %v6745 = vsel %vm1498, %v6737, %v6647
      %v6746 = vsel %vm1507, %v6738, %v6658
      %v6747 = vsel %vm1507, %v6739, %v6660
      %v6748 = vsel %vm1507, %v6740, %v6662
      %v6749 = vsel %vm1507, %v6741, %v6664
      %v6750 = vsel %vm1507, %v6742, %v6666
      %v6751 = vsel %vm1507, %v6743, %v6668
      %v6752 = vsel %vm1507, %v6744, %v6670
      %v6753 = vsel %vm1507, %v6745, %v6672
      %v6754 = vsel %vm1516, %v6746, %v6683
      %v6755 = vsel %vm1516, %v6747, %v6685
      %v6756 = vsel %vm1516, %v6748, %v6687
      %v6757 = vsel %vm1516, %v6749, %v6689
      %v6758 = vsel %vm1516, %v6750, %v6691
      %v6759 = vsel %vm1516, %v6751, %v6693
      %v6760 = vsel %vm1516, %v6752, %v6695
      %v6761 = vsel %vm1516, %v6753, %v6697
      %v6762 = vpack.c.bf16 %v6467, %v6466
      %v6763 = vpack.c.bf16 %v6523, %v6522
      %v6764 = vpack.c.bf16 %v6755, %v6754
      %v6765 = vpack.c.bf16 %v6009, %v6008
      %v6766 = vpack.c.bf16 %v6469, %v6468
      %v6767 = vpack.c.bf16 %v6525, %v6524
      %v6768 = vpack.c.bf16 %v6757, %v6756
      %v6769 = vpack.c.bf16 %v6011, %v6010
      %v6770 = vpack.c.bf16 %v6471, %v6470
      %v6771 = vpack.c.bf16 %v6527, %v6526
      %v6772 = vpack.c.bf16 %v6759, %v6758
      %v6773 = vpack.c.bf16 %v6021, %v6016
      %v6774 = vpack.c.bf16 %v6473, %v6472
      %v6775 = vpack.c.bf16 %v6529, %v6528
      %v6776 = vpack.c.bf16 %v6761, %v6760
      %v6777 = vpack.c.bf16 %v6031, %v6026
      %v6778 = vld [vmem:[%s7] sm:$0xf]
      %v6779 = vld [vmem:[%s7 + $0x4] sm:$0xf]
      %v6780 = vld [vmem:[%s7 + $0x8] sm:$0xf]
      %v6781 = vld [vmem:[%s7 + $0xc] sm:$0xf]
      %v6782 = vld [vmem:[%s7 + $0x10] sm:$0xf]
      %v6783 = vld [vmem:[%s7 + $0x14] sm:$0xf]
      %v6784 = vld [vmem:[%s7 + $0x18] sm:$0xf]
      %v6785 = vld [vmem:[%s7 + $0x1c] sm:$0xf]
      %v6786 = vld [vmem:[%s7 + $0x20] sm:$0xf]
      %v6787 = vld [vmem:[%s7 + $0x24] sm:$0xf]
      %v6788 = vld [vmem:[%s7 + $0x28] sm:$0xf]
      %v6789 = vld [vmem:[%s7 + $0x2c] sm:$0xf]
      %v6790 = vld [vmem:[%s7 + $0x30] sm:$0xf]
      %v6791 = vld [vmem:[%s7 + $0x34] sm:$0xf]
      %v6792 = vld [vmem:[%s7 + $0x38] sm:$0xf]
      %v6793 = vld [vmem:[%s7 + $0x3c] sm:$0xf]
      %v6794 = vld [vmem:[%s7 + $0x40] sm:$0xf]
      %v6795 = vld [vmem:[%s7 + $0x44] sm:$0xf]
      %v6796 = vld [vmem:[%s7 + $0x48] sm:$0xf]
      %v6797 = vld [vmem:[%s7 + $0x4c] sm:$0xf]
      %v6798 = vld [vmem:[%s7 + $0x50] sm:$0xf]
      %v6799 = vld [vmem:[%s7 + $0x54] sm:$0xf]
      %v6800 = vld [vmem:[%s7 + $0x58] sm:$0xf]
      %v6801 = vld [vmem:[%s7 + $0x5c] sm:$0xf]
      %v6802 = vld [vmem:[%s7 + $0x60] sm:$0xf]
      %v6803 = vld [vmem:[%s7 + $0x64] sm:$0xf]
      %v6804 = vld [vmem:[%s7 + $0x68] sm:$0xf]
      %v6805 = vld [vmem:[%s7 + $0x6c] sm:$0xf]
      %v6806 = vld [vmem:[%s7 + $0x70] sm:$0xf]
      %v6807 = vld [vmem:[%s7 + $0x74] sm:$0xf]
      %v6808 = vld [vmem:[%s7 + $0x78] sm:$0xf]
      %v6809 = vld [vmem:[%s7 + $0x7c] sm:$0xf]
      %v6810 = vld [vmem:[%s7 + $0x80] sm:$0xf]
      %v6811 = vld [vmem:[%s7 + $0x84] sm:$0xf]
      %v6812 = vld [vmem:[%s7 + $0x88] sm:$0xf]
      %v6813 = vld [vmem:[%s7 + $0x8c] sm:$0xf]
      %v6814 = vld [vmem:[%s7 + $0x90] sm:$0xf]
      %v6815 = vld [vmem:[%s7 + $0x94] sm:$0xf]
      %v6816 = vld [vmem:[%s7 + $0x98] sm:$0xf]
      %v6817 = vld [vmem:[%s7 + $0x9c] sm:$0xf]
      %v6818 = vld [vmem:[%s7 + $0xa0] sm:$0xf]
      %v6819 = vld [vmem:[%s7 + $0xa4] sm:$0xf]
      %v6820 = vld [vmem:[%s7 + $0xa8] sm:$0xf]
      %v6821 = vld [vmem:[%s7 + $0xac] sm:$0xf]
      %v6822 = vld [vmem:[%s7 + $0xb0] sm:$0xf]
      %v6823 = vld [vmem:[%s7 + $0xb4] sm:$0xf]
      %v6824 = vld [vmem:[%s7 + $0xb8] sm:$0xf]
      %v6825 = vld [vmem:[%s7 + $0xbc] sm:$0xf]
      %v6826 = vld [vmem:[%s7 + $0xc0] sm:$0xf]
      %v6827 = vld [vmem:[%s7 + $0xc4] sm:$0xf]
      %v6828 = vld [vmem:[%s8] sm:$0x1]
      %v6830 = vlaneseq
      %v6831 = vshrl.u32 %v6830, 7
      %v6832 = vsub.s32 0, %v6831
      %v6833 = vrot.slane %v6828, %v6832
      %v6885 = vunpack.c.l.b16 %v6778
      %v6886 = vunpack.c.l.b16 %v6779
      %v6887 = vunpack.c.l.b16 %v6780
      %v6888 = vunpack.c.l.b16 %v6781
      %v6889 = vunpack.c.l.b16 %v6782
      %v6890 = vunpack.c.l.b16 %v6783
      %v6891 = vunpack.c.l.b16 %v6784
      %v6892 = vunpack.c.l.b16 %v6785
      %v6893 = vunpack.c.l.b16 %v6786
      %v6894 = vunpack.c.l.b16 %v6787
      %v6895 = vunpack.c.l.b16 %v6788
      %v6896 = vunpack.c.l.b16 %v6789
      %v6897 = vunpack.c.l.b16 %v6790
      %v6898 = vunpack.c.l.b16 %v6791
      %v6899 = vunpack.c.l.b16 %v6792
      %v6900 = vunpack.c.l.b16 %v6793
      %v6901 = vunpack.c.l.b16 %v6794
      %v6902 = vunpack.c.l.b16 %v6795
      %v6903 = vunpack.c.l.b16 %v6796
      %v6904 = vunpack.c.l.b16 %v6797
      %v6905 = vunpack.c.l.b16 %v6798
      %v6906 = vunpack.c.l.b16 %v6799
      %v6907 = vunpack.c.l.b16 %v6800
      %v6908 = vunpack.c.l.b16 %v6801
      %v6909 = vunpack.c.l.b16 %v6802
      %v6910 = vunpack.c.l.b16 %v6803
      %v6911 = vunpack.c.l.b16 %v6804
      %v6912 = vunpack.c.l.b16 %v6805
      %v6913 = vunpack.c.l.b16 %v6806
      %v6914 = vunpack.c.l.b16 %v6807
      %v6915 = vunpack.c.l.b16 %v6808
      %v6916 = vunpack.c.l.b16 %v6809
      %v6917 = vunpack.c.l.b16 %v6810
      %v6918 = vunpack.c.l.b16 %v6811
      %v6919 = vunpack.c.l.b16 %v6812
      %v6920 = vunpack.c.l.b16 %v6813
      %v6921 = vunpack.c.l.b16 %v6814
      %v6922 = vunpack.c.l.b16 %v6815
      %v6923 = vunpack.c.l.b16 %v6816
      %v6924 = vunpack.c.l.b16 %v6817
      %v6925 = vunpack.c.l.b16 %v6818
      %v6926 = vunpack.c.l.b16 %v6819
      %v6927 = vunpack.c.l.b16 %v6820
      %v6928 = vunpack.c.l.b16 %v6821
      %v6929 = vunpack.c.l.b16 %v6822
      %v6930 = vunpack.c.l.b16 %v6823
      %v6931 = vunpack.c.l.b16 %v6824
      %v6932 = vunpack.c.l.b16 %v6825
      %v6933 = vunpack.c.l.b16 %v6826
      %v6934 = vunpack.c.l.b16 %v6827
      %v6935 = vpack.c.b16 %v6886, %v6885
      %v6936 = vpack.c.b16 %v6888, %v6887
      %v6937 = vpack.c.b16 %v6890, %v6889
      %v6938 = vpack.c.b16 %v6892, %v6891
      %v6939 = vpack.c.b16 %v6894, %v6893
      %v6940 = vpack.c.b16 %v6896, %v6895
      %v6941 = vpack.c.b16 %v6898, %v6897
      %v6942 = vpack.c.b16 %v6900, %v6899
      %v6943 = vpack.c.b16 %v6902, %v6901
      %v6944 = vpack.c.b16 %v6904, %v6903
      %v6945 = vpack.c.b16 %v6906, %v6905
      %v6946 = vpack.c.b16 %v6908, %v6907
      %v6947 = vpack.c.b16 %v6910, %v6909
      %v6948 = vpack.c.b16 %v6912, %v6911
      %v6949 = vpack.c.b16 %v6914, %v6913
      %v6950 = vpack.c.b16 %v6916, %v6915
      %v6951 = vpack.c.b16 %v6918, %v6917
      %v6952 = vpack.c.b16 %v6920, %v6919
      %v6953 = vpack.c.b16 %v6922, %v6921
      %v6954 = vpack.c.b16 %v6924, %v6923
      %v6955 = vpack.c.b16 %v6926, %v6925
      %v6956 = vpack.c.b16 %v6928, %v6927
      %v6957 = vpack.c.b16 %v6930, %v6929
      %v6958 = vpack.c.b16 %v6932, %v6931
      %v6959 = vpack.c.b16 %v6934, %v6933
      %v6986 = vsel %vm1462, %v6765, 0
      %v6989 = vsel %vm1462, %v6769, 0
      %v6992 = vsel %vm1462, %v6773, 0
      %v6995 = vsel %vm1462, %v6777, 0
      %6997 = vmatprep.subr.bf16.mxu0 0
      %6998 = vmatpush1.bf16.msra.mxu0 %v6935
      %6999 = vmatprep.subr.bf16.mxu0 0
      %7000 = vmatpush1.bf16.msra.mxu0 %v6936
      %7001 = vmatprep.subr.bf16.mxu0 0
      %7002 = vmatpush1.bf16.msra.mxu0 %v6937
      %7003 = vmatprep.subr.bf16.mxu0 0
      %7004 = vmatpush1.bf16.msra.mxu0 %v6938
      %7005 = vmatprep.subr.bf16.mxu0 0
      %7006 = vmatpush1.bf16.msra.mxu0 %v6939
      %7007 = vmatprep.subr.bf16.mxu0 0
      %7008 = vmatpush1.bf16.msra.mxu0 %v6940
      %7009 = vmatprep.subr.bf16.mxu0 0
      %7010 = vmatpush1.bf16.msra.mxu0 %v6941
      %7011 = vmatprep.subr.bf16.mxu0 0
      %7012 = vmatpush1.bf16.msra.mxu0 %v6942
      %7013 = vmatprep.subr.bf16.mxu0 0
      %7014 = vmatpush1.bf16.msra.mxu0 %v6943
      %7015 = vmatprep.subr.bf16.mxu0 0
      %7016 = vmatpush1.bf16.msra.mxu0 %v6944
      %7017 = vmatprep.subr.bf16.mxu0 0
      %7018 = vmatpush1.bf16.msra.mxu0 %v6945
      %7019 = vmatprep.subr.bf16.mxu0 0
      %7020 = vmatpush1.bf16.msra.mxu0 %v6946
      %7021 = vmatprep.subr.bf16.mxu0 0
      %7022 = vmatpush1.bf16.msra.mxu0 %v6947
      %7023 = vmatprep.subr.bf16.mxu0 0
      %7024 = vmatpush1.bf16.msra.mxu0 %v6948
      %7025 = vmatprep.subr.bf16.mxu0 0
      %7026 = vmatpush1.bf16.msra.mxu0 %v6949
      %7027 = vmatprep.subr.bf16.mxu0 0
      %7028 = vmatpush1.bf16.msra.mxu0 %v6950
      %7029 = vmatprep.mubr.bf16.mxu0 %v6763
      %7030 = vmatmul.mubr.bf16.gmra.mrb[0].mxu0 %v6762
      %v7031 = vpop.f32.mrb[0].mxu0
      %v7032 = vadd.f32 %v6833, %v7031
      %v7033 = vpop.f32.mrb[0].mxu0
      %v7034 = vpop.f32.mrb[0].mxu0
      %v7035 = vadd.f32 %v6833, %v7034
      %v7036 = vpop.f32.mrb[0].mxu0
      %7037 = vmatprep.mubr.bf16.mxu0 %v6767
      %7038 = vmatmul.mubr.bf16.gmra.mrb[0].mxu0 %v6766
      %v7039 = vpop.f32.mrb[0].mxu0
      %v7040 = vadd.f32 %v6833, %v7039
      %v7041 = vpop.f32.mrb[0].mxu0
      %v7042 = vpop.f32.mrb[0].mxu0
      %v7043 = vadd.f32 %v6833, %v7042
      %v7044 = vpop.f32.mrb[0].mxu0
      %7045 = vmatprep.mubr.bf16.mxu0 %v6771
      %7046 = vmatmul.mubr.bf16.gmra.mrb[0].mxu0 %v6770
      %v7047 = vpop.f32.mrb[0].mxu0
      %v7048 = vadd.f32 %v6833, %v7047
      %v7049 = vpop.f32.mrb[0].mxu0
      %v7050 = vpop.f32.mrb[0].mxu0
      %v7051 = vadd.f32 %v6833, %v7050
      %v7052 = vpop.f32.mrb[0].mxu0
      %7053 = vmatprep.mubr.bf16.mxu0 %v6775
      %7054 = vmatmul.mubr.bf16.gmra.mrb[0].mxu0 %v6774
      %v7055 = vpop.f32.mrb[0].mxu0
      %v7056 = vadd.f32 %v6833, %v7055
      %v7057 = vpop.f32.mrb[0].mxu0
      %v7058 = vpop.f32.mrb[0].mxu0
      %v7059 = vadd.f32 %v6833, %v7058
      %v7060 = vpop.f32.mrb[0].mxu0
      %7061 = vdwg.mxu0
      %7062 = vmatprep.subr.bf16.mxu0 0
      %7063 = vmatpush1.bf16.msra.mxu0 %v6951
      %7064 = vmatprep.subr.bf16.mxu0 0
      %7065 = vmatpush1.bf16.msra.mxu0 %v6952
      %7066 = vmatprep.subr.bf16.mxu0 0
      %7067 = vmatpush1.bf16.msra.mxu0 %v6953
      %7068 = vmatprep.subr.bf16.mxu0 0
      %7069 = vmatpush1.bf16.msra.mxu0 %v6954
      %7070 = vmatprep.subr.bf16.mxu0 0
      %7071 = vmatpush1.bf16.msra.mxu0 %v6955
      %7072 = vmatprep.subr.bf16.mxu0 0
      %7073 = vmatpush1.bf16.msra.mxu0 %v6956
      %7074 = vmatprep.subr.bf16.mxu0 0
      %7075 = vmatpush1.bf16.msra.mxu0 %v6957
      %7076 = vmatprep.subr.bf16.mxu0 0
      %7077 = vmatpush1.bf16.msra.mxu0 %v6958
      %7078 = vmatprep.subr.bf16.mxu0 0
      %7079 = vmatpush1.bf16.msra.mxu0 %v6959
      %7080 = vmatprep.subr.bf16.mxu0 0
      %7081 = vmatpush1.bf16.msra.mxu0 0
      %7082 = vmatprep.subr.bf16.mxu0 0
      %7083 = vmatpush1.bf16.msra.mxu0 0
      %7084 = vmatprep.subr.bf16.mxu0 0
      %7085 = vmatpush1.bf16.msra.mxu0 0
      %7086 = vmatprep.subr.bf16.mxu0 0
      %7087 = vmatpush1.bf16.msra.mxu0 0
      %7088 = vmatprep.subr.bf16.mxu0 0
      %7089 = vmatpush1.bf16.msra.mxu0 0
      %7090 = vmatprep.subr.bf16.mxu0 0
      %7091 = vmatpush1.bf16.msra.mxu0 0
      %7092 = vmatprep.subr.bf16.mxu0 0
      %7093 = vmatpush1.bf16.msra.mxu0 0
      %7094 = vmatprep.mubr.bf16.mxu0 %v6986
      %7095 = vmatmul.mubr.bf16.gmra.mrb[0].mxu0 %v6764
      %v7096 = vpop.f32.mrb[0].mxu0
      %v7097 = vadd.f32 %v7032, %v7096
      %v7098 = vpop.f32.mrb[0].mxu0
      %v7099 = vpop.f32.mrb[0].mxu0
      %v7100 = vadd.f32 %v7035, %v7099
      %v7101 = vpop.f32.mrb[0].mxu0
      %7102 = vmatprep.mubr.bf16.mxu0 %v6989
      %7103 = vmatmul.mubr.bf16.gmra.mrb[0].mxu0 %v6768
      %v7104 = vpop.f32.mrb[0].mxu0
      %v7105 = vadd.f32 %v7040, %v7104
      %v7106 = vpop.f32.mrb[0].mxu0
      %v7107 = vpop.f32.mrb[0].mxu0
      %v7108 = vadd.f32 %v7043, %v7107
      %v7109 = vpop.f32.mrb[0].mxu0
      %7110 = vmatprep.mubr.bf16.mxu0 %v6992
      %7111 = vmatmul.mubr.bf16.gmra.mrb[0].mxu0 %v6772
      %v7112 = vpop.f32.mrb[0].mxu0
      %v7113 = vadd.f32 %v7048, %v7112
      %v7114 = vpop.f32.mrb[0].mxu0
      %v7115 = vpop.f32.mrb[0].mxu0
      %v7116 = vadd.f32 %v7051, %v7115
      %v7117 = vpop.f32.mrb[0].mxu0
      %7118 = vmatprep.mubr.bf16.mxu0 %v6995
      %7119 = vmatmul.mubr.bf16.gmra.mrb[0].mxu0 %v6776
      %v7120 = vpop.f32.mrb[0].mxu0
      %v7121 = vadd.f32 %v7056, %v7120
      %v7122 = vpop.f32.mrb[0].mxu0
      %v7123 = vpop.f32.mrb[0].mxu0
      %v7124 = vadd.f32 %v7059, %v7123
      %v7125 = vpop.f32.mrb[0].mxu0
      %7126 = vdwg.mxu0
      %v7127 = vmax.f32 %v7097, 0.0
      %v7128 = vmax.f32 %v7100, 0.0
      %v7129 = vmax.f32 %v7105, 0.0
      %v7130 = vmax.f32 %v7108, 0.0
      %v7131 = vmax.f32 %v7113, 0.0
      %v7132 = vmax.f32 %v7116, 0.0
      %v7133 = vmax.f32 %v7121, 0.0
      %v7134 = vmax.f32 %v7124, 0.0
      %v7135 = vand.u32 2147483647, %v7097
      %v7136 = vand.u32 2147483647, %v7100
      %v7137 = vand.u32 2147483647, %v7105
      %v7138 = vand.u32 2147483647, %v7108
      %v7139 = vand.u32 2147483647, %v7113
      %v7140 = vand.u32 2147483647, %v7116
      %v7141 = vand.u32 2147483647, %v7121
      %v7142 = vand.u32 2147483647, %v7124
      %v7143 = vsub.f32 0.0, %v7135
      %v7144 = vsub.f32 0.0, %v7136
      %v7145 = vsub.f32 0.0, %v7137
      %v7146 = vsub.f32 0.0, %v7138
      %v7147 = vsub.f32 0.0, %v7139
      %v7148 = vsub.f32 0.0, %v7140
      %v7149 = vsub.f32 0.0, %v7141
      %v7150 = vsub.f32 0.0, %v7142
      %v7151 = vmul.f32 %v7143, 1.442695
      %v7152 = vpow.pop %v7151
      %v7153 = vmul.f32 %v7144, 1.442695
      %v7154 = vpow.pop %v7153
      %v7155 = vmul.f32 %v7145, 1.442695
      %v7156 = vpow.pop %v7155
      %v7157 = vmul.f32 %v7146, 1.442695
      %v7158 = vpow.pop %v7157
      %v7159 = vmul.f32 %v7147, 1.442695
      %v7160 = vpow.pop %v7159
      %v7161 = vmul.f32 %v7148, 1.442695
      %v7162 = vpow.pop %v7161
      %v7163 = vmul.f32 %v7149, 1.442695
      %v7164 = vpow.pop %v7163
      %v7165 = vmul.f32 %v7150, 1.442695
      %v7166 = vpow.pop %v7165
      %v7167 = vadd.f32 %v7152, 1.0
      %v7168 = vadd.f32 %v7154, 1.0
      %v7169 = vadd.f32 %v7156, 1.0
      %v7170 = vadd.f32 %v7158, 1.0
      %v7171 = vadd.f32 %v7160, 1.0
      %v7172 = vadd.f32 %v7162, 1.0
      %v7173 = vadd.f32 %v7164, 1.0
      %v7174 = vadd.f32 %v7166, 1.0
      %v7175 = vlog2.pop %v7167
      %v7176 = vmul.f32 %v7175, 0.6931472
      %v7177 = vlog2.pop %v7168
      %v7178 = vmul.f32 %v7177, 0.6931472
      %v7179 = vlog2.pop %v7169
      %v7180 = vmul.f32 %v7179, 0.6931472
      %v7181 = vlog2.pop %v7170
      %v7182 = vmul.f32 %v7181, 0.6931472
      %v7183 = vlog2.pop %v7171
      %v7184 = vmul.f32 %v7183, 0.6931472
      %v7185 = vlog2.pop %v7172
      %v7186 = vmul.f32 %v7185, 0.6931472
      %v7187 = vlog2.pop %v7173
      %v7188 = vmul.f32 %v7187, 0.6931472
      %v7189 = vlog2.pop %v7174
      %v7190 = vmul.f32 %v7189, 0.6931472
      %v7191 = vadd.f32 %v7127, %v7176
      %v7192 = vadd.f32 %v7128, %v7178
      %v7193 = vadd.f32 %v7129, %v7180
      %v7194 = vadd.f32 %v7130, %v7182
      %v7195 = vadd.f32 %v7131, %v7184
      %v7196 = vadd.f32 %v7132, %v7186
      %v7197 = vadd.f32 %v7133, %v7188
      %v7198 = vadd.f32 %v7134, %v7190
      %v7199 = vld [vmem:[%s725] sm:$0xff]
      %v7200 = vld [vmem:[%s725 + $0x8] sm:$0xff]
      %v7201 = vld [vmem:[%s725 + $0x10] sm:$0xff]
      %v7202 = vld [vmem:[%s725 + $0x18] sm:$0xff]
      %v7203 = vld [vmem:[%s725 + $0x20] sm:$0xff]
      %v7204 = vld [vmem:[%s725 + $0x28] sm:$0xff]
      %v7205 = vld [vmem:[%s725 + $0x30] sm:$0xff]
      %v7206 = vld [vmem:[%s725 + $0x38] sm:$0xff]
      %7215 = vrot.lane.b32.xlu0 %v7199, 8
      %v7216 = vpop.permute.xlu0 %7215
      %7217 = vrot.lane.b32.xlu0 %v7200, 8
      %v7218 = vpop.permute.xlu0 %7217
      %7219 = vrot.lane.b32.xlu0 %v7201, 8
      %v7220 = vpop.permute.xlu0 %7219
      %7221 = vrot.lane.b32.xlu0 %v7202, 8
      %v7222 = vpop.permute.xlu0 %7221
      %7223 = vrot.lane.b32.xlu0 %v7203, 8
      %v7224 = vpop.permute.xlu0 %7223
      %7225 = vrot.lane.b32.xlu0 %v7204, 8
      %v7226 = vpop.permute.xlu0 %7225
      %7227 = vrot.lane.b32.xlu0 %v7205, 8
      %v7228 = vpop.permute.xlu0 %7227
      %7229 = vrot.lane.b32.xlu0 %v7206, 8
      %v7230 = vpop.permute.xlu0 %7229
      %v7239 = vmul.f32 %v7191, %v7216
      %v7240 = vmul.f32 %v7192, %v7218
      %v7241 = vmul.f32 %v7193, %v7220
      %v7242 = vmul.f32 %v7194, %v7222
      %v7243 = vmul.f32 %v7195, %v7224
      %v7244 = vmul.f32 %v7196, %v7226
      %v7245 = vmul.f32 %v7197, %v7228
      %v7246 = vmul.f32 %v7198, %v7230
      %7255 = vrot.lane.b32.xlu0 %v7239, 120
      %v7256 = vpop.permute.xlu0 %7255
      %7257 = vrot.lane.b32.xlu0 %v7240, 120
      %v7258 = vpop.permute.xlu0 %7257
      %7259 = vrot.lane.b32.xlu0 %v7241, 120
      %v7260 = vpop.permute.xlu0 %7259
      %7261 = vrot.lane.b32.xlu0 %v7242, 120
      %v7262 = vpop.permute.xlu0 %7261
      %7263 = vrot.lane.b32.xlu0 %v7243, 120
      %v7264 = vpop.permute.xlu0 %7263
      %7265 = vrot.lane.b32.xlu0 %v7244, 120
      %v7266 = vpop.permute.xlu0 %7265
      %7267 = vrot.lane.b32.xlu0 %v7245, 120
      %v7268 = vpop.permute.xlu0 %7267
      %7269 = vrot.lane.b32.xlu0 %v7246, 120
      %v7270 = vpop.permute.xlu0 %7269
      %v7279 = vadd.f32 %v7097, %v7256
      %v7280 = vadd.f32 %v7100, %v7258
      %v7281 = vadd.f32 %v7105, %v7260
      %v7282 = vadd.f32 %v7108, %v7262
      %v7283 = vadd.f32 %v7113, %v7264
      %v7284 = vadd.f32 %v7116, %v7266
      %v7285 = vadd.f32 %v7121, %v7268
      %v7286 = vadd.f32 %v7124, %v7270
      %v7287 = vmul.f32 %v7279, %v5887
      %v7288 = vmul.f32 %v7280, %v5892
      %v7289 = vmul.f32 %v7281, %v5897
      %v7290 = vmul.f32 %v7282, %v5902
      %v7291 = vmul.f32 %v7283, %v5907
      %v7292 = vmul.f32 %v7284, %v5912
      %v7293 = vmul.f32 %v7285, %v5917
      %v7294 = vmul.f32 %v7286, %v5922
      %vm7295 = vcmask 64512
      %7296 = vst.msk [vmem:[#allocation5 + $0x18] sm:$0xff] %vm7295, %v7287
      %7297 = vst.msk [vmem:[#allocation5 + $0x20] sm:$0xff] %vm7295, %v7288
      %7298 = vst.msk [vmem:[#allocation5 + $0x28] sm:$0xff] %vm7295, %v7289
      %7299 = vst.msk [vmem:[#allocation5 + $0x30] sm:$0xff] %vm7295, %v7290
      %7300 = vst.msk [vmem:[#allocation5 + $0x38] sm:$0xff] %vm7295, %v7291
      %7301 = vst.msk [vmem:[#allocation5 + $0x40] sm:$0xff] %vm7295, %v7292
      %7302 = vst.msk [vmem:[#allocation5 + $0x48] sm:$0xff] %vm7295, %v7293
      %7303 = vst.msk [vmem:[#allocation5 + $0x50] sm:$0xff] %vm7295, %v7294
      %v7304 = vld [vmem:[#allocation3 + $0xf] sm:$0xff]
      %v7305 = vld [vmem:[#allocation3 + $0x17] sm:$0xff]
      %v7306 = vld [vmem:[#allocation3 + $0x1f] sm:$0xff]
      %v7307 = vld [vmem:[#allocation3 + $0x27] sm:$0xff]
      %v7308 = vld [vmem:[#allocation3 + $0x2f] sm:$0xff]
      %v7309 = vld [vmem:[#allocation3 + $0x37] sm:$0xff]
      %v7310 = vld [vmem:[#allocation3 + $0x3f] sm:$0xff]
      %v7311 = vld [vmem:[#allocation3 + $0x47] sm:$0xff]
      %v7312 = vld [vmem:[#allocation5 + $0xf] sm:$0xff]
      %v7313 = vld [vmem:[#allocation5 + $0x17] sm:$0xff]
      %v7314 = vld [vmem:[#allocation5 + $0x1f] sm:$0xff]
      %v7315 = vld [vmem:[#allocation5 + $0x27] sm:$0xff]
      %v7316 = vld [vmem:[#allocation5 + $0x2f] sm:$0xff]
      %v7317 = vld [vmem:[#allocation5 + $0x37] sm:$0xff]
      %v7318 = vld [vmem:[#allocation5 + $0x3f] sm:$0xff]
      %v7319 = vld [vmem:[#allocation5 + $0x47] sm:$0xff]
      %v7320 = vld [vmem:[%s716 + $0xf] sm:$0xff]
      %v7321 = vld [vmem:[%s716 + $0x17] sm:$0xff]
      %v7322 = vld [vmem:[%s716 + $0x1f] sm:$0xff]
      %v7323 = vld [vmem:[%s716 + $0x27] sm:$0xff]
      %v7324 = vld [vmem:[%s716 + $0x2f] sm:$0xff]
      %v7325 = vld [vmem:[%s716 + $0x37] sm:$0xff]
      %v7326 = vld [vmem:[%s716 + $0x3f] sm:$0xff]
      %v7327 = vld [vmem:[%s716 + $0x47] sm:$0xff]
      %v7328 = vld [vmem:[#allocation3 + $0x10] sm:$0xff]
      %v7329 = vld [vmem:[#allocation3 + $0x18] sm:$0xff]
      %v7330 = vld [vmem:[#allocation3 + $0x20] sm:$0xff]
      %v7331 = vld [vmem:[#allocation3 + $0x28] sm:$0xff]
      %v7332 = vld [vmem:[#allocation3 + $0x30] sm:$0xff]
      %v7333 = vld [vmem:[#allocation3 + $0x38] sm:$0xff]
      %v7334 = vld [vmem:[#allocation3 + $0x40] sm:$0xff]
      %v7335 = vld [vmem:[#allocation3 + $0x48] sm:$0xff]
      %v7336 = vld [vmem:[#allocation5 + $0x10] sm:$0xff]
      %v7337 = vld [vmem:[#allocation5 + $0x18] sm:$0xff]
      %v7338 = vld [vmem:[#allocation5 + $0x20] sm:$0xff]
      %v7339 = vld [vmem:[#allocation5 + $0x28] sm:$0xff]
      %v7340 = vld [vmem:[#allocation5 + $0x30] sm:$0xff]
      %v7341 = vld [vmem:[#allocation5 + $0x38] sm:$0xff]
      %v7342 = vld [vmem:[#allocation5 + $0x40] sm:$0xff]
      %v7343 = vld [vmem:[#allocation5 + $0x48] sm:$0xff]
      %v7344 = vld [vmem:[%s716 + $0x10] sm:$0xff]
      %v7345 = vld [vmem:[%s716 + $0x18] sm:$0xff]
      %v7346 = vld [vmem:[%s716 + $0x20] sm:$0xff]
      %v7347 = vld [vmem:[%s716 + $0x28] sm:$0xff]
      %v7348 = vld [vmem:[%s716 + $0x30] sm:$0xff]
      %v7349 = vld [vmem:[%s716 + $0x38] sm:$0xff]
      %v7350 = vld [vmem:[%s716 + $0x40] sm:$0xff]
      %v7351 = vld [vmem:[%s716 + $0x48] sm:$0xff]
      %v7352 = vld [vmem:[#allocation3 + $0x11] sm:$0xff]
      %v7353 = vld [vmem:[#allocation3 + $0x19] sm:$0xff]
      %v7354 = vld [vmem:[#allocation3 + $0x21] sm:$0xff]
      %v7355 = vld [vmem:[#allocation3 + $0x29] sm:$0xff]
      %v7356 = vld [vmem:[#allocation3 + $0x31] sm:$0xff]
      %v7357 = vld [vmem:[#allocation3 + $0x39] sm:$0xff]
      %v7358 = vld [vmem:[#allocation3 + $0x41] sm:$0xff]
      %v7359 = vld [vmem:[#allocation3 + $0x49] sm:$0xff]
      %v7360 = vld [vmem:[#allocation5 + $0x11] sm:$0xff]
      %v7361 = vld [vmem:[#allocation5 + $0x19] sm:$0xff]
      %v7362 = vld [vmem:[#allocation5 + $0x21] sm:$0xff]
      %v7363 = vld [vmem:[#allocation5 + $0x29] sm:$0xff]
      %v7364 = vld [vmem:[#allocation5 + $0x31] sm:$0xff]
      %v7365 = vld [vmem:[#allocation5 + $0x39] sm:$0xff]
      %v7366 = vld [vmem:[#allocation5 + $0x41] sm:$0xff]
      %v7367 = vld [vmem:[#allocation5 + $0x49] sm:$0xff]
      %v7368 = vld [vmem:[%s716 + $0x11] sm:$0xff]
      %v7369 = vld [vmem:[%s716 + $0x19] sm:$0xff]
      %v7370 = vld [vmem:[%s716 + $0x21] sm:$0xff]
      %v7371 = vld [vmem:[%s716 + $0x29] sm:$0xff]
      %v7372 = vld [vmem:[%s716 + $0x31] sm:$0xff]
      %v7373 = vld [vmem:[%s716 + $0x39] sm:$0xff]
      %v7374 = vld [vmem:[%s716 + $0x41] sm:$0xff]
      %v7375 = vld [vmem:[%s716 + $0x49] sm:$0xff]
      %v7376 = vld [vmem:[#allocation3 + $0x4f] sm:$0xff]
      %v7377 = vld [vmem:[#allocation5 + $0x4f] sm:$0xff]
      %v7378 = vld [vmem:[%s716 + $0x4f] sm:$0xff]
      %v7379 = vld [vmem:[#allocation3 + $0x50] sm:$0xff]
      %v7380 = vld [vmem:[#allocation5 + $0x50] sm:$0xff]
      %v7381 = vld [vmem:[%s716 + $0x50] sm:$0xff]
      %v7382 = vld [vmem:[#allocation3 + $0x51] sm:$0xff]
      %v7383 = vld [vmem:[#allocation5 + $0x51] sm:$0xff]
      %v7384 = vld [vmem:[%s716 + $0x51] sm:$0xff]
      %v7385 = vld [vmem:[#allocation3 + $0x57] sm:$0xff]
      %v7386 = vld [vmem:[#allocation5 + $0x57] sm:$0xff]
      %v7387 = vld [vmem:[%s716 + $0x57] sm:$0xff]
      %v7388 = vld [vmem:[#allocation3 + $0x58] sm:$0xff]
      %v7389 = vld [vmem:[#allocation5 + $0x58] sm:$0xff]
      %v7390 = vld [vmem:[%s716 + $0x58] sm:$0xff]
      %v7391 = vld [vmem:[#allocation3 + $0x59] sm:$0xff]
      %v7392 = vld [vmem:[#allocation5 + $0x59] sm:$0xff]
      %v7393 = vld [vmem:[%s716 + $0x59] sm:$0xff]
      %7402 = vrot.lane.b32.xlu0 %v7312, 16
      %v7403 = vpop.permute.xlu0 %7402
      %7404 = vrot.lane.b32.xlu0 %v7313, 16
      %v7405 = vpop.permute.xlu0 %7404
      %7406 = vrot.lane.b32.xlu0 %v7314, 16
      %v7407 = vpop.permute.xlu0 %7406
      %7408 = vrot.lane.b32.xlu0 %v7315, 16
      %v7409 = vpop.permute.xlu0 %7408
      %7410 = vrot.lane.b32.xlu0 %v7316, 16
      %v7411 = vpop.permute.xlu0 %7410
      %7412 = vrot.lane.b32.xlu0 %v7317, 16
      %v7413 = vpop.permute.xlu0 %7412
      %7414 = vrot.lane.b32.xlu0 %v7318, 16
      %v7415 = vpop.permute.xlu0 %7414
      %7416 = vrot.lane.b32.xlu0 %v7319, 16
      %v7417 = vpop.permute.xlu0 %7416
      %7434 = vrot.lane.b32.xlu0 %v7320, 24
      %v7435 = vpop.permute.xlu0 %7434
      %7436 = vrot.lane.b32.xlu0 %v7321, 24
      %v7437 = vpop.permute.xlu0 %7436
      %7438 = vrot.lane.b32.xlu0 %v7322, 24
      %v7439 = vpop.permute.xlu0 %7438
      %7440 = vrot.lane.b32.xlu0 %v7323, 24
      %v7441 = vpop.permute.xlu0 %7440
      %7442 = vrot.lane.b32.xlu0 %v7324, 24
      %v7443 = vpop.permute.xlu0 %7442
      %7444 = vrot.lane.b32.xlu0 %v7325, 24
      %v7445 = vpop.permute.xlu0 %7444
      %7446 = vrot.lane.b32.xlu0 %v7326, 24
      %v7447 = vpop.permute.xlu0 %7446
      %7448 = vrot.lane.b32.xlu0 %v7327, 24
      %v7449 = vpop.permute.xlu0 %7448
      %7466 = vrot.lane.b32.xlu0 %v7328, 32
      %v7467 = vpop.permute.xlu0 %7466
      %7468 = vrot.lane.b32.xlu0 %v7329, 32
      %v7469 = vpop.permute.xlu0 %7468
      %7470 = vrot.lane.b32.xlu0 %v7330, 32
      %v7471 = vpop.permute.xlu0 %7470
      %7472 = vrot.lane.b32.xlu0 %v7331, 32
      %v7473 = vpop.permute.xlu0 %7472
      %7474 = vrot.lane.b32.xlu0 %v7332, 32
      %v7475 = vpop.permute.xlu0 %7474
      %7476 = vrot.lane.b32.xlu0 %v7333, 32
      %v7477 = vpop.permute.xlu0 %7476
      %7478 = vrot.lane.b32.xlu0 %v7334, 32
      %v7479 = vpop.permute.xlu0 %7478
      %7480 = vrot.lane.b32.xlu0 %v7335, 32
      %v7481 = vpop.permute.xlu0 %7480
      %7498 = vrot.lane.b32.xlu0 %v7336, 48
      %v7499 = vpop.permute.xlu0 %7498
      %7500 = vrot.lane.b32.xlu0 %v7337, 48
      %v7501 = vpop.permute.xlu0 %7500
      %7502 = vrot.lane.b32.xlu0 %v7338, 48
      %v7503 = vpop.permute.xlu0 %7502
      %7504 = vrot.lane.b32.xlu0 %v7339, 48
      %v7505 = vpop.permute.xlu0 %7504
      %7506 = vrot.lane.b32.xlu0 %v7340, 48
      %v7507 = vpop.permute.xlu0 %7506
      %7508 = vrot.lane.b32.xlu0 %v7341, 48
      %v7509 = vpop.permute.xlu0 %7508
      %7510 = vrot.lane.b32.xlu0 %v7342, 48
      %v7511 = vpop.permute.xlu0 %7510
      %7512 = vrot.lane.b32.xlu0 %v7343, 48
      %v7513 = vpop.permute.xlu0 %7512
      %7530 = vrot.lane.b32.xlu0 %v7344, 56
      %v7531 = vpop.permute.xlu0 %7530
      %7532 = vrot.lane.b32.xlu0 %v7345, 56
      %v7533 = vpop.permute.xlu0 %7532
      %7534 = vrot.lane.b32.xlu0 %v7346, 56
      %v7535 = vpop.permute.xlu0 %7534
      %7536 = vrot.lane.b32.xlu0 %v7347, 56
      %v7537 = vpop.permute.xlu0 %7536
      %7538 = vrot.lane.b32.xlu0 %v7348, 56
      %v7539 = vpop.permute.xlu0 %7538
      %7540 = vrot.lane.b32.xlu0 %v7349, 56
      %v7541 = vpop.permute.xlu0 %7540
      %7542 = vrot.lane.b32.xlu0 %v7350, 56
      %v7543 = vpop.permute.xlu0 %7542
      %7544 = vrot.lane.b32.xlu0 %v7351, 56
      %v7545 = vpop.permute.xlu0 %7544
      %7562 = vrot.lane.b32.xlu0 %v7352, 64
      %v7563 = vpop.permute.xlu0 %7562
      %7564 = vrot.lane.b32.xlu0 %v7353, 64
      %v7565 = vpop.permute.xlu0 %7564
      %7566 = vrot.lane.b32.xlu0 %v7354, 64
      %v7567 = vpop.permute.xlu0 %7566
      %7568 = vrot.lane.b32.xlu0 %v7355, 64
      %v7569 = vpop.permute.xlu0 %7568
      %7570 = vrot.lane.b32.xlu0 %v7356, 64
      %v7571 = vpop.permute.xlu0 %7570
      %7572 = vrot.lane.b32.xlu0 %v7357, 64
      %v7573 = vpop.permute.xlu0 %7572
      %7574 = vrot.lane.b32.xlu0 %v7358, 64
      %v7575 = vpop.permute.xlu0 %7574
      %7576 = vrot.lane.b32.xlu0 %v7359, 64
      %v7577 = vpop.permute.xlu0 %7576
      %7594 = vrot.lane.b32.xlu0 %v7360, 80
      %v7595 = vpop.permute.xlu0 %7594
      %7596 = vrot.lane.b32.xlu0 %v7361, 80
      %v7597 = vpop.permute.xlu0 %7596
      %7598 = vrot.lane.b32.xlu0 %v7362, 80
      %v7599 = vpop.permute.xlu0 %7598
      %7600 = vrot.lane.b32.xlu0 %v7363, 80
      %v7601 = vpop.permute.xlu0 %7600
      %7602 = vrot.lane.b32.xlu0 %v7364, 80
      %v7603 = vpop.permute.xlu0 %7602
      %7604 = vrot.lane.b32.xlu0 %v7365, 80
      %v7605 = vpop.permute.xlu0 %7604
      %7606 = vrot.lane.b32.xlu0 %v7366, 80
      %v7607 = vpop.permute.xlu0 %7606
      %7608 = vrot.lane.b32.xlu0 %v7367, 80
      %v7609 = vpop.permute.xlu0 %7608
      %7626 = vrot.lane.b32.xlu0 %v7368, 88
      %v7627 = vpop.permute.xlu0 %7626
      %7628 = vrot.lane.b32.xlu0 %v7369, 88
      %v7629 = vpop.permute.xlu0 %7628
      %7630 = vrot.lane.b32.xlu0 %v7370, 88
      %v7631 = vpop.permute.xlu0 %7630
      %7632 = vrot.lane.b32.xlu0 %v7371, 88
      %v7633 = vpop.permute.xlu0 %7632
      %7634 = vrot.lane.b32.xlu0 %v7372, 88
      %v7635 = vpop.permute.xlu0 %7634
      %7636 = vrot.lane.b32.xlu0 %v7373, 88
      %v7637 = vpop.permute.xlu0 %7636
      %7638 = vrot.lane.b32.xlu0 %v7374, 88
      %v7639 = vpop.permute.xlu0 %7638
      %7640 = vrot.lane.b32.xlu0 %v7375, 88
      %v7641 = vpop.permute.xlu0 %7640
      %7658 = vrot.lane.b32.xlu0 %v7305, 96
      %v7659 = vpop.permute.xlu0 %7658
      %7660 = vrot.lane.b32.xlu0 %v7306, 96
      %v7661 = vpop.permute.xlu0 %7660
      %7662 = vrot.lane.b32.xlu0 %v7307, 96
      %v7663 = vpop.permute.xlu0 %7662
      %7664 = vrot.lane.b32.xlu0 %v7308, 96
      %v7665 = vpop.permute.xlu0 %7664
      %7666 = vrot.lane.b32.xlu0 %v7309, 96
      %v7667 = vpop.permute.xlu0 %7666
      %7668 = vrot.lane.b32.xlu0 %v7310, 96
      %v7669 = vpop.permute.xlu0 %7668
      %7670 = vrot.lane.b32.xlu0 %v7311, 96
      %v7671 = vpop.permute.xlu0 %7670
      %7672 = vrot.lane.b32.xlu0 %v7376, 96
      %v7673 = vpop.permute.xlu0 %7672
      %7683 = vrot.lane.b32.xlu0 %v7313, 112
      %v7684 = vpop.permute.xlu0 %7683
      %7685 = vrot.lane.b32.xlu0 %v7314, 112
      %v7686 = vpop.permute.xlu0 %7685
      %7687 = vrot.lane.b32.xlu0 %v7315, 112
      %v7688 = vpop.permute.xlu0 %7687
      %7689 = vrot.lane.b32.xlu0 %v7316, 112
      %v7690 = vpop.permute.xlu0 %7689
      %7691 = vrot.lane.b32.xlu0 %v7317, 112
      %v7692 = vpop.permute.xlu0 %7691
      %7693 = vrot.lane.b32.xlu0 %v7318, 112
      %v7694 = vpop.permute.xlu0 %7693
      %7695 = vrot.lane.b32.xlu0 %v7319, 112
      %v7696 = vpop.permute.xlu0 %7695
      %7697 = vrot.lane.b32.xlu0 %v7377, 112
      %v7698 = vpop.permute.xlu0 %7697
      %7708 = vrot.lane.b32.xlu0 %v7321, 120
      %v7709 = vpop.permute.xlu0 %7708
      %7710 = vrot.lane.b32.xlu0 %v7322, 120
      %v7711 = vpop.permute.xlu0 %7710
      %7712 = vrot.lane.b32.xlu0 %v7323, 120
      %v7713 = vpop.permute.xlu0 %7712
      %7714 = vrot.lane.b32.xlu0 %v7324, 120
      %v7715 = vpop.permute.xlu0 %7714
      %7716 = vrot.lane.b32.xlu0 %v7325, 120
      %v7717 = vpop.permute.xlu0 %7716
      %7718 = vrot.lane.b32.xlu0 %v7326, 120
      %v7719 = vpop.permute.xlu0 %7718
      %7720 = vrot.lane.b32.xlu0 %v7327, 120
      %v7721 = vpop.permute.xlu0 %7720
      %7722 = vrot.lane.b32.xlu0 %v7378, 120
      %v7723 = vpop.permute.xlu0 %7722
      %7733 = vrot.lane.b32.xlu0 %v7337, 16
      %v7734 = vpop.permute.xlu0 %7733
      %7735 = vrot.lane.b32.xlu0 %v7338, 16
      %v7736 = vpop.permute.xlu0 %7735
      %7737 = vrot.lane.b32.xlu0 %v7339, 16
      %v7738 = vpop.permute.xlu0 %7737
      %7739 = vrot.lane.b32.xlu0 %v7340, 16
      %v7740 = vpop.permute.xlu0 %7739
      %7741 = vrot.lane.b32.xlu0 %v7341, 16
      %v7742 = vpop.permute.xlu0 %7741
      %7743 = vrot.lane.b32.xlu0 %v7342, 16
      %v7744 = vpop.permute.xlu0 %7743
      %7745 = vrot.lane.b32.xlu0 %v7343, 16
      %v7746 = vpop.permute.xlu0 %7745
      %7747 = vrot.lane.b32.xlu0 %v7380, 16
      %v7748 = vpop.permute.xlu0 %7747
      %7758 = vrot.lane.b32.xlu0 %v7345, 24
      %v7759 = vpop.permute.xlu0 %7758
      %7760 = vrot.lane.b32.xlu0 %v7346, 24
      %v7761 = vpop.permute.xlu0 %7760
      %7762 = vrot.lane.b32.xlu0 %v7347, 24
      %v7763 = vpop.permute.xlu0 %7762
      %7764 = vrot.lane.b32.xlu0 %v7348, 24
      %v7765 = vpop.permute.xlu0 %7764
      %7766 = vrot.lane.b32.xlu0 %v7349, 24
      %v7767 = vpop.permute.xlu0 %7766
      %7768 = vrot.lane.b32.xlu0 %v7350, 24
      %v7769 = vpop.permute.xlu0 %7768
      %7770 = vrot.lane.b32.xlu0 %v7351, 24
      %v7771 = vpop.permute.xlu0 %7770
      %7772 = vrot.lane.b32.xlu0 %v7381, 24
      %v7773 = vpop.permute.xlu0 %7772
      %7783 = vrot.lane.b32.xlu0 %v7353, 32
      %v7784 = vpop.permute.xlu0 %7783
      %7785 = vrot.lane.b32.xlu0 %v7354, 32
      %v7786 = vpop.permute.xlu0 %7785
      %7787 = vrot.lane.b32.xlu0 %v7355, 32
      %v7788 = vpop.permute.xlu0 %7787
      %7789 = vrot.lane.b32.xlu0 %v7356, 32
      %v7790 = vpop.permute.xlu0 %7789
      %7791 = vrot.lane.b32.xlu0 %v7357, 32
      %v7792 = vpop.permute.xlu0 %7791
      %7793 = vrot.lane.b32.xlu0 %v7358, 32
      %v7794 = vpop.permute.xlu0 %7793
      %7795 = vrot.lane.b32.xlu0 %v7359, 32
      %v7796 = vpop.permute.xlu0 %7795
      %7797 = vrot.lane.b32.xlu0 %v7382, 32
      %v7798 = vpop.permute.xlu0 %7797
      %v7807 = vsel %vm1462, %v7304, %v7403
      %v7808 = vsel %vm1462, %v7305, %v7405
      %v7809 = vsel %vm1462, %v7306, %v7407
      %v7810 = vsel %vm1462, %v7307, %v7409
      %v7811 = vsel %vm1462, %v7308, %v7411
      %v7812 = vsel %vm1462, %v7309, %v7413
      %v7813 = vsel %vm1462, %v7310, %v7415
      %v7814 = vsel %vm1462, %v7311, %v7417
      %vm7815 = vcmask 195584
      %v7816 = vsel %vm7815, %v7807, %v7435
      %v7817 = vsel %vm7815, %v7808, %v7437
      %v7818 = vsel %vm7815, %v7809, %v7439
      %v7819 = vsel %vm7815, %v7810, %v7441
      %v7820 = vsel %vm7815, %v7811, %v7443
      %v7821 = vsel %vm7815, %v7812, %v7445
      %v7822 = vsel %vm7815, %v7813, %v7447
      %v7823 = vsel %vm7815, %v7814, %v7449
      %v7824 = vsel %vm1471, %v7816, %v7467
      %v7825 = vsel %vm1471, %v7817, %v7469
      %v7826 = vsel %vm1471, %v7818, %v7471
      %v7827 = vsel %vm1471, %v7819, %v7473
      %v7828 = vsel %vm1471, %v7820, %v7475
      %v7829 = vsel %vm1471, %v7821, %v7477
      %v7830 = vsel %vm1471, %v7822, %v7479
      %v7831 = vsel %vm1471, %v7823, %v7481
      %v7832 = vsel %vm1480, %v7824, %v7499
      %v7833 = vsel %vm1480, %v7825, %v7501
      %v7834 = vsel %vm1480, %v7826, %v7503
      %v7835 = vsel %vm1480, %v7827, %v7505
      %v7836 = vsel %vm1480, %v7828, %v7507
      %v7837 = vsel %vm1480, %v7829, %v7509
      %v7838 = vsel %vm1480, %v7830, %v7511
      %v7839 = vsel %vm1480, %v7831, %v7513
      %vm7840 = vcmask 457728
      %v7841 = vsel %vm7840, %v7832, %v7531
      %v7842 = vsel %vm7840, %v7833, %v7533
      %v7843 = vsel %vm7840, %v7834, %v7535
      %v7844 = vsel %vm7840, %v7835, %v7537
      %v7845 = vsel %vm7840, %v7836, %v7539
      %v7846 = vsel %vm7840, %v7837, %v7541
      %v7847 = vsel %vm7840, %v7838, %v7543
      %v7848 = vsel %vm7840, %v7839, %v7545
      %v7849 = vsel %vm1489, %v7841, %v7563
      %v7850 = vsel %vm1489, %v7842, %v7565
      %v7851 = vsel %vm1489, %v7843, %v7567
      %v7852 = vsel %vm1489, %v7844, %v7569
      %v7853 = vsel %vm1489, %v7845, %v7571
      %v7854 = vsel %vm1489, %v7846, %v7573
      %v7855 = vsel %vm1489, %v7847, %v7575
      %v7856 = vsel %vm1489, %v7848, %v7577
      %v7857 = vsel %vm1498, %v7849, %v7595
      %v7858 = vsel %vm1498, %v7850, %v7597
      %v7859 = vsel %vm1498, %v7851, %v7599
      %v7860 = vsel %vm1498, %v7852, %v7601
      %v7861 = vsel %vm1498, %v7853, %v7603
      %v7862 = vsel %vm1498, %v7854, %v7605
      %v7863 = vsel %vm1498, %v7855, %v7607
      %v7864 = vsel %vm1498, %v7856, %v7609
      %v7865 = vsel %vm3568, %v7857, %v7627
      %v7866 = vsel %vm3568, %v7858, %v7629
      %v7867 = vsel %vm3568, %v7859, %v7631
      %v7868 = vsel %vm3568, %v7860, %v7633
      %v7869 = vsel %vm3568, %v7861, %v7635
      %v7870 = vsel %vm3568, %v7862, %v7637
      %v7871 = vsel %vm3568, %v7863, %v7639
      %v7872 = vsel %vm3568, %v7864, %v7641
      %v7873 = vsel %vm1507, %v7865, %v7659
      %v7874 = vsel %vm1507, %v7866, %v7661
      %v7875 = vsel %vm1507, %v7867, %v7663
      %v7876 = vsel %vm1507, %v7868, %v7665
      %v7877 = vsel %vm1507, %v7869, %v7667
      %v7878 = vsel %vm1507, %v7870, %v7669
      %v7879 = vsel %vm1507, %v7871, %v7671
      %v7880 = vsel %vm1507, %v7872, %v7673
      %v7881 = vsel %vm1516, %v7873, %v7684
      %v7882 = vsel %vm1516, %v7874, %v7686
      %v7883 = vsel %vm1516, %v7875, %v7688
      %v7884 = vsel %vm1516, %v7876, %v7690
      %v7885 = vsel %vm1516, %v7877, %v7692
      %v7886 = vsel %vm1516, %v7878, %v7694
      %v7887 = vsel %vm1516, %v7879, %v7696
      %v7888 = vsel %vm1516, %v7880, %v7698
      %vm7889 = vcmask 982016
      %v7890 = vsel %vm7889, %v7881, %v7709
      %v7891 = vsel %vm7889, %v7882, %v7711
      %v7892 = vsel %vm7889, %v7883, %v7713
      %v7893 = vsel %vm7889, %v7884, %v7715
      %v7894 = vsel %vm7889, %v7885, %v7717
      %v7895 = vsel %vm7889, %v7886, %v7719
      %v7896 = vsel %vm7889, %v7887, %v7721
      %v7897 = vsel %vm7889, %v7888, %v7723
      %v7898 = vsel %vm1462, %v7329, %v7734
      %v7899 = vsel %vm1462, %v7330, %v7736
      %v7900 = vsel %vm1462, %v7331, %v7738
      %v7901 = vsel %vm1462, %v7332, %v7740
      %v7902 = vsel %vm1462, %v7333, %v7742
      %v7903 = vsel %vm1462, %v7334, %v7744
      %v7904 = vsel %vm1462, %v7335, %v7746
      %v7905 = vsel %vm1462, %v7379, %v7748
      %v7906 = vsel %vm7815, %v7898, %v7759
      %v7907 = vsel %vm7815, %v7899, %v7761
      %v7908 = vsel %vm7815, %v7900, %v7763
      %v7909 = vsel %vm7815, %v7901, %v7765
      %v7910 = vsel %vm7815, %v7902, %v7767
      %v7911 = vsel %vm7815, %v7903, %v7769
      %v7912 = vsel %vm7815, %v7904, %v7771
      %v7913 = vsel %vm7815, %v7905, %v7773
      %v7914 = vsel %vm1471, %v7906, %v7784
      %v7915 = vsel %vm1471, %v7907, %v7786
      %v7916 = vsel %vm1471, %v7908, %v7788
      %v7917 = vsel %vm1471, %v7909, %v7790
      %v7918 = vsel %vm1471, %v7910, %v7792
      %v7919 = vsel %vm1471, %v7911, %v7794
      %v7920 = vsel %vm1471, %v7912, %v7796
      %v7921 = vsel %vm1471, %v7913, %v7798
      %7923 = vrot.lane.b32.xlu0 %v7369, 8
      %v7924 = vpop.permute.xlu0 %7923
      %7925 = vrot.lane.b32.xlu0 %v7370, 8
      %v7926 = vpop.permute.xlu0 %7925
      %7927 = vrot.lane.b32.xlu0 %v7371, 8
      %v7928 = vpop.permute.xlu0 %7927
      %7929 = vrot.lane.b32.xlu0 %v7372, 8
      %v7930 = vpop.permute.xlu0 %7929
      %7931 = vrot.lane.b32.xlu0 %v7373, 8
      %v7932 = vpop.permute.xlu0 %7931
      %7933 = vrot.lane.b32.xlu0 %v7374, 8
      %v7934 = vpop.permute.xlu0 %7933
      %7935 = vrot.lane.b32.xlu0 %v7375, 8
      %v7936 = vpop.permute.xlu0 %7935
      %7937 = vrot.lane.b32.xlu0 %v7384, 8
      %v7938 = vpop.permute.xlu0 %7937
      %7948 = vrot.lane.b32.xlu0 %v7306, 16
      %v7949 = vpop.permute.xlu0 %7948
      %7950 = vrot.lane.b32.xlu0 %v7307, 16
      %v7951 = vpop.permute.xlu0 %7950
      %7952 = vrot.lane.b32.xlu0 %v7308, 16
      %v7953 = vpop.permute.xlu0 %7952
      %7954 = vrot.lane.b32.xlu0 %v7309, 16
      %v7955 = vpop.permute.xlu0 %7954
      %7956 = vrot.lane.b32.xlu0 %v7310, 16
      %v7957 = vpop.permute.xlu0 %7956
      %7958 = vrot.lane.b32.xlu0 %v7311, 16
      %v7959 = vpop.permute.xlu0 %7958
      %7960 = vrot.lane.b32.xlu0 %v7376, 16
      %v7961 = vpop.permute.xlu0 %7960
      %7962 = vrot.lane.b32.xlu0 %v7385, 16
      %v7963 = vpop.permute.xlu0 %7962
      %7973 = vrot.lane.b32.xlu0 %v7314, 32
      %v7974 = vpop.permute.xlu0 %7973
      %7975 = vrot.lane.b32.xlu0 %v7315, 32
      %v7976 = vpop.permute.xlu0 %7975
      %7977 = vrot.lane.b32.xlu0 %v7316, 32
      %v7978 = vpop.permute.xlu0 %7977
      %7979 = vrot.lane.b32.xlu0 %v7317, 32
      %v7980 = vpop.permute.xlu0 %7979
      %7981 = vrot.lane.b32.xlu0 %v7318, 32
      %v7982 = vpop.permute.xlu0 %7981
      %7983 = vrot.lane.b32.xlu0 %v7319, 32
      %v7984 = vpop.permute.xlu0 %7983
      %7985 = vrot.lane.b32.xlu0 %v7377, 32
      %v7986 = vpop.permute.xlu0 %7985
      %7987 = vrot.lane.b32.xlu0 %v7386, 32
      %v7988 = vpop.permute.xlu0 %7987
      %7998 = vrot.lane.b32.xlu0 %v7322, 40
      %v7999 = vpop.permute.xlu0 %7998
      %8000 = vrot.lane.b32.xlu0 %v7323, 40
      %v8001 = vpop.permute.xlu0 %8000
      %8002 = vrot.lane.b32.xlu0 %v7324, 40
      %v8003 = vpop.permute.xlu0 %8002
      %8004 = vrot.lane.b32.xlu0 %v7325, 40
      %v8005 = vpop.permute.xlu0 %8004
      %8006 = vrot.lane.b32.xlu0 %v7326, 40
      %v8007 = vpop.permute.xlu0 %8006
      %8008 = vrot.lane.b32.xlu0 %v7327, 40
      %v8009 = vpop.permute.xlu0 %8008
      %8010 = vrot.lane.b32.xlu0 %v7378, 40
      %v8011 = vpop.permute.xlu0 %8010
      %8012 = vrot.lane.b32.xlu0 %v7387, 40
      %v8013 = vpop.permute.xlu0 %8012
      %8024 = vrot.lane.b32.xlu0 %v7330, 48
      %v8025 = vpop.permute.xlu0 %8024
      %8026 = vrot.lane.b32.xlu0 %v7331, 48
      %v8027 = vpop.permute.xlu0 %8026
      %8028 = vrot.lane.b32.xlu0 %v7332, 48
      %v8029 = vpop.permute.xlu0 %8028
      %8030 = vrot.lane.b32.xlu0 %v7333, 48
      %v8031 = vpop.permute.xlu0 %8030
      %8032 = vrot.lane.b32.xlu0 %v7334, 48
      %v8033 = vpop.permute.xlu0 %8032
      %8034 = vrot.lane.b32.xlu0 %v7335, 48
      %v8035 = vpop.permute.xlu0 %8034
      %8036 = vrot.lane.b32.xlu0 %v7379, 48
      %v8037 = vpop.permute.xlu0 %8036
      %8038 = vrot.lane.b32.xlu0 %v7388, 48
      %v8039 = vpop.permute.xlu0 %8038
      %8049 = vrot.lane.b32.xlu0 %v7338, 64
      %v8050 = vpop.permute.xlu0 %8049
      %8051 = vrot.lane.b32.xlu0 %v7339, 64
      %v8052 = vpop.permute.xlu0 %8051
      %8053 = vrot.lane.b32.xlu0 %v7340, 64
      %v8054 = vpop.permute.xlu0 %8053
      %8055 = vrot.lane.b32.xlu0 %v7341, 64
      %v8056 = vpop.permute.xlu0 %8055
      %8057 = vrot.lane.b32.xlu0 %v7342, 64
      %v8058 = vpop.permute.xlu0 %8057
      %8059 = vrot.lane.b32.xlu0 %v7343, 64
      %v8060 = vpop.permute.xlu0 %8059
      %8061 = vrot.lane.b32.xlu0 %v7380, 64
      %v8062 = vpop.permute.xlu0 %8061
      %8063 = vrot.lane.b32.xlu0 %v7389, 64
      %v8064 = vpop.permute.xlu0 %8063
      %8074 = vrot.lane.b32.xlu0 %v7346, 72
      %v8075 = vpop.permute.xlu0 %8074
      %8076 = vrot.lane.b32.xlu0 %v7347, 72
      %v8077 = vpop.permute.xlu0 %8076
      %8078 = vrot.lane.b32.xlu0 %v7348, 72
      %v8079 = vpop.permute.xlu0 %8078
      %8080 = vrot.lane.b32.xlu0 %v7349, 72
      %v8081 = vpop.permute.xlu0 %8080
      %8082 = vrot.lane.b32.xlu0 %v7350, 72
      %v8083 = vpop.permute.xlu0 %8082
      %8084 = vrot.lane.b32.xlu0 %v7351, 72
      %v8085 = vpop.permute.xlu0 %8084
      %8086 = vrot.lane.b32.xlu0 %v7381, 72
      %v8087 = vpop.permute.xlu0 %8086
      %8088 = vrot.lane.b32.xlu0 %v7390, 72
      %v8089 = vpop.permute.xlu0 %8088
      %8099 = vrot.lane.b32.xlu0 %v7354, 80
      %v8100 = vpop.permute.xlu0 %8099
      %8101 = vrot.lane.b32.xlu0 %v7355, 80
      %v8102 = vpop.permute.xlu0 %8101
      %8103 = vrot.lane.b32.xlu0 %v7356, 80
      %v8104 = vpop.permute.xlu0 %8103
      %8105 = vrot.lane.b32.xlu0 %v7357, 80
      %v8106 = vpop.permute.xlu0 %8105
      %8107 = vrot.lane.b32.xlu0 %v7358, 80
      %v8108 = vpop.permute.xlu0 %8107
      %8109 = vrot.lane.b32.xlu0 %v7359, 80
      %v8110 = vpop.permute.xlu0 %8109
      %8111 = vrot.lane.b32.xlu0 %v7382, 80
      %v8112 = vpop.permute.xlu0 %8111
      %8113 = vrot.lane.b32.xlu0 %v7391, 80
      %v8114 = vpop.permute.xlu0 %8113
      %8125 = vrot.lane.b32.xlu0 %v7362, 96
      %v8126 = vpop.permute.xlu0 %8125
      %8127 = vrot.lane.b32.xlu0 %v7363, 96
      %v8128 = vpop.permute.xlu0 %8127
      %8129 = vrot.lane.b32.xlu0 %v7364, 96
      %v8130 = vpop.permute.xlu0 %8129
      %8131 = vrot.lane.b32.xlu0 %v7365, 96
      %v8132 = vpop.permute.xlu0 %8131
      %8133 = vrot.lane.b32.xlu0 %v7366, 96
      %v8134 = vpop.permute.xlu0 %8133
      %8135 = vrot.lane.b32.xlu0 %v7367, 96
      %v8136 = vpop.permute.xlu0 %8135
      %8137 = vrot.lane.b32.xlu0 %v7383, 96
      %v8138 = vpop.permute.xlu0 %8137
      %8139 = vrot.lane.b32.xlu0 %v7392, 96
      %v8140 = vpop.permute.xlu0 %8139
      %8150 = vrot.lane.b32.xlu0 %v7370, 104
      %v8151 = vpop.permute.xlu0 %8150
      %8152 = vrot.lane.b32.xlu0 %v7371, 104
      %v8153 = vpop.permute.xlu0 %8152
      %8154 = vrot.lane.b32.xlu0 %v7372, 104
      %v8155 = vpop.permute.xlu0 %8154
      %8156 = vrot.lane.b32.xlu0 %v7373, 104
      %v8157 = vpop.permute.xlu0 %8156
      %8158 = vrot.lane.b32.xlu0 %v7374, 104
      %v8159 = vpop.permute.xlu0 %8158
      %8160 = vrot.lane.b32.xlu0 %v7375, 104
      %v8161 = vpop.permute.xlu0 %8160
      %8162 = vrot.lane.b32.xlu0 %v7384, 104
      %v8163 = vpop.permute.xlu0 %8162
      %8164 = vrot.lane.b32.xlu0 %v7393, 104
      %v8165 = vpop.permute.xlu0 %8164
      %v8174 = vsel %vm7295, %v7361, %v7924
      %v8175 = vsel %vm7295, %v7362, %v7926
      %v8176 = vsel %vm7295, %v7363, %v7928
      %v8177 = vsel %vm7295, %v7364, %v7930
      %v8178 = vsel %vm7295, %v7365, %v7932
      %v8179 = vsel %vm7295, %v7366, %v7934
      %v8180 = vsel %vm7295, %v7367, %v7936
      %v8181 = vsel %vm7295, %v7383, %v7938
      %v8182 = vsel %vm1462, %v8174, %v7949
      %v8183 = vsel %vm1462, %v8175, %v7951
      %v8184 = vsel %vm1462, %v8176, %v7953
      %v8185 = vsel %vm1462, %v8177, %v7955
      %v8186 = vsel %vm1462, %v8178, %v7957
      %v8187 = vsel %vm1462, %v8179, %v7959
      %v8188 = vsel %vm1462, %v8180, %v7961
      %v8189 = vsel %vm1462, %v8181, %v7963
      %v8190 = vsel %vm1471, %v8182, %v7974
      %v8191 = vsel %vm1471, %v8183, %v7976
      %v8192 = vsel %vm1471, %v8184, %v7978
      %v8193 = vsel %vm1471, %v8185, %v7980
      %v8194 = vsel %vm1471, %v8186, %v7982
      %v8195 = vsel %vm1471, %v8187, %v7984
      %v8196 = vsel %vm1471, %v8188, %v7986
      %v8197 = vsel %vm1471, %v8189, %v7988
      %vm8198 = vcmask 326656
      %v8199 = vsel %vm8198, %v8190, %v7999
      %v8200 = vsel %vm8198, %v8191, %v8001
      %v8201 = vsel %vm8198, %v8192, %v8003
      %v8202 = vsel %vm8198, %v8193, %v8005
      %v8203 = vsel %vm8198, %v8194, %v8007
      %v8204 = vsel %vm8198, %v8195, %v8009
      %v8205 = vsel %vm8198, %v8196, %v8011
      %v8206 = vsel %vm8198, %v8197, %v8013
      %v8207 = vsel %vm1480, %v8199, %v8025
      %v8208 = vsel %vm1480, %v8200, %v8027
      %v8209 = vsel %vm1480, %v8201, %v8029
      %v8210 = vsel %vm1480, %v8202, %v8031
      %v8211 = vsel %vm1480, %v8203, %v8033
      %v8212 = vsel %vm1480, %v8204, %v8035
      %v8213 = vsel %vm1480, %v8205, %v8037
      %v8214 = vsel %vm1480, %v8206, %v8039
      %v8215 = vsel %vm1489, %v8207, %v8050
      %v8216 = vsel %vm1489, %v8208, %v8052
      %v8217 = vsel %vm1489, %v8209, %v8054
      %v8218 = vsel %vm1489, %v8210, %v8056
      %v8219 = vsel %vm1489, %v8211, %v8058
      %v8220 = vsel %vm1489, %v8212, %v8060
      %v8221 = vsel %vm1489, %v8213, %v8062
      %v8222 = vsel %vm1489, %v8214, %v8064
      %vm8223 = vcmask 588800
      %v8224 = vsel %vm8223, %v8215, %v8075
      %v8225 = vsel %vm8223, %v8216, %v8077
      %v8226 = vsel %vm8223, %v8217, %v8079
      %v8227 = vsel %vm8223, %v8218, %v8081
      %v8228 = vsel %vm8223, %v8219, %v8083
      %v8229 = vsel %vm8223, %v8220, %v8085
      %v8230 = vsel %vm8223, %v8221, %v8087
      %v8231 = vsel %vm8223, %v8222, %v8089
      %v8232 = vsel %vm1498, %v8224, %v8100
      %v8233 = vsel %vm1498, %v8225, %v8102
      %v8234 = vsel %vm1498, %v8226, %v8104
      %v8235 = vsel %vm1498, %v8227, %v8106
      %v8236 = vsel %vm1498, %v8228, %v8108
      %v8237 = vsel %vm1498, %v8229, %v8110
      %v8238 = vsel %vm1498, %v8230, %v8112
      %v8239 = vsel %vm1498, %v8231, %v8114
      %v8240 = vsel %vm1507, %v8232, %v8126
      %v8241 = vsel %vm1507, %v8233, %v8128
      %v8242 = vsel %vm1507, %v8234, %v8130
      %v8243 = vsel %vm1507, %v8235, %v8132
      %v8244 = vsel %vm1507, %v8236, %v8134
      %v8245 = vsel %vm1507, %v8237, %v8136
      %v8246 = vsel %vm1507, %v8238, %v8138
      %v8247 = vsel %vm1507, %v8239, %v8140
      %vm8248 = vcmask 850944
      %v8249 = vsel %vm8248, %v8240, %v8151
      %v8250 = vsel %vm8248, %v8241, %v8153
      %v8251 = vsel %vm8248, %v8242, %v8155
      %v8252 = vsel %vm8248, %v8243, %v8157
      %v8253 = vsel %vm8248, %v8244, %v8159
      %v8254 = vsel %vm8248, %v8245, %v8161
      %v8255 = vsel %vm8248, %v8246, %v8163
      %v8256 = vsel %vm8248, %v8247, %v8165
      %8265 = vrot.lane.b32.xlu0 %v8249, 48
      %v8266 = vpop.permute.xlu0 %8265
      %8267 = vrot.lane.b32.xlu0 %v8250, 48
      %v8268 = vpop.permute.xlu0 %8267
      %8269 = vrot.lane.b32.xlu0 %v8251, 48
      %v8270 = vpop.permute.xlu0 %8269
      %8271 = vrot.lane.b32.xlu0 %v8252, 48
      %v8272 = vpop.permute.xlu0 %8271
      %8273 = vrot.lane.b32.xlu0 %v8253, 48
      %v8274 = vpop.permute.xlu0 %8273
      %8275 = vrot.lane.b32.xlu0 %v8254, 48
      %v8276 = vpop.permute.xlu0 %8275
      %8277 = vrot.lane.b32.xlu0 %v8255, 48
      %v8278 = vpop.permute.xlu0 %8277
      %8279 = vrot.lane.b32.xlu0 %v8256, 48
      %v8280 = vpop.permute.xlu0 %8279
      %v8289 = vsel %vm1480, %v7914, %v8266
      %v8290 = vsel %vm1480, %v7915, %v8268
      %v8291 = vsel %vm1480, %v7916, %v8270
      %v8292 = vsel %vm1480, %v7917, %v8272
      %v8293 = vsel %vm1480, %v7918, %v8274
      %v8294 = vsel %vm1480, %v7919, %v8276
      %v8295 = vsel %vm1480, %v7920, %v8278
      %v8296 = vsel %vm1480, %v7921, %v8280
      %v8297 = vpack.c.bf16 %v7891, %v7890
      %v8298 = vpack.c.bf16 %v8290, %v8289
      %v8299 = vpack.c.bf16 %v8268, %v8266
      %v8300 = vpack.c.bf16 %v7893, %v7892
      %v8301 = vpack.c.bf16 %v8292, %v8291
      %v8302 = vpack.c.bf16 %v8272, %v8270
      %v8303 = vpack.c.bf16 %v7895, %v7894
      %v8304 = vpack.c.bf16 %v8294, %v8293
      %v8305 = vpack.c.bf16 %v8276, %v8274
      %v8306 = vpack.c.bf16 %v7897, %v7896
      %v8307 = vpack.c.bf16 %v8296, %v8295
      %v8308 = vpack.c.bf16 %v8280, %v8278
      %v8309 = vld [vmem:[%s13] sm:$0xf]
      %v8310 = vld [vmem:[%s13 + $0x4] sm:$0xf]
      %v8311 = vld [vmem:[%s13 + $0x8] sm:$0xf]
      %v8312 = vld [vmem:[%s13 + $0xc] sm:$0xf]
      %v8313 = vld [vmem:[%s13 + $0x10] sm:$0xf]
      %v8314 = vld [vmem:[%s13 + $0x14] sm:$0xf]
      %v8315 = vld [vmem:[%s13 + $0x18] sm:$0xf]
      %v8316 = vld [vmem:[%s13 + $0x1c] sm:$0xf]
      %v8317 = vld [vmem:[%s13 + $0x20] sm:$0xf]
      %v8318 = vld [vmem:[%s13 + $0x24] sm:$0xf]
      %v8319 = vld [vmem:[%s13 + $0x28] sm:$0xf]
      %v8320 = vld [vmem:[%s13 + $0x2c] sm:$0xf]
      %v8321 = vld [vmem:[%s13 + $0x30] sm:$0xf]
      %v8322 = vld [vmem:[%s13 + $0x34] sm:$0xf]
      %v8323 = vld [vmem:[%s13 + $0x38] sm:$0xf]
      %v8324 = vld [vmem:[%s13 + $0x3c] sm:$0xf]
      %v8325 = vld [vmem:[%s13 + $0x40] sm:$0xf]
      %v8326 = vld [vmem:[%s13 + $0x44] sm:$0xf]
      %v8327 = vld [vmem:[%s13 + $0x48] sm:$0xf]
      %v8328 = vld [vmem:[%s13 + $0x4c] sm:$0xf]
      %v8329 = vld [vmem:[%s13 + $0x50] sm:$0xf]
      %v8330 = vld [vmem:[%s13 + $0x54] sm:$0xf]
      %v8331 = vld [vmem:[%s13 + $0x58] sm:$0xf]
      %v8332 = vld [vmem:[%s13 + $0x5c] sm:$0xf]
      %v8333 = vld [vmem:[%s13 + $0x60] sm:$0xf]
      %v8334 = vld [vmem:[%s13 + $0x64] sm:$0xf]
      %v8335 = vld [vmem:[%s13 + $0x68] sm:$0xf]
      %v8336 = vld [vmem:[%s13 + $0x6c] sm:$0xf]
      %v8337 = vld [vmem:[%s13 + $0x70] sm:$0xf]
      %v8338 = vld [vmem:[%s13 + $0x74] sm:$0xf]
      %v8339 = vld [vmem:[%s13 + $0x78] sm:$0xf]
      %v8340 = vld [vmem:[%s13 + $0x7c] sm:$0xf]
      %v8341 = vld [vmem:[%s13 + $0x80] sm:$0xf]
      %v8342 = vld [vmem:[%s13 + $0x84] sm:$0xf]
      %v8343 = vld [vmem:[%s13 + $0x88] sm:$0xf]
      %v8344 = vld [vmem:[%s13 + $0x8c] sm:$0xf]
      %v8345 = vld [vmem:[%s14] sm:$0x1]
      %v8347 = vlaneseq
      %v8348 = vshrl.u32 %v8347, 7
      %v8349 = vsub.s32 0, %v8348
      %v8350 = vrot.slane %v8345, %v8349
      %v8388 = vunpack.c.l.b16 %v8309
      %v8389 = vunpack.c.l.b16 %v8310
      %v8390 = vunpack.c.l.b16 %v8311
      %v8391 = vunpack.c.l.b16 %v8312
      %v8392 = vunpack.c.l.b16 %v8313
      %v8393 = vunpack.c.l.b16 %v8314
      %v8394 = vunpack.c.l.b16 %v8315
      %v8395 = vunpack.c.l.b16 %v8316
      %v8396 = vunpack.c.l.b16 %v8317
      %v8397 = vunpack.c.l.b16 %v8318
      %v8398 = vunpack.c.l.b16 %v8319
      %v8399 = vunpack.c.l.b16 %v8320
      %v8400 = vunpack.c.l.b16 %v8321
      %v8401 = vunpack.c.l.b16 %v8322
      %v8402 = vunpack.c.l.b16 %v8323
      %v8403 = vunpack.c.l.b16 %v8324
      %v8404 = vunpack.c.l.b16 %v8325
      %v8405 = vunpack.c.l.b16 %v8326
      %v8406 = vunpack.c.l.b16 %v8327
      %v8407 = vunpack.c.l.b16 %v8328
      %v8408 = vunpack.c.l.b16 %v8329
      %v8409 = vunpack.c.l.b16 %v8330
      %v8410 = vunpack.c.l.b16 %v8331
      %v8411 = vunpack.c.l.b16 %v8332
      %v8412 = vunpack.c.l.b16 %v8333
      %v8413 = vunpack.c.l.b16 %v8334
      %v8414 = vunpack.c.l.b16 %v8335
      %v8415 = vunpack.c.l.b16 %v8336
      %v8416 = vunpack.c.l.b16 %v8337
      %v8417 = vunpack.c.l.b16 %v8338
      %v8418 = vunpack.c.l.b16 %v8339
      %v8419 = vunpack.c.l.b16 %v8340
      %v8420 = vunpack.c.l.b16 %v8341
      %v8421 = vunpack.c.l.b16 %v8342
      %v8422 = vunpack.c.l.b16 %v8343
      %v8423 = vunpack.c.l.b16 %v8344
      %v8424 = vpack.c.b16 %v8389, %v8388
      %v8425 = vpack.c.b16 %v8391, %v8390
      %v8426 = vpack.c.b16 %v8393, %v8392
      %v8427 = vpack.c.b16 %v8395, %v8394
      %v8428 = vpack.c.b16 %v8397, %v8396
      %v8429 = vpack.c.b16 %v8399, %v8398
      %v8430 = vpack.c.b16 %v8401, %v8400
      %v8431 = vpack.c.b16 %v8403, %v8402
      %v8432 = vpack.c.b16 %v8405, %v8404
      %v8433 = vpack.c.b16 %v8407, %v8406
      %v8434 = vpack.c.b16 %v8409, %v8408
      %v8435 = vpack.c.b16 %v8411, %v8410
      %v8436 = vpack.c.b16 %v8413, %v8412
      %v8437 = vpack.c.b16 %v8415, %v8414
      %v8438 = vpack.c.b16 %v8417, %v8416
      %v8439 = vpack.c.b16 %v8419, %v8418
      %v8440 = vpack.c.b16 %v8421, %v8420
      %v8441 = vpack.c.b16 %v8423, %v8422
      %v8461 = vsel %vm1471, %v8299, 0
      %v8464 = vsel %vm1471, %v8302, 0
      %v8467 = vsel %vm1471, %v8305, 0
      %v8470 = vsel %vm1471, %v8308, 0
      %8472 = vmatprep.subr.bf16.mxu0 0
      %8473 = vmatpush1.bf16.msra.mxu0 %v8424
      %8474 = vmatprep.subr.bf16.mxu0 0
      %8475 = vmatpush1.bf16.msra.mxu0 %v8425
      %8476 = vmatprep.subr.bf16.mxu0 0
      %8477 = vmatpush1.bf16.msra.mxu0 %v8426
      %8478 = vmatprep.subr.bf16.mxu0 0
      %8479 = vmatpush1.bf16.msra.mxu0 %v8427
      %8480 = vmatprep.subr.bf16.mxu0 0
      %8481 = vmatpush1.bf16.msra.mxu0 %v8428
      %8482 = vmatprep.subr.bf16.mxu0 0
      %8483 = vmatpush1.bf16.msra.mxu0 %v8429
      %8484 = vmatprep.subr.bf16.mxu0 0
      %8485 = vmatpush1.bf16.msra.mxu0 %v8430
      %8486 = vmatprep.subr.bf16.mxu0 0
      %8487 = vmatpush1.bf16.msra.mxu0 %v8431
      %8488 = vmatprep.subr.bf16.mxu0 0
      %8489 = vmatpush1.bf16.msra.mxu0 %v8432
      %8490 = vmatprep.subr.bf16.mxu0 0
      %8491 = vmatpush1.bf16.msra.mxu0 %v8433
      %8492 = vmatprep.subr.bf16.mxu0 0
      %8493 = vmatpush1.bf16.msra.mxu0 %v8434
      %8494 = vmatprep.subr.bf16.mxu0 0
      %8495 = vmatpush1.bf16.msra.mxu0 %v8435
      %8496 = vmatprep.subr.bf16.mxu0 0
      %8497 = vmatpush1.bf16.msra.mxu0 %v8436
      %8498 = vmatprep.subr.bf16.mxu0 0
      %8499 = vmatpush1.bf16.msra.mxu0 %v8437
      %8500 = vmatprep.subr.bf16.mxu0 0
      %8501 = vmatpush1.bf16.msra.mxu0 %v8438
      %8502 = vmatprep.subr.bf16.mxu0 0
      %8503 = vmatpush1.bf16.msra.mxu0 %v8439
      %8504 = vmatprep.mubr.bf16.mxu0 %v8298
      %8505 = vmatmul.mubr.bf16.gmra.mrb[0].mxu0 %v8297
      %v8506 = vpop.f32.mrb[0].mxu0
      %v8507 = vadd.f32 %v8350, %v8506
      %v8508 = vpop.f32.mrb[0].mxu0
      %v8509 = vpop.f32.mrb[0].mxu0
      %v8510 = vadd.f32 %v8350, %v8509
      %v8511 = vpop.f32.mrb[0].mxu0
      %8512 = vmatprep.mubr.bf16.mxu0 %v8301
      %8513 = vmatmul.mubr.bf16.gmra.mrb[0].mxu0 %v8300
      %v8514 = vpop.f32.mrb[0].mxu0
      %v8515 = vadd.f32 %v8350, %v8514
      %v8516 = vpop.f32.mrb[0].mxu0
      %v8517 = vpop.f32.mrb[0].mxu0
      %v8518 = vadd.f32 %v8350, %v8517
      %v8519 = vpop.f32.mrb[0].mxu0
      %8520 = vmatprep.mubr.bf16.mxu0 %v8304
      %8521 = vmatmul.mubr.bf16.gmra.mrb[0].mxu0 %v8303
      %v8522 = vpop.f32.mrb[0].mxu0
      %v8523 = vadd.f32 %v8350, %v8522
      %v8524 = vpop.f32.mrb[0].mxu0
      %v8525 = vpop.f32.mrb[0].mxu0
      %v8526 = vadd.f32 %v8350, %v8525
      %v8527 = vpop.f32.mrb[0].mxu0
      %8528 = vmatprep.mubr.bf16.mxu0 %v8307
      %8529 = vmatmul.mubr.bf16.gmra.mrb[0].mxu0 %v8306
      %v8530 = vpop.f32.mrb[0].mxu0
      %v8531 = vadd.f32 %v8350, %v8530
      %v8532 = vpop.f32.mrb[0].mxu0
      %v8533 = vpop.f32.mrb[0].mxu0
      %v8534 = vadd.f32 %v8350, %v8533
      %v8535 = vpop.f32.mrb[0].mxu0
      %8536 = vdwg.mxu0
      %8537 = vmatprep.subr.bf16.mxu0 0
      %8538 = vmatpush1.bf16.msra.mxu0 %v8440
      %8539 = vmatprep.subr.bf16.mxu0 0
      %8540 = vmatpush1.bf16.msra.mxu0 %v8441
      %8541 = vmatprep.subr.bf16.mxu0 0
      %8542 = vmatpush1.bf16.msra.mxu0 0
      %8543 = vmatprep.subr.bf16.mxu0 0
      %8544 = vmatpush1.bf16.msra.mxu0 0
      %8545 = vmatprep.subr.bf16.mxu0 0
      %8546 = vmatpush1.bf16.msra.mxu0 0
      %8547 = vmatprep.subr.bf16.mxu0 0
      %8548 = vmatpush1.bf16.msra.mxu0 0
      %8549 = vmatprep.subr.bf16.mxu0 0
      %8550 = vmatpush1.bf16.msra.mxu0 0
      %8551 = vmatprep.subr.bf16.mxu0 0
      %8552 = vmatpush1.bf16.msra.mxu0 0
      %8553 = vmatprep.subr.bf16.mxu0 0
      %8554 = vmatpush1.bf16.msra.mxu0 0
      %8555 = vmatprep.subr.bf16.mxu0 0
      %8556 = vmatpush1.bf16.msra.mxu0 0
      %8557 = vmatprep.subr.bf16.mxu0 0
      %8558 = vmatpush1.bf16.msra.mxu0 0
      %8559 = vmatprep.subr.bf16.mxu0 0
      %8560 = vmatpush1.bf16.msra.mxu0 0
      %8561 = vmatprep.subr.bf16.mxu0 0
      %8562 = vmatpush1.bf16.msra.mxu0 0
      %8563 = vmatprep.subr.bf16.mxu0 0
      %8564 = vmatpush1.bf16.msra.mxu0 0
      %8565 = vmatprep.subr.bf16.mxu0 0
      %8566 = vmatpush1.bf16.msra.mxu0 0
      %8567 = vmatprep.subr.bf16.mxu0 0
      %8568 = vmatpush1.bf16.msra.mxu0 0
      %8569 = vmatprep.mubr.bf16.mxu0 0
      %8570 = vmatmul.mubr.bf16.gmra.mrb[0].mxu0 %v8461
      %v8571 = vpop.f32.mrb[0].mxu0
      %v8572 = vadd.f32 %v8507, %v8571
      %v8573 = vpop.f32.mrb[0].mxu0
      %v8574 = vpop.f32.mrb[0].mxu0
      %v8575 = vadd.f32 %v8510, %v8574
      %v8576 = vpop.f32.mrb[0].mxu0
      %8577 = vmatprep.mubr.bf16.mxu0 0
      %8578 = vmatmul.mubr.bf16.gmra.mrb[0].mxu0 %v8464
      %v8579 = vpop.f32.mrb[0].mxu0
      %v8580 = vadd.f32 %v8515, %v8579
      %v8581 = vpop.f32.mrb[0].mxu0
      %v8582 = vpop.f32.mrb[0].mxu0
      %v8583 = vadd.f32 %v8518, %v8582
      %v8584 = vpop.f32.mrb[0].mxu0
      %8585 = vmatprep.mubr.bf16.mxu0 0
      %8586 = vmatmul.mubr.bf16.gmra.mrb[0].mxu0 %v8467
      %v8587 = vpop.f32.mrb[0].mxu0
      %v8588 = vadd.f32 %v8523, %v8587
      %v8589 = vpop.f32.mrb[0].mxu0
      %v8590 = vpop.f32.mrb[0].mxu0
      %v8591 = vadd.f32 %v8526, %v8590
      %v8592 = vpop.f32.mrb[0].mxu0
      %8593 = vmatprep.mubr.bf16.mxu0 0
      %8594 = vmatmul.mubr.bf16.gmra.mrb[0].mxu0 %v8470
      %v8595 = vpop.f32.mrb[0].mxu0
      %v8596 = vadd.f32 %v8531, %v8595
      %v8597 = vpop.f32.mrb[0].mxu0
      %v8598 = vpop.f32.mrb[0].mxu0
      %v8599 = vadd.f32 %v8534, %v8598
      %v8600 = vpop.f32.mrb[0].mxu0
      %8601 = vdwg.mxu0
      %v8602 = vxor.u32 %v8572, 2147483648
      %v8603 = vxor.u32 %v8575, 2147483648
      %v8604 = vxor.u32 %v8580, 2147483648
      %v8605 = vxor.u32 %v8583, 2147483648
      %v8606 = vxor.u32 %v8588, 2147483648
      %v8607 = vxor.u32 %v8591, 2147483648
      %v8608 = vxor.u32 %v8596, 2147483648
      %v8609 = vxor.u32 %v8599, 2147483648
      %v8610 = vmul.f32 %v8602, 1.442695
      %v8611 = vpow.pop %v8610
      %v8612 = vmul.f32 %v8603, 1.442695
      %v8613 = vpow.pop %v8612
      %v8614 = vmul.f32 %v8604, 1.442695
      %v8615 = vpow.pop %v8614
      %v8616 = vmul.f32 %v8605, 1.442695
      %v8617 = vpow.pop %v8616
      %v8618 = vmul.f32 %v8606, 1.442695
      %v8619 = vpow.pop %v8618
      %v8620 = vmul.f32 %v8607, 1.442695
      %v8621 = vpow.pop %v8620
      %v8622 = vmul.f32 %v8608, 1.442695
      %v8623 = vpow.pop %v8622
      %v8624 = vmul.f32 %v8609, 1.442695
      %v8625 = vpow.pop %v8624
      %v8626 = vadd.f32 %v8611, 1.0
      %v8627 = vadd.f32 %v8613, 1.0
      %v8628 = vadd.f32 %v8615, 1.0
      %v8629 = vadd.f32 %v8617, 1.0
      %v8630 = vadd.f32 %v8619, 1.0
      %v8631 = vadd.f32 %v8621, 1.0
      %v8632 = vadd.f32 %v8623, 1.0
      %v8633 = vadd.f32 %v8625, 1.0
      %v8634 = vrcp.pop %v8626
      %v8635 = vmul.f32 1.0, %v8634
      %v8636 = vrcp.pop %v8627
      %v8637 = vmul.f32 1.0, %v8636
      %v8638 = vrcp.pop %v8628
      %v8639 = vmul.f32 1.0, %v8638
      %v8640 = vrcp.pop %v8629
      %v8641 = vmul.f32 1.0, %v8640
      %v8642 = vrcp.pop %v8630
      %v8643 = vmul.f32 1.0, %v8642
      %v8644 = vrcp.pop %v8631
      %v8645 = vmul.f32 1.0, %v8644
      %v8646 = vrcp.pop %v8632
      %v8647 = vmul.f32 1.0, %v8646
      %v8648 = vrcp.pop %v8633
      %v8649 = vmul.f32 1.0, %v8648
      %v8650 = vmul.f32 %v8635, %v7329
      %v8651 = vmul.f32 %v8637, %v7330
      %v8652 = vmul.f32 %v8639, %v7331
      %v8653 = vmul.f32 %v8641, %v7332
      %v8654 = vmul.f32 %v8643, %v7333
      %v8655 = vmul.f32 %v8645, %v7334
      %v8656 = vmul.f32 %v8647, %v7335
      %v8657 = vmul.f32 %v8649, %v7379
      %8658 = vst.msk [vmem:[#allocation6 + $0x18] sm:$0xff] %vm1462, %v8650
      %8659 = vst.msk [vmem:[#allocation6 + $0x20] sm:$0xff] %vm1462, %v8651
      %8660 = vst.msk [vmem:[#allocation6 + $0x28] sm:$0xff] %vm1462, %v8652
      %8661 = vst.msk [vmem:[#allocation6 + $0x30] sm:$0xff] %vm1462, %v8653
      %8662 = vst.msk [vmem:[#allocation6 + $0x38] sm:$0xff] %vm1462, %v8654
      %8663 = vst.msk [vmem:[#allocation6 + $0x40] sm:$0xff] %vm1462, %v8655
      %8664 = vst.msk [vmem:[#allocation6 + $0x48] sm:$0xff] %vm1462, %v8656
      %8665 = vst.msk [vmem:[#allocation6 + $0x50] sm:$0xff] %vm1462, %v8657
      %v8666 = vld [vmem:[#allocation6 + $0xf] sm:$0xff]
      %v8667 = vld [vmem:[#allocation6 + $0x17] sm:$0xff]
      %v8668 = vld [vmem:[#allocation6 + $0x1f] sm:$0xff]
      %v8669 = vld [vmem:[#allocation6 + $0x27] sm:$0xff]
      %v8670 = vld [vmem:[#allocation6 + $0x2f] sm:$0xff]
      %v8671 = vld [vmem:[#allocation6 + $0x37] sm:$0xff]
      %v8672 = vld [vmem:[#allocation6 + $0x3f] sm:$0xff]
      %v8673 = vld [vmem:[#allocation6 + $0x47] sm:$0xff]
      %v8674 = vld [vmem:[#allocation5 + $0xf] sm:$0xff]
      %v8675 = vld [vmem:[#allocation5 + $0x17] sm:$0xff]
      %v8676 = vld [vmem:[#allocation5 + $0x1f] sm:$0xff]
      %v8677 = vld [vmem:[#allocation5 + $0x27] sm:$0xff]
      %v8678 = vld [vmem:[#allocation5 + $0x2f] sm:$0xff]
      %v8679 = vld [vmem:[#allocation5 + $0x37] sm:$0xff]
      %v8680 = vld [vmem:[#allocation5 + $0x3f] sm:$0xff]
      %v8681 = vld [vmem:[#allocation5 + $0x47] sm:$0xff]
      %v8682 = vld [vmem:[%s716 + $0xf] sm:$0xff]
      %v8683 = vld [vmem:[%s716 + $0x17] sm:$0xff]
      %v8684 = vld [vmem:[%s716 + $0x1f] sm:$0xff]
      %v8685 = vld [vmem:[%s716 + $0x27] sm:$0xff]
      %v8686 = vld [vmem:[%s716 + $0x2f] sm:$0xff]
      %v8687 = vld [vmem:[%s716 + $0x37] sm:$0xff]
      %v8688 = vld [vmem:[%s716 + $0x3f] sm:$0xff]
      %v8689 = vld [vmem:[%s716 + $0x47] sm:$0xff]
      %v8690 = vld [vmem:[#allocation6 + $0x10] sm:$0xff]
      %v8691 = vld [vmem:[#allocation6 + $0x18] sm:$0xff]
      %v8692 = vld [vmem:[#allocation6 + $0x20] sm:$0xff]
      %v8693 = vld [vmem:[#allocation6 + $0x28] sm:$0xff]
      %v8694 = vld [vmem:[#allocation6 + $0x30] sm:$0xff]
      %v8695 = vld [vmem:[#allocation6 + $0x38] sm:$0xff]
      %v8696 = vld [vmem:[#allocation6 + $0x40] sm:$0xff]
      %v8697 = vld [vmem:[#allocation6 + $0x48] sm:$0xff]
      %v8698 = vld [vmem:[#allocation5 + $0x10] sm:$0xff]
      %v8699 = vld [vmem:[#allocation5 + $0x18] sm:$0xff]
      %v8700 = vld [vmem:[#allocation5 + $0x20] sm:$0xff]
      %v8701 = vld [vmem:[#allocation5 + $0x28] sm:$0xff]
      %v8702 = vld [vmem:[#allocation5 + $0x30] sm:$0xff]
      %v8703 = vld [vmem:[#allocation5 + $0x38] sm:$0xff]
      %v8704 = vld [vmem:[#allocation5 + $0x40] sm:$0xff]
      %v8705 = vld [vmem:[#allocation5 + $0x48] sm:$0xff]
      %v8706 = vld [vmem:[%s716 + $0x10] sm:$0xff]
      %v8707 = vld [vmem:[%s716 + $0x18] sm:$0xff]
      %v8708 = vld [vmem:[%s716 + $0x20] sm:$0xff]
      %v8709 = vld [vmem:[%s716 + $0x28] sm:$0xff]
      %v8710 = vld [vmem:[%s716 + $0x30] sm:$0xff]
      %v8711 = vld [vmem:[%s716 + $0x38] sm:$0xff]
      %v8712 = vld [vmem:[%s716 + $0x40] sm:$0xff]
      %v8713 = vld [vmem:[%s716 + $0x48] sm:$0xff]
      %v8714 = vld [vmem:[#allocation6 + $0x11] sm:$0xff]
      %v8715 = vld [vmem:[#allocation6 + $0x19] sm:$0xff]
      %v8716 = vld [vmem:[#allocation6 + $0x21] sm:$0xff]
      %v8717 = vld [vmem:[#allocation6 + $0x29] sm:$0xff]
      %v8718 = vld [vmem:[#allocation6 + $0x31] sm:$0xff]
      %v8719 = vld [vmem:[#allocation6 + $0x39] sm:$0xff]
      %v8720 = vld [vmem:[#allocation6 + $0x41] sm:$0xff]
      %v8721 = vld [vmem:[#allocation6 + $0x49] sm:$0xff]
      %v8722 = vld [vmem:[#allocation5 + $0x11] sm:$0xff]
      %v8723 = vld [vmem:[#allocation5 + $0x19] sm:$0xff]
      %v8724 = vld [vmem:[#allocation5 + $0x21] sm:$0xff]
      %v8725 = vld [vmem:[#allocation5 + $0x29] sm:$0xff]
      %v8726 = vld [vmem:[#allocation5 + $0x31] sm:$0xff]
      %v8727 = vld [vmem:[#allocation5 + $0x39] sm:$0xff]
      %v8728 = vld [vmem:[#allocation5 + $0x41] sm:$0xff]
      %v8729 = vld [vmem:[#allocation5 + $0x49] sm:$0xff]
      %v8730 = vld [vmem:[%s716 + $0x11] sm:$0xff]
      %v8731 = vld [vmem:[%s716 + $0x19] sm:$0xff]
      %v8732 = vld [vmem:[%s716 + $0x21] sm:$0xff]
      %v8733 = vld [vmem:[%s716 + $0x29] sm:$0xff]
      %v8734 = vld [vmem:[%s716 + $0x31] sm:$0xff]
      %v8735 = vld [vmem:[%s716 + $0x39] sm:$0xff]
      %v8736 = vld [vmem:[%s716 + $0x41] sm:$0xff]
      %v8737 = vld [vmem:[%s716 + $0x49] sm:$0xff]
      %v8738 = vld [vmem:[#allocation6 + $0x4f] sm:$0xff]
      %v8739 = vld [vmem:[#allocation5 + $0x4f] sm:$0xff]
      %v8740 = vld [vmem:[%s716 + $0x4f] sm:$0xff]
      %v8741 = vld [vmem:[#allocation6 + $0x50] sm:$0xff]
      %v8742 = vld [vmem:[#allocation5 + $0x50] sm:$0xff]
      %v8743 = vld [vmem:[%s716 + $0x50] sm:$0xff]
      %v8744 = vld [vmem:[#allocation6 + $0x51] sm:$0xff]
      %v8745 = vld [vmem:[#allocation5 + $0x51] sm:$0xff]
      %v8746 = vld [vmem:[%s716 + $0x51] sm:$0xff]
      %v8747 = vld [vmem:[#allocation6 + $0x57] sm:$0xff]
      %v8748 = vld [vmem:[#allocation5 + $0x57] sm:$0xff]
      %v8749 = vld [vmem:[%s716 + $0x57] sm:$0xff]
      %v8750 = vld [vmem:[#allocation6 + $0x58] sm:$0xff]
      %v8751 = vld [vmem:[#allocation5 + $0x58] sm:$0xff]
      %v8752 = vld [vmem:[%s716 + $0x58] sm:$0xff]
      %v8753 = vld [vmem:[#allocation6 + $0x59] sm:$0xff]
      %v8754 = vld [vmem:[#allocation5 + $0x59] sm:$0xff]
      %v8755 = vld [vmem:[%s716 + $0x59] sm:$0xff]
      %8764 = vrot.lane.b32.xlu0 %v8674, 16
      %v8765 = vpop.permute.xlu0 %8764
      %8766 = vrot.lane.b32.xlu0 %v8675, 16
      %v8767 = vpop.permute.xlu0 %8766
      %8768 = vrot.lane.b32.xlu0 %v8676, 16
      %v8769 = vpop.permute.xlu0 %8768
      %8770 = vrot.lane.b32.xlu0 %v8677, 16
      %v8771 = vpop.permute.xlu0 %8770
      %8772 = vrot.lane.b32.xlu0 %v8678, 16
      %v8773 = vpop.permute.xlu0 %8772
      %8774 = vrot.lane.b32.xlu0 %v8679, 16
      %v8775 = vpop.permute.xlu0 %8774
      %8776 = vrot.lane.b32.xlu0 %v8680, 16
      %v8777 = vpop.permute.xlu0 %8776
      %8778 = vrot.lane.b32.xlu0 %v8681, 16
      %v8779 = vpop.permute.xlu0 %8778
      %8796 = vrot.lane.b32.xlu0 %v8682, 24
      %v8797 = vpop.permute.xlu0 %8796
      %8798 = vrot.lane.b32.xlu0 %v8683, 24
      %v8799 = vpop.permute.xlu0 %8798
      %8800 = vrot.lane.b32.xlu0 %v8684, 24
      %v8801 = vpop.permute.xlu0 %8800
      %8802 = vrot.lane.b32.xlu0 %v8685, 24
      %v8803 = vpop.permute.xlu0 %8802
      %8804 = vrot.lane.b32.xlu0 %v8686, 24
      %v8805 = vpop.permute.xlu0 %8804
      %8806 = vrot.lane.b32.xlu0 %v8687, 24
      %v8807 = vpop.permute.xlu0 %8806
      %8808 = vrot.lane.b32.xlu0 %v8688, 24
      %v8809 = vpop.permute.xlu0 %8808
      %8810 = vrot.lane.b32.xlu0 %v8689, 24
      %v8811 = vpop.permute.xlu0 %8810
      %8828 = vrot.lane.b32.xlu0 %v8690, 32
      %v8829 = vpop.permute.xlu0 %8828
      %8830 = vrot.lane.b32.xlu0 %v8691, 32
      %v8831 = vpop.permute.xlu0 %8830
      %8832 = vrot.lane.b32.xlu0 %v8692, 32
      %v8833 = vpop.permute.xlu0 %8832
      %8834 = vrot.lane.b32.xlu0 %v8693, 32
      %v8835 = vpop.permute.xlu0 %8834
      %8836 = vrot.lane.b32.xlu0 %v8694, 32
      %v8837 = vpop.permute.xlu0 %8836
      %8838 = vrot.lane.b32.xlu0 %v8695, 32
      %v8839 = vpop.permute.xlu0 %8838
      %8840 = vrot.lane.b32.xlu0 %v8696, 32
      %v8841 = vpop.permute.xlu0 %8840
      %8842 = vrot.lane.b32.xlu0 %v8697, 32
      %v8843 = vpop.permute.xlu0 %8842
      %8860 = vrot.lane.b32.xlu0 %v8698, 48
      %v8861 = vpop.permute.xlu0 %8860
      %8862 = vrot.lane.b32.xlu0 %v8699, 48
      %v8863 = vpop.permute.xlu0 %8862
      %8864 = vrot.lane.b32.xlu0 %v8700, 48
      %v8865 = vpop.permute.xlu0 %8864
      %8866 = vrot.lane.b32.xlu0 %v8701, 48
      %v8867 = vpop.permute.xlu0 %8866
      %8868 = vrot.lane.b32.xlu0 %v8702, 48
      %v8869 = vpop.permute.xlu0 %8868
      %8870 = vrot.lane.b32.xlu0 %v8703, 48
      %v8871 = vpop.permute.xlu0 %8870
      %8872 = vrot.lane.b32.xlu0 %v8704, 48
      %v8873 = vpop.permute.xlu0 %8872
      %8874 = vrot.lane.b32.xlu0 %v8705, 48
      %v8875 = vpop.permute.xlu0 %8874
      %8892 = vrot.lane.b32.xlu0 %v8706, 56
      %v8893 = vpop.permute.xlu0 %8892
      %8894 = vrot.lane.b32.xlu0 %v8707, 56
      %v8895 = vpop.permute.xlu0 %8894
      %8896 = vrot.lane.b32.xlu0 %v8708, 56
      %v8897 = vpop.permute.xlu0 %8896
      %8898 = vrot.lane.b32.xlu0 %v8709, 56
      %v8899 = vpop.permute.xlu0 %8898
      %8900 = vrot.lane.b32.xlu0 %v8710, 56
      %v8901 = vpop.permute.xlu0 %8900
      %8902 = vrot.lane.b32.xlu0 %v8711, 56
      %v8903 = vpop.permute.xlu0 %8902
      %8904 = vrot.lane.b32.xlu0 %v8712, 56
      %v8905 = vpop.permute.xlu0 %8904
      %8906 = vrot.lane.b32.xlu0 %v8713, 56
      %v8907 = vpop.permute.xlu0 %8906
      %8924 = vrot.lane.b32.xlu0 %v8714, 64
      %v8925 = vpop.permute.xlu0 %8924
      %8926 = vrot.lane.b32.xlu0 %v8715, 64
      %v8927 = vpop.permute.xlu0 %8926
      %8928 = vrot.lane.b32.xlu0 %v8716, 64
      %v8929 = vpop.permute.xlu0 %8928
      %8930 = vrot.lane.b32.xlu0 %v8717, 64
      %v8931 = vpop.permute.xlu0 %8930
      %8932 = vrot.lane.b32.xlu0 %v8718, 64
      %v8933 = vpop.permute.xlu0 %8932
      %8934 = vrot.lane.b32.xlu0 %v8719, 64
      %v8935 = vpop.permute.xlu0 %8934
      %8936 = vrot.lane.b32.xlu0 %v8720, 64
      %v8937 = vpop.permute.xlu0 %8936
      %8938 = vrot.lane.b32.xlu0 %v8721, 64
      %v8939 = vpop.permute.xlu0 %8938
      %8956 = vrot.lane.b32.xlu0 %v8722, 80
      %v8957 = vpop.permute.xlu0 %8956
      %8958 = vrot.lane.b32.xlu0 %v8723, 80
      %v8959 = vpop.permute.xlu0 %8958
      %8960 = vrot.lane.b32.xlu0 %v8724, 80
      %v8961 = vpop.permute.xlu0 %8960
      %8962 = vrot.lane.b32.xlu0 %v8725, 80
      %v8963 = vpop.permute.xlu0 %8962
      %8964 = vrot.lane.b32.xlu0 %v8726, 80
      %v8965 = vpop.permute.xlu0 %8964
      %8966 = vrot.lane.b32.xlu0 %v8727, 80
      %v8967 = vpop.permute.xlu0 %8966
      %8968 = vrot.lane.b32.xlu0 %v8728, 80
      %v8969 = vpop.permute.xlu0 %8968
      %8970 = vrot.lane.b32.xlu0 %v8729, 80
      %v8971 = vpop.permute.xlu0 %8970
      %8988 = vrot.lane.b32.xlu0 %v8730, 88
      %v8989 = vpop.permute.xlu0 %8988
      %8990 = vrot.lane.b32.xlu0 %v8731, 88
      %v8991 = vpop.permute.xlu0 %8990
      %8992 = vrot.lane.b32.xlu0 %v8732, 88
      %v8993 = vpop.permute.xlu0 %8992
      %8994 = vrot.lane.b32.xlu0 %v8733, 88
      %v8995 = vpop.permute.xlu0 %8994
      %8996 = vrot.lane.b32.xlu0 %v8734, 88
      %v8997 = vpop.permute.xlu0 %8996
      %8998 = vrot.lane.b32.xlu0 %v8735, 88
      %v8999 = vpop.permute.xlu0 %8998
      %9000 = vrot.lane.b32.xlu0 %v8736, 88
      %v9001 = vpop.permute.xlu0 %9000
      %9002 = vrot.lane.b32.xlu0 %v8737, 88
      %v9003 = vpop.permute.xlu0 %9002
      %9020 = vrot.lane.b32.xlu0 %v8667, 96
      %v9021 = vpop.permute.xlu0 %9020
      %9022 = vrot.lane.b32.xlu0 %v8668, 96
      %v9023 = vpop.permute.xlu0 %9022
      %9024 = vrot.lane.b32.xlu0 %v8669, 96
      %v9025 = vpop.permute.xlu0 %9024
      %9026 = vrot.lane.b32.xlu0 %v8670, 96
      %v9027 = vpop.permute.xlu0 %9026
      %9028 = vrot.lane.b32.xlu0 %v8671, 96
      %v9029 = vpop.permute.xlu0 %9028
      %9030 = vrot.lane.b32.xlu0 %v8672, 96
      %v9031 = vpop.permute.xlu0 %9030
      %9032 = vrot.lane.b32.xlu0 %v8673, 96
      %v9033 = vpop.permute.xlu0 %9032
      %9034 = vrot.lane.b32.xlu0 %v8738, 96
      %v9035 = vpop.permute.xlu0 %9034
      %9045 = vrot.lane.b32.xlu0 %v8675, 112
      %v9046 = vpop.permute.xlu0 %9045
      %9047 = vrot.lane.b32.xlu0 %v8676, 112
      %v9048 = vpop.permute.xlu0 %9047
      %9049 = vrot.lane.b32.xlu0 %v8677, 112
      %v9050 = vpop.permute.xlu0 %9049
      %9051 = vrot.lane.b32.xlu0 %v8678, 112
      %v9052 = vpop.permute.xlu0 %9051
      %9053 = vrot.lane.b32.xlu0 %v8679, 112
      %v9054 = vpop.permute.xlu0 %9053
      %9055 = vrot.lane.b32.xlu0 %v8680, 112
      %v9056 = vpop.permute.xlu0 %9055
      %9057 = vrot.lane.b32.xlu0 %v8681, 112
      %v9058 = vpop.permute.xlu0 %9057
      %9059 = vrot.lane.b32.xlu0 %v8739, 112
      %v9060 = vpop.permute.xlu0 %9059
      %9070 = vrot.lane.b32.xlu0 %v8683, 120
      %v9071 = vpop.permute.xlu0 %9070
      %9072 = vrot.lane.b32.xlu0 %v8684, 120
      %v9073 = vpop.permute.xlu0 %9072
      %9074 = vrot.lane.b32.xlu0 %v8685, 120
      %v9075 = vpop.permute.xlu0 %9074
      %9076 = vrot.lane.b32.xlu0 %v8686, 120
      %v9077 = vpop.permute.xlu0 %9076
      %9078 = vrot.lane.b32.xlu0 %v8687, 120
      %v9079 = vpop.permute.xlu0 %9078
      %9080 = vrot.lane.b32.xlu0 %v8688, 120
      %v9081 = vpop.permute.xlu0 %9080
      %9082 = vrot.lane.b32.xlu0 %v8689, 120
      %v9083 = vpop.permute.xlu0 %9082
      %9084 = vrot.lane.b32.xlu0 %v8740, 120
      %v9085 = vpop.permute.xlu0 %9084
      %9095 = vrot.lane.b32.xlu0 %v8699, 16
      %v9096 = vpop.permute.xlu0 %9095
      %9097 = vrot.lane.b32.xlu0 %v8700, 16
      %v9098 = vpop.permute.xlu0 %9097
      %9099 = vrot.lane.b32.xlu0 %v8701, 16
      %v9100 = vpop.permute.xlu0 %9099
      %9101 = vrot.lane.b32.xlu0 %v8702, 16
      %v9102 = vpop.permute.xlu0 %9101
      %9103 = vrot.lane.b32.xlu0 %v8703, 16
      %v9104 = vpop.permute.xlu0 %9103
      %9105 = vrot.lane.b32.xlu0 %v8704, 16
      %v9106 = vpop.permute.xlu0 %9105
      %9107 = vrot.lane.b32.xlu0 %v8705, 16
      %v9108 = vpop.permute.xlu0 %9107
      %9109 = vrot.lane.b32.xlu0 %v8742, 16
      %v9110 = vpop.permute.xlu0 %9109
      %9120 = vrot.lane.b32.xlu0 %v8707, 24
      %v9121 = vpop.permute.xlu0 %9120
      %9122 = vrot.lane.b32.xlu0 %v8708, 24
      %v9123 = vpop.permute.xlu0 %9122
      %9124 = vrot.lane.b32.xlu0 %v8709, 24
      %v9125 = vpop.permute.xlu0 %9124
      %9126 = vrot.lane.b32.xlu0 %v8710, 24
      %v9127 = vpop.permute.xlu0 %9126
      %9128 = vrot.lane.b32.xlu0 %v8711, 24
      %v9129 = vpop.permute.xlu0 %9128
      %9130 = vrot.lane.b32.xlu0 %v8712, 24
      %v9131 = vpop.permute.xlu0 %9130
      %9132 = vrot.lane.b32.xlu0 %v8713, 24
      %v9133 = vpop.permute.xlu0 %9132
      %9134 = vrot.lane.b32.xlu0 %v8743, 24
      %v9135 = vpop.permute.xlu0 %9134
      %9145 = vrot.lane.b32.xlu0 %v8715, 32
      %v9146 = vpop.permute.xlu0 %9145
      %9147 = vrot.lane.b32.xlu0 %v8716, 32
      %v9148 = vpop.permute.xlu0 %9147
      %9149 = vrot.lane.b32.xlu0 %v8717, 32
      %v9150 = vpop.permute.xlu0 %9149
      %9151 = vrot.lane.b32.xlu0 %v8718, 32
      %v9152 = vpop.permute.xlu0 %9151
      %9153 = vrot.lane.b32.xlu0 %v8719, 32
      %v9154 = vpop.permute.xlu0 %9153
      %9155 = vrot.lane.b32.xlu0 %v8720, 32
      %v9156 = vpop.permute.xlu0 %9155
      %9157 = vrot.lane.b32.xlu0 %v8721, 32
      %v9158 = vpop.permute.xlu0 %9157
      %9159 = vrot.lane.b32.xlu0 %v8744, 32
      %v9160 = vpop.permute.xlu0 %9159
      %v9169 = vsel %vm1462, %v8666, %v8765
      %v9170 = vsel %vm1462, %v8667, %v8767
      %v9171 = vsel %vm1462, %v8668, %v8769
      %v9172 = vsel %vm1462, %v8669, %v8771
      %v9173 = vsel %vm1462, %v8670, %v8773
      %v9174 = vsel %vm1462, %v8671, %v8775
      %v9175 = vsel %vm1462, %v8672, %v8777
      %v9176 = vsel %vm1462, %v8673, %v8779
      %v9177 = vsel %vm7815, %v9169, %v8797
      %v9178 = vsel %vm7815, %v9170, %v8799
      %v9179 = vsel %vm7815, %v9171, %v8801
      %v9180 = vsel %vm7815, %v9172, %v8803
      %v9181 = vsel %vm7815, %v9173, %v8805
      %v9182 = vsel %vm7815, %v9174, %v8807
      %v9183 = vsel %vm7815, %v9175, %v8809
      %v9184 = vsel %vm7815, %v9176, %v8811
      %v9185 = vsel %vm1471, %v9177, %v8829
      %v9186 = vsel %vm1471, %v9178, %v8831
      %v9187 = vsel %vm1471, %v9179, %v8833
      %v9188 = vsel %vm1471, %v9180, %v8835
      %v9189 = vsel %vm1471, %v9181, %v8837
      %v9190 = vsel %vm1471, %v9182, %v8839
      %v9191 = vsel %vm1471, %v9183, %v8841
      %v9192 = vsel %vm1471, %v9184, %v8843
      %v9193 = vsel %vm1480, %v9185, %v8861
      %v9194 = vsel %vm1480, %v9186, %v8863
      %v9195 = vsel %vm1480, %v9187, %v8865
      %v9196 = vsel %vm1480, %v9188, %v8867
      %v9197 = vsel %vm1480, %v9189, %v8869
      %v9198 = vsel %vm1480, %v9190, %v8871
      %v9199 = vsel %vm1480, %v9191, %v8873
      %v9200 = vsel %vm1480, %v9192, %v8875
      %v9201 = vsel %vm7840, %v9193, %v8893
      %v9202 = vsel %vm7840, %v9194, %v8895
      %v9203 = vsel %vm7840, %v9195, %v8897
      %v9204 = vsel %vm7840, %v9196, %v8899
      %v9205 = vsel %vm7840, %v9197, %v8901
      %v9206 = vsel %vm7840, %v9198, %v8903
      %v9207 = vsel %vm7840, %v9199, %v8905
      %v9208 = vsel %vm7840, %v9200, %v8907
      %v9209 = vsel %vm1489, %v9201, %v8925
      %v9210 = vsel %vm1489, %v9202, %v8927
      %v9211 = vsel %vm1489, %v9203, %v8929
      %v9212 = vsel %vm1489, %v9204, %v8931
      %v9213 = vsel %vm1489, %v9205, %v8933
      %v9214 = vsel %vm1489, %v9206, %v8935
      %v9215 = vsel %vm1489, %v9207, %v8937
      %v9216 = vsel %vm1489, %v9208, %v8939
      %v9217 = vsel %vm1498, %v9209, %v8957
      %v9218 = vsel %vm1498, %v9210, %v8959
      %v9219 = vsel %vm1498, %v9211, %v8961
      %v9220 = vsel %vm1498, %v9212, %v8963
      %v9221 = vsel %vm1498, %v9213, %v8965
      %v9222 = vsel %vm1498, %v9214, %v8967
      %v9223 = vsel %vm1498, %v9215, %v8969
      %v9224 = vsel %vm1498, %v9216, %v8971
      %v9225 = vsel %vm3568, %v9217, %v8989
      %v9226 = vsel %vm3568, %v9218, %v8991
      %v9227 = vsel %vm3568, %v9219, %v8993
      %v9228 = vsel %vm3568, %v9220, %v8995
      %v9229 = vsel %vm3568, %v9221, %v8997
      %v9230 = vsel %vm3568, %v9222, %v8999
      %v9231 = vsel %vm3568, %v9223, %v9001
      %v9232 = vsel %vm3568, %v9224, %v9003
      %v9233 = vsel %vm1507, %v9225, %v9021
      %v9234 = vsel %vm1507, %v9226, %v9023
      %v9235 = vsel %vm1507, %v9227, %v9025
      %v9236 = vsel %vm1507, %v9228, %v9027
      %v9237 = vsel %vm1507, %v9229, %v9029
      %v9238 = vsel %vm1507, %v9230, %v9031
      %v9239 = vsel %vm1507, %v9231, %v9033
      %v9240 = vsel %vm1507, %v9232, %v9035
      %v9241 = vsel %vm1516, %v9233, %v9046
      %v9242 = vsel %vm1516, %v9234, %v9048
      %v9243 = vsel %vm1516, %v9235, %v9050
      %v9244 = vsel %vm1516, %v9236, %v9052
      %v9245 = vsel %vm1516, %v9237, %v9054
      %v9246 = vsel %vm1516, %v9238, %v9056
      %v9247 = vsel %vm1516, %v9239, %v9058
      %v9248 = vsel %vm1516, %v9240, %v9060
      %v9249 = vsel %vm7889, %v9241, %v9071
      %v9250 = vsel %vm7889, %v9242, %v9073
      %v9251 = vsel %vm7889, %v9243, %v9075
      %v9252 = vsel %vm7889, %v9244, %v9077
      %v9253 = vsel %vm7889, %v9245, %v9079
      %v9254 = vsel %vm7889, %v9246, %v9081
      %v9255 = vsel %vm7889, %v9247, %v9083
      %v9256 = vsel %vm7889, %v9248, %v9085
      %v9257 = vsel %vm1462, %v8691, %v9096
      %v9258 = vsel %vm1462, %v8692, %v9098
      %v9259 = vsel %vm1462, %v8693, %v9100
      %v9260 = vsel %vm1462, %v8694, %v9102
      %v9261 = vsel %vm1462, %v8695, %v9104
      %v9262 = vsel %vm1462, %v8696, %v9106
      %v9263 = vsel %vm1462, %v8697, %v9108
      %v9264 = vsel %vm1462, %v8741, %v9110
      %v9265 = vsel %vm7815, %v9257, %v9121
      %v9266 = vsel %vm7815, %v9258, %v9123
      %v9267 = vsel %vm7815, %v9259, %v9125
      %v9268 = vsel %vm7815, %v9260, %v9127
      %v9269 = vsel %vm7815, %v9261, %v9129
      %v9270 = vsel %vm7815, %v9262, %v9131
      %v9271 = vsel %vm7815, %v9263, %v9133
      %v9272 = vsel %vm7815, %v9264, %v9135
      %v9273 = vsel %vm1471, %v9265, %v9146
      %v9274 = vsel %vm1471, %v9266, %v9148
      %v9275 = vsel %vm1471, %v9267, %v9150
      %v9276 = vsel %vm1471, %v9268, %v9152
      %v9277 = vsel %vm1471, %v9269, %v9154
      %v9278 = vsel %vm1471, %v9270, %v9156
      %v9279 = vsel %vm1471, %v9271, %v9158
      %v9280 = vsel %vm1471, %v9272, %v9160
      %9282 = vrot.lane.b32.xlu0 %v8731, 8
      %v9283 = vpop.permute.xlu0 %9282
      %9284 = vrot.lane.b32.xlu0 %v8732, 8
      %v9285 = vpop.permute.xlu0 %9284
      %9286 = vrot.lane.b32.xlu0 %v8733, 8
      %v9287 = vpop.permute.xlu0 %9286
      %9288 = vrot.lane.b32.xlu0 %v8734, 8
      %v9289 = vpop.permute.xlu0 %9288
      %9290 = vrot.lane.b32.xlu0 %v8735, 8
      %v9291 = vpop.permute.xlu0 %9290
      %9292 = vrot.lane.b32.xlu0 %v8736, 8
      %v9293 = vpop.permute.xlu0 %9292
      %9294 = vrot.lane.b32.xlu0 %v8737, 8
      %v9295 = vpop.permute.xlu0 %9294
      %9296 = vrot.lane.b32.xlu0 %v8746, 8
      %v9297 = vpop.permute.xlu0 %9296
      %9307 = vrot.lane.b32.xlu0 %v8668, 16
      %v9308 = vpop.permute.xlu0 %9307
      %9309 = vrot.lane.b32.xlu0 %v8669, 16
      %v9310 = vpop.permute.xlu0 %9309
      %9311 = vrot.lane.b32.xlu0 %v8670, 16
      %v9312 = vpop.permute.xlu0 %9311
      %9313 = vrot.lane.b32.xlu0 %v8671, 16
      %v9314 = vpop.permute.xlu0 %9313
      %9315 = vrot.lane.b32.xlu0 %v8672, 16
      %v9316 = vpop.permute.xlu0 %9315
      %9317 = vrot.lane.b32.xlu0 %v8673, 16
      %v9318 = vpop.permute.xlu0 %9317
      %9319 = vrot.lane.b32.xlu0 %v8738, 16
      %v9320 = vpop.permute.xlu0 %9319
      %9321 = vrot.lane.b32.xlu0 %v8747, 16
      %v9322 = vpop.permute.xlu0 %9321
      %9332 = vrot.lane.b32.xlu0 %v8676, 32
      %v9333 = vpop.permute.xlu0 %9332
      %9334 = vrot.lane.b32.xlu0 %v8677, 32
      %v9335 = vpop.permute.xlu0 %9334
      %9336 = vrot.lane.b32.xlu0 %v8678, 32
      %v9337 = vpop.permute.xlu0 %9336
      %9338 = vrot.lane.b32.xlu0 %v8679, 32
      %v9339 = vpop.permute.xlu0 %9338
      %9340 = vrot.lane.b32.xlu0 %v8680, 32
      %v9341 = vpop.permute.xlu0 %9340
      %9342 = vrot.lane.b32.xlu0 %v8681, 32
      %v9343 = vpop.permute.xlu0 %9342
      %9344 = vrot.lane.b32.xlu0 %v8739, 32
      %v9345 = vpop.permute.xlu0 %9344
      %9346 = vrot.lane.b32.xlu0 %v8748, 32
      %v9347 = vpop.permute.xlu0 %9346
      %9357 = vrot.lane.b32.xlu0 %v8684, 40
      %v9358 = vpop.permute.xlu0 %9357
      %9359 = vrot.lane.b32.xlu0 %v8685, 40
      %v9360 = vpop.permute.xlu0 %9359
      %9361 = vrot.lane.b32.xlu0 %v8686, 40
      %v9362 = vpop.permute.xlu0 %9361
      %9363 = vrot.lane.b32.xlu0 %v8687, 40
      %v9364 = vpop.permute.xlu0 %9363
      %9365 = vrot.lane.b32.xlu0 %v8688, 40
      %v9366 = vpop.permute.xlu0 %9365
      %9367 = vrot.lane.b32.xlu0 %v8689, 40
      %v9368 = vpop.permute.xlu0 %9367
      %9369 = vrot.lane.b32.xlu0 %v8740, 40
      %v9370 = vpop.permute.xlu0 %9369
      %9371 = vrot.lane.b32.xlu0 %v8749, 40
      %v9372 = vpop.permute.xlu0 %9371
      %9383 = vrot.lane.b32.xlu0 %v8692, 48
      %v9384 = vpop.permute.xlu0 %9383
      %9385 = vrot.lane.b32.xlu0 %v8693, 48
      %v9386 = vpop.permute.xlu0 %9385
      %9387 = vrot.lane.b32.xlu0 %v8694, 48
      %v9388 = vpop.permute.xlu0 %9387
      %9389 = vrot.lane.b32.xlu0 %v8695, 48
      %v9390 = vpop.permute.xlu0 %9389
      %9391 = vrot.lane.b32.xlu0 %v8696, 48
      %v9392 = vpop.permute.xlu0 %9391
      %9393 = vrot.lane.b32.xlu0 %v8697, 48
      %v9394 = vpop.permute.xlu0 %9393
      %9395 = vrot.lane.b32.xlu0 %v8741, 48
      %v9396 = vpop.permute.xlu0 %9395
      %9397 = vrot.lane.b32.xlu0 %v8750, 48
      %v9398 = vpop.permute.xlu0 %9397
      %9408 = vrot.lane.b32.xlu0 %v8700, 64
      %v9409 = vpop.permute.xlu0 %9408
      %9410 = vrot.lane.b32.xlu0 %v8701, 64
      %v9411 = vpop.permute.xlu0 %9410
      %9412 = vrot.lane.b32.xlu0 %v8702, 64
      %v9413 = vpop.permute.xlu0 %9412
      %9414 = vrot.lane.b32.xlu0 %v8703, 64
      %v9415 = vpop.permute.xlu0 %9414
      %9416 = vrot.lane.b32.xlu0 %v8704, 64
      %v9417 = vpop.permute.xlu0 %9416
      %9418 = vrot.lane.b32.xlu0 %v8705, 64
      %v9419 = vpop.permute.xlu0 %9418
      %9420 = vrot.lane.b32.xlu0 %v8742, 64
      %v9421 = vpop.permute.xlu0 %9420
      %9422 = vrot.lane.b32.xlu0 %v8751, 64
      %v9423 = vpop.permute.xlu0 %9422
      %9433 = vrot.lane.b32.xlu0 %v8708, 72
      %v9434 = vpop.permute.xlu0 %9433
      %9435 = vrot.lane.b32.xlu0 %v8709, 72
      %v9436 = vpop.permute.xlu0 %9435
      %9437 = vrot.lane.b32.xlu0 %v8710, 72
      %v9438 = vpop.permute.xlu0 %9437
      %9439 = vrot.lane.b32.xlu0 %v8711, 72
      %v9440 = vpop.permute.xlu0 %9439
      %9441 = vrot.lane.b32.xlu0 %v8712, 72
      %v9442 = vpop.permute.xlu0 %9441
      %9443 = vrot.lane.b32.xlu0 %v8713, 72
      %v9444 = vpop.permute.xlu0 %9443
      %9445 = vrot.lane.b32.xlu0 %v8743, 72
      %v9446 = vpop.permute.xlu0 %9445
      %9447 = vrot.lane.b32.xlu0 %v8752, 72
      %v9448 = vpop.permute.xlu0 %9447
      %9458 = vrot.lane.b32.xlu0 %v8716, 80
      %v9459 = vpop.permute.xlu0 %9458
      %9460 = vrot.lane.b32.xlu0 %v8717, 80
      %v9461 = vpop.permute.xlu0 %9460
      %9462 = vrot.lane.b32.xlu0 %v8718, 80
      %v9463 = vpop.permute.xlu0 %9462
      %9464 = vrot.lane.b32.xlu0 %v8719, 80
      %v9465 = vpop.permute.xlu0 %9464
      %9466 = vrot.lane.b32.xlu0 %v8720, 80
      %v9467 = vpop.permute.xlu0 %9466
      %9468 = vrot.lane.b32.xlu0 %v8721, 80
      %v9469 = vpop.permute.xlu0 %9468
      %9470 = vrot.lane.b32.xlu0 %v8744, 80
      %v9471 = vpop.permute.xlu0 %9470
      %9472 = vrot.lane.b32.xlu0 %v8753, 80
      %v9473 = vpop.permute.xlu0 %9472
      %9484 = vrot.lane.b32.xlu0 %v8724, 96
      %v9485 = vpop.permute.xlu0 %9484
      %9486 = vrot.lane.b32.xlu0 %v8725, 96
      %v9487 = vpop.permute.xlu0 %9486
      %9488 = vrot.lane.b32.xlu0 %v8726, 96
      %v9489 = vpop.permute.xlu0 %9488
      %9490 = vrot.lane.b32.xlu0 %v8727, 96
      %v9491 = vpop.permute.xlu0 %9490
      %9492 = vrot.lane.b32.xlu0 %v8728, 96
      %v9493 = vpop.permute.xlu0 %9492
      %9494 = vrot.lane.b32.xlu0 %v8729, 96
      %v9495 = vpop.permute.xlu0 %9494
      %9496 = vrot.lane.b32.xlu0 %v8745, 96
      %v9497 = vpop.permute.xlu0 %9496
      %9498 = vrot.lane.b32.xlu0 %v8754, 96
      %v9499 = vpop.permute.xlu0 %9498
      %9509 = vrot.lane.b32.xlu0 %v8732, 104
      %v9510 = vpop.permute.xlu0 %9509
      %9511 = vrot.lane.b32.xlu0 %v8733, 104
      %v9512 = vpop.permute.xlu0 %9511
      %9513 = vrot.lane.b32.xlu0 %v8734, 104
      %v9514 = vpop.permute.xlu0 %9513
      %9515 = vrot.lane.b32.xlu0 %v8735, 104
      %v9516 = vpop.permute.xlu0 %9515
      %9517 = vrot.lane.b32.xlu0 %v8736, 104
      %v9518 = vpop.permute.xlu0 %9517
      %9519 = vrot.lane.b32.xlu0 %v8737, 104
      %v9520 = vpop.permute.xlu0 %9519
      %9521 = vrot.lane.b32.xlu0 %v8746, 104
      %v9522 = vpop.permute.xlu0 %9521
      %9523 = vrot.lane.b32.xlu0 %v8755, 104
      %v9524 = vpop.permute.xlu0 %9523
      %v9533 = vsel %vm7295, %v8723, %v9283
      %v9534 = vsel %vm7295, %v8724, %v9285
      %v9535 = vsel %vm7295, %v8725, %v9287
      %v9536 = vsel %vm7295, %v8726, %v9289
      %v9537 = vsel %vm7295, %v8727, %v9291
      %v9538 = vsel %vm7295, %v8728, %v9293
      %v9539 = vsel %vm7295, %v8729, %v9295
      %v9540 = vsel %vm7295, %v8745, %v9297
      %v9541 = vsel %vm1462, %v9533, %v9308
      %v9542 = vsel %vm1462, %v9534, %v9310
      %v9543 = vsel %vm1462, %v9535, %v9312
      %v9544 = vsel %vm1462, %v9536, %v9314
      %v9545 = vsel %vm1462, %v9537, %v9316
      %v9546 = vsel %vm1462, %v9538, %v9318
      %v9547 = vsel %vm1462, %v9539, %v9320
      %v9548 = vsel %vm1462, %v9540, %v9322
      %v9549 = vsel %vm1471, %v9541, %v9333
      %v9550 = vsel %vm1471, %v9542, %v9335
      %v9551 = vsel %vm1471, %v9543, %v9337
      %v9552 = vsel %vm1471, %v9544, %v9339
      %v9553 = vsel %vm1471, %v9545, %v9341
      %v9554 = vsel %vm1471, %v9546, %v9343
      %v9555 = vsel %vm1471, %v9547, %v9345
      %v9556 = vsel %vm1471, %v9548, %v9347
      %v9557 = vsel %vm8198, %v9549, %v9358
      %v9558 = vsel %vm8198, %v9550, %v9360
      %v9559 = vsel %vm8198, %v9551, %v9362
      %v9560 = vsel %vm8198, %v9552, %v9364
      %v9561 = vsel %vm8198, %v9553, %v9366
      %v9562 = vsel %vm8198, %v9554, %v9368
      %v9563 = vsel %vm8198, %v9555, %v9370
      %v9564 = vsel %vm8198, %v9556, %v9372
      %v9565 = vsel %vm1480, %v9557, %v9384
      %v9566 = vsel %vm1480, %v9558, %v9386
      %v9567 = vsel %vm1480, %v9559, %v9388
      %v9568 = vsel %vm1480, %v9560, %v9390
      %v9569 = vsel %vm1480, %v9561, %v9392
      %v9570 = vsel %vm1480, %v9562, %v9394
      %v9571 = vsel %vm1480, %v9563, %v9396
      %v9572 = vsel %vm1480, %v9564, %v9398
      %v9573 = vsel %vm1489, %v9565, %v9409
      %v9574 = vsel %vm1489, %v9566, %v9411
      %v9575 = vsel %vm1489, %v9567, %v9413
      %v9576 = vsel %vm1489, %v9568, %v9415
      %v9577 = vsel %vm1489, %v9569, %v9417
      %v9578 = vsel %vm1489, %v9570, %v9419
      %v9579 = vsel %vm1489, %v9571, %v9421
      %v9580 = vsel %vm1489, %v9572, %v9423
      %v9581 = vsel %vm8223, %v9573, %v9434
      %v9582 = vsel %vm8223, %v9574, %v9436
      %v9583 = vsel %vm8223, %v9575, %v9438
      %v9584 = vsel %vm8223, %v9576, %v9440
      %v9585 = vsel %vm8223, %v9577, %v9442
      %v9586 = vsel %vm8223, %v9578, %v9444
      %v9587 = vsel %vm8223, %v9579, %v9446
      %v9588 = vsel %vm8223, %v9580, %v9448
      %v9589 = vsel %vm1498, %v9581, %v9459
      %v9590 = vsel %vm1498, %v9582, %v9461
      %v9591 = vsel %vm1498, %v9583, %v9463
      %v9592 = vsel %vm1498, %v9584, %v9465
      %v9593 = vsel %vm1498, %v9585, %v9467
      %v9594 = vsel %vm1498, %v9586, %v9469
      %v9595 = vsel %vm1498, %v9587, %v9471
      %v9596 = vsel %vm1498, %v9588, %v9473
      %v9597 = vsel %vm1507, %v9589, %v9485
      %v9598 = vsel %vm1507, %v9590, %v9487
      %v9599 = vsel %vm1507, %v9591, %v9489
      %v9600 = vsel %vm1507, %v9592, %v9491
      %v9601 = vsel %vm1507, %v9593, %v9493
      %v9602 = vsel %vm1507, %v9594, %v9495
      %v9603 = vsel %vm1507, %v9595, %v9497
      %v9604 = vsel %vm1507, %v9596, %v9499
      %v9605 = vsel %vm8248, %v9597, %v9510
      %v9606 = vsel %vm8248, %v9598, %v9512
      %v9607 = vsel %vm8248, %v9599, %v9514
      %v9608 = vsel %vm8248, %v9600, %v9516
      %v9609 = vsel %vm8248, %v9601, %v9518
      %v9610 = vsel %vm8248, %v9602, %v9520
      %v9611 = vsel %vm8248, %v9603, %v9522
      %v9612 = vsel %vm8248, %v9604, %v9524
      %9621 = vrot.lane.b32.xlu0 %v9605, 48
      %v9622 = vpop.permute.xlu0 %9621
      %9623 = vrot.lane.b32.xlu0 %v9606, 48
      %v9624 = vpop.permute.xlu0 %9623
      %9625 = vrot.lane.b32.xlu0 %v9607, 48
      %v9626 = vpop.permute.xlu0 %9625
      %9627 = vrot.lane.b32.xlu0 %v9608, 48
      %v9628 = vpop.permute.xlu0 %9627
      %9629 = vrot.lane.b32.xlu0 %v9609, 48
      %v9630 = vpop.permute.xlu0 %9629
      %9631 = vrot.lane.b32.xlu0 %v9610, 48
      %v9632 = vpop.permute.xlu0 %9631
      %9633 = vrot.lane.b32.xlu0 %v9611, 48
      %v9634 = vpop.permute.xlu0 %9633
      %9635 = vrot.lane.b32.xlu0 %v9612, 48
      %v9636 = vpop.permute.xlu0 %9635
      %v9645 = vsel %vm1480, %v9273, %v9622
      %v9646 = vsel %vm1480, %v9274, %v9624
      %v9647 = vsel %vm1480, %v9275, %v9626
      %v9648 = vsel %vm1480, %v9276, %v9628
      %v9649 = vsel %vm1480, %v9277, %v9630
      %v9650 = vsel %vm1480, %v9278, %v9632
      %v9651 = vsel %vm1480, %v9279, %v9634
      %v9652 = vsel %vm1480, %v9280, %v9636
      %v9653 = vpack.c.bf16 %v9250, %v9249
      %v9654 = vpack.c.bf16 %v9646, %v9645
      %v9655 = vpack.c.bf16 %v9624, %v9622
      %v9656 = vpack.c.bf16 %v9252, %v9251
      %v9657 = vpack.c.bf16 %v9648, %v9647
      %v9658 = vpack.c.bf16 %v9628, %v9626
      %v9659 = vpack.c.bf16 %v9254, %v9253
      %v9660 = vpack.c.bf16 %v9650, %v9649
      %v9661 = vpack.c.bf16 %v9632, %v9630
      %v9662 = vpack.c.bf16 %v9256, %v9255
      %v9663 = vpack.c.bf16 %v9652, %v9651
      %v9664 = vpack.c.bf16 %v9636, %v9634
      %v9665 = vld [vmem:[%s15] sm:$0xf]
      %v9666 = vld [vmem:[%s15 + $0x4] sm:$0xf]
      %v9667 = vld [vmem:[%s15 + $0x8] sm:$0xf]
      %v9668 = vld [vmem:[%s15 + $0xc] sm:$0xf]
      %v9669 = vld [vmem:[%s15 + $0x10] sm:$0xf]
      %v9670 = vld [vmem:[%s15 + $0x14] sm:$0xf]
      %v9671 = vld [vmem:[%s15 + $0x18] sm:$0xf]
      %v9672 = vld [vmem:[%s15 + $0x1c] sm:$0xf]
      %v9673 = vld [vmem:[%s15 + $0x20] sm:$0xf]
      %v9674 = vld [vmem:[%s15 + $0x24] sm:$0xf]
      %v9675 = vld [vmem:[%s15 + $0x28] sm:$0xf]
      %v9676 = vld [vmem:[%s15 + $0x2c] sm:$0xf]
      %v9677 = vld [vmem:[%s15 + $0x30] sm:$0xf]
      %v9678 = vld [vmem:[%s15 + $0x34] sm:$0xf]
      %v9679 = vld [vmem:[%s15 + $0x38] sm:$0xf]
      %v9680 = vld [vmem:[%s15 + $0x3c] sm:$0xf]
      %v9681 = vld [vmem:[%s15 + $0x40] sm:$0xf]
      %v9682 = vld [vmem:[%s15 + $0x44] sm:$0xf]
      %v9683 = vld [vmem:[%s15 + $0x48] sm:$0xf]
      %v9684 = vld [vmem:[%s15 + $0x4c] sm:$0xf]
      %v9685 = vld [vmem:[%s15 + $0x50] sm:$0xf]
      %v9686 = vld [vmem:[%s15 + $0x54] sm:$0xf]
      %v9687 = vld [vmem:[%s15 + $0x58] sm:$0xf]
      %v9688 = vld [vmem:[%s15 + $0x5c] sm:$0xf]
      %v9689 = vld [vmem:[%s15 + $0x60] sm:$0xf]
      %v9690 = vld [vmem:[%s15 + $0x64] sm:$0xf]
      %v9691 = vld [vmem:[%s15 + $0x68] sm:$0xf]
      %v9692 = vld [vmem:[%s15 + $0x6c] sm:$0xf]
      %v9693 = vld [vmem:[%s15 + $0x70] sm:$0xf]
      %v9694 = vld [vmem:[%s15 + $0x74] sm:$0xf]
      %v9695 = vld [vmem:[%s15 + $0x78] sm:$0xf]
      %v9696 = vld [vmem:[%s15 + $0x7c] sm:$0xf]
      %v9697 = vld [vmem:[%s15 + $0x80] sm:$0xf]
      %v9698 = vld [vmem:[%s15 + $0x84] sm:$0xf]
      %v9699 = vld [vmem:[%s15 + $0x88] sm:$0xf]
      %v9700 = vld [vmem:[%s15 + $0x8c] sm:$0xf]
      %v9701 = vld [vmem:[%s16] sm:$0x1]
      %v9703 = vlaneseq
      %v9704 = vshrl.u32 %v9703, 7
      %v9705 = vsub.s32 0, %v9704
      %v9706 = vrot.slane %v9701, %v9705
      %v9744 = vunpack.c.l.b16 %v9665
      %v9745 = vunpack.c.l.b16 %v9666
      %v9746 = vunpack.c.l.b16 %v9667
      %v9747 = vunpack.c.l.b16 %v9668
      %v9748 = vunpack.c.l.b16 %v9669
      %v9749 = vunpack.c.l.b16 %v9670
      %v9750 = vunpack.c.l.b16 %v9671
      %v9751 = vunpack.c.l.b16 %v9672
      %v9752 = vunpack.c.l.b16 %v9673
      %v9753 = vunpack.c.l.b16 %v9674
      %v9754 = vunpack.c.l.b16 %v9675
      %v9755 = vunpack.c.l.b16 %v9676
      %v9756 = vunpack.c.l.b16 %v9677
      %v9757 = vunpack.c.l.b16 %v9678
      %v9758 = vunpack.c.l.b16 %v9679
      %v9759 = vunpack.c.l.b16 %v9680
      %v9760 = vunpack.c.l.b16 %v9681
      %v9761 = vunpack.c.l.b16 %v9682
      %v9762 = vunpack.c.l.b16 %v9683
      %v9763 = vunpack.c.l.b16 %v9684
      %v9764 = vunpack.c.l.b16 %v9685
      %v9765 = vunpack.c.l.b16 %v9686
      %v9766 = vunpack.c.l.b16 %v9687
      %v9767 = vunpack.c.l.b16 %v9688
      %v9768 = vunpack.c.l.b16 %v9689
      %v9769 = vunpack.c.l.b16 %v9690
      %v9770 = vunpack.c.l.b16 %v9691
      %v9771 = vunpack.c.l.b16 %v9692
      %v9772 = vunpack.c.l.b16 %v9693
      %v9773 = vunpack.c.l.b16 %v9694
      %v9774 = vunpack.c.l.b16 %v9695
      %v9775 = vunpack.c.l.b16 %v9696
      %v9776 = vunpack.c.l.b16 %v9697
      %v9777 = vunpack.c.l.b16 %v9698
      %v9778 = vunpack.c.l.b16 %v9699
      %v9779 = vunpack.c.l.b16 %v9700
      %v9780 = vpack.c.b16 %v9745, %v9744
      %v9781 = vpack.c.b16 %v9747, %v9746
      %v9782 = vpack.c.b16 %v9749, %v9748
      %v9783 = vpack.c.b16 %v9751, %v9750
      %v9784 = vpack.c.b16 %v9753, %v9752
      %v9785 = vpack.c.b16 %v9755, %v9754
      %v9786 = vpack.c.b16 %v9757, %v9756
      %v9787 = vpack.c.b16 %v9759, %v9758
      %v9788 = vpack.c.b16 %v9761, %v9760
      %v9789 = vpack.c.b16 %v9763, %v9762
      %v9790 = vpack.c.b16 %v9765, %v9764
      %v9791 = vpack.c.b16 %v9767, %v9766
      %v9792 = vpack.c.b16 %v9769, %v9768
      %v9793 = vpack.c.b16 %v9771, %v9770
      %v9794 = vpack.c.b16 %v9773, %v9772
      %v9795 = vpack.c.b16 %v9775, %v9774
      %v9796 = vpack.c.b16 %v9777, %v9776
      %v9797 = vpack.c.b16 %v9779, %v9778
      %v9817 = vsel %vm1471, %v9655, 0
      %v9820 = vsel %vm1471, %v9658, 0
      %v9823 = vsel %vm1471, %v9661, 0
      %v9826 = vsel %vm1471, %v9664, 0
      %9828 = vmatprep.subr.bf16.mxu0 0
      %9829 = vmatpush1.bf16.msra.mxu0 %v9780
      %9830 = vmatprep.subr.bf16.mxu0 0
      %9831 = vmatpush1.bf16.msra.mxu0 %v9781
      %9832 = vmatprep.subr.bf16.mxu0 0
      %9833 = vmatpush1.bf16.msra.mxu0 %v9782
      %9834 = vmatprep.subr.bf16.mxu0 0
      %9835 = vmatpush1.bf16.msra.mxu0 %v9783
      %9836 = vmatprep.subr.bf16.mxu0 0
      %9837 = vmatpush1.bf16.msra.mxu0 %v9784
      %9838 = vmatprep.subr.bf16.mxu0 0
      %9839 = vmatpush1.bf16.msra.mxu0 %v9785
      %9840 = vmatprep.subr.bf16.mxu0 0
      %9841 = vmatpush1.bf16.msra.mxu0 %v9786
      %9842 = vmatprep.subr.bf16.mxu0 0
      %9843 = vmatpush1.bf16.msra.mxu0 %v9787
      %9844 = vmatprep.subr.bf16.mxu0 0
      %9845 = vmatpush1.bf16.msra.mxu0 %v9788
      %9846 = vmatprep.subr.bf16.mxu0 0
      %9847 = vmatpush1.bf16.msra.mxu0 %v9789
      %9848 = vmatprep.subr.bf16.mxu0 0
      %9849 = vmatpush1.bf16.msra.mxu0 %v9790
      %9850 = vmatprep.subr.bf16.mxu0 0
      %9851 = vmatpush1.bf16.msra.mxu0 %v9791
      %9852 = vmatprep.subr.bf16.mxu0 0
      %9853 = vmatpush1.bf16.msra.mxu0 %v9792
      %9854 = vmatprep.subr.bf16.mxu0 0
      %9855 = vmatpush1.bf16.msra.mxu0 %v9793
      %9856 = vmatprep.subr.bf16.mxu0 0
      %9857 = vmatpush1.bf16.msra.mxu0 %v9794
      %9858 = vmatprep.subr.bf16.mxu0 0
      %9859 = vmatpush1.bf16.msra.mxu0 %v9795
      %9860 = vmatprep.mubr.bf16.mxu0 %v9654
      %9861 = vmatmul.mubr.bf16.gmra.mrb[0].mxu0 %v9653
      %v9862 = vpop.f32.mrb[0].mxu0
      %v9863 = vadd.f32 %v9706, %v9862
      %v9864 = vpop.f32.mrb[0].mxu0
      %v9865 = vpop.f32.mrb[0].mxu0
      %v9866 = vadd.f32 %v9706, %v9865
      %v9867 = vpop.f32.mrb[0].mxu0
      %9868 = vmatprep.mubr.bf16.mxu0 %v9657
      %9869 = vmatmul.mubr.bf16.gmra.mrb[0].mxu0 %v9656
      %v9870 = vpop.f32.mrb[0].mxu0
      %v9871 = vadd.f32 %v9706, %v9870
      %v9872 = vpop.f32.mrb[0].mxu0
      %v9873 = vpop.f32.mrb[0].mxu0
      %v9874 = vadd.f32 %v9706, %v9873
      %v9875 = vpop.f32.mrb[0].mxu0
      %9876 = vmatprep.mubr.bf16.mxu0 %v9660
      %9877 = vmatmul.mubr.bf16.gmra.mrb[0].mxu0 %v9659
      %v9878 = vpop.f32.mrb[0].mxu0
      %v9879 = vadd.f32 %v9706, %v9878
      %v9880 = vpop.f32.mrb[0].mxu0
      %v9881 = vpop.f32.mrb[0].mxu0
      %v9882 = vadd.f32 %v9706, %v9881
      %v9883 = vpop.f32.mrb[0].mxu0
      %9884 = vmatprep.mubr.bf16.mxu0 %v9663
      %9885 = vmatmul.mubr.bf16.gmra.mrb[0].mxu0 %v9662
      %v9886 = vpop.f32.mrb[0].mxu0
      %v9887 = vadd.f32 %v9706, %v9886
      %v9888 = vpop.f32.mrb[0].mxu0
      %v9889 = vpop.f32.mrb[0].mxu0
      %v9890 = vadd.f32 %v9706, %v9889
      %v9891 = vpop.f32.mrb[0].mxu0
      %9892 = vdwg.mxu0
      %9893 = vmatprep.subr.bf16.mxu0 0
      %9894 = vmatpush1.bf16.msra.mxu0 %v9796
      %9895 = vmatprep.subr.bf16.mxu0 0
      %9896 = vmatpush1.bf16.msra.mxu0 %v9797
      %9897 = vmatprep.subr.bf16.mxu0 0
      %9898 = vmatpush1.bf16.msra.mxu0 0
      %9899 = vmatprep.subr.bf16.mxu0 0
      %9900 = vmatpush1.bf16.msra.mxu0 0
      %9901 = vmatprep.subr.bf16.mxu0 0
      %9902 = vmatpush1.bf16.msra.mxu0 0
      %9903 = vmatprep.subr.bf16.mxu0 0
      %9904 = vmatpush1.bf16.msra.mxu0 0
      %9905 = vmatprep.subr.bf16.mxu0 0
      %9906 = vmatpush1.bf16.msra.mxu0 0
      %9907 = vmatprep.subr.bf16.mxu0 0
      %9908 = vmatpush1.bf16.msra.mxu0 0
      %9909 = vmatprep.subr.bf16.mxu0 0
      %9910 = vmatpush1.bf16.msra.mxu0 0
      %9911 = vmatprep.subr.bf16.mxu0 0
      %9912 = vmatpush1.bf16.msra.mxu0 0
      %9913 = vmatprep.subr.bf16.mxu0 0
      %9914 = vmatpush1.bf16.msra.mxu0 0
      %9915 = vmatprep.subr.bf16.mxu0 0
      %9916 = vmatpush1.bf16.msra.mxu0 0
      %9917 = vmatprep.subr.bf16.mxu0 0
      %9918 = vmatpush1.bf16.msra.mxu0 0
      %9919 = vmatprep.subr.bf16.mxu0 0
      %9920 = vmatpush1.bf16.msra.mxu0 0
      %9921 = vmatprep.subr.bf16.mxu0 0
      %9922 = vmatpush1.bf16.msra.mxu0 0
      %9923 = vmatprep.subr.bf16.mxu0 0
      %9924 = vmatpush1.bf16.msra.mxu0 0
      %9925 = vmatprep.mubr.bf16.mxu0 0
      %9926 = vmatmul.mubr.bf16.gmra.mrb[0].mxu0 %v9817
      %v9927 = vpop.f32.mrb[0].mxu0
      %v9928 = vadd.f32 %v9863, %v9927
      %v9929 = vpop.f32.mrb[0].mxu0
      %v9930 = vpop.f32.mrb[0].mxu0
      %v9931 = vadd.f32 %v9866, %v9930
      %v9932 = vpop.f32.mrb[0].mxu0
      %9933 = vmatprep.mubr.bf16.mxu0 0
      %9934 = vmatmul.mubr.bf16.gmra.mrb[0].mxu0 %v9820
      %v9935 = vpop.f32.mrb[0].mxu0
      %v9936 = vadd.f32 %v9871, %v9935
      %v9937 = vpop.f32.mrb[0].mxu0
      %v9938 = vpop.f32.mrb[0].mxu0
      %v9939 = vadd.f32 %v9874, %v9938
      %v9940 = vpop.f32.mrb[0].mxu0
      %9941 = vmatprep.mubr.bf16.mxu0 0
      %9942 = vmatmul.mubr.bf16.gmra.mrb[0].mxu0 %v9823
      %v9943 = vpop.f32.mrb[0].mxu0
      %v9944 = vadd.f32 %v9879, %v9943
      %v9945 = vpop.f32.mrb[0].mxu0
      %v9946 = vpop.f32.mrb[0].mxu0
      %v9947 = vadd.f32 %v9882, %v9946
      %v9948 = vpop.f32.mrb[0].mxu0
      %9949 = vmatprep.mubr.bf16.mxu0 0
      %9950 = vmatmul.mubr.bf16.gmra.mrb[0].mxu0 %v9826
      %v9951 = vpop.f32.mrb[0].mxu0
      %v9952 = vadd.f32 %v9887, %v9951
      %v9953 = vpop.f32.mrb[0].mxu0
      %v9954 = vpop.f32.mrb[0].mxu0
      %v9955 = vadd.f32 %v9890, %v9954
      %v9956 = vpop.f32.mrb[0].mxu0
      %9957 = vdwg.mxu0
      %v9958 = vtanh.pop %v9928
      %v9959 = vtanh.pop %v9931
      %v9960 = vtanh.pop %v9936
      %v9961 = vtanh.pop %v9939
      %v9962 = vtanh.pop %v9944
      %v9963 = vtanh.pop %v9947
      %v9964 = vtanh.pop %v9952
      %v9965 = vtanh.pop %v9955
      %v9966 = vsub.f32 1.0, %v8635
      %v9967 = vsub.f32 1.0, %v8637
      %v9968 = vsub.f32 1.0, %v8639
      %v9969 = vsub.f32 1.0, %v8641
      %v9970 = vsub.f32 1.0, %v8643
      %v9971 = vsub.f32 1.0, %v8645
      %v9972 = vsub.f32 1.0, %v8647
      %v9973 = vsub.f32 1.0, %v8649
      %9974 = vrot.lane.b32.xlu0 %v7329, 16
      %v9975 = vpop.permute.xlu0 %9974
      %9976 = vrot.lane.b32.xlu0 %v7330, 16
      %v9977 = vpop.permute.xlu0 %9976
      %9978 = vrot.lane.b32.xlu0 %v7331, 16
      %v9979 = vpop.permute.xlu0 %9978
      %9980 = vrot.lane.b32.xlu0 %v7332, 16
      %v9981 = vpop.permute.xlu0 %9980
      %9982 = vrot.lane.b32.xlu0 %v7333, 16
      %v9983 = vpop.permute.xlu0 %9982
      %9984 = vrot.lane.b32.xlu0 %v7334, 16
      %v9985 = vpop.permute.xlu0 %9984
      %9986 = vrot.lane.b32.xlu0 %v7335, 16
      %v9987 = vpop.permute.xlu0 %9986
      %9988 = vrot.lane.b32.xlu0 %v7379, 16
      %v9989 = vpop.permute.xlu0 %9988
      %v9998 = vmul.f32 %v9966, %v9975
      %v9999 = vmul.f32 %v9967, %v9977
      %v10000 = vmul.f32 %v9968, %v9979
      %v10001 = vmul.f32 %v9969, %v9981
      %v10002 = vmul.f32 %v9970, %v9983
      %v10003 = vmul.f32 %v9971, %v9985
      %v10004 = vmul.f32 %v9972, %v9987
      %v10005 = vmul.f32 %v9973, %v9989
      %10014 = vrot.lane.b32.xlu0 %v9958, 16
      %v10015 = vpop.permute.xlu0 %10014
      %10016 = vrot.lane.b32.xlu0 %v9959, 16
      %v10017 = vpop.permute.xlu0 %10016
      %10018 = vrot.lane.b32.xlu0 %v9960, 16
      %v10019 = vpop.permute.xlu0 %10018
      %10020 = vrot.lane.b32.xlu0 %v9961, 16
      %v10021 = vpop.permute.xlu0 %10020
      %10022 = vrot.lane.b32.xlu0 %v9962, 16
      %v10023 = vpop.permute.xlu0 %10022
      %10024 = vrot.lane.b32.xlu0 %v9963, 16
      %v10025 = vpop.permute.xlu0 %10024
      %10026 = vrot.lane.b32.xlu0 %v9964, 16
      %v10027 = vpop.permute.xlu0 %10026
      %10028 = vrot.lane.b32.xlu0 %v9965, 16
      %v10029 = vpop.permute.xlu0 %10028
      %v10038 = vmul.f32 %v8635, %v10015
      %v10039 = vmul.f32 %v8637, %v10017
      %v10040 = vmul.f32 %v8639, %v10019
      %v10041 = vmul.f32 %v8641, %v10021
      %v10042 = vmul.f32 %v8643, %v10023
      %v10043 = vmul.f32 %v8645, %v10025
      %v10044 = vmul.f32 %v8647, %v10027
      %v10045 = vmul.f32 %v8649, %v10029
      %v10046 = vadd.f32 %v9998, %v10038
      %v10047 = vadd.f32 %v9999, %v10039
      %v10048 = vadd.f32 %v10000, %v10040
      %v10049 = vadd.f32 %v10001, %v10041
      %v10050 = vadd.f32 %v10002, %v10042
      %v10051 = vadd.f32 %v10003, %v10043
      %v10052 = vadd.f32 %v10004, %v10044
      %v10053 = vadd.f32 %v10005, %v10045
      %v10054 = vmul.f32 %v10046, %v5887
      %v10055 = vmul.f32 %v10047, %v5892
      %v10056 = vmul.f32 %v10048, %v5897
      %v10057 = vmul.f32 %v10049, %v5902
      %v10058 = vmul.f32 %v10050, %v5907
      %v10059 = vmul.f32 %v10051, %v5912
      %v10060 = vmul.f32 %v10052, %v5917
      %v10061 = vmul.f32 %v10053, %v5922
      %10070 = vrot.lane.b32.xlu0 %v10054, 112
      %v10071 = vpop.permute.xlu0 %10070
      %10072 = vrot.lane.b32.xlu0 %v10055, 112
      %v10073 = vpop.permute.xlu0 %10072
      %10074 = vrot.lane.b32.xlu0 %v10056, 112
      %v10075 = vpop.permute.xlu0 %10074
      %10076 = vrot.lane.b32.xlu0 %v10057, 112
      %v10077 = vpop.permute.xlu0 %10076
      %10078 = vrot.lane.b32.xlu0 %v10058, 112
      %v10079 = vpop.permute.xlu0 %10078
      %10080 = vrot.lane.b32.xlu0 %v10059, 112
      %v10081 = vpop.permute.xlu0 %10080
      %10082 = vrot.lane.b32.xlu0 %v10060, 112
      %v10083 = vpop.permute.xlu0 %10082
      %10084 = vrot.lane.b32.xlu0 %v10061, 112
      %v10085 = vpop.permute.xlu0 %10084
      %10094 = vst.msk [vmem:[#allocation3 + $0x18] sm:$0xff] %vm1462, %v10071
      %10095 = vst.msk [vmem:[#allocation3 + $0x20] sm:$0xff] %vm1462, %v10073
      %10096 = vst.msk [vmem:[#allocation3 + $0x28] sm:$0xff] %vm1462, %v10075
      %10097 = vst.msk [vmem:[#allocation3 + $0x30] sm:$0xff] %vm1462, %v10077
      %10098 = vst.msk [vmem:[#allocation3 + $0x38] sm:$0xff] %vm1462, %v10079
      %10099 = vst.msk [vmem:[#allocation3 + $0x40] sm:$0xff] %vm1462, %v10081
      %10100 = vst.msk [vmem:[#allocation3 + $0x48] sm:$0xff] %vm1462, %v10083
      %10101 = vst.msk [vmem:[#allocation3 + $0x50] sm:$0xff] %vm1462, %v10085
      %v10102 = vld [vmem:[#allocation7] sm:$0xff]
      %v10103 = vld [vmem:[#allocation7 + $0x8] sm:$0xff]
      %v10104 = vld [vmem:[#allocation7 + $0x10] sm:$0xff]
      %v10105 = vld [vmem:[#allocation7 + $0x18] sm:$0xff]
      %v10106 = vld [vmem:[#allocation7 + $0x20] sm:$0xff]
      %v10107 = vld [vmem:[#allocation7 + $0x28] sm:$0xff]
      %v10108 = vld [vmem:[#allocation7 + $0x30] sm:$0xff]
      %v10109 = vld [vmem:[#allocation7 + $0x38] sm:$0xff]
      %v10110 = vld [vmem:[#allocation7 + $0x40] sm:$0xff]
      %v10111 = vld [vmem:[#allocation7 + $0x48] sm:$0xff]
      %v10112 = vld [vmem:[#allocation7 + $0x50] sm:$0xff]
      %v10113 = vld [vmem:[#allocation7 + $0x58] sm:$0xff]
      %v10114 = vld [vmem:[#allocation7 + $0x60] sm:$0xff]
      %v10115 = vld [vmem:[#allocation7 + $0x68] sm:$0xff]
      %v10116 = vld [vmem:[#allocation7 + $0x70] sm:$0xff]
      %v10117 = vld [vmem:[#allocation7 + $0x78] sm:$0xff]
      %v10118 = vpack.c.bf16 %v10055, %v10054
      %v10119 = vpack.c.bf16 %v10057, %v10056
      %v10120 = vpack.c.bf16 %v10059, %v10058
      %v10121 = vpack.c.bf16 %v10061, %v10060
      %v10122 = vld [vmem:[%s17] sm:$0xff]
      %v10123 = vld [vmem:[%s17 + $0x8] sm:$0xff]
      %10128 = vrot.lane.b32.xlu0 %v10118, 112
      %v10129 = vpop.permute.xlu0 %10128
      %10130 = vrot.lane.b32.xlu0 %v10119, 112
      %v10131 = vpop.permute.xlu0 %10130
      %10132 = vrot.lane.b32.xlu0 %v10120, 112
      %v10133 = vpop.permute.xlu0 %10132
      %10134 = vrot.lane.b32.xlu0 %v10121, 112
      %v10135 = vpop.permute.xlu0 %10134
      %v10138 = vunpack.c.l.b16 %v10122
      %v10139 = vunpack.c.h.b16 %v10122
      %v10140 = vunpack.c.l.b16 %v10123
      %v10141 = vunpack.c.h.b16 %v10123
      %v10142 = vpack.c.b16 %v10140, %v10138
      %v10143 = vpack.c.b16 %v10141, %v10139
      %v10147 = vsel %vm1462, %v10129, 0
      %v10150 = vsel %vm1462, %v10131, 0
      %v10153 = vsel %vm1462, %v10133, 0
      %v10156 = vsel %vm1462, %v10135, 0
      %10158 = vmatprep.subr.bf16.mxu0 %v10143
      %10159 = vmatpush1.bf16.msra.mxu0 %v10142
      %10160 = vmatprep.subr.bf16.mxu0 0
      %10161 = vmatpush1.bf16.msra.mxu0 0
      %10162 = vmatprep.subr.bf16.mxu0 0
      %10163 = vmatpush1.bf16.msra.mxu0 0
      %10164 = vmatprep.subr.bf16.mxu0 0
      %10165 = vmatpush1.bf16.msra.mxu0 0
      %10166 = vmatprep.subr.bf16.mxu0 0
      %10167 = vmatpush1.bf16.msra.mxu0 0
      %10168 = vmatprep.subr.bf16.mxu0 0
      %10169 = vmatpush1.bf16.msra.mxu0 0
      %10170 = vmatprep.subr.bf16.mxu0 0
      %10171 = vmatpush1.bf16.msra.mxu0 0
      %10172 = vmatprep.subr.bf16.mxu0 0
      %10173 = vmatpush1.bf16.msra.mxu0 0
      %10174 = vmatprep.subr.bf16.mxu0 0
      %10175 = vmatpush1.bf16.msra.mxu0 0
      %10176 = vmatprep.subr.bf16.mxu0 0
      %10177 = vmatpush1.bf16.msra.mxu0 0
      %10178 = vmatprep.subr.bf16.mxu0 0
      %10179 = vmatpush1.bf16.msra.mxu0 0
      %10180 = vmatprep.subr.bf16.mxu0 0
      %10181 = vmatpush1.bf16.msra.mxu0 0
      %10182 = vmatprep.subr.bf16.mxu0 0
      %10183 = vmatpush1.bf16.msra.mxu0 0
      %10184 = vmatprep.subr.bf16.mxu0 0
      %10185 = vmatpush1.bf16.msra.mxu0 0
      %10186 = vmatprep.subr.bf16.mxu0 0
      %10187 = vmatpush1.bf16.msra.mxu0 0
      %10188 = vmatprep.subr.bf16.mxu0 0
      %10189 = vmatpush1.bf16.msra.mxu0 0
      %10190 = vmatprep.mubr.bf16.mxu0 0
      %10191 = vmatmul.mubr.bf16.gmra.mrb[0].mxu0 %v10147
      %v10192 = vpop.f32.mrb[0].mxu0
      %v10193 = vadd.f32 0.0, %v10192
      %v10194 = vpop.f32.mrb[0].mxu0
      %v10195 = vadd.f32 0.0, %v10194
      %v10196 = vpop.f32.mrb[0].mxu0
      %v10197 = vadd.f32 0.0, %v10196
      %v10198 = vpop.f32.mrb[0].mxu0
      %v10199 = vadd.f32 0.0, %v10198
      %10200 = vmatprep.mubr.bf16.mxu0 0
      %10201 = vmatmul.mubr.bf16.gmra.mrb[0].mxu0 %v10150
      %v10202 = vpop.f32.mrb[0].mxu0
      %v10203 = vadd.f32 0.0, %v10202
      %v10204 = vpop.f32.mrb[0].mxu0
      %v10205 = vadd.f32 0.0, %v10204
      %v10206 = vpop.f32.mrb[0].mxu0
      %v10207 = vadd.f32 0.0, %v10206
      %v10208 = vpop.f32.mrb[0].mxu0
      %v10209 = vadd.f32 0.0, %v10208
      %10210 = vmatprep.mubr.bf16.mxu0 0
      %10211 = vmatmul.mubr.bf16.gmra.mrb[0].mxu0 %v10153
      %v10212 = vpop.f32.mrb[0].mxu0
      %v10213 = vadd.f32 0.0, %v10212
      %v10214 = vpop.f32.mrb[0].mxu0
      %v10215 = vadd.f32 0.0, %v10214
      %v10216 = vpop.f32.mrb[0].mxu0
      %v10217 = vadd.f32 0.0, %v10216
      %v10218 = vpop.f32.mrb[0].mxu0
      %v10219 = vadd.f32 0.0, %v10218
      %10220 = vmatprep.mubr.bf16.mxu0 0
      %10221 = vmatmul.mubr.bf16.gmra.mrb[0].mxu0 %v10156
      %v10222 = vpop.f32.mrb[0].mxu0
      %v10223 = vadd.f32 0.0, %v10222
      %v10224 = vpop.f32.mrb[0].mxu0
      %v10225 = vadd.f32 0.0, %v10224
      %v10226 = vpop.f32.mrb[0].mxu0
      %v10227 = vadd.f32 0.0, %v10226
      %v10228 = vpop.f32.mrb[0].mxu0
      %v10229 = vadd.f32 0.0, %v10228
      %10230 = vdwg.mxu0
      %v10231 = vadd.f32 %v10102, %v10193
      %v10232 = vadd.f32 %v10103, %v10195
      %v10233 = vadd.f32 %v10104, %v10197
      %v10234 = vadd.f32 %v10105, %v10199
      %v10235 = vadd.f32 %v10106, %v10203
      %v10236 = vadd.f32 %v10107, %v10205
      %v10237 = vadd.f32 %v10108, %v10207
      %v10238 = vadd.f32 %v10109, %v10209
      %v10239 = vadd.f32 %v10110, %v10213
      %v10240 = vadd.f32 %v10111, %v10215
      %v10241 = vadd.f32 %v10112, %v10217
      %v10242 = vadd.f32 %v10113, %v10219
      %v10243 = vadd.f32 %v10114, %v10223
      %v10244 = vadd.f32 %v10115, %v10225
      %v10245 = vadd.f32 %v10116, %v10227
      %v10246 = vadd.f32 %v10117, %v10229
      %10247 = vst [vmem:[#allocation7] sm:$0xff] %v10231
      %10248 = vst [vmem:[#allocation7 + $0x8] sm:$0xff] %v10232
      %10249 = vst [vmem:[#allocation7 + $0x10] sm:$0xff] %v10233
      %10250 = vst [vmem:[#allocation7 + $0x18] sm:$0xff] %v10234
      %10251 = vst [vmem:[#allocation7 + $0x20] sm:$0xff] %v10235
      %10252 = vst [vmem:[#allocation7 + $0x28] sm:$0xff] %v10236
      %10253 = vst [vmem:[#allocation7 + $0x30] sm:$0xff] %v10237
      %10254 = vst [vmem:[#allocation7 + $0x38] sm:$0xff] %v10238
      %10255 = vst [vmem:[#allocation7 + $0x40] sm:$0xff] %v10239
      %10256 = vst [vmem:[#allocation7 + $0x48] sm:$0xff] %v10240
      %10257 = vst [vmem:[#allocation7 + $0x50] sm:$0xff] %v10241
      %10258 = vst [vmem:[#allocation7 + $0x58] sm:$0xff] %v10242
      %10259 = vst [vmem:[#allocation7 + $0x60] sm:$0xff] %v10243
      %10260 = vst [vmem:[#allocation7 + $0x68] sm:$0xff] %v10244
      %10261 = vst [vmem:[#allocation7 + $0x70] sm:$0xff] %v10245
      %10262 = vst [vmem:[#allocation7 + $0x78] sm:$0xff] %v10246
      %v10263 = vld [vmem:[%s735] sm:$0xff]
      %v10264 = vld [vmem:[%s735 + $0x8] sm:$0xff]
      %v10265 = vld [vmem:[%s735 + $0x10] sm:$0xff]
      %v10266 = vld [vmem:[%s735 + $0x18] sm:$0xff]
      %v10267 = vld [vmem:[%s735 + $0x20] sm:$0xff]
      %v10268 = vld [vmem:[%s735 + $0x28] sm:$0xff]
      %v10269 = vld [vmem:[%s735 + $0x30] sm:$0xff]
      %v10270 = vld [vmem:[%s735 + $0x38] sm:$0xff]
      %v10271 = vlog2.pop %v2242
      %v10272 = vmul.f32 %v10271, 0.6931472
      %v10273 = vlog2.pop %v2243
      %v10274 = vmul.f32 %v10273, 0.6931472
      %v10275 = vlog2.pop %v2244
      %v10276 = vmul.f32 %v10275, 0.6931472
      %v10277 = vlog2.pop %v2245
      %v10278 = vmul.f32 %v10277, 0.6931472
      %v10279 = vlog2.pop %v2246
      %v10280 = vmul.f32 %v10279, 0.6931472
      %v10281 = vlog2.pop %v2247
      %v10282 = vmul.f32 %v10281, 0.6931472
      %v10283 = vlog2.pop %v2248
      %v10284 = vmul.f32 %v10283, 0.6931472
      %v10285 = vlog2.pop %v2249
      %v10286 = vmul.f32 %v10285, 0.6931472
      %v10287 = vlog2.pop %v7191
      %v10288 = vmul.f32 %v10287, 0.6931472
      %v10289 = vlog2.pop %v7192
      %v10290 = vmul.f32 %v10289, 0.6931472
      %v10291 = vlog2.pop %v7193
      %v10292 = vmul.f32 %v10291, 0.6931472
      %v10293 = vlog2.pop %v7194
      %v10294 = vmul.f32 %v10293, 0.6931472
      %v10295 = vlog2.pop %v7195
      %v10296 = vmul.f32 %v10295, 0.6931472
      %v10297 = vlog2.pop %v7196
      %v10298 = vmul.f32 %v10297, 0.6931472
      %v10299 = vlog2.pop %v7197
      %v10300 = vmul.f32 %v10299, 0.6931472
      %v10301 = vlog2.pop %v7198
      %v10302 = vmul.f32 %v10301, 0.6931472
      %v10303 = vsub.f32 %v10272, %v10288
      %v10304 = vsub.f32 %v10274, %v10290
      %v10305 = vsub.f32 %v10276, %v10292
      %v10306 = vsub.f32 %v10278, %v10294
      %v10307 = vsub.f32 %v10280, %v10296
      %v10308 = vsub.f32 %v10282, %v10298
      %v10309 = vsub.f32 %v10284, %v10300
      %v10310 = vsub.f32 %v10286, %v10302
      %v10311 = vmul.f32 %v7191, %v7191
      %v10312 = vmul.f32 %v7192, %v7192
      %v10313 = vmul.f32 %v7193, %v7193
      %v10314 = vmul.f32 %v7194, %v7194
      %v10315 = vmul.f32 %v7195, %v7195
      %v10316 = vmul.f32 %v7196, %v7196
      %v10317 = vmul.f32 %v7197, %v7197
      %v10318 = vmul.f32 %v7198, %v7198
      %v10319 = vsub.f32 %v7097, %v2148
      %v10320 = vsub.f32 %v7100, %v2151
      %v10321 = vsub.f32 %v7105, %v2156
      %v10322 = vsub.f32 %v7108, %v2159
      %v10323 = vsub.f32 %v7113, %v2164
      %v10324 = vsub.f32 %v7116, %v2167
      %v10325 = vsub.f32 %v7121, %v2172
      %v10326 = vsub.f32 %v7124, %v2175
      %v10327 = vmul.f32 %v10319, %v10319
      %v10328 = vmul.f32 %v10320, %v10320
      %v10329 = vmul.f32 %v10321, %v10321
      %v10330 = vmul.f32 %v10322, %v10322
      %v10331 = vmul.f32 %v10323, %v10323
      %v10332 = vmul.f32 %v10324, %v10324
      %v10333 = vmul.f32 %v10325, %v10325
      %v10334 = vmul.f32 %v10326, %v10326
      %10343 = vrot.lane.b32.xlu0 %v10327, 8
      %v10344 = vpop.permute.xlu0 %10343
      %10345 = vrot.lane.b32.xlu0 %v10328, 8
      %v10346 = vpop.permute.xlu0 %10345
      %10347 = vrot.lane.b32.xlu0 %v10329, 8
      %v10348 = vpop.permute.xlu0 %10347
      %10349 = vrot.lane.b32.xlu0 %v10330, 8
      %v10350 = vpop.permute.xlu0 %10349
      %10351 = vrot.lane.b32.xlu0 %v10331, 8
      %v10352 = vpop.permute.xlu0 %10351
      %10353 = vrot.lane.b32.xlu0 %v10332, 8
      %v10354 = vpop.permute.xlu0 %10353
      %10355 = vrot.lane.b32.xlu0 %v10333, 8
      %v10356 = vpop.permute.xlu0 %10355
      %10357 = vrot.lane.b32.xlu0 %v10334, 8
      %v10358 = vpop.permute.xlu0 %10357
      %v10367 = vadd.f32 %v10311, %v10344
      %v10368 = vadd.f32 %v10312, %v10346
      %v10369 = vadd.f32 %v10313, %v10348
      %v10370 = vadd.f32 %v10314, %v10350
      %v10371 = vadd.f32 %v10315, %v10352
      %v10372 = vadd.f32 %v10316, %v10354
      %v10373 = vadd.f32 %v10317, %v10356
      %v10374 = vadd.f32 %v10318, %v10358
      %v10375 = vmul.f32 %v2242, 2.0
      %v10376 = vmul.f32 %v2243, 2.0
      %v10377 = vmul.f32 %v2244, 2.0
      %v10378 = vmul.f32 %v2245, 2.0
      %v10379 = vmul.f32 %v2246, 2.0
      %v10380 = vmul.f32 %v2247, 2.0
      %v10381 = vmul.f32 %v2248, 2.0
      %v10382 = vmul.f32 %v2249, 2.0
      %v10383 = vmul.f32 %v10375, %v2242
      %v10384 = vmul.f32 %v10376, %v2243
      %v10385 = vmul.f32 %v10377, %v2244
      %v10386 = vmul.f32 %v10378, %v2245
      %v10387 = vmul.f32 %v10379, %v2246
      %v10388 = vmul.f32 %v10380, %v2247
      %v10389 = vmul.f32 %v10381, %v2248
      %v10390 = vmul.f32 %v10382, %v2249
      %v10391 = vrcp.pop %v10383
      %v10392 = vmul.f32 %v10367, %v10391
      %v10393 = vrcp.pop %v10384
      %v10394 = vmul.f32 %v10368, %v10393
      %v10395 = vrcp.pop %v10385
      %v10396 = vmul.f32 %v10369, %v10395
      %v10397 = vrcp.pop %v10386
      %v10398 = vmul.f32 %v10370, %v10397
      %v10399 = vrcp.pop %v10387
      %v10400 = vmul.f32 %v10371, %v10399
      %v10401 = vrcp.pop %v10388
      %v10402 = vmul.f32 %v10372, %v10401
      %v10403 = vrcp.pop %v10389
      %v10404 = vmul.f32 %v10373, %v10403
      %v10405 = vrcp.pop %v10390
      %v10406 = vmul.f32 %v10374, %v10405
      %v10407 = vadd.f32 %v10303, %v10392
      %v10408 = vadd.f32 %v10304, %v10394
      %v10409 = vadd.f32 %v10305, %v10396
      %v10410 = vadd.f32 %v10306, %v10398
      %v10411 = vadd.f32 %v10307, %v10400
      %v10412 = vadd.f32 %v10308, %v10402
      %v10413 = vadd.f32 %v10309, %v10404
      %v10414 = vadd.f32 %v10310, %v10406
      %v10415 = vsub.f32 %v10407, 0.5
      %v10416 = vsub.f32 %v10408, 0.5
      %v10417 = vsub.f32 %v10409, 0.5
      %v10418 = vsub.f32 %v10410, 0.5
      %v10419 = vsub.f32 %v10411, 0.5
      %v10420 = vsub.f32 %v10412, 0.5
      %v10421 = vsub.f32 %v10413, 0.5
      %v10422 = vsub.f32 %v10414, 0.5
      %10431 = vrot.lane.b32.xlu0 %v10415, 120
      %v10432 = vpop.permute.xlu0 %10431
      %10433 = vrot.lane.b32.xlu0 %v10416, 120
      %v10434 = vpop.permute.xlu0 %10433
      %10435 = vrot.lane.b32.xlu0 %v10417, 120
      %v10436 = vpop.permute.xlu0 %10435
      %10437 = vrot.lane.b32.xlu0 %v10418, 120
      %v10438 = vpop.permute.xlu0 %10437
      %10439 = vrot.lane.b32.xlu0 %v10419, 120
      %v10440 = vpop.permute.xlu0 %10439
      %10441 = vrot.lane.b32.xlu0 %v10420, 120
      %v10442 = vpop.permute.xlu0 %10441
      %10443 = vrot.lane.b32.xlu0 %v10421, 120
      %v10444 = vpop.permute.xlu0 %10443
      %10445 = vrot.lane.b32.xlu0 %v10422, 120
      %v10446 = vpop.permute.xlu0 %10445
      %v10455 = vadd.f32 %v10263, %v10432
      %v10456 = vadd.f32 %v10264, %v10434
      %v10457 = vadd.f32 %v10265, %v10436
      %v10458 = vadd.f32 %v10266, %v10438
      %v10459 = vadd.f32 %v10267, %v10440
      %v10460 = vadd.f32 %v10268, %v10442
      %v10461 = vadd.f32 %v10269, %v10444
      %v10462 = vadd.f32 %v10270, %v10446
      %10463 = vst.msk [vmem:[%s735] sm:$0xff] %vm7295, %v10455
      %10464 = vst.msk [vmem:[%s735 + $0x8] sm:$0xff] %vm7295, %v10456
      %10465 = vst.msk [vmem:[%s735 + $0x10] sm:$0xff] %vm7295, %v10457
      %10466 = vst.msk [vmem:[%s735 + $0x18] sm:$0xff] %vm7295, %v10458
      %10467 = vst.msk [vmem:[%s735 + $0x20] sm:$0xff] %vm7295, %v10459
      %10468 = vst.msk [vmem:[%s735 + $0x28] sm:$0xff] %vm7295, %v10460
      %10469 = vst.msk [vmem:[%s735 + $0x30] sm:$0xff] %vm7295, %v10461
      %10470 = vst.msk [vmem:[%s735 + $0x38] sm:$0xff] %vm7295, %v10462
      %p10471 = scmp.eq.s32.totalorder %s38, 1
      // Predicated region
      $region105: #{generator_forward.1} parent=99 // pred_check
        %p10472 = pneg %p10471
      $region106: #{generator_forward.1} parent=99 // pred_check_branch
        %10474 = sbr.rel (%p10472) target = $region108
      $region107: #{generator_forward.1} parent=99 // pred_region
        %v10475 = vld [vmem:[#allocation7] sm:$0xff]
        %v10476 = vld [vmem:[#allocation7 + $0x8] sm:$0xff]
        %v10477 = vld [vmem:[#allocation7 + $0x10] sm:$0xff]
        %v10478 = vld [vmem:[#allocation7 + $0x18] sm:$0xff]
        %v10479 = vld [vmem:[#allocation7 + $0x20] sm:$0xff]
        %v10480 = vld [vmem:[#allocation7 + $0x28] sm:$0xff]
        %v10481 = vld [vmem:[#allocation7 + $0x30] sm:$0xff]
        %v10482 = vld [vmem:[#allocation7 + $0x38] sm:$0xff]
        %v10483 = vld [vmem:[#allocation7 + $0x40] sm:$0xff]
        %v10484 = vld [vmem:[#allocation7 + $0x48] sm:$0xff]
        %v10485 = vld [vmem:[#allocation7 + $0x50] sm:$0xff]
        %v10486 = vld [vmem:[#allocation7 + $0x58] sm:$0xff]
        %v10487 = vld [vmem:[#allocation7 + $0x60] sm:$0xff]
        %v10488 = vld [vmem:[#allocation7 + $0x68] sm:$0xff]
        %v10489 = vld [vmem:[#allocation7 + $0x70] sm:$0xff]
        %v10490 = vld [vmem:[#allocation7 + $0x78] sm:$0xff]
        %v10491 = vpack.c.bf16 %v10477, %v10475
        %v10492 = vpack.c.bf16 %v10478, %v10476
        %v10493 = vpack.c.bf16 %v10481, %v10479
        %v10494 = vpack.c.bf16 %v10482, %v10480
        %v10495 = vpack.c.bf16 %v10485, %v10483
        %v10496 = vpack.c.bf16 %v10486, %v10484
        %v10497 = vpack.c.bf16 %v10489, %v10487
        %v10498 = vpack.c.bf16 %v10490, %v10488
        %v10499 = vld [vmem:[%s18] sm:$0xf]
        %v10500 = vld [vmem:[%s18 + $0x4] sm:$0xf]
        %v10501 = vld [vmem:[%s18 + $0x8] sm:$0xf]
        %v10502 = vld [vmem:[%s18 + $0xc] sm:$0xf]
        %v10503 = vld [vmem:[%s18 + $0x10] sm:$0xf]
        %v10504 = vld [vmem:[%s18 + $0x14] sm:$0xf]
        %v10505 = vld [vmem:[%s18 + $0x18] sm:$0xf]
        %v10506 = vld [vmem:[%s18 + $0x1c] sm:$0xf]
        %v10507 = vld [vmem:[%s18 + $0x20] sm:$0xf]
        %v10508 = vld [vmem:[%s18 + $0x24] sm:$0xf]
        %v10509 = vld [vmem:[%s18 + $0x28] sm:$0xf]
        %v10510 = vld [vmem:[%s18 + $0x2c] sm:$0xf]
        %v10511 = vld [vmem:[%s18 + $0x30] sm:$0xf]
        %v10512 = vld [vmem:[%s18 + $0x34] sm:$0xf]
        %v10513 = vld [vmem:[%s18 + $0x38] sm:$0xf]
        %v10514 = vld [vmem:[%s18 + $0x3c] sm:$0xf]
        %v10515 = vld [vmem:[%s18 + $0x40] sm:$0xf]
        %v10516 = vld [vmem:[%s18 + $0x44] sm:$0xf]
        %v10517 = vld [vmem:[%s18 + $0x48] sm:$0xf]
        %v10518 = vld [vmem:[%s18 + $0x4c] sm:$0xf]
        %v10519 = vld [vmem:[%s18 + $0x50] sm:$0xf]
        %v10520 = vld [vmem:[%s18 + $0x54] sm:$0xf]
        %v10521 = vld [vmem:[%s18 + $0x58] sm:$0xf]
        %v10522 = vld [vmem:[%s18 + $0x5c] sm:$0xf]
        %v10523 = vld [vmem:[%s18 + $0x60] sm:$0xf]
        %v10524 = vld [vmem:[%s18 + $0x64] sm:$0xf]
        %v10525 = vld [vmem:[%s18 + $0x68] sm:$0xf]
        %v10526 = vld [vmem:[%s18 + $0x6c] sm:$0xf]
        %v10527 = vld [vmem:[%s18 + $0x70] sm:$0xf]
        %v10528 = vld [vmem:[%s18 + $0x74] sm:$0xf]
        %v10529 = vld [vmem:[%s18 + $0x78] sm:$0xf]
        %v10530 = vld [vmem:[%s18 + $0x7c] sm:$0xf]
        %v10531 = vld [vmem:[%s19] sm:$0x1]
        %v10533 = vlaneseq
        %v10534 = vshrl.u32 %v10533, 7
        %v10535 = vsub.s32 0, %v10534
        %v10536 = vrot.slane %v10531, %v10535
        %v10570 = vunpack.c.l.b16 %v10499
        %v10571 = vunpack.c.l.b16 %v10500
        %v10572 = vunpack.c.l.b16 %v10501
        %v10573 = vunpack.c.l.b16 %v10502
        %v10574 = vunpack.c.l.b16 %v10503
        %v10575 = vunpack.c.l.b16 %v10504
        %v10576 = vunpack.c.l.b16 %v10505
        %v10577 = vunpack.c.l.b16 %v10506
        %v10578 = vunpack.c.l.b16 %v10507
        %v10579 = vunpack.c.l.b16 %v10508
        %v10580 = vunpack.c.l.b16 %v10509
        %v10581 = vunpack.c.l.b16 %v10510
        %v10582 = vunpack.c.l.b16 %v10511
        %v10583 = vunpack.c.l.b16 %v10512
        %v10584 = vunpack.c.l.b16 %v10513
        %v10585 = vunpack.c.l.b16 %v10514
        %v10586 = vunpack.c.l.b16 %v10515
        %v10587 = vunpack.c.l.b16 %v10516
        %v10588 = vunpack.c.l.b16 %v10517
        %v10589 = vunpack.c.l.b16 %v10518
        %v10590 = vunpack.c.l.b16 %v10519
        %v10591 = vunpack.c.l.b16 %v10520
        %v10592 = vunpack.c.l.b16 %v10521
        %v10593 = vunpack.c.l.b16 %v10522
        %v10594 = vunpack.c.l.b16 %v10523
        %v10595 = vunpack.c.l.b16 %v10524
        %v10596 = vunpack.c.l.b16 %v10525
        %v10597 = vunpack.c.l.b16 %v10526
        %v10598 = vunpack.c.l.b16 %v10527
        %v10599 = vunpack.c.l.b16 %v10528
        %v10600 = vunpack.c.l.b16 %v10529
        %v10601 = vunpack.c.l.b16 %v10530
        %v10602 = vpack.c.b16 %v10571, %v10570
        %v10603 = vpack.c.b16 %v10573, %v10572
        %v10604 = vpack.c.b16 %v10575, %v10574
        %v10605 = vpack.c.b16 %v10577, %v10576
        %v10606 = vpack.c.b16 %v10579, %v10578
        %v10607 = vpack.c.b16 %v10581, %v10580
        %v10608 = vpack.c.b16 %v10583, %v10582
        %v10609 = vpack.c.b16 %v10585, %v10584
        %v10610 = vpack.c.b16 %v10587, %v10586
        %v10611 = vpack.c.b16 %v10589, %v10588
        %v10612 = vpack.c.b16 %v10591, %v10590
        %v10613 = vpack.c.b16 %v10593, %v10592
        %v10614 = vpack.c.b16 %v10595, %v10594
        %v10615 = vpack.c.b16 %v10597, %v10596
        %v10616 = vpack.c.b16 %v10599, %v10598
        %v10617 = vpack.c.b16 %v10601, %v10600
        %10634 = vmatprep.subr.bf16.mxu0 0
        %10635 = vmatpush1.bf16.msra.mxu0 %v10602
        %10636 = vmatprep.subr.bf16.mxu0 0
        %10637 = vmatpush1.bf16.msra.mxu0 %v10603
        %10638 = vmatprep.subr.bf16.mxu0 0
        %10639 = vmatpush1.bf16.msra.mxu0 %v10604
        %10640 = vmatprep.subr.bf16.mxu0 0
        %10641 = vmatpush1.bf16.msra.mxu0 %v10605
        %10642 = vmatprep.subr.bf16.mxu0 0
        %10643 = vmatpush1.bf16.msra.mxu0 %v10606
        %10644 = vmatprep.subr.bf16.mxu0 0
        %10645 = vmatpush1.bf16.msra.mxu0 %v10607
        %10646 = vmatprep.subr.bf16.mxu0 0
        %10647 = vmatpush1.bf16.msra.mxu0 %v10608
        %10648 = vmatprep.subr.bf16.mxu0 0
        %10649 = vmatpush1.bf16.msra.mxu0 %v10609
        %10650 = vmatprep.subr.bf16.mxu0 0
        %10651 = vmatpush1.bf16.msra.mxu0 %v10610
        %10652 = vmatprep.subr.bf16.mxu0 0
        %10653 = vmatpush1.bf16.msra.mxu0 %v10611
        %10654 = vmatprep.subr.bf16.mxu0 0
        %10655 = vmatpush1.bf16.msra.mxu0 %v10612
        %10656 = vmatprep.subr.bf16.mxu0 0
        %10657 = vmatpush1.bf16.msra.mxu0 %v10613
        %10658 = vmatprep.subr.bf16.mxu0 0
        %10659 = vmatpush1.bf16.msra.mxu0 %v10614
        %10660 = vmatprep.subr.bf16.mxu0 0
        %10661 = vmatpush1.bf16.msra.mxu0 %v10615
        %10662 = vmatprep.subr.bf16.mxu0 0
        %10663 = vmatpush1.bf16.msra.mxu0 %v10616
        %10664 = vmatprep.subr.bf16.mxu0 0
        %10665 = vmatpush1.bf16.msra.mxu0 %v10617
        %10666 = vmatprep.mubr.bf16.mxu0 %v10492
        %10667 = vmatmul.mubr.bf16.gmra.mrb[0].mxu0 %v10491
        %v10668 = vpop.f32.mrb[0].mxu0
        %v10669 = vadd.f32 %v10536, %v10668
        %v10670 = vpop.f32.mrb[0].mxu0
        %v10671 = vpop.f32.mrb[0].mxu0
        %v10672 = vadd.f32 %v10536, %v10671
        %v10673 = vpop.f32.mrb[0].mxu0
        %10674 = vmatprep.mubr.bf16.mxu0 %v10494
        %10675 = vmatmul.mubr.bf16.gmra.mrb[0].mxu0 %v10493
        %v10676 = vpop.f32.mrb[0].mxu0
        %v10677 = vadd.f32 %v10536, %v10676
        %v10678 = vpop.f32.mrb[0].mxu0
        %v10679 = vpop.f32.mrb[0].mxu0
        %v10680 = vadd.f32 %v10536, %v10679
        %v10681 = vpop.f32.mrb[0].mxu0
        %10682 = vmatprep.mubr.bf16.mxu0 %v10496
        %10683 = vmatmul.mubr.bf16.gmra.mrb[0].mxu0 %v10495
        %v10684 = vpop.f32.mrb[0].mxu0
        %v10685 = vadd.f32 %v10536, %v10684
        %v10686 = vpop.f32.mrb[0].mxu0
        %v10687 = vpop.f32.mrb[0].mxu0
        %v10688 = vadd.f32 %v10536, %v10687
        %v10689 = vpop.f32.mrb[0].mxu0
        %10690 = vmatprep.mubr.bf16.mxu0 %v10498
        %10691 = vmatmul.mubr.bf16.gmra.mrb[0].mxu0 %v10497
        %v10692 = vpop.f32.mrb[0].mxu0
        %v10693 = vadd.f32 %v10536, %v10692
        %v10694 = vpop.f32.mrb[0].mxu0
        %v10695 = vpop.f32.mrb[0].mxu0
        %v10696 = vadd.f32 %v10536, %v10695
        %v10697 = vpop.f32.mrb[0].mxu0
        %10698 = vdwg.mxu0
        %v10699 = vxor.u32 %v10669, 2147483648
        %v10700 = vxor.u32 %v10672, 2147483648
        %v10701 = vxor.u32 %v10677, 2147483648
        %v10702 = vxor.u32 %v10680, 2147483648
        %v10703 = vxor.u32 %v10685, 2147483648
        %v10704 = vxor.u32 %v10688, 2147483648
        %v10705 = vxor.u32 %v10693, 2147483648
        %v10706 = vxor.u32 %v10696, 2147483648
        %v10707 = vmul.f32 %v10699, 1.442695
        %v10708 = vpow.pop %v10707
        %v10709 = vmul.f32 %v10700, 1.442695
        %v10710 = vpow.pop %v10709
        %v10711 = vmul.f32 %v10701, 1.442695
        %v10712 = vpow.pop %v10711
        %v10713 = vmul.f32 %v10702, 1.442695
        %v10714 = vpow.pop %v10713
        %v10715 = vmul.f32 %v10703, 1.442695
        %v10716 = vpow.pop %v10715
        %v10717 = vmul.f32 %v10704, 1.442695
        %v10718 = vpow.pop %v10717
        %v10719 = vmul.f32 %v10705, 1.442695
        %v10720 = vpow.pop %v10719
        %v10721 = vmul.f32 %v10706, 1.442695
        %v10722 = vpow.pop %v10721
        %v10723 = vadd.f32 %v10708, 1.0
        %v10724 = vadd.f32 %v10710, 1.0
        %v10725 = vadd.f32 %v10712, 1.0
        %v10726 = vadd.f32 %v10714, 1.0
        %v10727 = vadd.f32 %v10716, 1.0
        %v10728 = vadd.f32 %v10718, 1.0
        %v10729 = vadd.f32 %v10720, 1.0
        %v10730 = vadd.f32 %v10722, 1.0
        %v10731 = vrcp.pop %v10723
        %v10732 = vmul.f32 1.0, %v10731
        %v10733 = vrcp.pop %v10724
        %v10734 = vmul.f32 1.0, %v10733
        %v10735 = vrcp.pop %v10725
        %v10736 = vmul.f32 1.0, %v10735
        %v10737 = vrcp.pop %v10726
        %v10738 = vmul.f32 1.0, %v10737
        %v10739 = vrcp.pop %v10727
        %v10740 = vmul.f32 1.0, %v10739
        %v10741 = vrcp.pop %v10728
        %v10742 = vmul.f32 1.0, %v10741
        %v10743 = vrcp.pop %v10729
        %v10744 = vmul.f32 1.0, %v10743
        %v10745 = vrcp.pop %v10730
        %v10746 = vmul.f32 1.0, %v10745
        %10747 = vst.msk [vmem:[%s730] sm:$0xff] %vm1480, %v10732
        %10748 = vst.msk [vmem:[%s730 + $0x8] sm:$0xff] %vm1480, %v10734
        %10749 = vst.msk [vmem:[%s730 + $0x10] sm:$0xff] %vm1480, %v10736
        %10750 = vst.msk [vmem:[%s730 + $0x18] sm:$0xff] %vm1480, %v10738
        %10751 = vst.msk [vmem:[%s730 + $0x20] sm:$0xff] %vm1480, %v10740
        %10752 = vst.msk [vmem:[%s730 + $0x28] sm:$0xff] %vm1480, %v10742
        %10753 = vst.msk [vmem:[%s730 + $0x30] sm:$0xff] %vm1480, %v10744
        %10754 = vst.msk [vmem:[%s730 + $0x38] sm:$0xff] %vm1480, %v10746
      $region108: #{generator_forward.1} parent=99 // pred_fallthru
        _
      %p10755 = scmp.lt.s32.totalorder %s37, 1
      %s10756 = scalar_select %p10755, %s37, 1
      %s10757 = smul.addr %s10756, 8
      %s10758 = smul.addr %s10757, 8
      %s10759 = scalar_lea.vmem %s20, %s10758
      %p10760 = scmp.lt.s32.totalorder %s37, 1
      %s10761 = scalar_select %p10760, %s37, 1
      %s10762 = smul.addr %s10761, 8
      %s10763 = smul.addr %s10762, 8
      %s10764 = scalar_lea.vmem %s21, %s10763
      // Predicated region
      $region109: #{generator_forward.1} parent=99 // pred_check
        %p10765 = pneg %p500
      $region110: #{generator_forward.1} parent=99 // pred_check_branch
        %10767 = sbr.rel (%p10765) target = $region112
      $region111: #{generator_forward.1} parent=99 // pred_region
        _
      $region112: #{generator_forward.1} parent=99 // pred_fallthru
        _
      // Predicated region
      $region113: #{generator_forward.1} parent=99 // pred_check
        %p10768 = pneg %p526
      $region114: #{generator_forward.1} parent=99 // pred_check_branch
        %10770 = sbr.rel (%p10768) target = $region116
      $region115: #{generator_forward.1} parent=99 // pred_region
        _
      $region116: #{generator_forward.1} parent=99 // pred_fallthru
        _
    $region100: #{generator_forward.1} parent=5 // pred_fallthru
      _
    %p10771 = scmp.le.s32.totalorder 2, %s28
    // Predicated region
    $region117: #{generator_forward.1} parent=5 // pred_check
      %p10772 = pneg %p10771
    $region118: #{generator_forward.1} parent=5 // pred_check_branch
      %10774 = sbr.rel (%p10772) target = $region120
    $region119: #{generator_forward.1} parent=5 // pred_region
      %s10775 = ssub.s32 %s28, 2
      // Predicated region
      $region121: #{generator_forward.1} parent=119 // pred_check
        %p10776 = pneg %p506
      $region122: #{generator_forward.1} parent=119 // pred_check_branch
        %10778 = sbr.rel (%p10776) target = $region124
      $region123: #{generator_forward.1} parent=119 // pred_region
        %p10779 = scmp.lt.s32.totalorder %s39, 1
        %s10780 = scalar_select %p10779, %s39, 1
        %s10781 = smul.addr %s10780, 8
        %s10782 = smul.addr %s10781, 8
        %s10783 = scalar_lea.vmem %s20, %s10782
      $region124: #{generator_forward.1} parent=119 // pred_fallthru
        _
      // Predicated region
      $region125: #{generator_forward.1} parent=119 // pred_check
        %p10784 = pneg %p532
      $region126: #{generator_forward.1} parent=119 // pred_check_branch
        %10786 = sbr.rel (%p10784) target = $region128
      $region127: #{generator_forward.1} parent=119 // pred_region
        %p10787 = scmp.lt.s32.totalorder %s39, 1
        %s10788 = scalar_select %p10787, %s39, 1
        %s10789 = smul.addr %s10788, 8
        %s10790 = smul.addr %s10789, 8
        %s10791 = scalar_lea.vmem %s21, %s10790
      $region128: #{generator_forward.1} parent=119 // pred_fallthru
        _
    $region120: #{generator_forward.1} parent=5 // pred_fallthru
      _
  $region6: #{generator_forward.1} parent=0 // loop_footer
    %s32 = sadd.s32 1, %s28
  $region7: #{generator_forward.1} parent=0 // loop_footer_branch
    %27 = sbr.rel target = $region3
  $region8: #{generator_forward.1} parent=0 // loop_exit
    _

</llo_original>
